<compile_context>
chip_gen: v6e
topology: v6e:2x2x1
jax: 0.10.0
libtpu: 0.0.40
codegen_flags: <defaults>
</compile_context>

<pallas_src>
import functools

import jax
import jax.numpy as jnp
from jax import lax
from jax.experimental import pallas as pl
from jax.experimental.pallas import tpu as pltpu

KSIZE = 21     # conv kernel size
PAD = 10       # conv padding ("same" length)
POOL_K = 3     # maxpool window
POOL_S = 2     # maxpool stride


def _round_up(x, m):
    return (x + m - 1) // m * m


def _residual_block_kernel(xe0_ref, xe1_ref, xo_ref, w1_ref, b1_ref,
                           w2_ref, b2_ref, o_ref,
                           ppad1_ref, ppad2_ref, h1_ref,
                           *, nb, nbuf, Lp, Lc, C1, C2, cdt):
    f32 = jnp.float32

    # Zero only the PAD-wide halo strips of the padded activation buffers
    # (their interiors are fully overwritten below).  Done every grid step
    # (cheap: 2*PAD lanes per slot) so it is also correct when the "parallel"
    # batch axis is sharded across TensorCores on megacore parts.
    for t in range(nbuf):
        ppad1_ref[t, :, 0:PAD] = jnp.zeros((C1, PAD), cdt)
        ppad1_ref[t, :, PAD + Lc:2 * PAD + Lc] = jnp.zeros((C1, PAD), cdt)
        ppad2_ref[t, :, 0:PAD] = jnp.zeros((C2, PAD), cdt)
        ppad2_ref[t, :, PAD + Lc:2 * PAD + Lc] = jnp.zeros((C2, PAD), cdt)

    # Lanes >= Lp are layout padding; h1 must be zero there before it feeds
    # conv2's padded buffer (the reference zero-pads that region).
    valid = lax.broadcasted_iota(jnp.int32, (1, Lc), 1) < Lp

    # Bias broadcasts hoisted out of the unrolled sample loop; they seed the
    # conv accumulators, so there is no separate per-sample "+ b" add.
    b1b = jnp.broadcast_to(b1_ref[...], (C2, Lc))
    b2b = jnp.broadcast_to(b2_ref[...], (C2, Lc))

    for s in range(nb):
        slot = s % nbuf   # double-buffer the padded scratches across samples

        # ---------- MaxPool1d(kernel_size=3, stride=2) ----------
        # p[:, j] = max(x[:, 2j], x[:, 2j+1], x[:, 2j+2]); all three streams
        # arrive lane-dense and zero-padded beyond Lp, so no masking needed.
        p = jnp.maximum(jnp.maximum(xe0_ref[s], xo_ref[s]), xe1_ref[s])
        ppad1_ref[slot, :, PAD:PAD + Lc] = p.astype(cdt)

        # ---------- conv1 (k=21, pad=10) + ReLU ----------
        # Direct form: 21 accumulating MXU matmuls straight from the padded
        # buffer (no im2col round trip through VMEM).
        acc1 = b1b
        for k in range(KSIZE):
            acc1 = acc1 + jnp.dot(w1_ref[k], ppad1_ref[slot, :, k:k + Lc],
                                  preferred_element_type=f32)
        h1 = jnp.maximum(acc1, 0.0)
        h1 = jnp.where(valid, h1, 0.0)            # zero the layout-pad lanes
        h1_ref[...] = h1                          # deliberate f32 spill (residual)
        ppad2_ref[slot, :, PAD:PAD + Lc] = h1.astype(cdt)

        # ---------- conv2 (k=21, pad=10) + ReLU + residual ----------
        acc2 = b2b
        for k in range(KSIZE):
            acc2 = acc2 + jnp.dot(w2_ref[k], ppad2_ref[slot, :, k:k + Lc],
                                  preferred_element_type=f32)
        y = jnp.maximum(acc2, 0.0) + h1_ref[...]  # reload the exact f32 residual
        o_ref[s] = y.astype(o_ref.dtype)


def _device_kind():
    try:
        return jax.devices()[0].device_kind.lower()
    except Exception:
        return ""


def _vmem_capacity_bytes(kind):
    try:
        cap = int(pltpu.get_tpu_info().vmem_capacity_bytes)
    except Exception:
        cap = 64 * 1024 * 1024              # assume the smallest (v7x per-TC)
    if "v7" in kind:
        cap = min(cap, 64 * 1024 * 1024)    # v7x: 64 MiB per TensorCore
    return min(cap, 128 * 1024 * 1024)


def residual_block(x, w1, b1, w2, b2, *,
                   compute_dtype=jnp.bfloat16, samples_per_block=None):
    """x: (N, C_in, L) f32; w1: (C_out, C_in, 21); b1: (C_out,);
    w2: (C_out, C_out, 21); b2: (C_out,).  Returns (N, C_out, Lp) in x.dtype.

    compute_dtype: dtype of the MXU matmul operands (accumulation is f32).
    """
    N, C_in, L = x.shape
    C_out = w1.shape[0]
    assert L >= POOL_K, (L, POOL_K)
    Lp = (L - POOL_K) // POOL_S + 1          # pooled / output length
    Lc = _round_up(Lp, 128)                  # lane-dense compute length
    C1 = _round_up(C_in, 8)                  # sublane-aligned channels
    C2 = _round_up(C_out, 8)
    cdt = jnp.dtype(compute_dtype)

    kind = _device_kind()
    # v5e has no bf16 VALU: keep the pooling stream f32 there; the MXU
    # operands stay in compute_dtype either way (cast at the ppad write).
    is_v5e = ("v5e" in kind) or ("v5 lite" in kind) or ("v5lite" in kind)
    in_dt = jnp.dtype(jnp.float32) if is_v5e else cdt
    in_es = in_dt.itemsize
    es = cdt.itemsize

    # ---- layout plumbing (strided slices / pads only, no compute) ----------
    # Three lane-dense streams: x_even[j], x_even[j+1], x_odd[j] for j < Lp.
    xe0 = x[:, :, 0:2 * Lp:2].astype(in_dt)             # x[2j]
    xe1 = x[:, :, 2:2 * Lp + 1:2].astype(in_dt)         # x[2j+2]
    xo = x[:, :, 1:2 * Lp:2].astype(in_dt)              # x[2j+1]
    padc = ((0, 0), (0, C1 - C_in), (0, Lc - Lp))
    xe0 = jnp.pad(xe0, padc)
    xe1 = jnp.pad(xe1, padc)
    xo = jnp.pad(xo, padc)

    # Weights in tap-major layout (K, C_out_pad, C_in_pad); biases (C2, 1) f32.
    def prep_w(w, cin_pad):
        co, cin, _ = w.shape
        wt = jnp.transpose(w, (2, 0, 1))                 # (K, co, cin)
        wt = jnp.pad(wt, ((0, 0), (0, C2 - co), (0, cin_pad - cin)))
        return wt.astype(cdt)

    w1t = prep_w(w1, C1)                                 # (K, C2, C1)
    w2t = prep_w(w2, C2)                                 # (K, C2, C2)
    b1p = jnp.pad(b1, (0, C2 - C_out)).reshape(C2, 1).astype(jnp.float32)
    b2p = jnp.pad(b2, (0, C2 - C_out)).reshape(C2, 1).astype(jnp.float32)

    # ---- samples per grid step ---------------------------------------------
    cap = _vmem_capacity_bytes(kind)
    n_tc = 2 if ("v7" in kind or "v4" in kind) else 1    # TensorCores per chip
    # Double-buffered in/out block bytes for one sample.
    per_sample_blk = 2 * (3 * C1 * Lc * in_es + C2 * Lc * x.dtype.itemsize)
    if samples_per_block is None:
        nb = 1
        for cand in (8, 4, 2):
            if (N % cand == 0 and N // cand >= n_tc
                    and cand * per_sample_blk <= cap // 3):
                nb = cand
                break
    else:
        nb = samples_per_block
    assert N % nb == 0, (N, nb)
    nbuf = 2 if nb > 1 else 1

    kernel = functools.partial(_residual_block_kernel, nb=nb, nbuf=nbuf,
                               Lp=Lp, Lc=Lc, C1=C1, C2=C2, cdt=cdt)

    # ---- VMEM budget: double-buffered blocks + resident weights + scratch ---
    def lanes(n):
        return _round_up(max(n, 1), 128)

    Lpad = _round_up(Lc + 2 * PAD, 128)
    need = (nb * per_sample_blk                                   # in/out blocks
            + KSIZE * C2 * (lanes(C1) + lanes(C2)) * es           # resident weights
            + 2 * C2 * lanes(1) * 4                               # resident biases
            + nbuf * (C1 + C2) * Lpad * es                        # padded scratches
            + C2 * Lc * 4)                                        # f32 residual stash
    vmem_limit = int(min(cap - 8 * 1024 * 1024,
                         max(need * 5 // 4 + (2 << 20), 32 * 1024 * 1024)))
    vmem_limit = max(vmem_limit, 8 * 1024 * 1024)

    vmem_space = pltpu.MemorySpace.VMEM

    out = pl.pallas_call(
        kernel,
        out_shape=jax.ShapeDtypeStruct((N, C2, Lc), x.dtype),
        grid_spec=pltpu.PrefetchScalarGridSpec(
            num_scalar_prefetch=0,
            grid=(N // nb,),
            in_specs=[
                pl.BlockSpec((nb, C1, Lc), lambda b: (b, 0, 0)),   # x_even[j]
                pl.BlockSpec((nb, C1, Lc), lambda b: (b, 0, 0)),   # x_even[j+1]
                pl.BlockSpec((nb, C1, Lc), lambda b: (b, 0, 0)),   # x_odd[j]
                pl.BlockSpec(memory_space=vmem_space),             # w1 (resident)
                pl.BlockSpec(memory_space=vmem_space),             # b1 (resident)
                pl.BlockSpec(memory_space=vmem_space),             # w2 (resident)
                pl.BlockSpec(memory_space=vmem_space),             # b2 (resident)
            ],
            out_specs=pl.BlockSpec((nb, C2, Lc), lambda b: (b, 0, 0)),
            scratch_shapes=[
                pltpu.VMEM((nbuf, C1, Lc + 2 * PAD), cdt),    # padded pooled
                pltpu.VMEM((nbuf, C2, Lc + 2 * PAD), cdt),    # padded h1
                pltpu.VMEM((C2, Lc), jnp.float32),            # f32 residual stash
            ],
        ),
        compiler_params=pltpu.CompilerParams(
            dimension_semantics=("parallel",),
            vmem_limit_bytes=vmem_limit,
        ),
    )(xe0, xe1, xo, w1t, b1p, w2t, b2p)

    # TODO(synk): for extremely long sequences (Lc in the 100K+ range) add a
    # length-axis grid dimension with a 2*PAD halo so the (C1+C2)*Lc padded
    # scratches also stay bounded; dropping im2col already removed the
    # dominant KSIZE*(C1+C2)*Lc VMEM term, so it is not needed for typical L.

    # Strip the channel / lane padding.
    return out[:, :C_out, :Lp]


def ref_forward(x, w1, b1, w2, b2):
    """Pure-JAX reference matching the PyTorch module."""
    p = lax.reduce_window(x, -jnp.inf, lax.max,
                          (1, 1, POOL_K), (1, 1, POOL_S), 'VALID')

    def conv(h, w, b):
        y = lax.conv_general_dilated(h, w, window_strides=(1,),
                                     padding=[(PAD, PAD)],
                                     dimension_numbers=('NCH', 'OIH', 'NCH'))
        return y + b[None, :, None]

    h1 = jax.nn.relu(conv(p, w1, b1))
    y = jax.nn.relu(conv(h1, w2, b2))
    return y + h1


if __name__ == "__main__":
    N, C_in, C_out, L = 2, 4, 8, 64

    key = jax.random.PRNGKey(0)
    kx, kw1, kb1, kw2, kb2 = jax.random.split(key, 5)

    x = jax.random.normal(kx, (N, C_in, L), dtype=jnp.float32)
    w1 = 0.05 * jax.random.normal(kw1, (C_out, C_in, KSIZE), dtype=jnp.float32)
    b1 = 0.05 * jax.random.normal(kb1, (C_out,), dtype=jnp.float32)
    w2 = 0.05 * jax.random.normal(kw2, (C_out, C_out, KSIZE), dtype=jnp.float32)
    b2 = 0.05 * jax.random.normal(kb2, (C_out,), dtype=jnp.float32)

    expected = jax.block_until_ready(ref_forward(x, w1, b1, w2, b2))

    # Exact path: f32 MXU operands (tight tolerance).
    out_f32 = jax.block_until_ready(
        residual_block(x, w1, b1, w2, b2, compute_dtype=jnp.float32))
    assert out_f32.shape == expected.shape, (out_f32.shape, expected.shape)
    assert jnp.allclose(out_f32, expected, atol=2e-3, rtol=2e-3), \
        float(jnp.max(jnp.abs(out_f32 - expected)))

    # Fast path (default): bf16 MXU operands, f32 accumulation.
    out_bf16 = jax.block_until_ready(residual_block(x, w1, b1, w2, b2))
    assert out_bf16.shape == expected.shape, (out_bf16.shape, expected.shape)
    assert jnp.allclose(out_bf16, expected, atol=5e-2, rtol=5e-2), \
        float(jnp.max(jnp.abs(out_bf16 - expected)))

    print("KERNEL_OK")
</pallas_src>

<mosaic_0001>
module attributes {stable_mosaic.version = 11 : i64} {
  func.func @_residual_block_kernel(%arg0: i32, %arg1: memref<2x8x128xf32, #tpu.memory_space<vmem>>, %arg2: memref<2x8x128xf32, #tpu.memory_space<vmem>>, %arg3: memref<2x8x128xf32, #tpu.memory_space<vmem>>, %arg4: memref<21x8x8xf32, #tpu.memory_space<vmem>>, %arg5: memref<8x1xf32, #tpu.memory_space<vmem>>, %arg6: memref<21x8x8xf32, #tpu.memory_space<vmem>>, %arg7: memref<8x1xf32, #tpu.memory_space<vmem>>, %arg8: memref<2x8x128xf32, #tpu.memory_space<vmem>>, %arg9: memref<2x8x148xf32, #tpu.memory_space<vmem>>, %arg10: memref<2x8x148xf32, #tpu.memory_space<vmem>>, %arg11: memref<8x128xf32, #tpu.memory_space<vmem>>) attributes {dimension_semantics = [#tpu.dimension_semantics<parallel>], iteration_bounds = array<i64: 1>, scalar_prefetch = 0 : i64, scratch_operands = 3 : i64, tpu.core_type = #tpu.core_type<tc>, window_params = [{transform_indices = @transform_0, window_bounds = array<i64: 2, 8, 128>}, {transform_indices = @transform_1, window_bounds = array<i64: 2, 8, 128>}, {transform_indices = @transform_2, window_bounds = array<i64: 2, 8, 128>}, {pipeline_mode = #tpu.pipeline_mode<synchronous>, transform_indices = @transform_3, window_bounds = array<i64: 21, 8, 8>}, {pipeline_mode = #tpu.pipeline_mode<synchronous>, transform_indices = @transform_4, window_bounds = array<i64: 8, 1>}, {pipeline_mode = #tpu.pipeline_mode<synchronous>, transform_indices = @transform_5, window_bounds = array<i64: 21, 8, 8>}, {pipeline_mode = #tpu.pipeline_mode<synchronous>, transform_indices = @transform_6, window_bounds = array<i64: 8, 1>}, {transform_indices = @transform_7, window_bounds = array<i64: 2, 8, 128>}]} {
    %cst = arith.constant 0.000000e+00 : f32
    %0 = vector.broadcast %cst : f32 to vector<8x10xf32>
    %c0 = arith.constant 0 : index
    %c0_0 = arith.constant 0 : index
    %c0_1 = arith.constant 0 : index
    %1 = vector.load %arg9[%c0, %c0_0, %c0_1] : memref<2x8x148xf32, #tpu.memory_space<vmem>>, vector<1x8x10xf32>
    %2 = vector.shape_cast %1 : vector<1x8x10xf32> to vector<8x10xf32>
    %3 = vector.shape_cast %0 : vector<8x10xf32> to vector<1x8x10xf32>
    tpu.vector_store %arg9[%c0, %c0_0, %c0_1], %3 {strides = array<i32>} : memref<2x8x148xf32, #tpu.memory_space<vmem>>, vector<1x8x10xf32>,
    %cst_2 = arith.constant 0.000000e+00 : f32
    %4 = vector.broadcast %cst_2 : f32 to vector<8x10xf32>
    %c0_3 = arith.constant 0 : index
    %c0_4 = arith.constant 0 : index
    %c138 = arith.constant 138 : index
    %5 = vector.load %arg9[%c0_3, %c0_4, %c138] : memref<2x8x148xf32, #tpu.memory_space<vmem>>, vector<1x8x10xf32>
    %6 = vector.shape_cast %5 : vector<1x8x10xf32> to vector<8x10xf32>
    %7 = vector.shape_cast %4 : vector<8x10xf32> to vector<1x8x10xf32>
    tpu.vector_store %arg9[%c0_3, %c0_4, %c138], %7 {strides = array<i32>} : memref<2x8x148xf32, #tpu.memory_space<vmem>>, vector<1x8x10xf32>,
    %cst_5 = arith.constant 0.000000e+00 : f32
    %8 = vector.broadcast %cst_5 : f32 to vector<8x10xf32>
    %c0_6 = arith.constant 0 : index
    %c0_7 = arith.constant 0 : index
    %c0_8 = arith.constant 0 : index
    %9 = vector.load %arg10[%c0_6, %c0_7, %c0_8] : memref<2x8x148xf32, #tpu.memory_space<vmem>>, vector<1x8x10xf32>
    %10 = vector.shape_cast %9 : vector<1x8x10xf32> to vector<8x10xf32>
    %11 = vector.shape_cast %8 : vector<8x10xf32> to vector<1x8x10xf32>
    tpu.vector_store %arg10[%c0_6, %c0_7, %c0_8], %11 {strides = array<i32>} : memref<2x8x148xf32, #tpu.memory_space<vmem>>, vector<1x8x10xf32>,
    %cst_9 = arith.constant 0.000000e+00 : f32
    %12 = vector.broadcast %cst_9 : f32 to vector<8x10xf32>
    %c0_10 = arith.constant 0 : index
    %c0_11 = arith.constant 0 : index
    %c138_12 = arith.constant 138 : index
    %13 = vector.load %arg10[%c0_10, %c0_11, %c138_12] : memref<2x8x148xf32, #tpu.memory_space<vmem>>, vector<1x8x10xf32>
    %14 = vector.shape_cast %13 : vector<1x8x10xf32> to vector<8x10xf32>
    %15 = vector.shape_cast %12 : vector<8x10xf32> to vector<1x8x10xf32>
    tpu.vector_store %arg10[%c0_10, %c0_11, %c138_12], %15 {strides = array<i32>} : memref<2x8x148xf32, #tpu.memory_space<vmem>>, vector<1x8x10xf32>,
    %cst_13 = arith.constant 0.000000e+00 : f32
    %16 = vector.broadcast %cst_13 : f32 to vector<8x10xf32>
    %c1 = arith.constant 1 : index
    %c0_14 = arith.constant 0 : index
    %c0_15 = arith.constant 0 : index
    %17 = vector.load %arg9[%c1, %c0_14, %c0_15] : memref<2x8x148xf32, #tpu.memory_space<vmem>>, vector<1x8x10xf32>
    %18 = vector.shape_cast %17 : vector<1x8x10xf32> to vector<8x10xf32>
    %19 = vector.shape_cast %16 : vector<8x10xf32> to vector<1x8x10xf32>
    tpu.vector_store %arg9[%c1, %c0_14, %c0_15], %19 {strides = array<i32>} : memref<2x8x148xf32, #tpu.memory_space<vmem>>, vector<1x8x10xf32>,
    %cst_16 = arith.constant 0.000000e+00 : f32
    %20 = vector.broadcast %cst_16 : f32 to vector<8x10xf32>
    %c1_17 = arith.constant 1 : index
    %c0_18 = arith.constant 0 : index
    %c138_19 = arith.constant 138 : index
    %21 = vector.load %arg9[%c1_17, %c0_18, %c138_19] : memref<2x8x148xf32, #tpu.memory_space<vmem>>, vector<1x8x10xf32>
    %22 = vector.shape_cast %21 : vector<1x8x10xf32> to vector<8x10xf32>
    %23 = vector.shape_cast %20 : vector<8x10xf32> to vector<1x8x10xf32>
    tpu.vector_store %arg9[%c1_17, %c0_18, %c138_19], %23 {strides = array<i32>} : memref<2x8x148xf32, #tpu.memory_space<vmem>>, vector<1x8x10xf32>,
    %cst_20 = arith.constant 0.000000e+00 : f32
    %24 = vector.broadcast %cst_20 : f32 to vector<8x10xf32>
    %c1_21 = arith.constant 1 : index
    %c0_22 = arith.constant 0 : index
    %c0_23 = arith.constant 0 : index
    %25 = vector.load %arg10[%c1_21, %c0_22, %c0_23] : memref<2x8x148xf32, #tpu.memory_space<vmem>>, vector<1x8x10xf32>
    %26 = vector.shape_cast %25 : vector<1x8x10xf32> to vector<8x10xf32>
    %27 = vector.shape_cast %24 : vector<8x10xf32> to vector<1x8x10xf32>
    tpu.vector_store %arg10[%c1_21, %c0_22, %c0_23], %27 {strides = array<i32>} : memref<2x8x148xf32, #tpu.memory_space<vmem>>, vector<1x8x10xf32>,
    %cst_24 = arith.constant 0.000000e+00 : f32
    %28 = vector.broadcast %cst_24 : f32 to vector<8x10xf32>
    %c1_25 = arith.constant 1 : index
    %c0_26 = arith.constant 0 : index
    %c138_27 = arith.constant 138 : index
    %29 = vector.load %arg10[%c1_25, %c0_26, %c138_27] : memref<2x8x148xf32, #tpu.memory_space<vmem>>, vector<1x8x10xf32>
    %30 = vector.shape_cast %29 : vector<1x8x10xf32> to vector<8x10xf32>
    %31 = vector.shape_cast %28 : vector<8x10xf32> to vector<1x8x10xf32>
    tpu.vector_store %arg10[%c1_25, %c0_26, %c138_27], %31 {strides = array<i32>} : memref<2x8x148xf32, #tpu.memory_space<vmem>>, vector<1x8x10xf32>,
    %32 = tpu.iota {dimensions = array<i32: 1>} : vector<1x128xi32>
    %c31_i32 = arith.constant 31 : i32
    %33 = vector.broadcast %c31_i32 : i32 to vector<1x128xi32>
    %34 = arith.cmpi slt, %32, %33 : vector<1x128xi32>
    %c0_28 = arith.constant 0 : index
    %c0_29 = arith.constant 0 : index
    %35 = vector.load %arg5[%c0_28, %c0_29] : memref<8x1xf32, #tpu.memory_space<vmem>>, vector<8x1xf32>
    %36 = vector.shape_cast %35 : vector<8x1xf32> to vector<8x1xf32>
    %37 = vector.broadcast %36 : vector<8x1xf32> to vector<8x128xf32>
    %c0_30 = arith.constant 0 : index
    %c0_31 = arith.constant 0 : index
    %38 = vector.load %arg7[%c0_30, %c0_31] : memref<8x1xf32, #tpu.memory_space<vmem>>, vector<8x1xf32>
    %39 = vector.shape_cast %38 : vector<8x1xf32> to vector<8x1xf32>
    %40 = vector.broadcast %39 : vector<8x1xf32> to vector<8x128xf32>
    %c0_32 = arith.constant 0 : index
    %c0_33 = arith.constant 0 : index
    %c0_34 = arith.constant 0 : index
    %41 = vector.load %arg1[%c0_32, %c0_33, %c0_34] : memref<2x8x128xf32, #tpu.memory_space<vmem>>, vector<1x8x128xf32>
    %42 = vector.shape_cast %41 : vector<1x8x128xf32> to vector<8x128xf32>
    %c0_35 = arith.constant 0 : index
    %c0_36 = arith.constant 0 : index
    %c0_37 = arith.constant 0 : index
    %43 = vector.load %arg3[%c0_35, %c0_36, %c0_37] : memref<2x8x128xf32, #tpu.memory_space<vmem>>, vector<1x8x128xf32>
    %44 = vector.shape_cast %43 : vector<1x8x128xf32> to vector<8x128xf32>
    %45 = arith.maximumf %42, %44 : vector<8x128xf32>
    %c0_38 = arith.constant 0 : index
    %c0_39 = arith.constant 0 : index
    %c0_40 = arith.constant 0 : index
    %46 = vector.load %arg2[%c0_38, %c0_39, %c0_40] : memref<2x8x128xf32, #tpu.memory_space<vmem>>, vector<1x8x128xf32>
    %47 = vector.shape_cast %46 : vector<1x8x128xf32> to vector<8x128xf32>
    %48 = arith.maximumf %45, %47 : vector<8x128xf32>
    %c0_41 = arith.constant 0 : index
    %c0_42 = arith.constant 0 : index
    %c10 = arith.constant 10 : index
    %49 = vector.load %arg9[%c0_41, %c0_42, %c10] : memref<2x8x148xf32, #tpu.memory_space<vmem>>, vector<1x8x128xf32>
    %50 = vector.shape_cast %49 : vector<1x8x128xf32> to vector<8x128xf32>
    %51 = vector.shape_cast %48 : vector<8x128xf32> to vector<1x8x128xf32>
    tpu.vector_store %arg9[%c0_41, %c0_42, %c10], %51 {strides = array<i32>} : memref<2x8x148xf32, #tpu.memory_space<vmem>>, vector<1x8x128xf32>,
    %c0_43 = arith.constant 0 : index
    %c0_44 = arith.constant 0 : index
    %c0_45 = arith.constant 0 : index
    %52 = vector.load %arg4[%c0_43, %c0_44, %c0_45] : memref<21x8x8xf32, #tpu.memory_space<vmem>>, vector<1x8x8xf32>
    %53 = vector.shape_cast %52 : vector<1x8x8xf32> to vector<8x8xf32>
    %c0_46 = arith.constant 0 : index
    %c0_47 = arith.constant 0 : index
    %c0_48 = arith.constant 0 : index
    %54 = vector.load %arg9[%c0_46, %c0_47, %c0_48] : memref<2x8x148xf32, #tpu.memory_space<vmem>>, vector<1x8x128xf32>
    %55 = vector.shape_cast %54 : vector<1x8x128xf32> to vector<8x128xf32>
    %cst_49 = arith.constant dense<0.000000e+00> : vector<8x128xf32>
    %56 = tpu.matmul %53, %55, %cst_49 {dimension_numbers = #tpu.dot_dimension_numbers<[1], [0], [0], [1], [0, 0, 1, 1], [], []>} : vector<8x8xf32>, vector<8x128xf32>, vector<8x128xf32> -> vector<8x128xf32>
    %57 = arith.addf %37, %56 : vector<8x128xf32>
    %c1_50 = arith.constant 1 : index
    %c0_51 = arith.constant 0 : index
    %c0_52 = arith.constant 0 : index
    %58 = vector.load %arg4[%c1_50, %c0_51, %c0_52] : memref<21x8x8xf32, #tpu.memory_space<vmem>>, vector<1x8x8xf32>
    %59 = vector.shape_cast %58 : vector<1x8x8xf32> to vector<8x8xf32>
    %c0_53 = arith.constant 0 : index
    %c0_54 = arith.constant 0 : index
    %c1_55 = arith.constant 1 : index
    %60 = vector.load %arg9[%c0_53, %c0_54, %c1_55] : memref<2x8x148xf32, #tpu.memory_space<vmem>>, vector<1x8x128xf32>
    %61 = vector.shape_cast %60 : vector<1x8x128xf32> to vector<8x128xf32>
    %cst_56 = arith.constant dense<0.000000e+00> : vector<8x128xf32>
    %62 = tpu.matmul %59, %61, %cst_56 {dimension_numbers = #tpu.dot_dimension_numbers<[1], [0], [0], [1], [0, 0, 1, 1], [], []>} : vector<8x8xf32>, vector<8x128xf32>, vector<8x128xf32> -> vector<8x128xf32>
    %63 = arith.addf %57, %62 : vector<8x128xf32>
    %c2 = arith.constant 2 : index
    %c0_57 = arith.constant 0 : index
    %c0_58 = arith.constant 0 : index
    %64 = vector.load %arg4[%c2, %c0_57, %c0_58] : memref<21x8x8xf32, #tpu.memory_space<vmem>>, vector<1x8x8xf32>
    %65 = vector.shape_cast %64 : vector<1x8x8xf32> to vector<8x8xf32>
    %c0_59 = arith.constant 0 : index
    %c0_60 = arith.constant 0 : index
    %c2_61 = arith.constant 2 : index
    %66 = vector.load %arg9[%c0_59, %c0_60, %c2_61] : memref<2x8x148xf32, #tpu.memory_space<vmem>>, vector<1x8x128xf32>
    %67 = vector.shape_cast %66 : vector<1x8x128xf32> to vector<8x128xf32>
    %cst_62 = arith.constant dense<0.000000e+00> : vector<8x128xf32>
    %68 = tpu.matmul %65, %67, %cst_62 {dimension_numbers = #tpu.dot_dimension_numbers<[1], [0], [0], [1], [0, 0, 1, 1], [], []>} : vector<8x8xf32>, vector<8x128xf32>, vector<8x128xf32> -> vector<8x128xf32>
    %69 = arith.addf %63, %68 : vector<8x128xf32>
    %c3 = arith.constant 3 : index
    %c0_63 = arith.constant 0 : index
    %c0_64 = arith.constant 0 : index
    %70 = vector.load %arg4[%c3, %c0_63, %c0_64] : memref<21x8x8xf32, #tpu.memory_space<vmem>>, vector<1x8x8xf32>
    %71 = vector.shape_cast %70 : vector<1x8x8xf32> to vector<8x8xf32>
    %c0_65 = arith.constant 0 : index
    %c0_66 = arith.constant 0 : index
    %c3_67 = arith.constant 3 : index
    %72 = vector.load %arg9[%c0_65, %c0_66, %c3_67] : memref<2x8x148xf32, #tpu.memory_space<vmem>>, vector<1x8x128xf32>
    %73 = vector.shape_cast %72 : vector<1x8x128xf32> to vector<8x128xf32>
    %cst_68 = arith.constant dense<0.000000e+00> : vector<8x128xf32>
    %74 = tpu.matmul %71, %73, %cst_68 {dimension_numbers = #tpu.dot_dimension_numbers<[1], [0], [0], [1], [0, 0, 1, 1], [], []>} : vector<8x8xf32>, vector<8x128xf32>, vector<8x128xf32> -> vector<8x128xf32>
    %75 = arith.addf %69, %74 : vector<8x128xf32>
    %c4 = arith.constant 4 : index
    %c0_69 = arith.constant 0 : index
    %c0_70 = arith.constant 0 : index
    %76 = vector.load %arg4[%c4, %c0_69, %c0_70] : memref<21x8x8xf32, #tpu.memory_space<vmem>>, vector<1x8x8xf32>
    %77 = vector.shape_cast %76 : vector<1x8x8xf32> to vector<8x8xf32>
    %c0_71 = arith.constant 0 : index
    %c0_72 = arith.constant 0 : index
    %c4_73 = arith.constant 4 : index
    %78 = vector.load %arg9[%c0_71, %c0_72, %c4_73] : memref<2x8x148xf32, #tpu.memory_space<vmem>>, vector<1x8x128xf32>
    %79 = vector.shape_cast %78 : vector<1x8x128xf32> to vector<8x128xf32>
    %cst_74 = arith.constant dense<0.000000e+00> : vector<8x128xf32>
    %80 = tpu.matmul %77, %79, %cst_74 {dimension_numbers = #tpu.dot_dimension_numbers<[1], [0], [0], [1], [0, 0, 1, 1], [], []>} : vector<8x8xf32>, vector<8x128xf32>, vector<8x128xf32> -> vector<8x128xf32>
    %81 = arith.addf %75, %80 : vector<8x128xf32>
    %c5 = arith.constant 5 : index
    %c0_75 = arith.constant 0 : index
    %c0_76 = arith.constant 0 : index
    %82 = vector.load %arg4[%c5, %c0_75, %c0_76] : memref<21x8x8xf32, #tpu.memory_space<vmem>>, vector<1x8x8xf32>
    %83 = vector.shape_cast %82 : vector<1x8x8xf32> to vector<8x8xf32>
    %c0_77 = arith.constant 0 : index
    %c0_78 = arith.constant 0 : index
    %c5_79 = arith.constant 5 : index
    %84 = vector.load %arg9[%c0_77, %c0_78, %c5_79] : memref<2x8x148xf32, #tpu.memory_space<vmem>>, vector<1x8x128xf32>
    %85 = vector.shape_cast %84 : vector<1x8x128xf32> to vector<8x128xf32>
    %cst_80 = arith.constant dense<0.000000e+00> : vector<8x128xf32>
    %86 = tpu.matmul %83, %85, %cst_80 {dimension_numbers = #tpu.dot_dimension_numbers<[1], [0], [0], [1], [0, 0, 1, 1], [], []>} : vector<8x8xf32>, vector<8x128xf32>, vector<8x128xf32> -> vector<8x128xf32>
    %87 = arith.addf %81, %86 : vector<8x128xf32>
    %c6 = arith.constant 6 : index
    %c0_81 = arith.constant 0 : index
    %c0_82 = arith.constant 0 : index
    %88 = vector.load %arg4[%c6, %c0_81, %c0_82] : memref<21x8x8xf32, #tpu.memory_space<vmem>>, vector<1x8x8xf32>
    %89 = vector.shape_cast %88 : vector<1x8x8xf32> to vector<8x8xf32>
    %c0_83 = arith.constant 0 : index
    %c0_84 = arith.constant 0 : index
    %c6_85 = arith.constant 6 : index
    %90 = vector.load %arg9[%c0_83, %c0_84, %c6_85] : memref<2x8x148xf32, #tpu.memory_space<vmem>>, vector<1x8x128xf32>
    %91 = vector.shape_cast %90 : vector<1x8x128xf32> to vector<8x128xf32>
    %cst_86 = arith.constant dense<0.000000e+00> : vector<8x128xf32>
    %92 = tpu.matmul %89, %91, %cst_86 {dimension_numbers = #tpu.dot_dimension_numbers<[1], [0], [0], [1], [0, 0, 1, 1], [], []>} : vector<8x8xf32>, vector<8x128xf32>, vector<8x128xf32> -> vector<8x128xf32>
    %93 = arith.addf %87, %92 : vector<8x128xf32>
    %c7 = arith.constant 7 : index
    %c0_87 = arith.constant 0 : index
    %c0_88 = arith.constant 0 : index
    %94 = vector.load %arg4[%c7, %c0_87, %c0_88] : memref<21x8x8xf32, #tpu.memory_space<vmem>>, vector<1x8x8xf32>
    %95 = vector.shape_cast %94 : vector<1x8x8xf32> to vector<8x8xf32>
    %c0_89 = arith.constant 0 : index
    %c0_90 = arith.constant 0 : index
    %c7_91 = arith.constant 7 : index
    %96 = vector.load %arg9[%c0_89, %c0_90, %c7_91] : memref<2x8x148xf32, #tpu.memory_space<vmem>>, vector<1x8x128xf32>
    %97 = vector.shape_cast %96 : vector<1x8x128xf32> to vector<8x128xf32>
    %cst_92 = arith.constant dense<0.000000e+00> : vector<8x128xf32>
    %98 = tpu.matmul %95, %97, %cst_92 {dimension_numbers = #tpu.dot_dimension_numbers<[1], [0], [0], [1], [0, 0, 1, 1], [], []>} : vector<8x8xf32>, vector<8x128xf32>, vector<8x128xf32> -> vector<8x128xf32>
    %99 = arith.addf %93, %98 : vector<8x128xf32>
    %c8 = arith.constant 8 : index
    %c0_93 = arith.constant 0 : index
    %c0_94 = arith.constant 0 : index
    %100 = vector.load %arg4[%c8, %c0_93, %c0_94] : memref<21x8x8xf32, #tpu.memory_space<vmem>>, vector<1x8x8xf32>
    %101 = vector.shape_cast %100 : vector<1x8x8xf32> to vector<8x8xf32>
    %c0_95 = arith.constant 0 : index
    %c0_96 = arith.constant 0 : index
    %c8_97 = arith.constant 8 : index
    %102 = vector.load %arg9[%c0_95, %c0_96, %c8_97] : memref<2x8x148xf32, #tpu.memory_space<vmem>>, vector<1x8x128xf32>
    %103 = vector.shape_cast %102 : vector<1x8x128xf32> to vector<8x128xf32>
    %cst_98 = arith.constant dense<0.000000e+00> : vector<8x128xf32>
    %104 = tpu.matmul %101, %103, %cst_98 {dimension_numbers = #tpu.dot_dimension_numbers<[1], [0], [0], [1], [0, 0, 1, 1], [], []>} : vector<8x8xf32>, vector<8x128xf32>, vector<8x128xf32> -> vector<8x128xf32>
    %105 = arith.addf %99, %104 : vector<8x128xf32>
    %c9 = arith.constant 9 : index
    %c0_99 = arith.constant 0 : index
    %c0_100 = arith.constant 0 : index
    %106 = vector.load %arg4[%c9, %c0_99, %c0_100] : memref<21x8x8xf32, #tpu.memory_space<vmem>>, vector<1x8x8xf32>
    %107 = vector.shape_cast %106 : vector<1x8x8xf32> to vector<8x8xf32>
    %c0_101 = arith.constant 0 : index
    %c0_102 = arith.constant 0 : index
    %c9_103 = arith.constant 9 : index
    %108 = vector.load %arg9[%c0_101, %c0_102, %c9_103] : memref<2x8x148xf32, #tpu.memory_space<vmem>>, vector<1x8x128xf32>
    %109 = vector.shape_cast %108 : vector<1x8x128xf32> to vector<8x128xf32>
    %cst_104 = arith.constant dense<0.000000e+00> : vector<8x128xf32>
    %110 = tpu.matmul %107, %109, %cst_104 {dimension_numbers = #tpu.dot_dimension_numbers<[1], [0], [0], [1], [0, 0, 1, 1], [], []>} : vector<8x8xf32>, vector<8x128xf32>, vector<8x128xf32> -> vector<8x128xf32>
    %111 = arith.addf %105, %110 : vector<8x128xf32>
    %c10_105 = arith.constant 10 : index
    %c0_106 = arith.constant 0 : index
    %c0_107 = arith.constant 0 : index
    %112 = vector.load %arg4[%c10_105, %c0_106, %c0_107] : memref<21x8x8xf32, #tpu.memory_space<vmem>>, vector<1x8x8xf32>
    %113 = vector.shape_cast %112 : vector<1x8x8xf32> to vector<8x8xf32>
    %c0_108 = arith.constant 0 : index
    %c0_109 = arith.constant 0 : index
    %c10_110 = arith.constant 10 : index
    %114 = vector.load %arg9[%c0_108, %c0_109, %c10_110] : memref<2x8x148xf32, #tpu.memory_space<vmem>>, vector<1x8x128xf32>
    %115 = vector.shape_cast %114 : vector<1x8x128xf32> to vector<8x128xf32>
    %cst_111 = arith.constant dense<0.000000e+00> : vector<8x128xf32>
    %116 = tpu.matmul %113, %115, %cst_111 {dimension_numbers = #tpu.dot_dimension_numbers<[1], [0], [0], [1], [0, 0, 1, 1], [], []>} : vector<8x8xf32>, vector<8x128xf32>, vector<8x128xf32> -> vector<8x128xf32>
    %117 = arith.addf %111, %116 : vector<8x128xf32>
    %c11 = arith.constant 11 : index
    %c0_112 = arith.constant 0 : index
    %c0_113 = arith.constant 0 : index
    %118 = vector.load %arg4[%c11, %c0_112, %c0_113] : memref<21x8x8xf32, #tpu.memory_space<vmem>>, vector<1x8x8xf32>
    %119 = vector.shape_cast %118 : vector<1x8x8xf32> to vector<8x8xf32>
    %c0_114 = arith.constant 0 : index
    %c0_115 = arith.constant 0 : index
    %c11_116 = arith.constant 11 : index
    %120 = vector.load %arg9[%c0_114, %c0_115, %c11_116] : memref<2x8x148xf32, #tpu.memory_space<vmem>>, vector<1x8x128xf32>
    %121 = vector.shape_cast %120 : vector<1x8x128xf32> to vector<8x128xf32>
    %cst_117 = arith.constant dense<0.000000e+00> : vector<8x128xf32>
    %122 = tpu.matmul %119, %121, %cst_117 {dimension_numbers = #tpu.dot_dimension_numbers<[1], [0], [0], [1], [0, 0, 1, 1], [], []>} : vector<8x8xf32>, vector<8x128xf32>, vector<8x128xf32> -> vector<8x128xf32>
    %123 = arith.addf %117, %122 : vector<8x128xf32>
    %c12 = arith.constant 12 : index
    %c0_118 = arith.constant 0 : index
    %c0_119 = arith.constant 0 : index
    %124 = vector.load %arg4[%c12, %c0_118, %c0_119] : memref<21x8x8xf32, #tpu.memory_space<vmem>>, vector<1x8x8xf32>
    %125 = vector.shape_cast %124 : vector<1x8x8xf32> to vector<8x8xf32>
    %c0_120 = arith.constant 0 : index
    %c0_121 = arith.constant 0 : index
    %c12_122 = arith.constant 12 : index
    %126 = vector.load %arg9[%c0_120, %c0_121, %c12_122] : memref<2x8x148xf32, #tpu.memory_space<vmem>>, vector<1x8x128xf32>
    %127 = vector.shape_cast %126 : vector<1x8x128xf32> to vector<8x128xf32>
    %cst_123 = arith.constant dense<0.000000e+00> : vector<8x128xf32>
    %128 = tpu.matmul %125, %127, %cst_123 {dimension_numbers = #tpu.dot_dimension_numbers<[1], [0], [0], [1], [0, 0, 1, 1], [], []>} : vector<8x8xf32>, vector<8x128xf32>, vector<8x128xf32> -> vector<8x128xf32>
    %129 = arith.addf %123, %128 : vector<8x128xf32>
    %c13 = arith.constant 13 : index
    %c0_124 = arith.constant 0 : index
    %c0_125 = arith.constant 0 : index
    %130 = vector.load %arg4[%c13, %c0_124, %c0_125] : memref<21x8x8xf32, #tpu.memory_space<vmem>>, vector<1x8x8xf32>
    %131 = vector.shape_cast %130 : vector<1x8x8xf32> to vector<8x8xf32>
    %c0_126 = arith.constant 0 : index
    %c0_127 = arith.constant 0 : index
    %c13_128 = arith.constant 13 : index
    %132 = vector.load %arg9[%c0_126, %c0_127, %c13_128] : memref<2x8x148xf32, #tpu.memory_space<vmem>>, vector<1x8x128xf32>
    %133 = vector.shape_cast %132 : vector<1x8x128xf32> to vector<8x128xf32>
    %cst_129 = arith.constant dense<0.000000e+00> : vector<8x128xf32>
    %134 = tpu.matmul %131, %133, %cst_129 {dimension_numbers = #tpu.dot_dimension_numbers<[1], [0], [0], [1], [0, 0, 1, 1], [], []>} : vector<8x8xf32>, vector<8x128xf32>, vector<8x128xf32> -> vector<8x128xf32>
    %135 = arith.addf %129, %134 : vector<8x128xf32>
    %c14 = arith.constant 14 : index
    %c0_130 = arith.constant 0 : index
    %c0_131 = arith.constant 0 : index
    %136 = vector.load %arg4[%c14, %c0_130, %c0_131] : memref<21x8x8xf32, #tpu.memory_space<vmem>>, vector<1x8x8xf32>
    %137 = vector.shape_cast %136 : vector<1x8x8xf32> to vector<8x8xf32>
    %c0_132 = arith.constant 0 : index
    %c0_133 = arith.constant 0 : index
    %c14_134 = arith.constant 14 : index
    %138 = vector.load %arg9[%c0_132, %c0_133, %c14_134] : memref<2x8x148xf32, #tpu.memory_space<vmem>>, vector<1x8x128xf32>
    %139 = vector.shape_cast %138 : vector<1x8x128xf32> to vector<8x128xf32>
    %cst_135 = arith.constant dense<0.000000e+00> : vector<8x128xf32>
    %140 = tpu.matmul %137, %139, %cst_135 {dimension_numbers = #tpu.dot_dimension_numbers<[1], [0], [0], [1], [0, 0, 1, 1], [], []>} : vector<8x8xf32>, vector<8x128xf32>, vector<8x128xf32> -> vector<8x128xf32>
    %141 = arith.addf %135, %140 : vector<8x128xf32>
    %c15 = arith.constant 15 : index
    %c0_136 = arith.constant 0 : index
    %c0_137 = arith.constant 0 : index
    %142 = vector.load %arg4[%c15, %c0_136, %c0_137] : memref<21x8x8xf32, #tpu.memory_space<vmem>>, vector<1x8x8xf32>
    %143 = vector.shape_cast %142 : vector<1x8x8xf32> to vector<8x8xf32>
    %c0_138 = arith.constant 0 : index
    %c0_139 = arith.constant 0 : index
    %c15_140 = arith.constant 15 : index
    %144 = vector.load %arg9[%c0_138, %c0_139, %c15_140] : memref<2x8x148xf32, #tpu.memory_space<vmem>>, vector<1x8x128xf32>
    %145 = vector.shape_cast %144 : vector<1x8x128xf32> to vector<8x128xf32>
    %cst_141 = arith.constant dense<0.000000e+00> : vector<8x128xf32>
    %146 = tpu.matmul %143, %145, %cst_141 {dimension_numbers = #tpu.dot_dimension_numbers<[1], [0], [0], [1], [0, 0, 1, 1], [], []>} : vector<8x8xf32>, vector<8x128xf32>, vector<8x128xf32> -> vector<8x128xf32>
    %147 = arith.addf %141, %146 : vector<8x128xf32>
    %c16 = arith.constant 16 : index
    %c0_142 = arith.constant 0 : index
    %c0_143 = arith.constant 0 : index
    %148 = vector.load %arg4[%c16, %c0_142, %c0_143] : memref<21x8x8xf32, #tpu.memory_space<vmem>>, vector<1x8x8xf32>
    %149 = vector.shape_cast %148 : vector<1x8x8xf32> to vector<8x8xf32>
    %c0_144 = arith.constant 0 : index
    %c0_145 = arith.constant 0 : index
    %c16_146 = arith.constant 16 : index
    %150 = vector.load %arg9[%c0_144, %c0_145, %c16_146] : memref<2x8x148xf32, #tpu.memory_space<vmem>>, vector<1x8x128xf32>
    %151 = vector.shape_cast %150 : vector<1x8x128xf32> to vector<8x128xf32>
    %cst_147 = arith.constant dense<0.000000e+00> : vector<8x128xf32>
    %152 = tpu.matmul %149, %151, %cst_147 {dimension_numbers = #tpu.dot_dimension_numbers<[1], [0], [0], [1], [0, 0, 1, 1], [], []>} : vector<8x8xf32>, vector<8x128xf32>, vector<8x128xf32> -> vector<8x128xf32>
    %153 = arith.addf %147, %152 : vector<8x128xf32>
    %c17 = arith.constant 17 : index
    %c0_148 = arith.constant 0 : index
    %c0_149 = arith.constant 0 : index
    %154 = vector.load %arg4[%c17, %c0_148, %c0_149] : memref<21x8x8xf32, #tpu.memory_space<vmem>>, vector<1x8x8xf32>
    %155 = vector.shape_cast %154 : vector<1x8x8xf32> to vector<8x8xf32>
    %c0_150 = arith.constant 0 : index
    %c0_151 = arith.constant 0 : index
    %c17_152 = arith.constant 17 : index
    %156 = vector.load %arg9[%c0_150, %c0_151, %c17_152] : memref<2x8x148xf32, #tpu.memory_space<vmem>>, vector<1x8x128xf32>
    %157 = vector.shape_cast %156 : vector<1x8x128xf32> to vector<8x128xf32>
    %cst_153 = arith.constant dense<0.000000e+00> : vector<8x128xf32>
    %158 = tpu.matmul %155, %157, %cst_153 {dimension_numbers = #tpu.dot_dimension_numbers<[1], [0], [0], [1], [0, 0, 1, 1], [], []>} : vector<8x8xf32>, vector<8x128xf32>, vector<8x128xf32> -> vector<8x128xf32>
    %159 = arith.addf %153, %158 : vector<8x128xf32>
    %c18 = arith.constant 18 : index
    %c0_154 = arith.constant 0 : index
    %c0_155 = arith.constant 0 : index
    %160 = vector.load %arg4[%c18, %c0_154, %c0_155] : memref<21x8x8xf32, #tpu.memory_space<vmem>>, vector<1x8x8xf32>
    %161 = vector.shape_cast %160 : vector<1x8x8xf32> to vector<8x8xf32>
    %c0_156 = arith.constant 0 : index
    %c0_157 = arith.constant 0 : index
    %c18_158 = arith.constant 18 : index
    %162 = vector.load %arg9[%c0_156, %c0_157, %c18_158] : memref<2x8x148xf32, #tpu.memory_space<vmem>>, vector<1x8x128xf32>
    %163 = vector.shape_cast %162 : vector<1x8x128xf32> to vector<8x128xf32>
    %cst_159 = arith.constant dense<0.000000e+00> : vector<8x128xf32>
    %164 = tpu.matmul %161, %163, %cst_159 {dimension_numbers = #tpu.dot_dimension_numbers<[1], [0], [0], [1], [0, 0, 1, 1], [], []>} : vector<8x8xf32>, vector<8x128xf32>, vector<8x128xf32> -> vector<8x128xf32>
    %165 = arith.addf %159, %164 : vector<8x128xf32>
    %c19 = arith.constant 19 : index
    %c0_160 = arith.constant 0 : index
    %c0_161 = arith.constant 0 : index
    %166 = vector.load %arg4[%c19, %c0_160, %c0_161] : memref<21x8x8xf32, #tpu.memory_space<vmem>>, vector<1x8x8xf32>
    %167 = vector.shape_cast %166 : vector<1x8x8xf32> to vector<8x8xf32>
    %c0_162 = arith.constant 0 : index
    %c0_163 = arith.constant 0 : index
    %c19_164 = arith.constant 19 : index
    %168 = vector.load %arg9[%c0_162, %c0_163, %c19_164] : memref<2x8x148xf32, #tpu.memory_space<vmem>>, vector<1x8x128xf32>
    %169 = vector.shape_cast %168 : vector<1x8x128xf32> to vector<8x128xf32>
    %cst_165 = arith.constant dense<0.000000e+00> : vector<8x128xf32>
    %170 = tpu.matmul %167, %169, %cst_165 {dimension_numbers = #tpu.dot_dimension_numbers<[1], [0], [0], [1], [0, 0, 1, 1], [], []>} : vector<8x8xf32>, vector<8x128xf32>, vector<8x128xf32> -> vector<8x128xf32>
    %171 = arith.addf %165, %170 : vector<8x128xf32>
    %c20 = arith.constant 20 : index
    %c0_166 = arith.constant 0 : index
    %c0_167 = arith.constant 0 : index
    %172 = vector.load %arg4[%c20, %c0_166, %c0_167] : memref<21x8x8xf32, #tpu.memory_space<vmem>>, vector<1x8x8xf32>
    %173 = vector.shape_cast %172 : vector<1x8x8xf32> to vector<8x8xf32>
    %c0_168 = arith.constant 0 : index
    %c0_169 = arith.constant 0 : index
    %c20_170 = arith.constant 20 : index
    %174 = vector.load %arg9[%c0_168, %c0_169, %c20_170] : memref<2x8x148xf32, #tpu.memory_space<vmem>>, vector<1x8x128xf32>
    %175 = vector.shape_cast %174 : vector<1x8x128xf32> to vector<8x128xf32>
    %cst_171 = arith.constant dense<0.000000e+00> : vector<8x128xf32>
    %176 = tpu.matmul %173, %175, %cst_171 {dimension_numbers = #tpu.dot_dimension_numbers<[1], [0], [0], [1], [0, 0, 1, 1], [], []>} : vector<8x8xf32>, vector<8x128xf32>, vector<8x128xf32> -> vector<8x128xf32>
    %177 = arith.addf %171, %176 : vector<8x128xf32>
    %cst_172 = arith.constant 0.000000e+00 : f32
    %178 = vector.broadcast %cst_172 : f32 to vector<8x128xf32>
    %179 = arith.maximumf %177, %178 : vector<8x128xf32>
    %cst_173 = arith.constant 0.000000e+00 : f32
    %180 = vector.shape_cast %34 : vector<1x128xi1> to vector<1x128xi1>
    %181 = vector.broadcast %180 : vector<1x128xi1> to vector<8x128xi1>
    %182 = vector.broadcast %cst_173 : f32 to vector<8x128xf32>
    %183 = arith.select %181, %179, %182 : vector<8x128xi1>, vector<8x128xf32>
    %c0_174 = arith.constant 0 : index
    %c0_175 = arith.constant 0 : index
    %184 = vector.load %arg11[%c0_174, %c0_175] : memref<8x128xf32, #tpu.memory_space<vmem>>, vector<8x128xf32>
    tpu.vector_store %arg11[%c0_174, %c0_175], %183 {strides = array<i32>} : memref<8x128xf32, #tpu.memory_space<vmem>>, vector<8x128xf32>,
    %c0_176 = arith.constant 0 : index
    %c0_177 = arith.constant 0 : index
    %c10_178 = arith.constant 10 : index
    %185 = vector.load %arg10[%c0_176, %c0_177, %c10_178] : memref<2x8x148xf32, #tpu.memory_space<vmem>>, vector<1x8x128xf32>
    %186 = vector.shape_cast %185 : vector<1x8x128xf32> to vector<8x128xf32>
    %187 = vector.shape_cast %183 : vector<8x128xf32> to vector<1x8x128xf32>
    tpu.vector_store %arg10[%c0_176, %c0_177, %c10_178], %187 {strides = array<i32>} : memref<2x8x148xf32, #tpu.memory_space<vmem>>, vector<1x8x128xf32>,
    %c0_179 = arith.constant 0 : index
    %c0_180 = arith.constant 0 : index
    %c0_181 = arith.constant 0 : index
    %188 = vector.load %arg6[%c0_179, %c0_180, %c0_181] : memref<21x8x8xf32, #tpu.memory_space<vmem>>, vector<1x8x8xf32>
    %189 = vector.shape_cast %188 : vector<1x8x8xf32> to vector<8x8xf32>
    %c0_182 = arith.constant 0 : index
    %c0_183 = arith.constant 0 : index
    %c0_184 = arith.constant 0 : index
    %190 = vector.load %arg10[%c0_182, %c0_183, %c0_184] : memref<2x8x148xf32, #tpu.memory_space<vmem>>, vector<1x8x128xf32>
    %191 = vector.shape_cast %190 : vector<1x8x128xf32> to vector<8x128xf32>
    %cst_185 = arith.constant dense<0.000000e+00> : vector<8x128xf32>
    %192 = tpu.matmul %189, %191, %cst_185 {dimension_numbers = #tpu.dot_dimension_numbers<[1], [0], [0], [1], [0, 0, 1, 1], [], []>} : vector<8x8xf32>, vector<8x128xf32>, vector<8x128xf32> -> vector<8x128xf32>
    %193 = arith.addf %40, %192 : vector<8x128xf32>
    %c1_186 = arith.constant 1 : index
    %c0_187 = arith.constant 0 : index
    %c0_188 = arith.constant 0 : index
    %194 = vector.load %arg6[%c1_186, %c0_187, %c0_188] : memref<21x8x8xf32, #tpu.memory_space<vmem>>, vector<1x8x8xf32>
    %195 = vector.shape_cast %194 : vector<1x8x8xf32> to vector<8x8xf32>
    %c0_189 = arith.constant 0 : index
    %c0_190 = arith.constant 0 : index
    %c1_191 = arith.constant 1 : index
    %196 = vector.load %arg10[%c0_189, %c0_190, %c1_191] : memref<2x8x148xf32, #tpu.memory_space<vmem>>, vector<1x8x128xf32>
    %197 = vector.shape_cast %196 : vector<1x8x128xf32> to vector<8x128xf32>
    %cst_192 = arith.constant dense<0.000000e+00> : vector<8x128xf32>
    %198 = tpu.matmul %195, %197, %cst_192 {dimension_numbers = #tpu.dot_dimension_numbers<[1], [0], [0], [1], [0, 0, 1, 1], [], []>} : vector<8x8xf32>, vector<8x128xf32>, vector<8x128xf32> -> vector<8x128xf32>
    %199 = arith.addf %193, %198 : vector<8x128xf32>
    %c2_193 = arith.constant 2 : index
    %c0_194 = arith.constant 0 : index
    %c0_195 = arith.constant 0 : index
    %200 = vector.load %arg6[%c2_193, %c0_194, %c0_195] : memref<21x8x8xf32, #tpu.memory_space<vmem>>, vector<1x8x8xf32>
    %201 = vector.shape_cast %200 : vector<1x8x8xf32> to vector<8x8xf32>
    %c0_196 = arith.constant 0 : index
    %c0_197 = arith.constant 0 : index
    %c2_198 = arith.constant 2 : index
    %202 = vector.load %arg10[%c0_196, %c0_197, %c2_198] : memref<2x8x148xf32, #tpu.memory_space<vmem>>, vector<1x8x128xf32>
    %203 = vector.shape_cast %202 : vector<1x8x128xf32> to vector<8x128xf32>
    %cst_199 = arith.constant dense<0.000000e+00> : vector<8x128xf32>
    %204 = tpu.matmul %201, %203, %cst_199 {dimension_numbers = #tpu.dot_dimension_numbers<[1], [0], [0], [1], [0, 0, 1, 1], [], []>} : vector<8x8xf32>, vector<8x128xf32>, vector<8x128xf32> -> vector<8x128xf32>
    %205 = arith.addf %199, %204 : vector<8x128xf32>
    %c3_200 = arith.constant 3 : index
    %c0_201 = arith.constant 0 : index
    %c0_202 = arith.constant 0 : index
    %206 = vector.load %arg6[%c3_200, %c0_201, %c0_202] : memref<21x8x8xf32, #tpu.memory_space<vmem>>, vector<1x8x8xf32>
    %207 = vector.shape_cast %206 : vector<1x8x8xf32> to vector<8x8xf32>
    %c0_203 = arith.constant 0 : index
    %c0_204 = arith.constant 0 : index
    %c3_205 = arith.constant 3 : index
    %208 = vector.load %arg10[%c0_203, %c0_204, %c3_205] : memref<2x8x148xf32, #tpu.memory_space<vmem>>, vector<1x8x128xf32>
    %209 = vector.shape_cast %208 : vector<1x8x128xf32> to vector<8x128xf32>
    %cst_206 = arith.constant dense<0.000000e+00> : vector<8x128xf32>
    %210 = tpu.matmul %207, %209, %cst_206 {dimension_numbers = #tpu.dot_dimension_numbers<[1], [0], [0], [1], [0, 0, 1, 1], [], []>} : vector<8x8xf32>, vector<8x128xf32>, vector<8x128xf32> -> vector<8x128xf32>
    %211 = arith.addf %205, %210 : vector<8x128xf32>
    %c4_207 = arith.constant 4 : index
    %c0_208 = arith.constant 0 : index
    %c0_209 = arith.constant 0 : index
    %212 = vector.load %arg6[%c4_207, %c0_208, %c0_209] : memref<21x8x8xf32, #tpu.memory_space<vmem>>, vector<1x8x8xf32>
    %213 = vector.shape_cast %212 : vector<1x8x8xf32> to vector<8x8xf32>
    %c0_210 = arith.constant 0 : index
    %c0_211 = arith.constant 0 : index
    %c4_212 = arith.constant 4 : index
    %214 = vector.load %arg10[%c0_210, %c0_211, %c4_212] : memref<2x8x148xf32, #tpu.memory_space<vmem>>, vector<1x8x128xf32>
    %215 = vector.shape_cast %214 : vector<1x8x128xf32> to vector<8x128xf32>
    %cst_213 = arith.constant dense<0.000000e+00> : vector<8x128xf32>
    %216 = tpu.matmul %213, %215, %cst_213 {dimension_numbers = #tpu.dot_dimension_numbers<[1], [0], [0], [1], [0, 0, 1, 1], [], []>} : vector<8x8xf32>, vector<8x128xf32>, vector<8x128xf32> -> vector<8x128xf32>
    %217 = arith.addf %211, %216 : vector<8x128xf32>
    %c5_214 = arith.constant 5 : index
    %c0_215 = arith.constant 0 : index
    %c0_216 = arith.constant 0 : index
    %218 = vector.load %arg6[%c5_214, %c0_215, %c0_216] : memref<21x8x8xf32, #tpu.memory_space<vmem>>, vector<1x8x8xf32>
    %219 = vector.shape_cast %218 : vector<1x8x8xf32> to vector<8x8xf32>
    %c0_217 = arith.constant 0 : index
    %c0_218 = arith.constant 0 : index
    %c5_219 = arith.constant 5 : index
    %220 = vector.load %arg10[%c0_217, %c0_218, %c5_219] : memref<2x8x148xf32, #tpu.memory_space<vmem>>, vector<1x8x128xf32>
    %221 = vector.shape_cast %220 : vector<1x8x128xf32> to vector<8x128xf32>
    %cst_220 = arith.constant dense<0.000000e+00> : vector<8x128xf32>
    %222 = tpu.matmul %219, %221, %cst_220 {dimension_numbers = #tpu.dot_dimension_numbers<[1], [0], [0], [1], [0, 0, 1, 1], [], []>} : vector<8x8xf32>, vector<8x128xf32>, vector<8x128xf32> -> vector<8x128xf32>
    %223 = arith.addf %217, %222 : vector<8x128xf32>
    %c6_221 = arith.constant 6 : index
    %c0_222 = arith.constant 0 : index
    %c0_223 = arith.constant 0 : index
    %224 = vector.load %arg6[%c6_221, %c0_222, %c0_223] : memref<21x8x8xf32, #tpu.memory_space<vmem>>, vector<1x8x8xf32>
    %225 = vector.shape_cast %224 : vector<1x8x8xf32> to vector<8x8xf32>
    %c0_224 = arith.constant 0 : index
    %c0_225 = arith.constant 0 : index
    %c6_226 = arith.constant 6 : index
    %226 = vector.load %arg10[%c0_224, %c0_225, %c6_226] : memref<2x8x148xf32, #tpu.memory_space<vmem>>, vector<1x8x128xf32>
    %227 = vector.shape_cast %226 : vector<1x8x128xf32> to vector<8x128xf32>
    %cst_227 = arith.constant dense<0.000000e+00> : vector<8x128xf32>
    %228 = tpu.matmul %225, %227, %cst_227 {dimension_numbers = #tpu.dot_dimension_numbers<[1], [0], [0], [1], [0, 0, 1, 1], [], []>} : vector<8x8xf32>, vector<8x128xf32>, vector<8x128xf32> -> vector<8x128xf32>
    %229 = arith.addf %223, %228 : vector<8x128xf32>
    %c7_228 = arith.constant 7 : index
    %c0_229 = arith.constant 0 : index
    %c0_230 = arith.constant 0 : index
    %230 = vector.load %arg6[%c7_228, %c0_229, %c0_230] : memref<21x8x8xf32, #tpu.memory_space<vmem>>, vector<1x8x8xf32>
    %231 = vector.shape_cast %230 : vector<1x8x8xf32> to vector<8x8xf32>
    %c0_231 = arith.constant 0 : index
    %c0_232 = arith.constant 0 : index
    %c7_233 = arith.constant 7 : index
    %232 = vector.load %arg10[%c0_231, %c0_232, %c7_233] : memref<2x8x148xf32, #tpu.memory_space<vmem>>, vector<1x8x128xf32>
    %233 = vector.shape_cast %232 : vector<1x8x128xf32> to vector<8x128xf32>
    %cst_234 = arith.constant dense<0.000000e+00> : vector<8x128xf32>
    %234 = tpu.matmul %231, %233, %cst_234 {dimension_numbers = #tpu.dot_dimension_numbers<[1], [0], [0], [1], [0, 0, 1, 1], [], []>} : vector<8x8xf32>, vector<8x128xf32>, vector<8x128xf32> -> vector<8x128xf32>
    %235 = arith.addf %229, %234 : vector<8x128xf32>
    %c8_235 = arith.constant 8 : index
    %c0_236 = arith.constant 0 : index
    %c0_237 = arith.constant 0 : index
    %236 = vector.load %arg6[%c8_235, %c0_236, %c0_237] : memref<21x8x8xf32, #tpu.memory_space<vmem>>, vector<1x8x8xf32>
    %237 = vector.shape_cast %236 : vector<1x8x8xf32> to vector<8x8xf32>
    %c0_238 = arith.constant 0 : index
    %c0_239 = arith.constant 0 : index
    %c8_240 = arith.constant 8 : index
    %238 = vector.load %arg10[%c0_238, %c0_239, %c8_240] : memref<2x8x148xf32, #tpu.memory_space<vmem>>, vector<1x8x128xf32>
    %239 = vector.shape_cast %238 : vector<1x8x128xf32> to vector<8x128xf32>
    %cst_241 = arith.constant dense<0.000000e+00> : vector<8x128xf32>
    %240 = tpu.matmul %237, %239, %cst_241 {dimension_numbers = #tpu.dot_dimension_numbers<[1], [0], [0], [1], [0, 0, 1, 1], [], []>} : vector<8x8xf32>, vector<8x128xf32>, vector<8x128xf32> -> vector<8x128xf32>
    %241 = arith.addf %235, %240 : vector<8x128xf32>
    %c9_242 = arith.constant 9 : index
    %c0_243 = arith.constant 0 : index
    %c0_244 = arith.constant 0 : index
    %242 = vector.load %arg6[%c9_242, %c0_243, %c0_244] : memref<21x8x8xf32, #tpu.memory_space<vmem>>, vector<1x8x8xf32>
    %243 = vector.shape_cast %242 : vector<1x8x8xf32> to vector<8x8xf32>
    %c0_245 = arith.constant 0 : index
    %c0_246 = arith.constant 0 : index
    %c9_247 = arith.constant 9 : index
    %244 = vector.load %arg10[%c0_245, %c0_246, %c9_247] : memref<2x8x148xf32, #tpu.memory_space<vmem>>, vector<1x8x128xf32>
    %245 = vector.shape_cast %244 : vector<1x8x128xf32> to vector<8x128xf32>
    %cst_248 = arith.constant dense<0.000000e+00> : vector<8x128xf32>
    %246 = tpu.matmul %243, %245, %cst_248 {dimension_numbers = #tpu.dot_dimension_numbers<[1], [0], [0], [1], [0, 0, 1, 1], [], []>} : vector<8x8xf32>, vector<8x128xf32>, vector<8x128xf32> -> vector<8x128xf32>
    %247 = arith.addf %241, %246 : vector<8x128xf32>
    %c10_249 = arith.constant 10 : index
    %c0_250 = arith.constant 0 : index
    %c0_251 = arith.constant 0 : index
    %248 = vector.load %arg6[%c10_249, %c0_250, %c0_251] : memref<21x8x8xf32, #tpu.memory_space<vmem>>, vector<1x8x8xf32>
    %249 = vector.shape_cast %248 : vector<1x8x8xf32> to vector<8x8xf32>
    %c0_252 = arith.constant 0 : index
    %c0_253 = arith.constant 0 : index
    %c10_254 = arith.constant 10 : index
    %250 = vector.load %arg10[%c0_252, %c0_253, %c10_254] : memref<2x8x148xf32, #tpu.memory_space<vmem>>, vector<1x8x128xf32>
    %251 = vector.shape_cast %250 : vector<1x8x128xf32> to vector<8x128xf32>
    %cst_255 = arith.constant dense<0.000000e+00> : vector<8x128xf32>
    %252 = tpu.matmul %249, %251, %cst_255 {dimension_numbers = #tpu.dot_dimension_numbers<[1], [0], [0], [1], [0, 0, 1, 1], [], []>} : vector<8x8xf32>, vector<8x128xf32>, vector<8x128xf32> -> vector<8x128xf32>
    %253 = arith.addf %247, %252 : vector<8x128xf32>
    %c11_256 = arith.constant 11 : index
    %c0_257 = arith.constant 0 : index
    %c0_258 = arith.constant 0 : index
    %254 = vector.load %arg6[%c11_256, %c0_257, %c0_258] : memref<21x8x8xf32, #tpu.memory_space<vmem>>, vector<1x8x8xf32>
    %255 = vector.shape_cast %254 : vector<1x8x8xf32> to vector<8x8xf32>
    %c0_259 = arith.constant 0 : index
    %c0_260 = arith.constant 0 : index
    %c11_261 = arith.constant 11 : index
    %256 = vector.load %arg10[%c0_259, %c0_260, %c11_261] : memref<2x8x148xf32, #tpu.memory_space<vmem>>, vector<1x8x128xf32>
    %257 = vector.shape_cast %256 : vector<1x8x128xf32> to vector<8x128xf32>
    %cst_262 = arith.constant dense<0.000000e+00> : vector<8x128xf32>
    %258 = tpu.matmul %255, %257, %cst_262 {dimension_numbers = #tpu.dot_dimension_numbers<[1], [0], [0], [1], [0, 0, 1, 1], [], []>} : vector<8x8xf32>, vector<8x128xf32>, vector<8x128xf32> -> vector<8x128xf32>
    %259 = arith.addf %253, %258 : vector<8x128xf32>
    %c12_263 = arith.constant 12 : index
    %c0_264 = arith.constant 0 : index
    %c0_265 = arith.constant 0 : index
    %260 = vector.load %arg6[%c12_263, %c0_264, %c0_265] : memref<21x8x8xf32, #tpu.memory_space<vmem>>, vector<1x8x8xf32>
    %261 = vector.shape_cast %260 : vector<1x8x8xf32> to vector<8x8xf32>
    %c0_266 = arith.constant 0 : index
    %c0_267 = arith.constant 0 : index
    %c12_268 = arith.constant 12 : index
    %262 = vector.load %arg10[%c0_266, %c0_267, %c12_268] : memref<2x8x148xf32, #tpu.memory_space<vmem>>, vector<1x8x128xf32>
    %263 = vector.shape_cast %262 : vector<1x8x128xf32> to vector<8x128xf32>
    %cst_269 = arith.constant dense<0.000000e+00> : vector<8x128xf32>
    %264 = tpu.matmul %261, %263, %cst_269 {dimension_numbers = #tpu.dot_dimension_numbers<[1], [0], [0], [1], [0, 0, 1, 1], [], []>} : vector<8x8xf32>, vector<8x128xf32>, vector<8x128xf32> -> vector<8x128xf32>
    %265 = arith.addf %259, %264 : vector<8x128xf32>
    %c13_270 = arith.constant 13 : index
    %c0_271 = arith.constant 0 : index
    %c0_272 = arith.constant 0 : index
    %266 = vector.load %arg6[%c13_270, %c0_271, %c0_272] : memref<21x8x8xf32, #tpu.memory_space<vmem>>, vector<1x8x8xf32>
    %267 = vector.shape_cast %266 : vector<1x8x8xf32> to vector<8x8xf32>
    %c0_273 = arith.constant 0 : index
    %c0_274 = arith.constant 0 : index
    %c13_275 = arith.constant 13 : index
    %268 = vector.load %arg10[%c0_273, %c0_274, %c13_275] : memref<2x8x148xf32, #tpu.memory_space<vmem>>, vector<1x8x128xf32>
    %269 = vector.shape_cast %268 : vector<1x8x128xf32> to vector<8x128xf32>
    %cst_276 = arith.constant dense<0.000000e+00> : vector<8x128xf32>
    %270 = tpu.matmul %267, %269, %cst_276 {dimension_numbers = #tpu.dot_dimension_numbers<[1], [0], [0], [1], [0, 0, 1, 1], [], []>} : vector<8x8xf32>, vector<8x128xf32>, vector<8x128xf32> -> vector<8x128xf32>
    %271 = arith.addf %265, %270 : vector<8x128xf32>
    %c14_277 = arith.constant 14 : index
    %c0_278 = arith.constant 0 : index
    %c0_279 = arith.constant 0 : index
    %272 = vector.load %arg6[%c14_277, %c0_278, %c0_279] : memref<21x8x8xf32, #tpu.memory_space<vmem>>, vector<1x8x8xf32>
    %273 = vector.shape_cast %272 : vector<1x8x8xf32> to vector<8x8xf32>
    %c0_280 = arith.constant 0 : index
    %c0_281 = arith.constant 0 : index
    %c14_282 = arith.constant 14 : index
    %274 = vector.load %arg10[%c0_280, %c0_281, %c14_282] : memref<2x8x148xf32, #tpu.memory_space<vmem>>, vector<1x8x128xf32>
    %275 = vector.shape_cast %274 : vector<1x8x128xf32> to vector<8x128xf32>
    %cst_283 = arith.constant dense<0.000000e+00> : vector<8x128xf32>
    %276 = tpu.matmul %273, %275, %cst_283 {dimension_numbers = #tpu.dot_dimension_numbers<[1], [0], [0], [1], [0, 0, 1, 1], [], []>} : vector<8x8xf32>, vector<8x128xf32>, vector<8x128xf32> -> vector<8x128xf32>
    %277 = arith.addf %271, %276 : vector<8x128xf32>
    %c15_284 = arith.constant 15 : index
    %c0_285 = arith.constant 0 : index
    %c0_286 = arith.constant 0 : index
    %278 = vector.load %arg6[%c15_284, %c0_285, %c0_286] : memref<21x8x8xf32, #tpu.memory_space<vmem>>, vector<1x8x8xf32>
    %279 = vector.shape_cast %278 : vector<1x8x8xf32> to vector<8x8xf32>
    %c0_287 = arith.constant 0 : index
    %c0_288 = arith.constant 0 : index
    %c15_289 = arith.constant 15 : index
    %280 = vector.load %arg10[%c0_287, %c0_288, %c15_289] : memref<2x8x148xf32, #tpu.memory_space<vmem>>, vector<1x8x128xf32>
    %281 = vector.shape_cast %280 : vector<1x8x128xf32> to vector<8x128xf32>
    %cst_290 = arith.constant dense<0.000000e+00> : vector<8x128xf32>
    %282 = tpu.matmul %279, %281, %cst_290 {dimension_numbers = #tpu.dot_dimension_numbers<[1], [0], [0], [1], [0, 0, 1, 1], [], []>} : vector<8x8xf32>, vector<8x128xf32>, vector<8x128xf32> -> vector<8x128xf32>
    %283 = arith.addf %277, %282 : vector<8x128xf32>
    %c16_291 = arith.constant 16 : index
    %c0_292 = arith.constant 0 : index
    %c0_293 = arith.constant 0 : index
    %284 = vector.load %arg6[%c16_291, %c0_292, %c0_293] : memref<21x8x8xf32, #tpu.memory_space<vmem>>, vector<1x8x8xf32>
    %285 = vector.shape_cast %284 : vector<1x8x8xf32> to vector<8x8xf32>
    %c0_294 = arith.constant 0 : index
    %c0_295 = arith.constant 0 : index
    %c16_296 = arith.constant 16 : index
    %286 = vector.load %arg10[%c0_294, %c0_295, %c16_296] : memref<2x8x148xf32, #tpu.memory_space<vmem>>, vector<1x8x128xf32>
    %287 = vector.shape_cast %286 : vector<1x8x128xf32> to vector<8x128xf32>
    %cst_297 = arith.constant dense<0.000000e+00> : vector<8x128xf32>
    %288 = tpu.matmul %285, %287, %cst_297 {dimension_numbers = #tpu.dot_dimension_numbers<[1], [0], [0], [1], [0, 0, 1, 1], [], []>} : vector<8x8xf32>, vector<8x128xf32>, vector<8x128xf32> -> vector<8x128xf32>
    %289 = arith.addf %283, %288 : vector<8x128xf32>
    %c17_298 = arith.constant 17 : index
    %c0_299 = arith.constant 0 : index
    %c0_300 = arith.constant 0 : index
    %290 = vector.load %arg6[%c17_298, %c0_299, %c0_300] : memref<21x8x8xf32, #tpu.memory_space<vmem>>, vector<1x8x8xf32>
    %291 = vector.shape_cast %290 : vector<1x8x8xf32> to vector<8x8xf32>
    %c0_301 = arith.constant 0 : index
    %c0_302 = arith.constant 0 : index
    %c17_303 = arith.constant 17 : index
    %292 = vector.load %arg10[%c0_301, %c0_302, %c17_303] : memref<2x8x148xf32, #tpu.memory_space<vmem>>, vector<1x8x128xf32>
    %293 = vector.shape_cast %292 : vector<1x8x128xf32> to vector<8x128xf32>
    %cst_304 = arith.constant dense<0.000000e+00> : vector<8x128xf32>
    %294 = tpu.matmul %291, %293, %cst_304 {dimension_numbers = #tpu.dot_dimension_numbers<[1], [0], [0], [1], [0, 0, 1, 1], [], []>} : vector<8x8xf32>, vector<8x128xf32>, vector<8x128xf32> -> vector<8x128xf32>
    %295 = arith.addf %289, %294 : vector<8x128xf32>
    %c18_305 = arith.constant 18 : index
    %c0_306 = arith.constant 0 : index
    %c0_307 = arith.constant 0 : index
    %296 = vector.load %arg6[%c18_305, %c0_306, %c0_307] : memref<21x8x8xf32, #tpu.memory_space<vmem>>, vector<1x8x8xf32>
    %297 = vector.shape_cast %296 : vector<1x8x8xf32> to vector<8x8xf32>
    %c0_308 = arith.constant 0 : index
    %c0_309 = arith.constant 0 : index
    %c18_310 = arith.constant 18 : index
    %298 = vector.load %arg10[%c0_308, %c0_309, %c18_310] : memref<2x8x148xf32, #tpu.memory_space<vmem>>, vector<1x8x128xf32>
    %299 = vector.shape_cast %298 : vector<1x8x128xf32> to vector<8x128xf32>
    %cst_311 = arith.constant dense<0.000000e+00> : vector<8x128xf32>
    %300 = tpu.matmul %297, %299, %cst_311 {dimension_numbers = #tpu.dot_dimension_numbers<[1], [0], [0], [1], [0, 0, 1, 1], [], []>} : vector<8x8xf32>, vector<8x128xf32>, vector<8x128xf32> -> vector<8x128xf32>
    %301 = arith.addf %295, %300 : vector<8x128xf32>
    %c19_312 = arith.constant 19 : index
    %c0_313 = arith.constant 0 : index
    %c0_314 = arith.constant 0 : index
    %302 = vector.load %arg6[%c19_312, %c0_313, %c0_314] : memref<21x8x8xf32, #tpu.memory_space<vmem>>, vector<1x8x8xf32>
    %303 = vector.shape_cast %302 : vector<1x8x8xf32> to vector<8x8xf32>
    %c0_315 = arith.constant 0 : index
    %c0_316 = arith.constant 0 : index
    %c19_317 = arith.constant 19 : index
    %304 = vector.load %arg10[%c0_315, %c0_316, %c19_317] : memref<2x8x148xf32, #tpu.memory_space<vmem>>, vector<1x8x128xf32>
    %305 = vector.shape_cast %304 : vector<1x8x128xf32> to vector<8x128xf32>
    %cst_318 = arith.constant dense<0.000000e+00> : vector<8x128xf32>
    %306 = tpu.matmul %303, %305, %cst_318 {dimension_numbers = #tpu.dot_dimension_numbers<[1], [0], [0], [1], [0, 0, 1, 1], [], []>} : vector<8x8xf32>, vector<8x128xf32>, vector<8x128xf32> -> vector<8x128xf32>
    %307 = arith.addf %301, %306 : vector<8x128xf32>
    %c20_319 = arith.constant 20 : index
    %c0_320 = arith.constant 0 : index
    %c0_321 = arith.constant 0 : index
    %308 = vector.load %arg6[%c20_319, %c0_320, %c0_321] : memref<21x8x8xf32, #tpu.memory_space<vmem>>, vector<1x8x8xf32>
    %309 = vector.shape_cast %308 : vector<1x8x8xf32> to vector<8x8xf32>
    %c0_322 = arith.constant 0 : index
    %c0_323 = arith.constant 0 : index
    %c20_324 = arith.constant 20 : index
    %310 = vector.load %arg10[%c0_322, %c0_323, %c20_324] : memref<2x8x148xf32, #tpu.memory_space<vmem>>, vector<1x8x128xf32>
    %311 = vector.shape_cast %310 : vector<1x8x128xf32> to vector<8x128xf32>
    %cst_325 = arith.constant dense<0.000000e+00> : vector<8x128xf32>
    %312 = tpu.matmul %309, %311, %cst_325 {dimension_numbers = #tpu.dot_dimension_numbers<[1], [0], [0], [1], [0, 0, 1, 1], [], []>} : vector<8x8xf32>, vector<8x128xf32>, vector<8x128xf32> -> vector<8x128xf32>
    %313 = arith.addf %307, %312 : vector<8x128xf32>
    %cst_326 = arith.constant 0.000000e+00 : f32
    %314 = vector.broadcast %cst_326 : f32 to vector<8x128xf32>
    %315 = arith.maximumf %313, %314 : vector<8x128xf32>
    %c0_327 = arith.constant 0 : index
    %c0_328 = arith.constant 0 : index
    %316 = vector.load %arg11[%c0_327, %c0_328] : memref<8x128xf32, #tpu.memory_space<vmem>>, vector<8x128xf32>
    %317 = arith.addf %315, %316 : vector<8x128xf32>
    %c0_329 = arith.constant 0 : index
    %c0_330 = arith.constant 0 : index
    %c0_331 = arith.constant 0 : index
    %318 = vector.load %arg8[%c0_329, %c0_330, %c0_331] : memref<2x8x128xf32, #tpu.memory_space<vmem>>, vector<1x8x128xf32>
    %319 = vector.shape_cast %318 : vector<1x8x128xf32> to vector<8x128xf32>
    %320 = vector.shape_cast %317 : vector<8x128xf32> to vector<1x8x128xf32>
    tpu.vector_store %arg8[%c0_329, %c0_330, %c0_331], %320 {strides = array<i32>} : memref<2x8x128xf32, #tpu.memory_space<vmem>>, vector<1x8x128xf32>,
    %c1_332 = arith.constant 1 : index
    %c0_333 = arith.constant 0 : index
    %c0_334 = arith.constant 0 : index
    %321 = vector.load %arg1[%c1_332, %c0_333, %c0_334] : memref<2x8x128xf32, #tpu.memory_space<vmem>>, vector<1x8x128xf32>
    %322 = vector.shape_cast %321 : vector<1x8x128xf32> to vector<8x128xf32>
    %c1_335 = arith.constant 1 : index
    %c0_336 = arith.constant 0 : index
    %c0_337 = arith.constant 0 : index
    %323 = vector.load %arg3[%c1_335, %c0_336, %c0_337] : memref<2x8x128xf32, #tpu.memory_space<vmem>>, vector<1x8x128xf32>
    %324 = vector.shape_cast %323 : vector<1x8x128xf32> to vector<8x128xf32>
    %325 = arith.maximumf %322, %324 : vector<8x128xf32>
    %c1_338 = arith.constant 1 : index
    %c0_339 = arith.constant 0 : index
    %c0_340 = arith.constant 0 : index
    %326 = vector.load %arg2[%c1_338, %c0_339, %c0_340] : memref<2x8x128xf32, #tpu.memory_space<vmem>>, vector<1x8x128xf32>
    %327 = vector.shape_cast %326 : vector<1x8x128xf32> to vector<8x128xf32>
    %328 = arith.maximumf %325, %327 : vector<8x128xf32>
    %c1_341 = arith.constant 1 : index
    %c0_342 = arith.constant 0 : index
    %c10_343 = arith.constant 10 : index
    %329 = vector.load %arg9[%c1_341, %c0_342, %c10_343] : memref<2x8x148xf32, #tpu.memory_space<vmem>>, vector<1x8x128xf32>
    %330 = vector.shape_cast %329 : vector<1x8x128xf32> to vector<8x128xf32>
    %331 = vector.shape_cast %328 : vector<8x128xf32> to vector<1x8x128xf32>
    tpu.vector_store %arg9[%c1_341, %c0_342, %c10_343], %331 {strides = array<i32>} : memref<2x8x148xf32, #tpu.memory_space<vmem>>, vector<1x8x128xf32>,
    %c0_344 = arith.constant 0 : index
    %c0_345 = arith.constant 0 : index
    %c0_346 = arith.constant 0 : index
    %332 = vector.load %arg4[%c0_344, %c0_345, %c0_346] : memref<21x8x8xf32, #tpu.memory_space<vmem>>, vector<1x8x8xf32>
    %333 = vector.shape_cast %332 : vector<1x8x8xf32> to vector<8x8xf32>
    %c1_347 = arith.constant 1 : index
    %c0_348 = arith.constant 0 : index
    %c0_349 = arith.constant 0 : index
    %334 = vector.load %arg9[%c1_347, %c0_348, %c0_349] : memref<2x8x148xf32, #tpu.memory_space<vmem>>, vector<1x8x128xf32>
    %335 = vector.shape_cast %334 : vector<1x8x128xf32> to vector<8x128xf32>
    %cst_350 = arith.constant dense<0.000000e+00> : vector<8x128xf32>
    %336 = tpu.matmul %333, %335, %cst_350 {dimension_numbers = #tpu.dot_dimension_numbers<[1], [0], [0], [1], [0, 0, 1, 1], [], []>} : vector<8x8xf32>, vector<8x128xf32>, vector<8x128xf32> -> vector<8x128xf32>
    %337 = arith.addf %37, %336 : vector<8x128xf32>
    %c1_351 = arith.constant 1 : index
    %c0_352 = arith.constant 0 : index
    %c0_353 = arith.constant 0 : index
    %338 = vector.load %arg4[%c1_351, %c0_352, %c0_353] : memref<21x8x8xf32, #tpu.memory_space<vmem>>, vector<1x8x8xf32>
    %339 = vector.shape_cast %338 : vector<1x8x8xf32> to vector<8x8xf32>
    %c1_354 = arith.constant 1 : index
    %c0_355 = arith.constant 0 : index
    %c1_356 = arith.constant 1 : index
    %340 = vector.load %arg9[%c1_354, %c0_355, %c1_356] : memref<2x8x148xf32, #tpu.memory_space<vmem>>, vector<1x8x128xf32>
    %341 = vector.shape_cast %340 : vector<1x8x128xf32> to vector<8x128xf32>
    %cst_357 = arith.constant dense<0.000000e+00> : vector<8x128xf32>
    %342 = tpu.matmul %339, %341, %cst_357 {dimension_numbers = #tpu.dot_dimension_numbers<[1], [0], [0], [1], [0, 0, 1, 1], [], []>} : vector<8x8xf32>, vector<8x128xf32>, vector<8x128xf32> -> vector<8x128xf32>
    %343 = arith.addf %337, %342 : vector<8x128xf32>
    %c2_358 = arith.constant 2 : index
    %c0_359 = arith.constant 0 : index
    %c0_360 = arith.constant 0 : index
    %344 = vector.load %arg4[%c2_358, %c0_359, %c0_360] : memref<21x8x8xf32, #tpu.memory_space<vmem>>, vector<1x8x8xf32>
    %345 = vector.shape_cast %344 : vector<1x8x8xf32> to vector<8x8xf32>
    %c1_361 = arith.constant 1 : index
    %c0_362 = arith.constant 0 : index
    %c2_363 = arith.constant 2 : index
    %346 = vector.load %arg9[%c1_361, %c0_362, %c2_363] : memref<2x8x148xf32, #tpu.memory_space<vmem>>, vector<1x8x128xf32>
    %347 = vector.shape_cast %346 : vector<1x8x128xf32> to vector<8x128xf32>
    %cst_364 = arith.constant dense<0.000000e+00> : vector<8x128xf32>
    %348 = tpu.matmul %345, %347, %cst_364 {dimension_numbers = #tpu.dot_dimension_numbers<[1], [0], [0], [1], [0, 0, 1, 1], [], []>} : vector<8x8xf32>, vector<8x128xf32>, vector<8x128xf32> -> vector<8x128xf32>
    %349 = arith.addf %343, %348 : vector<8x128xf32>
    %c3_365 = arith.constant 3 : index
    %c0_366 = arith.constant 0 : index
    %c0_367 = arith.constant 0 : index
    %350 = vector.load %arg4[%c3_365, %c0_366, %c0_367] : memref<21x8x8xf32, #tpu.memory_space<vmem>>, vector<1x8x8xf32>
    %351 = vector.shape_cast %350 : vector<1x8x8xf32> to vector<8x8xf32>
    %c1_368 = arith.constant 1 : index
    %c0_369 = arith.constant 0 : index
    %c3_370 = arith.constant 3 : index
    %352 = vector.load %arg9[%c1_368, %c0_369, %c3_370] : memref<2x8x148xf32, #tpu.memory_space<vmem>>, vector<1x8x128xf32>
    %353 = vector.shape_cast %352 : vector<1x8x128xf32> to vector<8x128xf32>
    %cst_371 = arith.constant dense<0.000000e+00> : vector<8x128xf32>
    %354 = tpu.matmul %351, %353, %cst_371 {dimension_numbers = #tpu.dot_dimension_numbers<[1], [0], [0], [1], [0, 0, 1, 1], [], []>} : vector<8x8xf32>, vector<8x128xf32>, vector<8x128xf32> -> vector<8x128xf32>
    %355 = arith.addf %349, %354 : vector<8x128xf32>
    %c4_372 = arith.constant 4 : index
    %c0_373 = arith.constant 0 : index
    %c0_374 = arith.constant 0 : index
    %356 = vector.load %arg4[%c4_372, %c0_373, %c0_374] : memref<21x8x8xf32, #tpu.memory_space<vmem>>, vector<1x8x8xf32>
    %357 = vector.shape_cast %356 : vector<1x8x8xf32> to vector<8x8xf32>
    %c1_375 = arith.constant 1 : index
    %c0_376 = arith.constant 0 : index
    %c4_377 = arith.constant 4 : index
    %358 = vector.load %arg9[%c1_375, %c0_376, %c4_377] : memref<2x8x148xf32, #tpu.memory_space<vmem>>, vector<1x8x128xf32>
    %359 = vector.shape_cast %358 : vector<1x8x128xf32> to vector<8x128xf32>
    %cst_378 = arith.constant dense<0.000000e+00> : vector<8x128xf32>
    %360 = tpu.matmul %357, %359, %cst_378 {dimension_numbers = #tpu.dot_dimension_numbers<[1], [0], [0], [1], [0, 0, 1, 1], [], []>} : vector<8x8xf32>, vector<8x128xf32>, vector<8x128xf32> -> vector<8x128xf32>
    %361 = arith.addf %355, %360 : vector<8x128xf32>
    %c5_379 = arith.constant 5 : index
    %c0_380 = arith.constant 0 : index
    %c0_381 = arith.constant 0 : index
    %362 = vector.load %arg4[%c5_379, %c0_380, %c0_381] : memref<21x8x8xf32, #tpu.memory_space<vmem>>, vector<1x8x8xf32>
    %363 = vector.shape_cast %362 : vector<1x8x8xf32> to vector<8x8xf32>
    %c1_382 = arith.constant 1 : index
    %c0_383 = arith.constant 0 : index
    %c5_384 = arith.constant 5 : index
    %364 = vector.load %arg9[%c1_382, %c0_383, %c5_384] : memref<2x8x148xf32, #tpu.memory_space<vmem>>, vector<1x8x128xf32>
    %365 = vector.shape_cast %364 : vector<1x8x128xf32> to vector<8x128xf32>
    %cst_385 = arith.constant dense<0.000000e+00> : vector<8x128xf32>
    %366 = tpu.matmul %363, %365, %cst_385 {dimension_numbers = #tpu.dot_dimension_numbers<[1], [0], [0], [1], [0, 0, 1, 1], [], []>} : vector<8x8xf32>, vector<8x128xf32>, vector<8x128xf32> -> vector<8x128xf32>
    %367 = arith.addf %361, %366 : vector<8x128xf32>
    %c6_386 = arith.constant 6 : index
    %c0_387 = arith.constant 0 : index
    %c0_388 = arith.constant 0 : index
    %368 = vector.load %arg4[%c6_386, %c0_387, %c0_388] : memref<21x8x8xf32, #tpu.memory_space<vmem>>, vector<1x8x8xf32>
    %369 = vector.shape_cast %368 : vector<1x8x8xf32> to vector<8x8xf32>
    %c1_389 = arith.constant 1 : index
    %c0_390 = arith.constant 0 : index
    %c6_391 = arith.constant 6 : index
    %370 = vector.load %arg9[%c1_389, %c0_390, %c6_391] : memref<2x8x148xf32, #tpu.memory_space<vmem>>, vector<1x8x128xf32>
    %371 = vector.shape_cast %370 : vector<1x8x128xf32> to vector<8x128xf32>
    %cst_392 = arith.constant dense<0.000000e+00> : vector<8x128xf32>
    %372 = tpu.matmul %369, %371, %cst_392 {dimension_numbers = #tpu.dot_dimension_numbers<[1], [0], [0], [1], [0, 0, 1, 1], [], []>} : vector<8x8xf32>, vector<8x128xf32>, vector<8x128xf32> -> vector<8x128xf32>
    %373 = arith.addf %367, %372 : vector<8x128xf32>
    %c7_393 = arith.constant 7 : index
    %c0_394 = arith.constant 0 : index
    %c0_395 = arith.constant 0 : index
    %374 = vector.load %arg4[%c7_393, %c0_394, %c0_395] : memref<21x8x8xf32, #tpu.memory_space<vmem>>, vector<1x8x8xf32>
    %375 = vector.shape_cast %374 : vector<1x8x8xf32> to vector<8x8xf32>
    %c1_396 = arith.constant 1 : index
    %c0_397 = arith.constant 0 : index
    %c7_398 = arith.constant 7 : index
    %376 = vector.load %arg9[%c1_396, %c0_397, %c7_398] : memref<2x8x148xf32, #tpu.memory_space<vmem>>, vector<1x8x128xf32>
    %377 = vector.shape_cast %376 : vector<1x8x128xf32> to vector<8x128xf32>
    %cst_399 = arith.constant dense<0.000000e+00> : vector<8x128xf32>
    %378 = tpu.matmul %375, %377, %cst_399 {dimension_numbers = #tpu.dot_dimension_numbers<[1], [0], [0], [1], [0, 0, 1, 1], [], []>} : vector<8x8xf32>, vector<8x128xf32>, vector<8x128xf32> -> vector<8x128xf32>
    %379 = arith.addf %373, %378 : vector<8x128xf32>
    %c8_400 = arith.constant 8 : index
    %c0_401 = arith.constant 0 : index
    %c0_402 = arith.constant 0 : index
    %380 = vector.load %arg4[%c8_400, %c0_401, %c0_402] : memref<21x8x8xf32, #tpu.memory_space<vmem>>, vector<1x8x8xf32>
    %381 = vector.shape_cast %380 : vector<1x8x8xf32> to vector<8x8xf32>
    %c1_403 = arith.constant 1 : index
    %c0_404 = arith.constant 0 : index
    %c8_405 = arith.constant 8 : index
    %382 = vector.load %arg9[%c1_403, %c0_404, %c8_405] : memref<2x8x148xf32, #tpu.memory_space<vmem>>, vector<1x8x128xf32>
    %383 = vector.shape_cast %382 : vector<1x8x128xf32> to vector<8x128xf32>
    %cst_406 = arith.constant dense<0.000000e+00> : vector<8x128xf32>
    %384 = tpu.matmul %381, %383, %cst_406 {dimension_numbers = #tpu.dot_dimension_numbers<[1], [0], [0], [1], [0, 0, 1, 1], [], []>} : vector<8x8xf32>, vector<8x128xf32>, vector<8x128xf32> -> vector<8x128xf32>
    %385 = arith.addf %379, %384 : vector<8x128xf32>
    %c9_407 = arith.constant 9 : index
    %c0_408 = arith.constant 0 : index
    %c0_409 = arith.constant 0 : index
    %386 = vector.load %arg4[%c9_407, %c0_408, %c0_409] : memref<21x8x8xf32, #tpu.memory_space<vmem>>, vector<1x8x8xf32>
    %387 = vector.shape_cast %386 : vector<1x8x8xf32> to vector<8x8xf32>
    %c1_410 = arith.constant 1 : index
    %c0_411 = arith.constant 0 : index
    %c9_412 = arith.constant 9 : index
    %388 = vector.load %arg9[%c1_410, %c0_411, %c9_412] : memref<2x8x148xf32, #tpu.memory_space<vmem>>, vector<1x8x128xf32>
    %389 = vector.shape_cast %388 : vector<1x8x128xf32> to vector<8x128xf32>
    %cst_413 = arith.constant dense<0.000000e+00> : vector<8x128xf32>
    %390 = tpu.matmul %387, %389, %cst_413 {dimension_numbers = #tpu.dot_dimension_numbers<[1], [0], [0], [1], [0, 0, 1, 1], [], []>} : vector<8x8xf32>, vector<8x128xf32>, vector<8x128xf32> -> vector<8x128xf32>
    %391 = arith.addf %385, %390 : vector<8x128xf32>
    %c10_414 = arith.constant 10 : index
    %c0_415 = arith.constant 0 : index
    %c0_416 = arith.constant 0 : index
    %392 = vector.load %arg4[%c10_414, %c0_415, %c0_416] : memref<21x8x8xf32, #tpu.memory_space<vmem>>, vector<1x8x8xf32>
    %393 = vector.shape_cast %392 : vector<1x8x8xf32> to vector<8x8xf32>
    %c1_417 = arith.constant 1 : index
    %c0_418 = arith.constant 0 : index
    %c10_419 = arith.constant 10 : index
    %394 = vector.load %arg9[%c1_417, %c0_418, %c10_419] : memref<2x8x148xf32, #tpu.memory_space<vmem>>, vector<1x8x128xf32>
    %395 = vector.shape_cast %394 : vector<1x8x128xf32> to vector<8x128xf32>
    %cst_420 = arith.constant dense<0.000000e+00> : vector<8x128xf32>
    %396 = tpu.matmul %393, %395, %cst_420 {dimension_numbers = #tpu.dot_dimension_numbers<[1], [0], [0], [1], [0, 0, 1, 1], [], []>} : vector<8x8xf32>, vector<8x128xf32>, vector<8x128xf32> -> vector<8x128xf32>
    %397 = arith.addf %391, %396 : vector<8x128xf32>
    %c11_421 = arith.constant 11 : index
    %c0_422 = arith.constant 0 : index
    %c0_423 = arith.constant 0 : index
    %398 = vector.load %arg4[%c11_421, %c0_422, %c0_423] : memref<21x8x8xf32, #tpu.memory_space<vmem>>, vector<1x8x8xf32>
    %399 = vector.shape_cast %398 : vector<1x8x8xf32> to vector<8x8xf32>
    %c1_424 = arith.constant 1 : index
    %c0_425 = arith.constant 0 : index
    %c11_426 = arith.constant 11 : index
    %400 = vector.load %arg9[%c1_424, %c0_425, %c11_426] : memref<2x8x148xf32, #tpu.memory_space<vmem>>, vector<1x8x128xf32>
    %401 = vector.shape_cast %400 : vector<1x8x128xf32> to vector<8x128xf32>
    %cst_427 = arith.constant dense<0.000000e+00> : vector<8x128xf32>
    %402 = tpu.matmul %399, %401, %cst_427 {dimension_numbers = #tpu.dot_dimension_numbers<[1], [0], [0], [1], [0, 0, 1, 1], [], []>} : vector<8x8xf32>, vector<8x128xf32>, vector<8x128xf32> -> vector<8x128xf32>
    %403 = arith.addf %397, %402 : vector<8x128xf32>
    %c12_428 = arith.constant 12 : index
    %c0_429 = arith.constant 0 : index
    %c0_430 = arith.constant 0 : index
    %404 = vector.load %arg4[%c12_428, %c0_429, %c0_430] : memref<21x8x8xf32, #tpu.memory_space<vmem>>, vector<1x8x8xf32>
    %405 = vector.shape_cast %404 : vector<1x8x8xf32> to vector<8x8xf32>
    %c1_431 = arith.constant 1 : index
    %c0_432 = arith.constant 0 : index
    %c12_433 = arith.constant 12 : index
    %406 = vector.load %arg9[%c1_431, %c0_432, %c12_433] : memref<2x8x148xf32, #tpu.memory_space<vmem>>, vector<1x8x128xf32>
    %407 = vector.shape_cast %406 : vector<1x8x128xf32> to vector<8x128xf32>
    %cst_434 = arith.constant dense<0.000000e+00> : vector<8x128xf32>
    %408 = tpu.matmul %405, %407, %cst_434 {dimension_numbers = #tpu.dot_dimension_numbers<[1], [0], [0], [1], [0, 0, 1, 1], [], []>} : vector<8x8xf32>, vector<8x128xf32>, vector<8x128xf32> -> vector<8x128xf32>
    %409 = arith.addf %403, %408 : vector<8x128xf32>
    %c13_435 = arith.constant 13 : index
    %c0_436 = arith.constant 0 : index
    %c0_437 = arith.constant 0 : index
    %410 = vector.load %arg4[%c13_435, %c0_436, %c0_437] : memref<21x8x8xf32, #tpu.memory_space<vmem>>, vector<1x8x8xf32>
    %411 = vector.shape_cast %410 : vector<1x8x8xf32> to vector<8x8xf32>
    %c1_438 = arith.constant 1 : index
    %c0_439 = arith.constant 0 : index
    %c13_440 = arith.constant 13 : index
    %412 = vector.load %arg9[%c1_438, %c0_439, %c13_440] : memref<2x8x148xf32, #tpu.memory_space<vmem>>, vector<1x8x128xf32>
    %413 = vector.shape_cast %412 : vector<1x8x128xf32> to vector<8x128xf32>
    %cst_441 = arith.constant dense<0.000000e+00> : vector<8x128xf32>
    %414 = tpu.matmul %411, %413, %cst_441 {dimension_numbers = #tpu.dot_dimension_numbers<[1], [0], [0], [1], [0, 0, 1, 1], [], []>} : vector<8x8xf32>, vector<8x128xf32>, vector<8x128xf32> -> vector<8x128xf32>
    %415 = arith.addf %409, %414 : vector<8x128xf32>
    %c14_442 = arith.constant 14 : index
    %c0_443 = arith.constant 0 : index
    %c0_444 = arith.constant 0 : index
    %416 = vector.load %arg4[%c14_442, %c0_443, %c0_444] : memref<21x8x8xf32, #tpu.memory_space<vmem>>, vector<1x8x8xf32>
    %417 = vector.shape_cast %416 : vector<1x8x8xf32> to vector<8x8xf32>
    %c1_445 = arith.constant 1 : index
    %c0_446 = arith.constant 0 : index
    %c14_447 = arith.constant 14 : index
    %418 = vector.load %arg9[%c1_445, %c0_446, %c14_447] : memref<2x8x148xf32, #tpu.memory_space<vmem>>, vector<1x8x128xf32>
    %419 = vector.shape_cast %418 : vector<1x8x128xf32> to vector<8x128xf32>
    %cst_448 = arith.constant dense<0.000000e+00> : vector<8x128xf32>
    %420 = tpu.matmul %417, %419, %cst_448 {dimension_numbers = #tpu.dot_dimension_numbers<[1], [0], [0], [1], [0, 0, 1, 1], [], []>} : vector<8x8xf32>, vector<8x128xf32>, vector<8x128xf32> -> vector<8x128xf32>
    %421 = arith.addf %415, %420 : vector<8x128xf32>
    %c15_449 = arith.constant 15 : index
    %c0_450 = arith.constant 0 : index
    %c0_451 = arith.constant 0 : index
    %422 = vector.load %arg4[%c15_449, %c0_450, %c0_451] : memref<21x8x8xf32, #tpu.memory_space<vmem>>, vector<1x8x8xf32>
    %423 = vector.shape_cast %422 : vector<1x8x8xf32> to vector<8x8xf32>
    %c1_452 = arith.constant 1 : index
    %c0_453 = arith.constant 0 : index
    %c15_454 = arith.constant 15 : index
    %424 = vector.load %arg9[%c1_452, %c0_453, %c15_454] : memref<2x8x148xf32, #tpu.memory_space<vmem>>, vector<1x8x128xf32>
    %425 = vector.shape_cast %424 : vector<1x8x128xf32> to vector<8x128xf32>
    %cst_455 = arith.constant dense<0.000000e+00> : vector<8x128xf32>
    %426 = tpu.matmul %423, %425, %cst_455 {dimension_numbers = #tpu.dot_dimension_numbers<[1], [0], [0], [1], [0, 0, 1, 1], [], []>} : vector<8x8xf32>, vector<8x128xf32>, vector<8x128xf32> -> vector<8x128xf32>
    %427 = arith.addf %421, %426 : vector<8x128xf32>
    %c16_456 = arith.constant 16 : index
    %c0_457 = arith.constant 0 : index
    %c0_458 = arith.constant 0 : index
    %428 = vector.load %arg4[%c16_456, %c0_457, %c0_458] : memref<21x8x8xf32, #tpu.memory_space<vmem>>, vector<1x8x8xf32>
    %429 = vector.shape_cast %428 : vector<1x8x8xf32> to vector<8x8xf32>
    %c1_459 = arith.constant 1 : index
    %c0_460 = arith.constant 0 : index
    %c16_461 = arith.constant 16 : index
    %430 = vector.load %arg9[%c1_459, %c0_460, %c16_461] : memref<2x8x148xf32, #tpu.memory_space<vmem>>, vector<1x8x128xf32>
    %431 = vector.shape_cast %430 : vector<1x8x128xf32> to vector<8x128xf32>
    %cst_462 = arith.constant dense<0.000000e+00> : vector<8x128xf32>
    %432 = tpu.matmul %429, %431, %cst_462 {dimension_numbers = #tpu.dot_dimension_numbers<[1], [0], [0], [1], [0, 0, 1, 1], [], []>} : vector<8x8xf32>, vector<8x128xf32>, vector<8x128xf32> -> vector<8x128xf32>
    %433 = arith.addf %427, %432 : vector<8x128xf32>
    %c17_463 = arith.constant 17 : index
    %c0_464 = arith.constant 0 : index
    %c0_465 = arith.constant 0 : index
    %434 = vector.load %arg4[%c17_463, %c0_464, %c0_465] : memref<21x8x8xf32, #tpu.memory_space<vmem>>, vector<1x8x8xf32>
    %435 = vector.shape_cast %434 : vector<1x8x8xf32> to vector<8x8xf32>
    %c1_466 = arith.constant 1 : index
    %c0_467 = arith.constant 0 : index
    %c17_468 = arith.constant 17 : index
    %436 = vector.load %arg9[%c1_466, %c0_467, %c17_468] : memref<2x8x148xf32, #tpu.memory_space<vmem>>, vector<1x8x128xf32>
    %437 = vector.shape_cast %436 : vector<1x8x128xf32> to vector<8x128xf32>
    %cst_469 = arith.constant dense<0.000000e+00> : vector<8x128xf32>
    %438 = tpu.matmul %435, %437, %cst_469 {dimension_numbers = #tpu.dot_dimension_numbers<[1], [0], [0], [1], [0, 0, 1, 1], [], []>} : vector<8x8xf32>, vector<8x128xf32>, vector<8x128xf32> -> vector<8x128xf32>
    %439 = arith.addf %433, %438 : vector<8x128xf32>
    %c18_470 = arith.constant 18 : index
    %c0_471 = arith.constant 0 : index
    %c0_472 = arith.constant 0 : index
    %440 = vector.load %arg4[%c18_470, %c0_471, %c0_472] : memref<21x8x8xf32, #tpu.memory_space<vmem>>, vector<1x8x8xf32>
    %441 = vector.shape_cast %440 : vector<1x8x8xf32> to vector<8x8xf32>
    %c1_473 = arith.constant 1 : index
    %c0_474 = arith.constant 0 : index
    %c18_475 = arith.constant 18 : index
    %442 = vector.load %arg9[%c1_473, %c0_474, %c18_475] : memref<2x8x148xf32, #tpu.memory_space<vmem>>, vector<1x8x128xf32>
    %443 = vector.shape_cast %442 : vector<1x8x128xf32> to vector<8x128xf32>
    %cst_476 = arith.constant dense<0.000000e+00> : vector<8x128xf32>
    %444 = tpu.matmul %441, %443, %cst_476 {dimension_numbers = #tpu.dot_dimension_numbers<[1], [0], [0], [1], [0, 0, 1, 1], [], []>} : vector<8x8xf32>, vector<8x128xf32>, vector<8x128xf32> -> vector<8x128xf32>
    %445 = arith.addf %439, %444 : vector<8x128xf32>
    %c19_477 = arith.constant 19 : index
    %c0_478 = arith.constant 0 : index
    %c0_479 = arith.constant 0 : index
    %446 = vector.load %arg4[%c19_477, %c0_478, %c0_479] : memref<21x8x8xf32, #tpu.memory_space<vmem>>, vector<1x8x8xf32>
    %447 = vector.shape_cast %446 : vector<1x8x8xf32> to vector<8x8xf32>
    %c1_480 = arith.constant 1 : index
    %c0_481 = arith.constant 0 : index
    %c19_482 = arith.constant 19 : index
    %448 = vector.load %arg9[%c1_480, %c0_481, %c19_482] : memref<2x8x148xf32, #tpu.memory_space<vmem>>, vector<1x8x128xf32>
    %449 = vector.shape_cast %448 : vector<1x8x128xf32> to vector<8x128xf32>
    %cst_483 = arith.constant dense<0.000000e+00> : vector<8x128xf32>
    %450 = tpu.matmul %447, %449, %cst_483 {dimension_numbers = #tpu.dot_dimension_numbers<[1], [0], [0], [1], [0, 0, 1, 1], [], []>} : vector<8x8xf32>, vector<8x128xf32>, vector<8x128xf32> -> vector<8x128xf32>
    %451 = arith.addf %445, %450 : vector<8x128xf32>
    %c20_484 = arith.constant 20 : index
    %c0_485 = arith.constant 0 : index
    %c0_486 = arith.constant 0 : index
    %452 = vector.load %arg4[%c20_484, %c0_485, %c0_486] : memref<21x8x8xf32, #tpu.memory_space<vmem>>, vector<1x8x8xf32>
    %453 = vector.shape_cast %452 : vector<1x8x8xf32> to vector<8x8xf32>
    %c1_487 = arith.constant 1 : index
    %c0_488 = arith.constant 0 : index
    %c20_489 = arith.constant 20 : index
    %454 = vector.load %arg9[%c1_487, %c0_488, %c20_489] : memref<2x8x148xf32, #tpu.memory_space<vmem>>, vector<1x8x128xf32>
    %455 = vector.shape_cast %454 : vector<1x8x128xf32> to vector<8x128xf32>
    %cst_490 = arith.constant dense<0.000000e+00> : vector<8x128xf32>
    %456 = tpu.matmul %453, %455, %cst_490 {dimension_numbers = #tpu.dot_dimension_numbers<[1], [0], [0], [1], [0, 0, 1, 1], [], []>} : vector<8x8xf32>, vector<8x128xf32>, vector<8x128xf32> -> vector<8x128xf32>
    %457 = arith.addf %451, %456 : vector<8x128xf32>
    %cst_491 = arith.constant 0.000000e+00 : f32
    %458 = vector.broadcast %cst_491 : f32 to vector<8x128xf32>
    %459 = arith.maximumf %457, %458 : vector<8x128xf32>
    %cst_492 = arith.constant 0.000000e+00 : f32
    %460 = vector.shape_cast %34 : vector<1x128xi1> to vector<1x128xi1>
    %461 = vector.broadcast %460 : vector<1x128xi1> to vector<8x128xi1>
    %462 = vector.broadcast %cst_492 : f32 to vector<8x128xf32>
    %463 = arith.select %461, %459, %462 : vector<8x128xi1>, vector<8x128xf32>
    %c0_493 = arith.constant 0 : index
    %c0_494 = arith.constant 0 : index
    %464 = vector.load %arg11[%c0_493, %c0_494] : memref<8x128xf32, #tpu.memory_space<vmem>>, vector<8x128xf32>
    tpu.vector_store %arg11[%c0_493, %c0_494], %463 {strides = array<i32>} : memref<8x128xf32, #tpu.memory_space<vmem>>, vector<8x128xf32>,
    %c1_495 = arith.constant 1 : index
    %c0_496 = arith.constant 0 : index
    %c10_497 = arith.constant 10 : index
    %465 = vector.load %arg10[%c1_495, %c0_496, %c10_497] : memref<2x8x148xf32, #tpu.memory_space<vmem>>, vector<1x8x128xf32>
    %466 = vector.shape_cast %465 : vector<1x8x128xf32> to vector<8x128xf32>
    %467 = vector.shape_cast %463 : vector<8x128xf32> to vector<1x8x128xf32>
    tpu.vector_store %arg10[%c1_495, %c0_496, %c10_497], %467 {strides = array<i32>} : memref<2x8x148xf32, #tpu.memory_space<vmem>>, vector<1x8x128xf32>,
    %c0_498 = arith.constant 0 : index
    %c0_499 = arith.constant 0 : index
    %c0_500 = arith.constant 0 : index
    %468 = vector.load %arg6[%c0_498, %c0_499, %c0_500] : memref<21x8x8xf32, #tpu.memory_space<vmem>>, vector<1x8x8xf32>
    %469 = vector.shape_cast %468 : vector<1x8x8xf32> to vector<8x8xf32>
    %c1_501 = arith.constant 1 : index
    %c0_502 = arith.constant 0 : index
    %c0_503 = arith.constant 0 : index
    %470 = vector.load %arg10[%c1_501, %c0_502, %c0_503] : memref<2x8x148xf32, #tpu.memory_space<vmem>>, vector<1x8x128xf32>
    %471 = vector.shape_cast %470 : vector<1x8x128xf32> to vector<8x128xf32>
    %cst_504 = arith.constant dense<0.000000e+00> : vector<8x128xf32>
    %472 = tpu.matmul %469, %471, %cst_504 {dimension_numbers = #tpu.dot_dimension_numbers<[1], [0], [0], [1], [0, 0, 1, 1], [], []>} : vector<8x8xf32>, vector<8x128xf32>, vector<8x128xf32> -> vector<8x128xf32>
    %473 = arith.addf %40, %472 : vector<8x128xf32>
    %c1_505 = arith.constant 1 : index
    %c0_506 = arith.constant 0 : index
    %c0_507 = arith.constant 0 : index
    %474 = vector.load %arg6[%c1_505, %c0_506, %c0_507] : memref<21x8x8xf32, #tpu.memory_space<vmem>>, vector<1x8x8xf32>
    %475 = vector.shape_cast %474 : vector<1x8x8xf32> to vector<8x8xf32>
    %c1_508 = arith.constant 1 : index
    %c0_509 = arith.constant 0 : index
    %c1_510 = arith.constant 1 : index
    %476 = vector.load %arg10[%c1_508, %c0_509, %c1_510] : memref<2x8x148xf32, #tpu.memory_space<vmem>>, vector<1x8x128xf32>
    %477 = vector.shape_cast %476 : vector<1x8x128xf32> to vector<8x128xf32>
    %cst_511 = arith.constant dense<0.000000e+00> : vector<8x128xf32>
    %478 = tpu.matmul %475, %477, %cst_511 {dimension_numbers = #tpu.dot_dimension_numbers<[1], [0], [0], [1], [0, 0, 1, 1], [], []>} : vector<8x8xf32>, vector<8x128xf32>, vector<8x128xf32> -> vector<8x128xf32>
    %479 = arith.addf %473, %478 : vector<8x128xf32>
    %c2_512 = arith.constant 2 : index
    %c0_513 = arith.constant 0 : index
    %c0_514 = arith.constant 0 : index
    %480 = vector.load %arg6[%c2_512, %c0_513, %c0_514] : memref<21x8x8xf32, #tpu.memory_space<vmem>>, vector<1x8x8xf32>
    %481 = vector.shape_cast %480 : vector<1x8x8xf32> to vector<8x8xf32>
    %c1_515 = arith.constant 1 : index
    %c0_516 = arith.constant 0 : index
    %c2_517 = arith.constant 2 : index
    %482 = vector.load %arg10[%c1_515, %c0_516, %c2_517] : memref<2x8x148xf32, #tpu.memory_space<vmem>>, vector<1x8x128xf32>
    %483 = vector.shape_cast %482 : vector<1x8x128xf32> to vector<8x128xf32>
    %cst_518 = arith.constant dense<0.000000e+00> : vector<8x128xf32>
    %484 = tpu.matmul %481, %483, %cst_518 {dimension_numbers = #tpu.dot_dimension_numbers<[1], [0], [0], [1], [0, 0, 1, 1], [], []>} : vector<8x8xf32>, vector<8x128xf32>, vector<8x128xf32> -> vector<8x128xf32>
    %485 = arith.addf %479, %484 : vector<8x128xf32>
    %c3_519 = arith.constant 3 : index
    %c0_520 = arith.constant 0 : index
    %c0_521 = arith.constant 0 : index
    %486 = vector.load %arg6[%c3_519, %c0_520, %c0_521] : memref<21x8x8xf32, #tpu.memory_space<vmem>>, vector<1x8x8xf32>
    %487 = vector.shape_cast %486 : vector<1x8x8xf32> to vector<8x8xf32>
    %c1_522 = arith.constant 1 : index
    %c0_523 = arith.constant 0 : index
    %c3_524 = arith.constant 3 : index
    %488 = vector.load %arg10[%c1_522, %c0_523, %c3_524] : memref<2x8x148xf32, #tpu.memory_space<vmem>>, vector<1x8x128xf32>
    %489 = vector.shape_cast %488 : vector<1x8x128xf32> to vector<8x128xf32>
    %cst_525 = arith.constant dense<0.000000e+00> : vector<8x128xf32>
    %490 = tpu.matmul %487, %489, %cst_525 {dimension_numbers = #tpu.dot_dimension_numbers<[1], [0], [0], [1], [0, 0, 1, 1], [], []>} : vector<8x8xf32>, vector<8x128xf32>, vector<8x128xf32> -> vector<8x128xf32>
    %491 = arith.addf %485, %490 : vector<8x128xf32>
    %c4_526 = arith.constant 4 : index
    %c0_527 = arith.constant 0 : index
    %c0_528 = arith.constant 0 : index
    %492 = vector.load %arg6[%c4_526, %c0_527, %c0_528] : memref<21x8x8xf32, #tpu.memory_space<vmem>>, vector<1x8x8xf32>
    %493 = vector.shape_cast %492 : vector<1x8x8xf32> to vector<8x8xf32>
    %c1_529 = arith.constant 1 : index
    %c0_530 = arith.constant 0 : index
    %c4_531 = arith.constant 4 : index
    %494 = vector.load %arg10[%c1_529, %c0_530, %c4_531] : memref<2x8x148xf32, #tpu.memory_space<vmem>>, vector<1x8x128xf32>
    %495 = vector.shape_cast %494 : vector<1x8x128xf32> to vector<8x128xf32>
    %cst_532 = arith.constant dense<0.000000e+00> : vector<8x128xf32>
    %496 = tpu.matmul %493, %495, %cst_532 {dimension_numbers = #tpu.dot_dimension_numbers<[1], [0], [0], [1], [0, 0, 1, 1], [], []>} : vector<8x8xf32>, vector<8x128xf32>, vector<8x128xf32> -> vector<8x128xf32>
    %497 = arith.addf %491, %496 : vector<8x128xf32>
    %c5_533 = arith.constant 5 : index
    %c0_534 = arith.constant 0 : index
    %c0_535 = arith.constant 0 : index
    %498 = vector.load %arg6[%c5_533, %c0_534, %c0_535] : memref<21x8x8xf32, #tpu.memory_space<vmem>>, vector<1x8x8xf32>
    %499 = vector.shape_cast %498 : vector<1x8x8xf32> to vector<8x8xf32>
    %c1_536 = arith.constant 1 : index
    %c0_537 = arith.constant 0 : index
    %c5_538 = arith.constant 5 : index
    %500 = vector.load %arg10[%c1_536, %c0_537, %c5_538] : memref<2x8x148xf32, #tpu.memory_space<vmem>>, vector<1x8x128xf32>
    %501 = vector.shape_cast %500 : vector<1x8x128xf32> to vector<8x128xf32>
    %cst_539 = arith.constant dense<0.000000e+00> : vector<8x128xf32>
    %502 = tpu.matmul %499, %501, %cst_539 {dimension_numbers = #tpu.dot_dimension_numbers<[1], [0], [0], [1], [0, 0, 1, 1], [], []>} : vector<8x8xf32>, vector<8x128xf32>, vector<8x128xf32> -> vector<8x128xf32>
    %503 = arith.addf %497, %502 : vector<8x128xf32>
    %c6_540 = arith.constant 6 : index
    %c0_541 = arith.constant 0 : index
    %c0_542 = arith.constant 0 : index
    %504 = vector.load %arg6[%c6_540, %c0_541, %c0_542] : memref<21x8x8xf32, #tpu.memory_space<vmem>>, vector<1x8x8xf32>
    %505 = vector.shape_cast %504 : vector<1x8x8xf32> to vector<8x8xf32>
    %c1_543 = arith.constant 1 : index
    %c0_544 = arith.constant 0 : index
    %c6_545 = arith.constant 6 : index
    %506 = vector.load %arg10[%c1_543, %c0_544, %c6_545] : memref<2x8x148xf32, #tpu.memory_space<vmem>>, vector<1x8x128xf32>
    %507 = vector.shape_cast %506 : vector<1x8x128xf32> to vector<8x128xf32>
    %cst_546 = arith.constant dense<0.000000e+00> : vector<8x128xf32>
    %508 = tpu.matmul %505, %507, %cst_546 {dimension_numbers = #tpu.dot_dimension_numbers<[1], [0], [0], [1], [0, 0, 1, 1], [], []>} : vector<8x8xf32>, vector<8x128xf32>, vector<8x128xf32> -> vector<8x128xf32>
    %509 = arith.addf %503, %508 : vector<8x128xf32>
    %c7_547 = arith.constant 7 : index
    %c0_548 = arith.constant 0 : index
    %c0_549 = arith.constant 0 : index
    %510 = vector.load %arg6[%c7_547, %c0_548, %c0_549] : memref<21x8x8xf32, #tpu.memory_space<vmem>>, vector<1x8x8xf32>
    %511 = vector.shape_cast %510 : vector<1x8x8xf32> to vector<8x8xf32>
    %c1_550 = arith.constant 1 : index
    %c0_551 = arith.constant 0 : index
    %c7_552 = arith.constant 7 : index
    %512 = vector.load %arg10[%c1_550, %c0_551, %c7_552] : memref<2x8x148xf32, #tpu.memory_space<vmem>>, vector<1x8x128xf32>
    %513 = vector.shape_cast %512 : vector<1x8x128xf32> to vector<8x128xf32>
    %cst_553 = arith.constant dense<0.000000e+00> : vector<8x128xf32>
    %514 = tpu.matmul %511, %513, %cst_553 {dimension_numbers = #tpu.dot_dimension_numbers<[1], [0], [0], [1], [0, 0, 1, 1], [], []>} : vector<8x8xf32>, vector<8x128xf32>, vector<8x128xf32> -> vector<8x128xf32>
    %515 = arith.addf %509, %514 : vector<8x128xf32>
    %c8_554 = arith.constant 8 : index
    %c0_555 = arith.constant 0 : index
    %c0_556 = arith.constant 0 : index
    %516 = vector.load %arg6[%c8_554, %c0_555, %c0_556] : memref<21x8x8xf32, #tpu.memory_space<vmem>>, vector<1x8x8xf32>
    %517 = vector.shape_cast %516 : vector<1x8x8xf32> to vector<8x8xf32>
    %c1_557 = arith.constant 1 : index
    %c0_558 = arith.constant 0 : index
    %c8_559 = arith.constant 8 : index
    %518 = vector.load %arg10[%c1_557, %c0_558, %c8_559] : memref<2x8x148xf32, #tpu.memory_space<vmem>>, vector<1x8x128xf32>
    %519 = vector.shape_cast %518 : vector<1x8x128xf32> to vector<8x128xf32>
    %cst_560 = arith.constant dense<0.000000e+00> : vector<8x128xf32>
    %520 = tpu.matmul %517, %519, %cst_560 {dimension_numbers = #tpu.dot_dimension_numbers<[1], [0], [0], [1], [0, 0, 1, 1], [], []>} : vector<8x8xf32>, vector<8x128xf32>, vector<8x128xf32> -> vector<8x128xf32>
    %521 = arith.addf %515, %520 : vector<8x128xf32>
    %c9_561 = arith.constant 9 : index
    %c0_562 = arith.constant 0 : index
    %c0_563 = arith.constant 0 : index
    %522 = vector.load %arg6[%c9_561, %c0_562, %c0_563] : memref<21x8x8xf32, #tpu.memory_space<vmem>>, vector<1x8x8xf32>
    %523 = vector.shape_cast %522 : vector<1x8x8xf32> to vector<8x8xf32>
    %c1_564 = arith.constant 1 : index
    %c0_565 = arith.constant 0 : index
    %c9_566 = arith.constant 9 : index
    %524 = vector.load %arg10[%c1_564, %c0_565, %c9_566] : memref<2x8x148xf32, #tpu.memory_space<vmem>>, vector<1x8x128xf32>
    %525 = vector.shape_cast %524 : vector<1x8x128xf32> to vector<8x128xf32>
    %cst_567 = arith.constant dense<0.000000e+00> : vector<8x128xf32>
    %526 = tpu.matmul %523, %525, %cst_567 {dimension_numbers = #tpu.dot_dimension_numbers<[1], [0], [0], [1], [0, 0, 1, 1], [], []>} : vector<8x8xf32>, vector<8x128xf32>, vector<8x128xf32> -> vector<8x128xf32>
    %527 = arith.addf %521, %526 : vector<8x128xf32>
    %c10_568 = arith.constant 10 : index
    %c0_569 = arith.constant 0 : index
    %c0_570 = arith.constant 0 : index
    %528 = vector.load %arg6[%c10_568, %c0_569, %c0_570] : memref<21x8x8xf32, #tpu.memory_space<vmem>>, vector<1x8x8xf32>
    %529 = vector.shape_cast %528 : vector<1x8x8xf32> to vector<8x8xf32>
    %c1_571 = arith.constant 1 : index
    %c0_572 = arith.constant 0 : index
    %c10_573 = arith.constant 10 : index
    %530 = vector.load %arg10[%c1_571, %c0_572, %c10_573] : memref<2x8x148xf32, #tpu.memory_space<vmem>>, vector<1x8x128xf32>
    %531 = vector.shape_cast %530 : vector<1x8x128xf32> to vector<8x128xf32>
    %cst_574 = arith.constant dense<0.000000e+00> : vector<8x128xf32>
    %532 = tpu.matmul %529, %531, %cst_574 {dimension_numbers = #tpu.dot_dimension_numbers<[1], [0], [0], [1], [0, 0, 1, 1], [], []>} : vector<8x8xf32>, vector<8x128xf32>, vector<8x128xf32> -> vector<8x128xf32>
    %533 = arith.addf %527, %532 : vector<8x128xf32>
    %c11_575 = arith.constant 11 : index
    %c0_576 = arith.constant 0 : index
    %c0_577 = arith.constant 0 : index
    %534 = vector.load %arg6[%c11_575, %c0_576, %c0_577] : memref<21x8x8xf32, #tpu.memory_space<vmem>>, vector<1x8x8xf32>
    %535 = vector.shape_cast %534 : vector<1x8x8xf32> to vector<8x8xf32>
    %c1_578 = arith.constant 1 : index
    %c0_579 = arith.constant 0 : index
    %c11_580 = arith.constant 11 : index
    %536 = vector.load %arg10[%c1_578, %c0_579, %c11_580] : memref<2x8x148xf32, #tpu.memory_space<vmem>>, vector<1x8x128xf32>
    %537 = vector.shape_cast %536 : vector<1x8x128xf32> to vector<8x128xf32>
    %cst_581 = arith.constant dense<0.000000e+00> : vector<8x128xf32>
    %538 = tpu.matmul %535, %537, %cst_581 {dimension_numbers = #tpu.dot_dimension_numbers<[1], [0], [0], [1], [0, 0, 1, 1], [], []>} : vector<8x8xf32>, vector<8x128xf32>, vector<8x128xf32> -> vector<8x128xf32>
    %539 = arith.addf %533, %538 : vector<8x128xf32>
    %c12_582 = arith.constant 12 : index
    %c0_583 = arith.constant 0 : index
    %c0_584 = arith.constant 0 : index
    %540 = vector.load %arg6[%c12_582, %c0_583, %c0_584] : memref<21x8x8xf32, #tpu.memory_space<vmem>>, vector<1x8x8xf32>
    %541 = vector.shape_cast %540 : vector<1x8x8xf32> to vector<8x8xf32>
    %c1_585 = arith.constant 1 : index
    %c0_586 = arith.constant 0 : index
    %c12_587 = arith.constant 12 : index
    %542 = vector.load %arg10[%c1_585, %c0_586, %c12_587] : memref<2x8x148xf32, #tpu.memory_space<vmem>>, vector<1x8x128xf32>
    %543 = vector.shape_cast %542 : vector<1x8x128xf32> to vector<8x128xf32>
    %cst_588 = arith.constant dense<0.000000e+00> : vector<8x128xf32>
    %544 = tpu.matmul %541, %543, %cst_588 {dimension_numbers = #tpu.dot_dimension_numbers<[1], [0], [0], [1], [0, 0, 1, 1], [], []>} : vector<8x8xf32>, vector<8x128xf32>, vector<8x128xf32> -> vector<8x128xf32>
    %545 = arith.addf %539, %544 : vector<8x128xf32>
    %c13_589 = arith.constant 13 : index
    %c0_590 = arith.constant 0 : index
    %c0_591 = arith.constant 0 : index
    %546 = vector.load %arg6[%c13_589, %c0_590, %c0_591] : memref<21x8x8xf32, #tpu.memory_space<vmem>>, vector<1x8x8xf32>
    %547 = vector.shape_cast %546 : vector<1x8x8xf32> to vector<8x8xf32>
    %c1_592 = arith.constant 1 : index
    %c0_593 = arith.constant 0 : index
    %c13_594 = arith.constant 13 : index
    %548 = vector.load %arg10[%c1_592, %c0_593, %c13_594] : memref<2x8x148xf32, #tpu.memory_space<vmem>>, vector<1x8x128xf32>
    %549 = vector.shape_cast %548 : vector<1x8x128xf32> to vector<8x128xf32>
    %cst_595 = arith.constant dense<0.000000e+00> : vector<8x128xf32>
    %550 = tpu.matmul %547, %549, %cst_595 {dimension_numbers = #tpu.dot_dimension_numbers<[1], [0], [0], [1], [0, 0, 1, 1], [], []>} : vector<8x8xf32>, vector<8x128xf32>, vector<8x128xf32> -> vector<8x128xf32>
    %551 = arith.addf %545, %550 : vector<8x128xf32>
    %c14_596 = arith.constant 14 : index
    %c0_597 = arith.constant 0 : index
    %c0_598 = arith.constant 0 : index
    %552 = vector.load %arg6[%c14_596, %c0_597, %c0_598] : memref<21x8x8xf32, #tpu.memory_space<vmem>>, vector<1x8x8xf32>
    %553 = vector.shape_cast %552 : vector<1x8x8xf32> to vector<8x8xf32>
    %c1_599 = arith.constant 1 : index
    %c0_600 = arith.constant 0 : index
    %c14_601 = arith.constant 14 : index
    %554 = vector.load %arg10[%c1_599, %c0_600, %c14_601] : memref<2x8x148xf32, #tpu.memory_space<vmem>>, vector<1x8x128xf32>
    %555 = vector.shape_cast %554 : vector<1x8x128xf32> to vector<8x128xf32>
    %cst_602 = arith.constant dense<0.000000e+00> : vector<8x128xf32>
    %556 = tpu.matmul %553, %555, %cst_602 {dimension_numbers = #tpu.dot_dimension_numbers<[1], [0], [0], [1], [0, 0, 1, 1], [], []>} : vector<8x8xf32>, vector<8x128xf32>, vector<8x128xf32> -> vector<8x128xf32>
    %557 = arith.addf %551, %556 : vector<8x128xf32>
    %c15_603 = arith.constant 15 : index
    %c0_604 = arith.constant 0 : index
    %c0_605 = arith.constant 0 : index
    %558 = vector.load %arg6[%c15_603, %c0_604, %c0_605] : memref<21x8x8xf32, #tpu.memory_space<vmem>>, vector<1x8x8xf32>
    %559 = vector.shape_cast %558 : vector<1x8x8xf32> to vector<8x8xf32>
    %c1_606 = arith.constant 1 : index
    %c0_607 = arith.constant 0 : index
    %c15_608 = arith.constant 15 : index
    %560 = vector.load %arg10[%c1_606, %c0_607, %c15_608] : memref<2x8x148xf32, #tpu.memory_space<vmem>>, vector<1x8x128xf32>
    %561 = vector.shape_cast %560 : vector<1x8x128xf32> to vector<8x128xf32>
    %cst_609 = arith.constant dense<0.000000e+00> : vector<8x128xf32>
    %562 = tpu.matmul %559, %561, %cst_609 {dimension_numbers = #tpu.dot_dimension_numbers<[1], [0], [0], [1], [0, 0, 1, 1], [], []>} : vector<8x8xf32>, vector<8x128xf32>, vector<8x128xf32> -> vector<8x128xf32>
    %563 = arith.addf %557, %562 : vector<8x128xf32>
    %c16_610 = arith.constant 16 : index
    %c0_611 = arith.constant 0 : index
    %c0_612 = arith.constant 0 : index
    %564 = vector.load %arg6[%c16_610, %c0_611, %c0_612] : memref<21x8x8xf32, #tpu.memory_space<vmem>>, vector<1x8x8xf32>
    %565 = vector.shape_cast %564 : vector<1x8x8xf32> to vector<8x8xf32>
    %c1_613 = arith.constant 1 : index
    %c0_614 = arith.constant 0 : index
    %c16_615 = arith.constant 16 : index
    %566 = vector.load %arg10[%c1_613, %c0_614, %c16_615] : memref<2x8x148xf32, #tpu.memory_space<vmem>>, vector<1x8x128xf32>
    %567 = vector.shape_cast %566 : vector<1x8x128xf32> to vector<8x128xf32>
    %cst_616 = arith.constant dense<0.000000e+00> : vector<8x128xf32>
    %568 = tpu.matmul %565, %567, %cst_616 {dimension_numbers = #tpu.dot_dimension_numbers<[1], [0], [0], [1], [0, 0, 1, 1], [], []>} : vector<8x8xf32>, vector<8x128xf32>, vector<8x128xf32> -> vector<8x128xf32>
    %569 = arith.addf %563, %568 : vector<8x128xf32>
    %c17_617 = arith.constant 17 : index
    %c0_618 = arith.constant 0 : index
    %c0_619 = arith.constant 0 : index
    %570 = vector.load %arg6[%c17_617, %c0_618, %c0_619] : memref<21x8x8xf32, #tpu.memory_space<vmem>>, vector<1x8x8xf32>
    %571 = vector.shape_cast %570 : vector<1x8x8xf32> to vector<8x8xf32>
    %c1_620 = arith.constant 1 : index
    %c0_621 = arith.constant 0 : index
    %c17_622 = arith.constant 17 : index
    %572 = vector.load %arg10[%c1_620, %c0_621, %c17_622] : memref<2x8x148xf32, #tpu.memory_space<vmem>>, vector<1x8x128xf32>
    %573 = vector.shape_cast %572 : vector<1x8x128xf32> to vector<8x128xf32>
    %cst_623 = arith.constant dense<0.000000e+00> : vector<8x128xf32>
    %574 = tpu.matmul %571, %573, %cst_623 {dimension_numbers = #tpu.dot_dimension_numbers<[1], [0], [0], [1], [0, 0, 1, 1], [], []>} : vector<8x8xf32>, vector<8x128xf32>, vector<8x128xf32> -> vector<8x128xf32>
    %575 = arith.addf %569, %574 : vector<8x128xf32>
    %c18_624 = arith.constant 18 : index
    %c0_625 = arith.constant 0 : index
    %c0_626 = arith.constant 0 : index
    %576 = vector.load %arg6[%c18_624, %c0_625, %c0_626] : memref<21x8x8xf32, #tpu.memory_space<vmem>>, vector<1x8x8xf32>
    %577 = vector.shape_cast %576 : vector<1x8x8xf32> to vector<8x8xf32>
    %c1_627 = arith.constant 1 : index
    %c0_628 = arith.constant 0 : index
    %c18_629 = arith.constant 18 : index
    %578 = vector.load %arg10[%c1_627, %c0_628, %c18_629] : memref<2x8x148xf32, #tpu.memory_space<vmem>>, vector<1x8x128xf32>
    %579 = vector.shape_cast %578 : vector<1x8x128xf32> to vector<8x128xf32>
    %cst_630 = arith.constant dense<0.000000e+00> : vector<8x128xf32>
    %580 = tpu.matmul %577, %579, %cst_630 {dimension_numbers = #tpu.dot_dimension_numbers<[1], [0], [0], [1], [0, 0, 1, 1], [], []>} : vector<8x8xf32>, vector<8x128xf32>, vector<8x128xf32> -> vector<8x128xf32>
    %581 = arith.addf %575, %580 : vector<8x128xf32>
    %c19_631 = arith.constant 19 : index
    %c0_632 = arith.constant 0 : index
    %c0_633 = arith.constant 0 : index
    %582 = vector.load %arg6[%c19_631, %c0_632, %c0_633] : memref<21x8x8xf32, #tpu.memory_space<vmem>>, vector<1x8x8xf32>
    %583 = vector.shape_cast %582 : vector<1x8x8xf32> to vector<8x8xf32>
    %c1_634 = arith.constant 1 : index
    %c0_635 = arith.constant 0 : index
    %c19_636 = arith.constant 19 : index
    %584 = vector.load %arg10[%c1_634, %c0_635, %c19_636] : memref<2x8x148xf32, #tpu.memory_space<vmem>>, vector<1x8x128xf32>
    %585 = vector.shape_cast %584 : vector<1x8x128xf32> to vector<8x128xf32>
    %cst_637 = arith.constant dense<0.000000e+00> : vector<8x128xf32>
    %586 = tpu.matmul %583, %585, %cst_637 {dimension_numbers = #tpu.dot_dimension_numbers<[1], [0], [0], [1], [0, 0, 1, 1], [], []>} : vector<8x8xf32>, vector<8x128xf32>, vector<8x128xf32> -> vector<8x128xf32>
    %587 = arith.addf %581, %586 : vector<8x128xf32>
    %c20_638 = arith.constant 20 : index
    %c0_639 = arith.constant 0 : index
    %c0_640 = arith.constant 0 : index
    %588 = vector.load %arg6[%c20_638, %c0_639, %c0_640] : memref<21x8x8xf32, #tpu.memory_space<vmem>>, vector<1x8x8xf32>
    %589 = vector.shape_cast %588 : vector<1x8x8xf32> to vector<8x8xf32>
    %c1_641 = arith.constant 1 : index
    %c0_642 = arith.constant 0 : index
    %c20_643 = arith.constant 20 : index
    %590 = vector.load %arg10[%c1_641, %c0_642, %c20_643] : memref<2x8x148xf32, #tpu.memory_space<vmem>>, vector<1x8x128xf32>
    %591 = vector.shape_cast %590 : vector<1x8x128xf32> to vector<8x128xf32>
    %cst_644 = arith.constant dense<0.000000e+00> : vector<8x128xf32>
    %592 = tpu.matmul %589, %591, %cst_644 {dimension_numbers = #tpu.dot_dimension_numbers<[1], [0], [0], [1], [0, 0, 1, 1], [], []>} : vector<8x8xf32>, vector<8x128xf32>, vector<8x128xf32> -> vector<8x128xf32>
    %593 = arith.addf %587, %592 : vector<8x128xf32>
    %cst_645 = arith.constant 0.000000e+00 : f32
    %594 = vector.broadcast %cst_645 : f32 to vector<8x128xf32>
    %595 = arith.maximumf %593, %594 : vector<8x128xf32>
    %c0_646 = arith.constant 0 : index
    %c0_647 = arith.constant 0 : index
    %596 = vector.load %arg11[%c0_646, %c0_647] : memref<8x128xf32, #tpu.memory_space<vmem>>, vector<8x128xf32>
    %597 = arith.addf %595, %596 : vector<8x128xf32>
    %c1_648 = arith.constant 1 : index
    %c0_649 = arith.constant 0 : index
    %c0_650 = arith.constant 0 : index
    %598 = vector.load %arg8[%c1_648, %c0_649, %c0_650] : memref<2x8x128xf32, #tpu.memory_space<vmem>>, vector<1x8x128xf32>
    %599 = vector.shape_cast %598 : vector<1x8x128xf32> to vector<8x128xf32>
    %600 = vector.shape_cast %597 : vector<8x128xf32> to vector<1x8x128xf32>
    tpu.vector_store %arg8[%c1_648, %c0_649, %c0_650], %600 {strides = array<i32>} : memref<2x8x128xf32, #tpu.memory_space<vmem>>, vector<1x8x128xf32>,
    return
  }
  func.func @transform_0(%arg0: i32) -> (i32, i32, i32) {
    %c0_i32 = arith.constant 0 : i32
    %c0_i32_0 = arith.constant 0 : i32
    %c0_i32_1 = arith.constant 0 : i32
    return %arg0, %c0_i32, %c0_i32_0 : i32, i32, i32
  }
  func.func @transform_1(%arg0: i32) -> (i32, i32, i32) {
    %c0_i32 = arith.constant 0 : i32
    %c0_i32_0 = arith.constant 0 : i32
    %c0_i32_1 = arith.constant 0 : i32
    return %arg0, %c0_i32, %c0_i32_0 : i32, i32, i32
  }
  func.func @transform_2(%arg0: i32) -> (i32, i32, i32) {
    %c0_i32 = arith.constant 0 : i32
    %c0_i32_0 = arith.constant 0 : i32
    %c0_i32_1 = arith.constant 0 : i32
    return %arg0, %c0_i32, %c0_i32_0 : i32, i32, i32
  }
  func.func @transform_3(%arg0: i32) -> (i32, i32, i32) {
    %c0_i32 = arith.constant 0 : i32
    %c0_i32_0 = arith.constant 0 : i32
    %c0_i32_1 = arith.constant 0 : i32
    %c0_i32_2 = arith.constant 0 : i32
    return %c0_i32, %c0_i32_0, %c0_i32_1 : i32, i32, i32
  }
  func.func @transform_4(%arg0: i32) -> (i32, i32) {
    %c0_i32 = arith.constant 0 : i32
    %c0_i32_0 = arith.constant 0 : i32
    %c0_i32_1 = arith.constant 0 : i32
    return %c0_i32, %c0_i32_0 : i32, i32
  }
  func.func @transform_5(%arg0: i32) -> (i32, i32, i32) {
    %c0_i32 = arith.constant 0 : i32
    %c0_i32_0 = arith.constant 0 : i32
    %c0_i32_1 = arith.constant 0 : i32
    %c0_i32_2 = arith.constant 0 : i32
    return %c0_i32, %c0_i32_0, %c0_i32_1 : i32, i32, i32
  }
  func.func @transform_6(%arg0: i32) -> (i32, i32) {
    %c0_i32 = arith.constant 0 : i32
    %c0_i32_0 = arith.constant 0 : i32
    %c0_i32_1 = arith.constant 0 : i32
    return %c0_i32, %c0_i32_0 : i32, i32
  }
  func.func @transform_7(%arg0: i32) -> (i32, i32, i32) {
    %c0_i32 = arith.constant 0 : i32
    %c0_i32_0 = arith.constant 0 : i32
    %c0_i32_1 = arith.constant 0 : i32
    return %arg0, %c0_i32, %c0_i32_0 : i32, i32, i32
  }
}

</mosaic_0001>

<llo_original>
// kernel: tpu_custom_call.1
$region0: #{tpu_custom_call.1}
  #allocation0 [shape = 'u32[]', space=smem, size = 0x4, offset = 0x4, fixed_abs, tag = 'smem constant byte address 0x4 - core index']
  #allocation1 [shape = 'u32[144,128]{1,0:T(1,128)}', space=vmem, size = 0x12000, scoped, tag = 'internal scratch']
  #allocation2 [shape = 'f32[2,8,148]{2,1,0:T(8,128)}', space=vmem, size = 0x4000, scoped, tag = 'scratch operand']
  #allocation3 [shape = 'f32[2,8,148]{2,1,0:T(8,128)}', space=vmem, size = 0x4000, scoped, tag = 'scratch operand']
  #allocation4 [shape = 'f32[8,128]{1,0:T(8,128)}', space=vmem, size = 0x1000, scoped, tag = 'scratch operand']
  %s0 = inlined_call_operand.vmem [shape: f32[2,8,128], index: 0, kind: input, shape index: {}]
  %s1 = inlined_call_operand.vmem [shape: f32[2,8,128], index: 1, kind: input, shape index: {}]
  %s2 = inlined_call_operand.vmem [shape: f32[2,8,128], index: 2, kind: input, shape index: {}]
  %s3 = inlined_call_operand.vmem [shape: f32[21,8,8], index: 3, kind: input, shape index: {}]
  %s4 = inlined_call_operand.vmem [shape: f32[8,1], index: 4, kind: input, shape index: {}]
  %s5 = inlined_call_operand.vmem [shape: f32[21,8,8], index: 5, kind: input, shape index: {}]
  %s6 = inlined_call_operand.vmem [shape: f32[8,1], index: 6, kind: input, shape index: {}]
  %s7 = inlined_call_operand.hbm [shape: f32[2,8,128], index: 7, kind: output, shape index: {}]
  %s8 = sld [smem:[#allocation0]]
  $region38: #{tpu_custom_call.1} parent=0
    _
  %s10 = ssub.s32 1, %s8
  %s11 = scalar_select 0, %s10, %s8
  $region1: #{tpu_custom_call.1} parent=0
    #allocation5 [shape = 'u8[8192]{0}', space=vmem, size = 0x2000, scoped, tag = 'output window, operand 0, single buffered']
    #allocation6 [shape = 's32[1]{0}', space=sflag, size = 0x4, scoped, tag = 'scoped memory for tpu_custom_call.1']
    %12 = vsyncpa [#allocation6], 0
    // Predicated region
    $region2: #{tpu_custom_call.1} parent=1 // pred_check
      _
    $region3: #{tpu_custom_call.1} parent=1 // pred_check_branch
      %14 = sbr.rel (0) target = $region5
    $region4: #{tpu_custom_call.1} parent=1 // pred_region
      _
    $region5: #{tpu_custom_call.1} parent=1 // pred_fallthru
      _
    // Predicated region
    $region6: #{tpu_custom_call.1} parent=1 // pred_check
      _
    $region7: #{tpu_custom_call.1} parent=1 // pred_check_branch
      %16 = sbr.rel (0) target = $region9
    $region8: #{tpu_custom_call.1} parent=1 // pred_region
      _
    $region9: #{tpu_custom_call.1} parent=1 // pred_fallthru
      _
    // Predicated region
    $region10: #{tpu_custom_call.1} parent=1 // pred_check
      _
    $region11: #{tpu_custom_call.1} parent=1 // pred_check_branch
      %18 = sbr.rel (0) target = $region13
    $region12: #{tpu_custom_call.1} parent=1 // pred_region
      _
    $region13: #{tpu_custom_call.1} parent=1 // pred_fallthru
      _
    // Predicated region
    $region14: #{tpu_custom_call.1} parent=1 // pred_check
      _
    $region15: #{tpu_custom_call.1} parent=1 // pred_check_branch
      %20 = sbr.rel (0) target = $region17
    $region16: #{tpu_custom_call.1} parent=1 // pred_region
      _
    $region17: #{tpu_custom_call.1} parent=1 // pred_fallthru
      _
    // Predicated region
    $region18: #{tpu_custom_call.1} parent=1 // pred_check
      _
    $region19: #{tpu_custom_call.1} parent=1 // pred_check_branch
      %22 = sbr.rel (0) target = $region21
    $region20: #{tpu_custom_call.1} parent=1 // pred_region
      _
    $region21: #{tpu_custom_call.1} parent=1 // pred_fallthru
      _
    // Predicated region
    $region22: #{tpu_custom_call.1} parent=1 // pred_check
      _
    $region23: #{tpu_custom_call.1} parent=1 // pred_check_branch
      %24 = sbr.rel (0) target = $region25
    $region24: #{tpu_custom_call.1} parent=1 // pred_region
      _
    $region25: #{tpu_custom_call.1} parent=1 // pred_fallthru
      _
    // Predicated region
    $region26: #{tpu_custom_call.1} parent=1 // pred_check
      _
    $region27: #{tpu_custom_call.1} parent=1 // pred_check_branch
      %26 = sbr.rel (0) target = $region29
    $region28: #{tpu_custom_call.1} parent=1 // pred_region
      _
    $region29: #{tpu_custom_call.1} parent=1 // pred_fallthru
      _
    %vm27 = vcmask 80896
    %28 = vst.msk [vmem:[#allocation2] sm:$0xff] %vm27, 0.0
    %vm29 = vcmask 162896
    %30 = vst.msk [vmem:[#allocation2 + $0x8] sm:$0xff] %vm29, 0.0
    %31 = vst.msk [vmem:[#allocation3] sm:$0xff] %vm27, 0.0
    %32 = vst.msk [vmem:[#allocation3 + $0x8] sm:$0xff] %vm29, 0.0
    %s33 = scalar_lea.vmem [#allocation2], 16
    %34 = vst.msk [vmem:[%s33] sm:$0xff] %vm27, 0.0
    %35 = vst.msk [vmem:[%s33 + $0x8] sm:$0xff] %vm29, 0.0
    %s36 = scalar_lea.vmem [#allocation3], 16
    %37 = vst.msk [vmem:[%s36] sm:$0xff] %vm27, 0.0
    %38 = vst.msk [vmem:[%s36 + $0x8] sm:$0xff] %vm29, 0.0
    %v39 = vlaneseq
    %v40 = vand.u32 %v39, 127
    %vm41 = vcmp.lt.s32.totalorder %v40, 31
    %v42 = vld [vmem:[%s4] sm:$0xff]
    %44 = vset.pattern.permute.xlu0 0
    %45 = vperm.xlu0 %44, %v42
    %v46 = vpop.permute.xlu0 %45
    %v48 = vld [vmem:[%s6] sm:$0xff]
    %50 = vset.pattern.permute.xlu0 0
    %51 = vperm.xlu0 %50, %v48
    %v52 = vpop.permute.xlu0 %51
    %v54 = vld [vmem:[%s0] sm:$0xff]
    %v55 = vld [vmem:[%s2] sm:$0xff]
    %v56 = vmax.f32 %v54, %v55
    %v57 = vld [vmem:[%s1] sm:$0xff]
    %v58 = vmax.f32 %v56, %v57
    %60 = vrot.lane.b32.xlu0 %v58, 10
    %v61 = vpop.permute.xlu0 %60
    %vm63 = vcmask 1047632
    %64 = vst.msk [vmem:[#allocation2] sm:$0xff] %vm63, %v61
    %65 = vst.msk [vmem:[#allocation2 + $0x8] sm:$0xff] %vm27, %v61
    %v66 = vld [vmem:[%s3] sm:$0xff]
    %v67 = vld [vmem:[#allocation2] sm:$0xff]
    %vm68 = vcmask 64512
    %v70 = vsel %vm68, %v66, 0
    %72 = vmatprep.subr.mxu0 0.0
    %73 = vmatpush1.msra.mxu0 0.0
    %74 = vmatprep.subr.mxu0 0.0
    %75 = vmatpush1.msra.mxu0 0.0
    %76 = vmatprep.subr.mxu0 0.0
    %77 = vmatpush1.msra.mxu0 0.0
    %78 = vmatprep.subr.mxu0 0.0
    %79 = vmatpush1.msra.mxu0 0.0
    %80 = vmatprep.subr.mxu0 0.0
    %81 = vmatpush1.msra.mxu0 0.0
    %82 = vmatprep.subr.mxu0 0.0
    %83 = vmatpush1.msra.mxu0 0.0
    %84 = vmatprep.subr.mxu0 0.0
    %85 = vmatpush1.msra.mxu0 0.0
    %86 = vmatprep.subr.mxu0 0.0
    %87 = vmatpush1.msra.mxu0 0.0
    %88 = vmatprep.subr.mxu0 0.0
    %89 = vmatpush1.msra.mxu0 0.0
    %90 = vmatprep.subr.mxu0 0.0
    %91 = vmatpush1.msra.mxu0 0.0
    %92 = vmatprep.subr.mxu0 0.0
    %93 = vmatpush1.msra.mxu0 0.0
    %94 = vmatprep.subr.mxu0 0.0
    %95 = vmatpush1.msra.mxu0 0.0
    %96 = vmatprep.subr.mxu0 0.0
    %97 = vmatpush1.msra.mxu0 0.0
    %98 = vmatprep.subr.mxu0 0.0
    %99 = vmatpush1.msra.mxu0 0.0
    %100 = vmatprep.subr.mxu0 0.0
    %101 = vmatpush1.msra.mxu0 0.0
    %102 = vmatprep.subr.mxu0 0.0
    %103 = vmatpush1.msra.mxu0 %v67
    %104 = vmatprep.subr.mxu0 0.0
    %105 = vmatpush2.msra.mxu0 0.0
    %106 = vmatprep.subr.mxu0 0.0
    %107 = vmatpush2.msra.mxu0 0.0
    %108 = vmatprep.subr.mxu0 0.0
    %109 = vmatpush2.msra.mxu0 0.0
    %110 = vmatprep.subr.mxu0 0.0
    %111 = vmatpush2.msra.mxu0 0.0
    %112 = vmatprep.subr.mxu0 0.0
    %113 = vmatpush2.msra.mxu0 0.0
    %114 = vmatprep.subr.mxu0 0.0
    %115 = vmatpush2.msra.mxu0 0.0
    %116 = vmatprep.subr.mxu0 0.0
    %117 = vmatpush2.msra.mxu0 0.0
    %118 = vmatprep.subr.mxu0 0.0
    %119 = vmatpush2.msra.mxu0 0.0
    %120 = vmatprep.subr.mxu0 0.0
    %121 = vmatpush2.msra.mxu0 0.0
    %122 = vmatprep.subr.mxu0 0.0
    %123 = vmatpush2.msra.mxu0 0.0
    %124 = vmatprep.subr.mxu0 0.0
    %125 = vmatpush2.msra.mxu0 0.0
    %126 = vmatprep.subr.mxu0 0.0
    %127 = vmatpush2.msra.mxu0 0.0
    %128 = vmatprep.subr.mxu0 0.0
    %129 = vmatpush2.msra.mxu0 0.0
    %130 = vmatprep.subr.mxu0 0.0
    %131 = vmatpush2.msra.mxu0 0.0
    %132 = vmatprep.subr.mxu0 0.0
    %133 = vmatpush2.msra.mxu0 0.0
    %134 = vmatprep.subr.mxu0 0.0
    %135 = vmatpush2.msra.mxu0 0.0
    %136 = vmatprep.mubr.f32.mxu0 0.0
    %137 = vmatmul.mubr.f32.gmra.mxu0 %v70
    %v138 = vpop.f32.mrf.mxu0
    %v139 = vadd.f32 0.0, %v138
    %v140 = vpop.f32.mrf.mxu0
    %141 = vdwg.mxu0
    %v142 = vadd.f32 %v46, %v139
    %s143 = scalar_lea.vmem %s3, 8
    %v144 = vld [vmem:[%s143] sm:$0xff]
    %v145 = vld [vmem:[#allocation2] sm:$0xff]
    %v146 = vld [vmem:[#allocation2 + $0x8] sm:$0xff]
    %149 = vrot.lane.b32.xlu0 %v145, 127
    %v150 = vpop.permute.xlu0 %149
    %151 = vrot.lane.b32.xlu0 %v146, 127
    %v152 = vpop.permute.xlu0 %151
    %vm153 = vcmask 1039360
    %v154 = vsel %vm153, %v150, %v152
    %v157 = vsel %vm68, %v144, 0
    %159 = vmatprep.subr.mxu0 0.0
    %160 = vmatpush1.msra.mxu0 0.0
    %161 = vmatprep.subr.mxu0 0.0
    %162 = vmatpush1.msra.mxu0 0.0
    %163 = vmatprep.subr.mxu0 0.0
    %164 = vmatpush1.msra.mxu0 0.0
    %165 = vmatprep.subr.mxu0 0.0
    %166 = vmatpush1.msra.mxu0 0.0
    %167 = vmatprep.subr.mxu0 0.0
    %168 = vmatpush1.msra.mxu0 0.0
    %169 = vmatprep.subr.mxu0 0.0
    %170 = vmatpush1.msra.mxu0 0.0
    %171 = vmatprep.subr.mxu0 0.0
    %172 = vmatpush1.msra.mxu0 0.0
    %173 = vmatprep.subr.mxu0 0.0
    %174 = vmatpush1.msra.mxu0 0.0
    %175 = vmatprep.subr.mxu0 0.0
    %176 = vmatpush1.msra.mxu0 0.0
    %177 = vmatprep.subr.mxu0 0.0
    %178 = vmatpush1.msra.mxu0 0.0
    %179 = vmatprep.subr.mxu0 0.0
    %180 = vmatpush1.msra.mxu0 0.0
    %181 = vmatprep.subr.mxu0 0.0
    %182 = vmatpush1.msra.mxu0 0.0
    %183 = vmatprep.subr.mxu0 0.0
    %184 = vmatpush1.msra.mxu0 0.0
    %185 = vmatprep.subr.mxu0 0.0
    %186 = vmatpush1.msra.mxu0 0.0
    %187 = vmatprep.subr.mxu0 0.0
    %188 = vmatpush1.msra.mxu0 0.0
    %189 = vmatprep.subr.mxu0 0.0
    %190 = vmatpush1.msra.mxu0 %v154
    %191 = vmatprep.subr.mxu0 0.0
    %192 = vmatpush2.msra.mxu0 0.0
    %193 = vmatprep.subr.mxu0 0.0
    %194 = vmatpush2.msra.mxu0 0.0
    %195 = vmatprep.subr.mxu0 0.0
    %196 = vmatpush2.msra.mxu0 0.0
    %197 = vmatprep.subr.mxu0 0.0
    %198 = vmatpush2.msra.mxu0 0.0
    %199 = vmatprep.subr.mxu0 0.0
    %200 = vmatpush2.msra.mxu0 0.0
    %201 = vmatprep.subr.mxu0 0.0
    %202 = vmatpush2.msra.mxu0 0.0
    %203 = vmatprep.subr.mxu0 0.0
    %204 = vmatpush2.msra.mxu0 0.0
    %205 = vmatprep.subr.mxu0 0.0
    %206 = vmatpush2.msra.mxu0 0.0
    %207 = vmatprep.subr.mxu0 0.0
    %208 = vmatpush2.msra.mxu0 0.0
    %209 = vmatprep.subr.mxu0 0.0
    %210 = vmatpush2.msra.mxu0 0.0
    %211 = vmatprep.subr.mxu0 0.0
    %212 = vmatpush2.msra.mxu0 0.0
    %213 = vmatprep.subr.mxu0 0.0
    %214 = vmatpush2.msra.mxu0 0.0
    %215 = vmatprep.subr.mxu0 0.0
    %216 = vmatpush2.msra.mxu0 0.0
    %217 = vmatprep.subr.mxu0 0.0
    %218 = vmatpush2.msra.mxu0 0.0
    %219 = vmatprep.subr.mxu0 0.0
    %220 = vmatpush2.msra.mxu0 0.0
    %221 = vmatprep.subr.mxu0 0.0
    %222 = vmatpush2.msra.mxu0 0.0
    %223 = vmatprep.mubr.f32.mxu0 0.0
    %224 = vmatmul.mubr.f32.gmra.mxu0 %v157
    %v225 = vpop.f32.mrf.mxu0
    %v226 = vadd.f32 0.0, %v225
    %v227 = vpop.f32.mrf.mxu0
    %228 = vdwg.mxu0
    %v229 = vadd.f32 %v142, %v226
    %s230 = scalar_lea.vmem %s3, 16
    %v231 = vld [vmem:[%s230] sm:$0xff]
    %232 = vrot.lane.b32.xlu0 %v145, 126
    %v233 = vpop.permute.xlu0 %232
    %234 = vrot.lane.b32.xlu0 %v146, 126
    %v235 = vpop.permute.xlu0 %234
    %vm236 = vcmask 1031168
    %v237 = vsel %vm236, %v233, %v235
    %v240 = vsel %vm68, %v231, 0
    %242 = vmatprep.subr.mxu0 0.0
    %243 = vmatpush1.msra.mxu0 0.0
    %244 = vmatprep.subr.mxu0 0.0
    %245 = vmatpush1.msra.mxu0 0.0
    %246 = vmatprep.subr.mxu0 0.0
    %247 = vmatpush1.msra.mxu0 0.0
    %248 = vmatprep.subr.mxu0 0.0
    %249 = vmatpush1.msra.mxu0 0.0
    %250 = vmatprep.subr.mxu0 0.0
    %251 = vmatpush1.msra.mxu0 0.0
    %252 = vmatprep.subr.mxu0 0.0
    %253 = vmatpush1.msra.mxu0 0.0
    %254 = vmatprep.subr.mxu0 0.0
    %255 = vmatpush1.msra.mxu0 0.0
    %256 = vmatprep.subr.mxu0 0.0
    %257 = vmatpush1.msra.mxu0 0.0
    %258 = vmatprep.subr.mxu0 0.0
    %259 = vmatpush1.msra.mxu0 0.0
    %260 = vmatprep.subr.mxu0 0.0
    %261 = vmatpush1.msra.mxu0 0.0
    %262 = vmatprep.subr.mxu0 0.0
    %263 = vmatpush1.msra.mxu0 0.0
    %264 = vmatprep.subr.mxu0 0.0
    %265 = vmatpush1.msra.mxu0 0.0
    %266 = vmatprep.subr.mxu0 0.0
    %267 = vmatpush1.msra.mxu0 0.0
    %268 = vmatprep.subr.mxu0 0.0
    %269 = vmatpush1.msra.mxu0 0.0
    %270 = vmatprep.subr.mxu0 0.0
    %271 = vmatpush1.msra.mxu0 0.0
    %272 = vmatprep.subr.mxu0 0.0
    %273 = vmatpush1.msra.mxu0 %v237
    %274 = vmatprep.subr.mxu0 0.0
    %275 = vmatpush2.msra.mxu0 0.0
    %276 = vmatprep.subr.mxu0 0.0
    %277 = vmatpush2.msra.mxu0 0.0
    %278 = vmatprep.subr.mxu0 0.0
    %279 = vmatpush2.msra.mxu0 0.0
    %280 = vmatprep.subr.mxu0 0.0
    %281 = vmatpush2.msra.mxu0 0.0
    %282 = vmatprep.subr.mxu0 0.0
    %283 = vmatpush2.msra.mxu0 0.0
    %284 = vmatprep.subr.mxu0 0.0
    %285 = vmatpush2.msra.mxu0 0.0
    %286 = vmatprep.subr.mxu0 0.0
    %287 = vmatpush2.msra.mxu0 0.0
    %288 = vmatprep.subr.mxu0 0.0
    %289 = vmatpush2.msra.mxu0 0.0
    %290 = vmatprep.subr.mxu0 0.0
    %291 = vmatpush2.msra.mxu0 0.0
    %292 = vmatprep.subr.mxu0 0.0
    %293 = vmatpush2.msra.mxu0 0.0
    %294 = vmatprep.subr.mxu0 0.0
    %295 = vmatpush2.msra.mxu0 0.0
    %296 = vmatprep.subr.mxu0 0.0
    %297 = vmatpush2.msra.mxu0 0.0
    %298 = vmatprep.subr.mxu0 0.0
    %299 = vmatpush2.msra.mxu0 0.0
    %300 = vmatprep.subr.mxu0 0.0
    %301 = vmatpush2.msra.mxu0 0.0
    %302 = vmatprep.subr.mxu0 0.0
    %303 = vmatpush2.msra.mxu0 0.0
    %304 = vmatprep.subr.mxu0 0.0
    %305 = vmatpush2.msra.mxu0 0.0
    %306 = vmatprep.mubr.f32.mxu0 0.0
    %307 = vmatmul.mubr.f32.gmra.mxu0 %v240
    %v308 = vpop.f32.mrf.mxu0
    %v309 = vadd.f32 0.0, %v308
    %v310 = vpop.f32.mrf.mxu0
    %311 = vdwg.mxu0
    %v312 = vadd.f32 %v229, %v309
    %s313 = scalar_lea.vmem %s3, 24
    %v314 = vld [vmem:[%s313] sm:$0xff]
    %315 = vrot.lane.b32.xlu0 %v145, 125
    %v316 = vpop.permute.xlu0 %315
    %317 = vrot.lane.b32.xlu0 %v146, 125
    %v318 = vpop.permute.xlu0 %317
    %vm319 = vcmask 1022976
    %v320 = vsel %vm319, %v316, %v318
    %v323 = vsel %vm68, %v314, 0
    %325 = vmatprep.subr.mxu0 0.0
    %326 = vmatpush1.msra.mxu0 0.0
    %327 = vmatprep.subr.mxu0 0.0
    %328 = vmatpush1.msra.mxu0 0.0
    %329 = vmatprep.subr.mxu0 0.0
    %330 = vmatpush1.msra.mxu0 0.0
    %331 = vmatprep.subr.mxu0 0.0
    %332 = vmatpush1.msra.mxu0 0.0
    %333 = vmatprep.subr.mxu0 0.0
    %334 = vmatpush1.msra.mxu0 0.0
    %335 = vmatprep.subr.mxu0 0.0
    %336 = vmatpush1.msra.mxu0 0.0
    %337 = vmatprep.subr.mxu0 0.0
    %338 = vmatpush1.msra.mxu0 0.0
    %339 = vmatprep.subr.mxu0 0.0
    %340 = vmatpush1.msra.mxu0 0.0
    %341 = vmatprep.subr.mxu0 0.0
    %342 = vmatpush1.msra.mxu0 0.0
    %343 = vmatprep.subr.mxu0 0.0
    %344 = vmatpush1.msra.mxu0 0.0
    %345 = vmatprep.subr.mxu0 0.0
    %346 = vmatpush1.msra.mxu0 0.0
    %347 = vmatprep.subr.mxu0 0.0
    %348 = vmatpush1.msra.mxu0 0.0
    %349 = vmatprep.subr.mxu0 0.0
    %350 = vmatpush1.msra.mxu0 0.0
    %351 = vmatprep.subr.mxu0 0.0
    %352 = vmatpush1.msra.mxu0 0.0
    %353 = vmatprep.subr.mxu0 0.0
    %354 = vmatpush1.msra.mxu0 0.0
    %355 = vmatprep.subr.mxu0 0.0
    %356 = vmatpush1.msra.mxu0 %v320
    %357 = vmatprep.subr.mxu0 0.0
    %358 = vmatpush2.msra.mxu0 0.0
    %359 = vmatprep.subr.mxu0 0.0
    %360 = vmatpush2.msra.mxu0 0.0
    %361 = vmatprep.subr.mxu0 0.0
    %362 = vmatpush2.msra.mxu0 0.0
    %363 = vmatprep.subr.mxu0 0.0
    %364 = vmatpush2.msra.mxu0 0.0
    %365 = vmatprep.subr.mxu0 0.0
    %366 = vmatpush2.msra.mxu0 0.0
    %367 = vmatprep.subr.mxu0 0.0
    %368 = vmatpush2.msra.mxu0 0.0
    %369 = vmatprep.subr.mxu0 0.0
    %370 = vmatpush2.msra.mxu0 0.0
    %371 = vmatprep.subr.mxu0 0.0
    %372 = vmatpush2.msra.mxu0 0.0
    %373 = vmatprep.subr.mxu0 0.0
    %374 = vmatpush2.msra.mxu0 0.0
    %375 = vmatprep.subr.mxu0 0.0
    %376 = vmatpush2.msra.mxu0 0.0
    %377 = vmatprep.subr.mxu0 0.0
    %378 = vmatpush2.msra.mxu0 0.0
    %379 = vmatprep.subr.mxu0 0.0
    %380 = vmatpush2.msra.mxu0 0.0
    %381 = vmatprep.subr.mxu0 0.0
    %382 = vmatpush2.msra.mxu0 0.0
    %383 = vmatprep.subr.mxu0 0.0
    %384 = vmatpush2.msra.mxu0 0.0
    %385 = vmatprep.subr.mxu0 0.0
    %386 = vmatpush2.msra.mxu0 0.0
    %387 = vmatprep.subr.mxu0 0.0
    %388 = vmatpush2.msra.mxu0 0.0
    %389 = vmatprep.mubr.f32.mxu0 0.0
    %390 = vmatmul.mubr.f32.gmra.mxu0 %v323
    %v391 = vpop.f32.mrf.mxu0
    %v392 = vadd.f32 0.0, %v391
    %v393 = vpop.f32.mrf.mxu0
    %394 = vdwg.mxu0
    %v395 = vadd.f32 %v312, %v392
    %s396 = scalar_lea.vmem %s3, 32
    %v397 = vld [vmem:[%s396] sm:$0xff]
    %398 = vrot.lane.b32.xlu0 %v145, 124
    %v399 = vpop.permute.xlu0 %398
    %400 = vrot.lane.b32.xlu0 %v146, 124
    %v401 = vpop.permute.xlu0 %400
    %vm402 = vcmask 1014784
    %v403 = vsel %vm402, %v399, %v401
    %v406 = vsel %vm68, %v397, 0
    %408 = vmatprep.subr.mxu0 0.0
    %409 = vmatpush1.msra.mxu0 0.0
    %410 = vmatprep.subr.mxu0 0.0
    %411 = vmatpush1.msra.mxu0 0.0
    %412 = vmatprep.subr.mxu0 0.0
    %413 = vmatpush1.msra.mxu0 0.0
    %414 = vmatprep.subr.mxu0 0.0
    %415 = vmatpush1.msra.mxu0 0.0
    %416 = vmatprep.subr.mxu0 0.0
    %417 = vmatpush1.msra.mxu0 0.0
    %418 = vmatprep.subr.mxu0 0.0
    %419 = vmatpush1.msra.mxu0 0.0
    %420 = vmatprep.subr.mxu0 0.0
    %421 = vmatpush1.msra.mxu0 0.0
    %422 = vmatprep.subr.mxu0 0.0
    %423 = vmatpush1.msra.mxu0 0.0
    %424 = vmatprep.subr.mxu0 0.0
    %425 = vmatpush1.msra.mxu0 0.0
    %426 = vmatprep.subr.mxu0 0.0
    %427 = vmatpush1.msra.mxu0 0.0
    %428 = vmatprep.subr.mxu0 0.0
    %429 = vmatpush1.msra.mxu0 0.0
    %430 = vmatprep.subr.mxu0 0.0
    %431 = vmatpush1.msra.mxu0 0.0
    %432 = vmatprep.subr.mxu0 0.0
    %433 = vmatpush1.msra.mxu0 0.0
    %434 = vmatprep.subr.mxu0 0.0
    %435 = vmatpush1.msra.mxu0 0.0
    %436 = vmatprep.subr.mxu0 0.0
    %437 = vmatpush1.msra.mxu0 0.0
    %438 = vmatprep.subr.mxu0 0.0
    %439 = vmatpush1.msra.mxu0 %v403
    %440 = vmatprep.subr.mxu0 0.0
    %441 = vmatpush2.msra.mxu0 0.0
    %442 = vmatprep.subr.mxu0 0.0
    %443 = vmatpush2.msra.mxu0 0.0
    %444 = vmatprep.subr.mxu0 0.0
    %445 = vmatpush2.msra.mxu0 0.0
    %446 = vmatprep.subr.mxu0 0.0
    %447 = vmatpush2.msra.mxu0 0.0
    %448 = vmatprep.subr.mxu0 0.0
    %449 = vmatpush2.msra.mxu0 0.0
    %450 = vmatprep.subr.mxu0 0.0
    %451 = vmatpush2.msra.mxu0 0.0
    %452 = vmatprep.subr.mxu0 0.0
    %453 = vmatpush2.msra.mxu0 0.0
    %454 = vmatprep.subr.mxu0 0.0
    %455 = vmatpush2.msra.mxu0 0.0
    %456 = vmatprep.subr.mxu0 0.0
    %457 = vmatpush2.msra.mxu0 0.0
    %458 = vmatprep.subr.mxu0 0.0
    %459 = vmatpush2.msra.mxu0 0.0
    %460 = vmatprep.subr.mxu0 0.0
    %461 = vmatpush2.msra.mxu0 0.0
    %462 = vmatprep.subr.mxu0 0.0
    %463 = vmatpush2.msra.mxu0 0.0
    %464 = vmatprep.subr.mxu0 0.0
    %465 = vmatpush2.msra.mxu0 0.0
    %466 = vmatprep.subr.mxu0 0.0
    %467 = vmatpush2.msra.mxu0 0.0
    %468 = vmatprep.subr.mxu0 0.0
    %469 = vmatpush2.msra.mxu0 0.0
    %470 = vmatprep.subr.mxu0 0.0
    %471 = vmatpush2.msra.mxu0 0.0
    %472 = vmatprep.mubr.f32.mxu0 0.0
    %473 = vmatmul.mubr.f32.gmra.mxu0 %v406
    %v474 = vpop.f32.mrf.mxu0
    %v475 = vadd.f32 0.0, %v474
    %v476 = vpop.f32.mrf.mxu0
    %477 = vdwg.mxu0
    %v478 = vadd.f32 %v395, %v475
    %s479 = scalar_lea.vmem %s3, 40
    %v480 = vld [vmem:[%s479] sm:$0xff]
    %481 = vrot.lane.b32.xlu0 %v145, 123
    %v482 = vpop.permute.xlu0 %481
    %483 = vrot.lane.b32.xlu0 %v146, 123
    %v484 = vpop.permute.xlu0 %483
    %vm485 = vcmask 1006592
    %v486 = vsel %vm485, %v482, %v484
    %v489 = vsel %vm68, %v480, 0
    %491 = vmatprep.subr.mxu0 0.0
    %492 = vmatpush1.msra.mxu0 0.0
    %493 = vmatprep.subr.mxu0 0.0
    %494 = vmatpush1.msra.mxu0 0.0
    %495 = vmatprep.subr.mxu0 0.0
    %496 = vmatpush1.msra.mxu0 0.0
    %497 = vmatprep.subr.mxu0 0.0
    %498 = vmatpush1.msra.mxu0 0.0
    %499 = vmatprep.subr.mxu0 0.0
    %500 = vmatpush1.msra.mxu0 0.0
    %501 = vmatprep.subr.mxu0 0.0
    %502 = vmatpush1.msra.mxu0 0.0
    %503 = vmatprep.subr.mxu0 0.0
    %504 = vmatpush1.msra.mxu0 0.0
    %505 = vmatprep.subr.mxu0 0.0
    %506 = vmatpush1.msra.mxu0 0.0
    %507 = vmatprep.subr.mxu0 0.0
    %508 = vmatpush1.msra.mxu0 0.0
    %509 = vmatprep.subr.mxu0 0.0
    %510 = vmatpush1.msra.mxu0 0.0
    %511 = vmatprep.subr.mxu0 0.0
    %512 = vmatpush1.msra.mxu0 0.0
    %513 = vmatprep.subr.mxu0 0.0
    %514 = vmatpush1.msra.mxu0 0.0
    %515 = vmatprep.subr.mxu0 0.0
    %516 = vmatpush1.msra.mxu0 0.0
    %517 = vmatprep.subr.mxu0 0.0
    %518 = vmatpush1.msra.mxu0 0.0
    %519 = vmatprep.subr.mxu0 0.0
    %520 = vmatpush1.msra.mxu0 0.0
    %521 = vmatprep.subr.mxu0 0.0
    %522 = vmatpush1.msra.mxu0 %v486
    %523 = vmatprep.subr.mxu0 0.0
    %524 = vmatpush2.msra.mxu0 0.0
    %525 = vmatprep.subr.mxu0 0.0
    %526 = vmatpush2.msra.mxu0 0.0
    %527 = vmatprep.subr.mxu0 0.0
    %528 = vmatpush2.msra.mxu0 0.0
    %529 = vmatprep.subr.mxu0 0.0
    %530 = vmatpush2.msra.mxu0 0.0
    %531 = vmatprep.subr.mxu0 0.0
    %532 = vmatpush2.msra.mxu0 0.0
    %533 = vmatprep.subr.mxu0 0.0
    %534 = vmatpush2.msra.mxu0 0.0
    %535 = vmatprep.subr.mxu0 0.0
    %536 = vmatpush2.msra.mxu0 0.0
    %537 = vmatprep.subr.mxu0 0.0
    %538 = vmatpush2.msra.mxu0 0.0
    %539 = vmatprep.subr.mxu0 0.0
    %540 = vmatpush2.msra.mxu0 0.0
    %541 = vmatprep.subr.mxu0 0.0
    %542 = vmatpush2.msra.mxu0 0.0
    %543 = vmatprep.subr.mxu0 0.0
    %544 = vmatpush2.msra.mxu0 0.0
    %545 = vmatprep.subr.mxu0 0.0
    %546 = vmatpush2.msra.mxu0 0.0
    %547 = vmatprep.subr.mxu0 0.0
    %548 = vmatpush2.msra.mxu0 0.0
    %549 = vmatprep.subr.mxu0 0.0
    %550 = vmatpush2.msra.mxu0 0.0
    %551 = vmatprep.subr.mxu0 0.0
    %552 = vmatpush2.msra.mxu0 0.0
    %553 = vmatprep.subr.mxu0 0.0
    %554 = vmatpush2.msra.mxu0 0.0
    %555 = vmatprep.mubr.f32.mxu0 0.0
    %556 = vmatmul.mubr.f32.gmra.mxu0 %v489
    %v557 = vpop.f32.mrf.mxu0
    %v558 = vadd.f32 0.0, %v557
    %v559 = vpop.f32.mrf.mxu0
    %560 = vdwg.mxu0
    %v561 = vadd.f32 %v478, %v558
    %s562 = scalar_lea.vmem %s3, 48
    %v563 = vld [vmem:[%s562] sm:$0xff]
    %564 = vrot.lane.b32.xlu0 %v145, 122
    %v565 = vpop.permute.xlu0 %564
    %566 = vrot.lane.b32.xlu0 %v146, 122
    %v567 = vpop.permute.xlu0 %566
    %vm568 = vcmask 998400
    %v569 = vsel %vm568, %v565, %v567
    %v572 = vsel %vm68, %v563, 0
    %574 = vmatprep.subr.mxu0 0.0
    %575 = vmatpush1.msra.mxu0 0.0
    %576 = vmatprep.subr.mxu0 0.0
    %577 = vmatpush1.msra.mxu0 0.0
    %578 = vmatprep.subr.mxu0 0.0
    %579 = vmatpush1.msra.mxu0 0.0
    %580 = vmatprep.subr.mxu0 0.0
    %581 = vmatpush1.msra.mxu0 0.0
    %582 = vmatprep.subr.mxu0 0.0
    %583 = vmatpush1.msra.mxu0 0.0
    %584 = vmatprep.subr.mxu0 0.0
    %585 = vmatpush1.msra.mxu0 0.0
    %586 = vmatprep.subr.mxu0 0.0
    %587 = vmatpush1.msra.mxu0 0.0
    %588 = vmatprep.subr.mxu0 0.0
    %589 = vmatpush1.msra.mxu0 0.0
    %590 = vmatprep.subr.mxu0 0.0
    %591 = vmatpush1.msra.mxu0 0.0
    %592 = vmatprep.subr.mxu0 0.0
    %593 = vmatpush1.msra.mxu0 0.0
    %594 = vmatprep.subr.mxu0 0.0
    %595 = vmatpush1.msra.mxu0 0.0
    %596 = vmatprep.subr.mxu0 0.0
    %597 = vmatpush1.msra.mxu0 0.0
    %598 = vmatprep.subr.mxu0 0.0
    %599 = vmatpush1.msra.mxu0 0.0
    %600 = vmatprep.subr.mxu0 0.0
    %601 = vmatpush1.msra.mxu0 0.0
    %602 = vmatprep.subr.mxu0 0.0
    %603 = vmatpush1.msra.mxu0 0.0
    %604 = vmatprep.subr.mxu0 0.0
    %605 = vmatpush1.msra.mxu0 %v569
    %606 = vmatprep.subr.mxu0 0.0
    %607 = vmatpush2.msra.mxu0 0.0
    %608 = vmatprep.subr.mxu0 0.0
    %609 = vmatpush2.msra.mxu0 0.0
    %610 = vmatprep.subr.mxu0 0.0
    %611 = vmatpush2.msra.mxu0 0.0
    %612 = vmatprep.subr.mxu0 0.0
    %613 = vmatpush2.msra.mxu0 0.0
    %614 = vmatprep.subr.mxu0 0.0
    %615 = vmatpush2.msra.mxu0 0.0
    %616 = vmatprep.subr.mxu0 0.0
    %617 = vmatpush2.msra.mxu0 0.0
    %618 = vmatprep.subr.mxu0 0.0
    %619 = vmatpush2.msra.mxu0 0.0
    %620 = vmatprep.subr.mxu0 0.0
    %621 = vmatpush2.msra.mxu0 0.0
    %622 = vmatprep.subr.mxu0 0.0
    %623 = vmatpush2.msra.mxu0 0.0
    %624 = vmatprep.subr.mxu0 0.0
    %625 = vmatpush2.msra.mxu0 0.0
    %626 = vmatprep.subr.mxu0 0.0
    %627 = vmatpush2.msra.mxu0 0.0
    %628 = vmatprep.subr.mxu0 0.0
    %629 = vmatpush2.msra.mxu0 0.0
    %630 = vmatprep.subr.mxu0 0.0
    %631 = vmatpush2.msra.mxu0 0.0
    %632 = vmatprep.subr.mxu0 0.0
    %633 = vmatpush2.msra.mxu0 0.0
    %634 = vmatprep.subr.mxu0 0.0
    %635 = vmatpush2.msra.mxu0 0.0
    %636 = vmatprep.subr.mxu0 0.0
    %637 = vmatpush2.msra.mxu0 0.0
    %638 = vmatprep.mubr.f32.mxu0 0.0
    %639 = vmatmul.mubr.f32.gmra.mxu0 %v572
    %v640 = vpop.f32.mrf.mxu0
    %v641 = vadd.f32 0.0, %v640
    %v642 = vpop.f32.mrf.mxu0
    %643 = vdwg.mxu0
    %v644 = vadd.f32 %v561, %v641
    %s645 = scalar_lea.vmem %s3, 56
    %v646 = vld [vmem:[%s645] sm:$0xff]
    %647 = vrot.lane.b32.xlu0 %v145, 121
    %v648 = vpop.permute.xlu0 %647
    %649 = vrot.lane.b32.xlu0 %v146, 121
    %v650 = vpop.permute.xlu0 %649
    %vm651 = vcmask 990208
    %v652 = vsel %vm651, %v648, %v650
    %v655 = vsel %vm68, %v646, 0
    %657 = vmatprep.subr.mxu0 0.0
    %658 = vmatpush1.msra.mxu0 0.0
    %659 = vmatprep.subr.mxu0 0.0
    %660 = vmatpush1.msra.mxu0 0.0
    %661 = vmatprep.subr.mxu0 0.0
    %662 = vmatpush1.msra.mxu0 0.0
    %663 = vmatprep.subr.mxu0 0.0
    %664 = vmatpush1.msra.mxu0 0.0
    %665 = vmatprep.subr.mxu0 0.0
    %666 = vmatpush1.msra.mxu0 0.0
    %667 = vmatprep.subr.mxu0 0.0
    %668 = vmatpush1.msra.mxu0 0.0
    %669 = vmatprep.subr.mxu0 0.0
    %670 = vmatpush1.msra.mxu0 0.0
    %671 = vmatprep.subr.mxu0 0.0
    %672 = vmatpush1.msra.mxu0 0.0
    %673 = vmatprep.subr.mxu0 0.0
    %674 = vmatpush1.msra.mxu0 0.0
    %675 = vmatprep.subr.mxu0 0.0
    %676 = vmatpush1.msra.mxu0 0.0
    %677 = vmatprep.subr.mxu0 0.0
    %678 = vmatpush1.msra.mxu0 0.0
    %679 = vmatprep.subr.mxu0 0.0
    %680 = vmatpush1.msra.mxu0 0.0
    %681 = vmatprep.subr.mxu0 0.0
    %682 = vmatpush1.msra.mxu0 0.0
    %683 = vmatprep.subr.mxu0 0.0
    %684 = vmatpush1.msra.mxu0 0.0
    %685 = vmatprep.subr.mxu0 0.0
    %686 = vmatpush1.msra.mxu0 0.0
    %687 = vmatprep.subr.mxu0 0.0
    %688 = vmatpush1.msra.mxu0 %v652
    %689 = vmatprep.subr.mxu0 0.0
    %690 = vmatpush2.msra.mxu0 0.0
    %691 = vmatprep.subr.mxu0 0.0
    %692 = vmatpush2.msra.mxu0 0.0
    %693 = vmatprep.subr.mxu0 0.0
    %694 = vmatpush2.msra.mxu0 0.0
    %695 = vmatprep.subr.mxu0 0.0
    %696 = vmatpush2.msra.mxu0 0.0
    %697 = vmatprep.subr.mxu0 0.0
    %698 = vmatpush2.msra.mxu0 0.0
    %699 = vmatprep.subr.mxu0 0.0
    %700 = vmatpush2.msra.mxu0 0.0
    %701 = vmatprep.subr.mxu0 0.0
    %702 = vmatpush2.msra.mxu0 0.0
    %703 = vmatprep.subr.mxu0 0.0
    %704 = vmatpush2.msra.mxu0 0.0
    %705 = vmatprep.subr.mxu0 0.0
    %706 = vmatpush2.msra.mxu0 0.0
    %707 = vmatprep.subr.mxu0 0.0
    %708 = vmatpush2.msra.mxu0 0.0
    %709 = vmatprep.subr.mxu0 0.0
    %710 = vmatpush2.msra.mxu0 0.0
    %711 = vmatprep.subr.mxu0 0.0
    %712 = vmatpush2.msra.mxu0 0.0
    %713 = vmatprep.subr.mxu0 0.0
    %714 = vmatpush2.msra.mxu0 0.0
    %715 = vmatprep.subr.mxu0 0.0
    %716 = vmatpush2.msra.mxu0 0.0
    %717 = vmatprep.subr.mxu0 0.0
    %718 = vmatpush2.msra.mxu0 0.0
    %719 = vmatprep.subr.mxu0 0.0
    %720 = vmatpush2.msra.mxu0 0.0
    %721 = vmatprep.mubr.f32.mxu0 0.0
    %722 = vmatmul.mubr.f32.gmra.mxu0 %v655
    %v723 = vpop.f32.mrf.mxu0
    %v724 = vadd.f32 0.0, %v723
    %v725 = vpop.f32.mrf.mxu0
    %726 = vdwg.mxu0
    %v727 = vadd.f32 %v644, %v724
    %s728 = scalar_lea.vmem %s3, 64
    %v729 = vld [vmem:[%s728] sm:$0xff]
    %730 = vrot.lane.b32.xlu0 %v145, 120
    %v731 = vpop.permute.xlu0 %730
    %732 = vrot.lane.b32.xlu0 %v146, 120
    %v733 = vpop.permute.xlu0 %732
    %vm734 = vcmask 982016
    %v735 = vsel %vm734, %v731, %v733
    %v738 = vsel %vm68, %v729, 0
    %740 = vmatprep.subr.mxu0 0.0
    %741 = vmatpush1.msra.mxu0 0.0
    %742 = vmatprep.subr.mxu0 0.0
    %743 = vmatpush1.msra.mxu0 0.0
    %744 = vmatprep.subr.mxu0 0.0
    %745 = vmatpush1.msra.mxu0 0.0
    %746 = vmatprep.subr.mxu0 0.0
    %747 = vmatpush1.msra.mxu0 0.0
    %748 = vmatprep.subr.mxu0 0.0
    %749 = vmatpush1.msra.mxu0 0.0
    %750 = vmatprep.subr.mxu0 0.0
    %751 = vmatpush1.msra.mxu0 0.0
    %752 = vmatprep.subr.mxu0 0.0
    %753 = vmatpush1.msra.mxu0 0.0
    %754 = vmatprep.subr.mxu0 0.0
    %755 = vmatpush1.msra.mxu0 0.0
    %756 = vmatprep.subr.mxu0 0.0
    %757 = vmatpush1.msra.mxu0 0.0
    %758 = vmatprep.subr.mxu0 0.0
    %759 = vmatpush1.msra.mxu0 0.0
    %760 = vmatprep.subr.mxu0 0.0
    %761 = vmatpush1.msra.mxu0 0.0
    %762 = vmatprep.subr.mxu0 0.0
    %763 = vmatpush1.msra.mxu0 0.0
    %764 = vmatprep.subr.mxu0 0.0
    %765 = vmatpush1.msra.mxu0 0.0
    %766 = vmatprep.subr.mxu0 0.0
    %767 = vmatpush1.msra.mxu0 0.0
    %768 = vmatprep.subr.mxu0 0.0
    %769 = vmatpush1.msra.mxu0 0.0
    %770 = vmatprep.subr.mxu0 0.0
    %771 = vmatpush1.msra.mxu0 %v735
    %772 = vmatprep.subr.mxu0 0.0
    %773 = vmatpush2.msra.mxu0 0.0
    %774 = vmatprep.subr.mxu0 0.0
    %775 = vmatpush2.msra.mxu0 0.0
    %776 = vmatprep.subr.mxu0 0.0
    %777 = vmatpush2.msra.mxu0 0.0
    %778 = vmatprep.subr.mxu0 0.0
    %779 = vmatpush2.msra.mxu0 0.0
    %780 = vmatprep.subr.mxu0 0.0
    %781 = vmatpush2.msra.mxu0 0.0
    %782 = vmatprep.subr.mxu0 0.0
    %783 = vmatpush2.msra.mxu0 0.0
    %784 = vmatprep.subr.mxu0 0.0
    %785 = vmatpush2.msra.mxu0 0.0
    %786 = vmatprep.subr.mxu0 0.0
    %787 = vmatpush2.msra.mxu0 0.0
    %788 = vmatprep.subr.mxu0 0.0
    %789 = vmatpush2.msra.mxu0 0.0
    %790 = vmatprep.subr.mxu0 0.0
    %791 = vmatpush2.msra.mxu0 0.0
    %792 = vmatprep.subr.mxu0 0.0
    %793 = vmatpush2.msra.mxu0 0.0
    %794 = vmatprep.subr.mxu0 0.0
    %795 = vmatpush2.msra.mxu0 0.0
    %796 = vmatprep.subr.mxu0 0.0
    %797 = vmatpush2.msra.mxu0 0.0
    %798 = vmatprep.subr.mxu0 0.0
    %799 = vmatpush2.msra.mxu0 0.0
    %800 = vmatprep.subr.mxu0 0.0
    %801 = vmatpush2.msra.mxu0 0.0
    %802 = vmatprep.subr.mxu0 0.0
    %803 = vmatpush2.msra.mxu0 0.0
    %804 = vmatprep.mubr.f32.mxu0 0.0
    %805 = vmatmul.mubr.f32.gmra.mxu0 %v738
    %v806 = vpop.f32.mrf.mxu0
    %v807 = vadd.f32 0.0, %v806
    %v808 = vpop.f32.mrf.mxu0
    %809 = vdwg.mxu0
    %v810 = vadd.f32 %v727, %v807
    %s811 = scalar_lea.vmem %s3, 72
    %v812 = vld [vmem:[%s811] sm:$0xff]
    %813 = vrot.lane.b32.xlu0 %v145, 119
    %v814 = vpop.permute.xlu0 %813
    %815 = vrot.lane.b32.xlu0 %v146, 119
    %v816 = vpop.permute.xlu0 %815
    %vm817 = vcmask 973824
    %v818 = vsel %vm817, %v814, %v816
    %v821 = vsel %vm68, %v812, 0
    %823 = vmatprep.subr.mxu0 0.0
    %824 = vmatpush1.msra.mxu0 0.0
    %825 = vmatprep.subr.mxu0 0.0
    %826 = vmatpush1.msra.mxu0 0.0
    %827 = vmatprep.subr.mxu0 0.0
    %828 = vmatpush1.msra.mxu0 0.0
    %829 = vmatprep.subr.mxu0 0.0
    %830 = vmatpush1.msra.mxu0 0.0
    %831 = vmatprep.subr.mxu0 0.0
    %832 = vmatpush1.msra.mxu0 0.0
    %833 = vmatprep.subr.mxu0 0.0
    %834 = vmatpush1.msra.mxu0 0.0
    %835 = vmatprep.subr.mxu0 0.0
    %836 = vmatpush1.msra.mxu0 0.0
    %837 = vmatprep.subr.mxu0 0.0
    %838 = vmatpush1.msra.mxu0 0.0
    %839 = vmatprep.subr.mxu0 0.0
    %840 = vmatpush1.msra.mxu0 0.0
    %841 = vmatprep.subr.mxu0 0.0
    %842 = vmatpush1.msra.mxu0 0.0
    %843 = vmatprep.subr.mxu0 0.0
    %844 = vmatpush1.msra.mxu0 0.0
    %845 = vmatprep.subr.mxu0 0.0
    %846 = vmatpush1.msra.mxu0 0.0
    %847 = vmatprep.subr.mxu0 0.0
    %848 = vmatpush1.msra.mxu0 0.0
    %849 = vmatprep.subr.mxu0 0.0
    %850 = vmatpush1.msra.mxu0 0.0
    %851 = vmatprep.subr.mxu0 0.0
    %852 = vmatpush1.msra.mxu0 0.0
    %853 = vmatprep.subr.mxu0 0.0
    %854 = vmatpush1.msra.mxu0 %v818
    %855 = vmatprep.subr.mxu0 0.0
    %856 = vmatpush2.msra.mxu0 0.0
    %857 = vmatprep.subr.mxu0 0.0
    %858 = vmatpush2.msra.mxu0 0.0
    %859 = vmatprep.subr.mxu0 0.0
    %860 = vmatpush2.msra.mxu0 0.0
    %861 = vmatprep.subr.mxu0 0.0
    %862 = vmatpush2.msra.mxu0 0.0
    %863 = vmatprep.subr.mxu0 0.0
    %864 = vmatpush2.msra.mxu0 0.0
    %865 = vmatprep.subr.mxu0 0.0
    %866 = vmatpush2.msra.mxu0 0.0
    %867 = vmatprep.subr.mxu0 0.0
    %868 = vmatpush2.msra.mxu0 0.0
    %869 = vmatprep.subr.mxu0 0.0
    %870 = vmatpush2.msra.mxu0 0.0
    %871 = vmatprep.subr.mxu0 0.0
    %872 = vmatpush2.msra.mxu0 0.0
    %873 = vmatprep.subr.mxu0 0.0
    %874 = vmatpush2.msra.mxu0 0.0
    %875 = vmatprep.subr.mxu0 0.0
    %876 = vmatpush2.msra.mxu0 0.0
    %877 = vmatprep.subr.mxu0 0.0
    %878 = vmatpush2.msra.mxu0 0.0
    %879 = vmatprep.subr.mxu0 0.0
    %880 = vmatpush2.msra.mxu0 0.0
    %881 = vmatprep.subr.mxu0 0.0
    %882 = vmatpush2.msra.mxu0 0.0
    %883 = vmatprep.subr.mxu0 0.0
    %884 = vmatpush2.msra.mxu0 0.0
    %885 = vmatprep.subr.mxu0 0.0
    %886 = vmatpush2.msra.mxu0 0.0
    %887 = vmatprep.mubr.f32.mxu0 0.0
    %888 = vmatmul.mubr.f32.gmra.mxu0 %v821
    %v889 = vpop.f32.mrf.mxu0
    %v890 = vadd.f32 0.0, %v889
    %v891 = vpop.f32.mrf.mxu0
    %892 = vdwg.mxu0
    %v893 = vadd.f32 %v810, %v890
    %s894 = scalar_lea.vmem %s3, 80
    %v895 = vld [vmem:[%s894] sm:$0xff]
    %896 = vrot.lane.b32.xlu0 %v145, 118
    %v897 = vpop.permute.xlu0 %896
    %898 = vrot.lane.b32.xlu0 %v146, 118
    %v899 = vpop.permute.xlu0 %898
    %vm900 = vcmask 965632
    %v901 = vsel %vm900, %v897, %v899
    %v904 = vsel %vm68, %v895, 0
    %906 = vmatprep.subr.mxu0 0.0
    %907 = vmatpush1.msra.mxu0 0.0
    %908 = vmatprep.subr.mxu0 0.0
    %909 = vmatpush1.msra.mxu0 0.0
    %910 = vmatprep.subr.mxu0 0.0
    %911 = vmatpush1.msra.mxu0 0.0
    %912 = vmatprep.subr.mxu0 0.0
    %913 = vmatpush1.msra.mxu0 0.0
    %914 = vmatprep.subr.mxu0 0.0
    %915 = vmatpush1.msra.mxu0 0.0
    %916 = vmatprep.subr.mxu0 0.0
    %917 = vmatpush1.msra.mxu0 0.0
    %918 = vmatprep.subr.mxu0 0.0
    %919 = vmatpush1.msra.mxu0 0.0
    %920 = vmatprep.subr.mxu0 0.0
    %921 = vmatpush1.msra.mxu0 0.0
    %922 = vmatprep.subr.mxu0 0.0
    %923 = vmatpush1.msra.mxu0 0.0
    %924 = vmatprep.subr.mxu0 0.0
    %925 = vmatpush1.msra.mxu0 0.0
    %926 = vmatprep.subr.mxu0 0.0
    %927 = vmatpush1.msra.mxu0 0.0
    %928 = vmatprep.subr.mxu0 0.0
    %929 = vmatpush1.msra.mxu0 0.0
    %930 = vmatprep.subr.mxu0 0.0
    %931 = vmatpush1.msra.mxu0 0.0
    %932 = vmatprep.subr.mxu0 0.0
    %933 = vmatpush1.msra.mxu0 0.0
    %934 = vmatprep.subr.mxu0 0.0
    %935 = vmatpush1.msra.mxu0 0.0
    %936 = vmatprep.subr.mxu0 0.0
    %937 = vmatpush1.msra.mxu0 %v901
    %938 = vmatprep.subr.mxu0 0.0
    %939 = vmatpush2.msra.mxu0 0.0
    %940 = vmatprep.subr.mxu0 0.0
    %941 = vmatpush2.msra.mxu0 0.0
    %942 = vmatprep.subr.mxu0 0.0
    %943 = vmatpush2.msra.mxu0 0.0
    %944 = vmatprep.subr.mxu0 0.0
    %945 = vmatpush2.msra.mxu0 0.0
    %946 = vmatprep.subr.mxu0 0.0
    %947 = vmatpush2.msra.mxu0 0.0
    %948 = vmatprep.subr.mxu0 0.0
    %949 = vmatpush2.msra.mxu0 0.0
    %950 = vmatprep.subr.mxu0 0.0
    %951 = vmatpush2.msra.mxu0 0.0
    %952 = vmatprep.subr.mxu0 0.0
    %953 = vmatpush2.msra.mxu0 0.0
    %954 = vmatprep.subr.mxu0 0.0
    %955 = vmatpush2.msra.mxu0 0.0
    %956 = vmatprep.subr.mxu0 0.0
    %957 = vmatpush2.msra.mxu0 0.0
    %958 = vmatprep.subr.mxu0 0.0
    %959 = vmatpush2.msra.mxu0 0.0
    %960 = vmatprep.subr.mxu0 0.0
    %961 = vmatpush2.msra.mxu0 0.0
    %962 = vmatprep.subr.mxu0 0.0
    %963 = vmatpush2.msra.mxu0 0.0
    %964 = vmatprep.subr.mxu0 0.0
    %965 = vmatpush2.msra.mxu0 0.0
    %966 = vmatprep.subr.mxu0 0.0
    %967 = vmatpush2.msra.mxu0 0.0
    %968 = vmatprep.subr.mxu0 0.0
    %969 = vmatpush2.msra.mxu0 0.0
    %970 = vmatprep.mubr.f32.mxu0 0.0
    %971 = vmatmul.mubr.f32.gmra.mxu0 %v904
    %v972 = vpop.f32.mrf.mxu0
    %v973 = vadd.f32 0.0, %v972
    %v974 = vpop.f32.mrf.mxu0
    %975 = vdwg.mxu0
    %v976 = vadd.f32 %v893, %v973
    %s977 = scalar_lea.vmem %s3, 88
    %v978 = vld [vmem:[%s977] sm:$0xff]
    %979 = vrot.lane.b32.xlu0 %v145, 117
    %v980 = vpop.permute.xlu0 %979
    %981 = vrot.lane.b32.xlu0 %v146, 117
    %v982 = vpop.permute.xlu0 %981
    %vm983 = vcmask 957440
    %v984 = vsel %vm983, %v980, %v982
    %v987 = vsel %vm68, %v978, 0
    %989 = vmatprep.subr.mxu0 0.0
    %990 = vmatpush1.msra.mxu0 0.0
    %991 = vmatprep.subr.mxu0 0.0
    %992 = vmatpush1.msra.mxu0 0.0
    %993 = vmatprep.subr.mxu0 0.0
    %994 = vmatpush1.msra.mxu0 0.0
    %995 = vmatprep.subr.mxu0 0.0
    %996 = vmatpush1.msra.mxu0 0.0
    %997 = vmatprep.subr.mxu0 0.0
    %998 = vmatpush1.msra.mxu0 0.0
    %999 = vmatprep.subr.mxu0 0.0
    %1000 = vmatpush1.msra.mxu0 0.0
    %1001 = vmatprep.subr.mxu0 0.0
    %1002 = vmatpush1.msra.mxu0 0.0
    %1003 = vmatprep.subr.mxu0 0.0
    %1004 = vmatpush1.msra.mxu0 0.0
    %1005 = vmatprep.subr.mxu0 0.0
    %1006 = vmatpush1.msra.mxu0 0.0
    %1007 = vmatprep.subr.mxu0 0.0
    %1008 = vmatpush1.msra.mxu0 0.0
    %1009 = vmatprep.subr.mxu0 0.0
    %1010 = vmatpush1.msra.mxu0 0.0
    %1011 = vmatprep.subr.mxu0 0.0
    %1012 = vmatpush1.msra.mxu0 0.0
    %1013 = vmatprep.subr.mxu0 0.0
    %1014 = vmatpush1.msra.mxu0 0.0
    %1015 = vmatprep.subr.mxu0 0.0
    %1016 = vmatpush1.msra.mxu0 0.0
    %1017 = vmatprep.subr.mxu0 0.0
    %1018 = vmatpush1.msra.mxu0 0.0
    %1019 = vmatprep.subr.mxu0 0.0
    %1020 = vmatpush1.msra.mxu0 %v984
    %1021 = vmatprep.subr.mxu0 0.0
    %1022 = vmatpush2.msra.mxu0 0.0
    %1023 = vmatprep.subr.mxu0 0.0
    %1024 = vmatpush2.msra.mxu0 0.0
    %1025 = vmatprep.subr.mxu0 0.0
    %1026 = vmatpush2.msra.mxu0 0.0
    %1027 = vmatprep.subr.mxu0 0.0
    %1028 = vmatpush2.msra.mxu0 0.0
    %1029 = vmatprep.subr.mxu0 0.0
    %1030 = vmatpush2.msra.mxu0 0.0
    %1031 = vmatprep.subr.mxu0 0.0
    %1032 = vmatpush2.msra.mxu0 0.0
    %1033 = vmatprep.subr.mxu0 0.0
    %1034 = vmatpush2.msra.mxu0 0.0
    %1035 = vmatprep.subr.mxu0 0.0
    %1036 = vmatpush2.msra.mxu0 0.0
    %1037 = vmatprep.subr.mxu0 0.0
    %1038 = vmatpush2.msra.mxu0 0.0
    %1039 = vmatprep.subr.mxu0 0.0
    %1040 = vmatpush2.msra.mxu0 0.0
    %1041 = vmatprep.subr.mxu0 0.0
    %1042 = vmatpush2.msra.mxu0 0.0
    %1043 = vmatprep.subr.mxu0 0.0
    %1044 = vmatpush2.msra.mxu0 0.0
    %1045 = vmatprep.subr.mxu0 0.0
    %1046 = vmatpush2.msra.mxu0 0.0
    %1047 = vmatprep.subr.mxu0 0.0
    %1048 = vmatpush2.msra.mxu0 0.0
    %1049 = vmatprep.subr.mxu0 0.0
    %1050 = vmatpush2.msra.mxu0 0.0
    %1051 = vmatprep.subr.mxu0 0.0
    %1052 = vmatpush2.msra.mxu0 0.0
    %1053 = vmatprep.mubr.f32.mxu0 0.0
    %1054 = vmatmul.mubr.f32.gmra.mxu0 %v987
    %v1055 = vpop.f32.mrf.mxu0
    %v1056 = vadd.f32 0.0, %v1055
    %v1057 = vpop.f32.mrf.mxu0
    %1058 = vdwg.mxu0
    %v1059 = vadd.f32 %v976, %v1056
    %s1060 = scalar_lea.vmem %s3, 96
    %v1061 = vld [vmem:[%s1060] sm:$0xff]
    %1062 = vrot.lane.b32.xlu0 %v145, 116
    %v1063 = vpop.permute.xlu0 %1062
    %1064 = vrot.lane.b32.xlu0 %v146, 116
    %v1065 = vpop.permute.xlu0 %1064
    %vm1066 = vcmask 949248
    %v1067 = vsel %vm1066, %v1063, %v1065
    %v1070 = vsel %vm68, %v1061, 0
    %1072 = vmatprep.subr.mxu0 0.0
    %1073 = vmatpush1.msra.mxu0 0.0
    %1074 = vmatprep.subr.mxu0 0.0
    %1075 = vmatpush1.msra.mxu0 0.0
    %1076 = vmatprep.subr.mxu0 0.0
    %1077 = vmatpush1.msra.mxu0 0.0
    %1078 = vmatprep.subr.mxu0 0.0
    %1079 = vmatpush1.msra.mxu0 0.0
    %1080 = vmatprep.subr.mxu0 0.0
    %1081 = vmatpush1.msra.mxu0 0.0
    %1082 = vmatprep.subr.mxu0 0.0
    %1083 = vmatpush1.msra.mxu0 0.0
    %1084 = vmatprep.subr.mxu0 0.0
    %1085 = vmatpush1.msra.mxu0 0.0
    %1086 = vmatprep.subr.mxu0 0.0
    %1087 = vmatpush1.msra.mxu0 0.0
    %1088 = vmatprep.subr.mxu0 0.0
    %1089 = vmatpush1.msra.mxu0 0.0
    %1090 = vmatprep.subr.mxu0 0.0
    %1091 = vmatpush1.msra.mxu0 0.0
    %1092 = vmatprep.subr.mxu0 0.0
    %1093 = vmatpush1.msra.mxu0 0.0
    %1094 = vmatprep.subr.mxu0 0.0
    %1095 = vmatpush1.msra.mxu0 0.0
    %1096 = vmatprep.subr.mxu0 0.0
    %1097 = vmatpush1.msra.mxu0 0.0
    %1098 = vmatprep.subr.mxu0 0.0
    %1099 = vmatpush1.msra.mxu0 0.0
    %1100 = vmatprep.subr.mxu0 0.0
    %1101 = vmatpush1.msra.mxu0 0.0
    %1102 = vmatprep.subr.mxu0 0.0
    %1103 = vmatpush1.msra.mxu0 %v1067
    %1104 = vmatprep.subr.mxu0 0.0
    %1105 = vmatpush2.msra.mxu0 0.0
    %1106 = vmatprep.subr.mxu0 0.0
    %1107 = vmatpush2.msra.mxu0 0.0
    %1108 = vmatprep.subr.mxu0 0.0
    %1109 = vmatpush2.msra.mxu0 0.0
    %1110 = vmatprep.subr.mxu0 0.0
    %1111 = vmatpush2.msra.mxu0 0.0
    %1112 = vmatprep.subr.mxu0 0.0
    %1113 = vmatpush2.msra.mxu0 0.0
    %1114 = vmatprep.subr.mxu0 0.0
    %1115 = vmatpush2.msra.mxu0 0.0
    %1116 = vmatprep.subr.mxu0 0.0
    %1117 = vmatpush2.msra.mxu0 0.0
    %1118 = vmatprep.subr.mxu0 0.0
    %1119 = vmatpush2.msra.mxu0 0.0
    %1120 = vmatprep.subr.mxu0 0.0
    %1121 = vmatpush2.msra.mxu0 0.0
    %1122 = vmatprep.subr.mxu0 0.0
    %1123 = vmatpush2.msra.mxu0 0.0
    %1124 = vmatprep.subr.mxu0 0.0
    %1125 = vmatpush2.msra.mxu0 0.0
    %1126 = vmatprep.subr.mxu0 0.0
    %1127 = vmatpush2.msra.mxu0 0.0
    %1128 = vmatprep.subr.mxu0 0.0
    %1129 = vmatpush2.msra.mxu0 0.0
    %1130 = vmatprep.subr.mxu0 0.0
    %1131 = vmatpush2.msra.mxu0 0.0
    %1132 = vmatprep.subr.mxu0 0.0
    %1133 = vmatpush2.msra.mxu0 0.0
    %1134 = vmatprep.subr.mxu0 0.0
    %1135 = vmatpush2.msra.mxu0 0.0
    %1136 = vmatprep.mubr.f32.mxu0 0.0
    %1137 = vmatmul.mubr.f32.gmra.mxu0 %v1070
    %v1138 = vpop.f32.mrf.mxu0
    %v1139 = vadd.f32 0.0, %v1138
    %v1140 = vpop.f32.mrf.mxu0
    %1141 = vdwg.mxu0
    %v1142 = vadd.f32 %v1059, %v1139
    %s1143 = scalar_lea.vmem %s3, 104
    %v1144 = vld [vmem:[%s1143] sm:$0xff]
    %1145 = vrot.lane.b32.xlu0 %v145, 115
    %v1146 = vpop.permute.xlu0 %1145
    %1147 = vrot.lane.b32.xlu0 %v146, 115
    %v1148 = vpop.permute.xlu0 %1147
    %vm1149 = vcmask 941056
    %v1150 = vsel %vm1149, %v1146, %v1148
    %v1153 = vsel %vm68, %v1144, 0
    %1155 = vmatprep.subr.mxu0 0.0
    %1156 = vmatpush1.msra.mxu0 0.0
    %1157 = vmatprep.subr.mxu0 0.0
    %1158 = vmatpush1.msra.mxu0 0.0
    %1159 = vmatprep.subr.mxu0 0.0
    %1160 = vmatpush1.msra.mxu0 0.0
    %1161 = vmatprep.subr.mxu0 0.0
    %1162 = vmatpush1.msra.mxu0 0.0
    %1163 = vmatprep.subr.mxu0 0.0
    %1164 = vmatpush1.msra.mxu0 0.0
    %1165 = vmatprep.subr.mxu0 0.0
    %1166 = vmatpush1.msra.mxu0 0.0
    %1167 = vmatprep.subr.mxu0 0.0
    %1168 = vmatpush1.msra.mxu0 0.0
    %1169 = vmatprep.subr.mxu0 0.0
    %1170 = vmatpush1.msra.mxu0 0.0
    %1171 = vmatprep.subr.mxu0 0.0
    %1172 = vmatpush1.msra.mxu0 0.0
    %1173 = vmatprep.subr.mxu0 0.0
    %1174 = vmatpush1.msra.mxu0 0.0
    %1175 = vmatprep.subr.mxu0 0.0
    %1176 = vmatpush1.msra.mxu0 0.0
    %1177 = vmatprep.subr.mxu0 0.0
    %1178 = vmatpush1.msra.mxu0 0.0
    %1179 = vmatprep.subr.mxu0 0.0
    %1180 = vmatpush1.msra.mxu0 0.0
    %1181 = vmatprep.subr.mxu0 0.0
    %1182 = vmatpush1.msra.mxu0 0.0
    %1183 = vmatprep.subr.mxu0 0.0
    %1184 = vmatpush1.msra.mxu0 0.0
    %1185 = vmatprep.subr.mxu0 0.0
    %1186 = vmatpush1.msra.mxu0 %v1150
    %1187 = vmatprep.subr.mxu0 0.0
    %1188 = vmatpush2.msra.mxu0 0.0
    %1189 = vmatprep.subr.mxu0 0.0
    %1190 = vmatpush2.msra.mxu0 0.0
    %1191 = vmatprep.subr.mxu0 0.0
    %1192 = vmatpush2.msra.mxu0 0.0
    %1193 = vmatprep.subr.mxu0 0.0
    %1194 = vmatpush2.msra.mxu0 0.0
    %1195 = vmatprep.subr.mxu0 0.0
    %1196 = vmatpush2.msra.mxu0 0.0
    %1197 = vmatprep.subr.mxu0 0.0
    %1198 = vmatpush2.msra.mxu0 0.0
    %1199 = vmatprep.subr.mxu0 0.0
    %1200 = vmatpush2.msra.mxu0 0.0
    %1201 = vmatprep.subr.mxu0 0.0
    %1202 = vmatpush2.msra.mxu0 0.0
    %1203 = vmatprep.subr.mxu0 0.0
    %1204 = vmatpush2.msra.mxu0 0.0
    %1205 = vmatprep.subr.mxu0 0.0
    %1206 = vmatpush2.msra.mxu0 0.0
    %1207 = vmatprep.subr.mxu0 0.0
    %1208 = vmatpush2.msra.mxu0 0.0
    %1209 = vmatprep.subr.mxu0 0.0
    %1210 = vmatpush2.msra.mxu0 0.0
    %1211 = vmatprep.subr.mxu0 0.0
    %1212 = vmatpush2.msra.mxu0 0.0
    %1213 = vmatprep.subr.mxu0 0.0
    %1214 = vmatpush2.msra.mxu0 0.0
    %1215 = vmatprep.subr.mxu0 0.0
    %1216 = vmatpush2.msra.mxu0 0.0
    %1217 = vmatprep.subr.mxu0 0.0
    %1218 = vmatpush2.msra.mxu0 0.0
    %1219 = vmatprep.mubr.f32.mxu0 0.0
    %1220 = vmatmul.mubr.f32.gmra.mxu0 %v1153
    %v1221 = vpop.f32.mrf.mxu0
    %v1222 = vadd.f32 0.0, %v1221
    %v1223 = vpop.f32.mrf.mxu0
    %1224 = vdwg.mxu0
    %v1225 = vadd.f32 %v1142, %v1222
    %s1226 = scalar_lea.vmem %s3, 112
    %v1227 = vld [vmem:[%s1226] sm:$0xff]
    %1228 = vrot.lane.b32.xlu0 %v145, 114
    %v1229 = vpop.permute.xlu0 %1228
    %1230 = vrot.lane.b32.xlu0 %v146, 114
    %v1231 = vpop.permute.xlu0 %1230
    %vm1232 = vcmask 932864
    %v1233 = vsel %vm1232, %v1229, %v1231
    %v1236 = vsel %vm68, %v1227, 0
    %1238 = vmatprep.subr.mxu0 0.0
    %1239 = vmatpush1.msra.mxu0 0.0
    %1240 = vmatprep.subr.mxu0 0.0
    %1241 = vmatpush1.msra.mxu0 0.0
    %1242 = vmatprep.subr.mxu0 0.0
    %1243 = vmatpush1.msra.mxu0 0.0
    %1244 = vmatprep.subr.mxu0 0.0
    %1245 = vmatpush1.msra.mxu0 0.0
    %1246 = vmatprep.subr.mxu0 0.0
    %1247 = vmatpush1.msra.mxu0 0.0
    %1248 = vmatprep.subr.mxu0 0.0
    %1249 = vmatpush1.msra.mxu0 0.0
    %1250 = vmatprep.subr.mxu0 0.0
    %1251 = vmatpush1.msra.mxu0 0.0
    %1252 = vmatprep.subr.mxu0 0.0
    %1253 = vmatpush1.msra.mxu0 0.0
    %1254 = vmatprep.subr.mxu0 0.0
    %1255 = vmatpush1.msra.mxu0 0.0
    %1256 = vmatprep.subr.mxu0 0.0
    %1257 = vmatpush1.msra.mxu0 0.0
    %1258 = vmatprep.subr.mxu0 0.0
    %1259 = vmatpush1.msra.mxu0 0.0
    %1260 = vmatprep.subr.mxu0 0.0
    %1261 = vmatpush1.msra.mxu0 0.0
    %1262 = vmatprep.subr.mxu0 0.0
    %1263 = vmatpush1.msra.mxu0 0.0
    %1264 = vmatprep.subr.mxu0 0.0
    %1265 = vmatpush1.msra.mxu0 0.0
    %1266 = vmatprep.subr.mxu0 0.0
    %1267 = vmatpush1.msra.mxu0 0.0
    %1268 = vmatprep.subr.mxu0 0.0
    %1269 = vmatpush1.msra.mxu0 %v1233
    %1270 = vmatprep.subr.mxu0 0.0
    %1271 = vmatpush2.msra.mxu0 0.0
    %1272 = vmatprep.subr.mxu0 0.0
    %1273 = vmatpush2.msra.mxu0 0.0
    %1274 = vmatprep.subr.mxu0 0.0
    %1275 = vmatpush2.msra.mxu0 0.0
    %1276 = vmatprep.subr.mxu0 0.0
    %1277 = vmatpush2.msra.mxu0 0.0
    %1278 = vmatprep.subr.mxu0 0.0
    %1279 = vmatpush2.msra.mxu0 0.0
    %1280 = vmatprep.subr.mxu0 0.0
    %1281 = vmatpush2.msra.mxu0 0.0
    %1282 = vmatprep.subr.mxu0 0.0
    %1283 = vmatpush2.msra.mxu0 0.0
    %1284 = vmatprep.subr.mxu0 0.0
    %1285 = vmatpush2.msra.mxu0 0.0
    %1286 = vmatprep.subr.mxu0 0.0
    %1287 = vmatpush2.msra.mxu0 0.0
    %1288 = vmatprep.subr.mxu0 0.0
    %1289 = vmatpush2.msra.mxu0 0.0
    %1290 = vmatprep.subr.mxu0 0.0
    %1291 = vmatpush2.msra.mxu0 0.0
    %1292 = vmatprep.subr.mxu0 0.0
    %1293 = vmatpush2.msra.mxu0 0.0
    %1294 = vmatprep.subr.mxu0 0.0
    %1295 = vmatpush2.msra.mxu0 0.0
    %1296 = vmatprep.subr.mxu0 0.0
    %1297 = vmatpush2.msra.mxu0 0.0
    %1298 = vmatprep.subr.mxu0 0.0
    %1299 = vmatpush2.msra.mxu0 0.0
    %1300 = vmatprep.subr.mxu0 0.0
    %1301 = vmatpush2.msra.mxu0 0.0
    %1302 = vmatprep.mubr.f32.mxu0 0.0
    %1303 = vmatmul.mubr.f32.gmra.mxu0 %v1236
    %v1304 = vpop.f32.mrf.mxu0
    %v1305 = vadd.f32 0.0, %v1304
    %v1306 = vpop.f32.mrf.mxu0
    %1307 = vdwg.mxu0
    %v1308 = vadd.f32 %v1225, %v1305
    %s1309 = scalar_lea.vmem %s3, 120
    %v1310 = vld [vmem:[%s1309] sm:$0xff]
    %1311 = vrot.lane.b32.xlu0 %v145, 113
    %v1312 = vpop.permute.xlu0 %1311
    %1313 = vrot.lane.b32.xlu0 %v146, 113
    %v1314 = vpop.permute.xlu0 %1313
    %vm1315 = vcmask 924672
    %v1316 = vsel %vm1315, %v1312, %v1314
    %v1319 = vsel %vm68, %v1310, 0
    %1321 = vmatprep.subr.mxu0 0.0
    %1322 = vmatpush1.msra.mxu0 0.0
    %1323 = vmatprep.subr.mxu0 0.0
    %1324 = vmatpush1.msra.mxu0 0.0
    %1325 = vmatprep.subr.mxu0 0.0
    %1326 = vmatpush1.msra.mxu0 0.0
    %1327 = vmatprep.subr.mxu0 0.0
    %1328 = vmatpush1.msra.mxu0 0.0
    %1329 = vmatprep.subr.mxu0 0.0
    %1330 = vmatpush1.msra.mxu0 0.0
    %1331 = vmatprep.subr.mxu0 0.0
    %1332 = vmatpush1.msra.mxu0 0.0
    %1333 = vmatprep.subr.mxu0 0.0
    %1334 = vmatpush1.msra.mxu0 0.0
    %1335 = vmatprep.subr.mxu0 0.0
    %1336 = vmatpush1.msra.mxu0 0.0
    %1337 = vmatprep.subr.mxu0 0.0
    %1338 = vmatpush1.msra.mxu0 0.0
    %1339 = vmatprep.subr.mxu0 0.0
    %1340 = vmatpush1.msra.mxu0 0.0
    %1341 = vmatprep.subr.mxu0 0.0
    %1342 = vmatpush1.msra.mxu0 0.0
    %1343 = vmatprep.subr.mxu0 0.0
    %1344 = vmatpush1.msra.mxu0 0.0
    %1345 = vmatprep.subr.mxu0 0.0
    %1346 = vmatpush1.msra.mxu0 0.0
    %1347 = vmatprep.subr.mxu0 0.0
    %1348 = vmatpush1.msra.mxu0 0.0
    %1349 = vmatprep.subr.mxu0 0.0
    %1350 = vmatpush1.msra.mxu0 0.0
    %1351 = vmatprep.subr.mxu0 0.0
    %1352 = vmatpush1.msra.mxu0 %v1316
    %1353 = vmatprep.subr.mxu0 0.0
    %1354 = vmatpush2.msra.mxu0 0.0
    %1355 = vmatprep.subr.mxu0 0.0
    %1356 = vmatpush2.msra.mxu0 0.0
    %1357 = vmatprep.subr.mxu0 0.0
    %1358 = vmatpush2.msra.mxu0 0.0
    %1359 = vmatprep.subr.mxu0 0.0
    %1360 = vmatpush2.msra.mxu0 0.0
    %1361 = vmatprep.subr.mxu0 0.0
    %1362 = vmatpush2.msra.mxu0 0.0
    %1363 = vmatprep.subr.mxu0 0.0
    %1364 = vmatpush2.msra.mxu0 0.0
    %1365 = vmatprep.subr.mxu0 0.0
    %1366 = vmatpush2.msra.mxu0 0.0
    %1367 = vmatprep.subr.mxu0 0.0
    %1368 = vmatpush2.msra.mxu0 0.0
    %1369 = vmatprep.subr.mxu0 0.0
    %1370 = vmatpush2.msra.mxu0 0.0
    %1371 = vmatprep.subr.mxu0 0.0
    %1372 = vmatpush2.msra.mxu0 0.0
    %1373 = vmatprep.subr.mxu0 0.0
    %1374 = vmatpush2.msra.mxu0 0.0
    %1375 = vmatprep.subr.mxu0 0.0
    %1376 = vmatpush2.msra.mxu0 0.0
    %1377 = vmatprep.subr.mxu0 0.0
    %1378 = vmatpush2.msra.mxu0 0.0
    %1379 = vmatprep.subr.mxu0 0.0
    %1380 = vmatpush2.msra.mxu0 0.0
    %1381 = vmatprep.subr.mxu0 0.0
    %1382 = vmatpush2.msra.mxu0 0.0
    %1383 = vmatprep.subr.mxu0 0.0
    %1384 = vmatpush2.msra.mxu0 0.0
    %1385 = vmatprep.mubr.f32.mxu0 0.0
    %1386 = vmatmul.mubr.f32.gmra.mxu0 %v1319
    %v1387 = vpop.f32.mrf.mxu0
    %v1388 = vadd.f32 0.0, %v1387
    %v1389 = vpop.f32.mrf.mxu0
    %1390 = vdwg.mxu0
    %v1391 = vadd.f32 %v1308, %v1388
    %s1392 = scalar_lea.vmem %s3, 128
    %v1393 = vld [vmem:[%s1392] sm:$0xff]
    %1394 = vrot.lane.b32.xlu0 %v145, 112
    %v1395 = vpop.permute.xlu0 %1394
    %1396 = vrot.lane.b32.xlu0 %v146, 112
    %v1397 = vpop.permute.xlu0 %1396
    %vm1398 = vcmask 916480
    %v1399 = vsel %vm1398, %v1395, %v1397
    %v1402 = vsel %vm68, %v1393, 0
    %1404 = vmatprep.subr.mxu0 0.0
    %1405 = vmatpush1.msra.mxu0 0.0
    %1406 = vmatprep.subr.mxu0 0.0
    %1407 = vmatpush1.msra.mxu0 0.0
    %1408 = vmatprep.subr.mxu0 0.0
    %1409 = vmatpush1.msra.mxu0 0.0
    %1410 = vmatprep.subr.mxu0 0.0
    %1411 = vmatpush1.msra.mxu0 0.0
    %1412 = vmatprep.subr.mxu0 0.0
    %1413 = vmatpush1.msra.mxu0 0.0
    %1414 = vmatprep.subr.mxu0 0.0
    %1415 = vmatpush1.msra.mxu0 0.0
    %1416 = vmatprep.subr.mxu0 0.0
    %1417 = vmatpush1.msra.mxu0 0.0
    %1418 = vmatprep.subr.mxu0 0.0
    %1419 = vmatpush1.msra.mxu0 0.0
    %1420 = vmatprep.subr.mxu0 0.0
    %1421 = vmatpush1.msra.mxu0 0.0
    %1422 = vmatprep.subr.mxu0 0.0
    %1423 = vmatpush1.msra.mxu0 0.0
    %1424 = vmatprep.subr.mxu0 0.0
    %1425 = vmatpush1.msra.mxu0 0.0
    %1426 = vmatprep.subr.mxu0 0.0
    %1427 = vmatpush1.msra.mxu0 0.0
    %1428 = vmatprep.subr.mxu0 0.0
    %1429 = vmatpush1.msra.mxu0 0.0
    %1430 = vmatprep.subr.mxu0 0.0
    %1431 = vmatpush1.msra.mxu0 0.0
    %1432 = vmatprep.subr.mxu0 0.0
    %1433 = vmatpush1.msra.mxu0 0.0
    %1434 = vmatprep.subr.mxu0 0.0
    %1435 = vmatpush1.msra.mxu0 %v1399
    %1436 = vmatprep.subr.mxu0 0.0
    %1437 = vmatpush2.msra.mxu0 0.0
    %1438 = vmatprep.subr.mxu0 0.0
    %1439 = vmatpush2.msra.mxu0 0.0
    %1440 = vmatprep.subr.mxu0 0.0
    %1441 = vmatpush2.msra.mxu0 0.0
    %1442 = vmatprep.subr.mxu0 0.0
    %1443 = vmatpush2.msra.mxu0 0.0
    %1444 = vmatprep.subr.mxu0 0.0
    %1445 = vmatpush2.msra.mxu0 0.0
    %1446 = vmatprep.subr.mxu0 0.0
    %1447 = vmatpush2.msra.mxu0 0.0
    %1448 = vmatprep.subr.mxu0 0.0
    %1449 = vmatpush2.msra.mxu0 0.0
    %1450 = vmatprep.subr.mxu0 0.0
    %1451 = vmatpush2.msra.mxu0 0.0
    %1452 = vmatprep.subr.mxu0 0.0
    %1453 = vmatpush2.msra.mxu0 0.0
    %1454 = vmatprep.subr.mxu0 0.0
    %1455 = vmatpush2.msra.mxu0 0.0
    %1456 = vmatprep.subr.mxu0 0.0
    %1457 = vmatpush2.msra.mxu0 0.0
    %1458 = vmatprep.subr.mxu0 0.0
    %1459 = vmatpush2.msra.mxu0 0.0
    %1460 = vmatprep.subr.mxu0 0.0
    %1461 = vmatpush2.msra.mxu0 0.0
    %1462 = vmatprep.subr.mxu0 0.0
    %1463 = vmatpush2.msra.mxu0 0.0
    %1464 = vmatprep.subr.mxu0 0.0
    %1465 = vmatpush2.msra.mxu0 0.0
    %1466 = vmatprep.subr.mxu0 0.0
    %1467 = vmatpush2.msra.mxu0 0.0
    %1468 = vmatprep.mubr.f32.mxu0 0.0
    %1469 = vmatmul.mubr.f32.gmra.mxu0 %v1402
    %v1470 = vpop.f32.mrf.mxu0
    %v1471 = vadd.f32 0.0, %v1470
    %v1472 = vpop.f32.mrf.mxu0
    %1473 = vdwg.mxu0
    %v1474 = vadd.f32 %v1391, %v1471
    %s1475 = scalar_lea.vmem %s3, 136
    %v1476 = vld [vmem:[%s1475] sm:$0xff]
    %1477 = vrot.lane.b32.xlu0 %v145, 111
    %v1478 = vpop.permute.xlu0 %1477
    %1479 = vrot.lane.b32.xlu0 %v146, 111
    %v1480 = vpop.permute.xlu0 %1479
    %vm1481 = vcmask 908288
    %v1482 = vsel %vm1481, %v1478, %v1480
    %v1485 = vsel %vm68, %v1476, 0
    %1487 = vmatprep.subr.mxu0 0.0
    %1488 = vmatpush1.msra.mxu0 0.0
    %1489 = vmatprep.subr.mxu0 0.0
    %1490 = vmatpush1.msra.mxu0 0.0
    %1491 = vmatprep.subr.mxu0 0.0
    %1492 = vmatpush1.msra.mxu0 0.0
    %1493 = vmatprep.subr.mxu0 0.0
    %1494 = vmatpush1.msra.mxu0 0.0
    %1495 = vmatprep.subr.mxu0 0.0
    %1496 = vmatpush1.msra.mxu0 0.0
    %1497 = vmatprep.subr.mxu0 0.0
    %1498 = vmatpush1.msra.mxu0 0.0
    %1499 = vmatprep.subr.mxu0 0.0
    %1500 = vmatpush1.msra.mxu0 0.0
    %1501 = vmatprep.subr.mxu0 0.0
    %1502 = vmatpush1.msra.mxu0 0.0
    %1503 = vmatprep.subr.mxu0 0.0
    %1504 = vmatpush1.msra.mxu0 0.0
    %1505 = vmatprep.subr.mxu0 0.0
    %1506 = vmatpush1.msra.mxu0 0.0
    %1507 = vmatprep.subr.mxu0 0.0
    %1508 = vmatpush1.msra.mxu0 0.0
    %1509 = vmatprep.subr.mxu0 0.0
    %1510 = vmatpush1.msra.mxu0 0.0
    %1511 = vmatprep.subr.mxu0 0.0
    %1512 = vmatpush1.msra.mxu0 0.0
    %1513 = vmatprep.subr.mxu0 0.0
    %1514 = vmatpush1.msra.mxu0 0.0
    %1515 = vmatprep.subr.mxu0 0.0
    %1516 = vmatpush1.msra.mxu0 0.0
    %1517 = vmatprep.subr.mxu0 0.0
    %1518 = vmatpush1.msra.mxu0 %v1482
    %1519 = vmatprep.subr.mxu0 0.0
    %1520 = vmatpush2.msra.mxu0 0.0
    %1521 = vmatprep.subr.mxu0 0.0
    %1522 = vmatpush2.msra.mxu0 0.0
    %1523 = vmatprep.subr.mxu0 0.0
    %1524 = vmatpush2.msra.mxu0 0.0
    %1525 = vmatprep.subr.mxu0 0.0
    %1526 = vmatpush2.msra.mxu0 0.0
    %1527 = vmatprep.subr.mxu0 0.0
    %1528 = vmatpush2.msra.mxu0 0.0
    %1529 = vmatprep.subr.mxu0 0.0
    %1530 = vmatpush2.msra.mxu0 0.0
    %1531 = vmatprep.subr.mxu0 0.0
    %1532 = vmatpush2.msra.mxu0 0.0
    %1533 = vmatprep.subr.mxu0 0.0
    %1534 = vmatpush2.msra.mxu0 0.0
    %1535 = vmatprep.subr.mxu0 0.0
    %1536 = vmatpush2.msra.mxu0 0.0
    %1537 = vmatprep.subr.mxu0 0.0
    %1538 = vmatpush2.msra.mxu0 0.0
    %1539 = vmatprep.subr.mxu0 0.0
    %1540 = vmatpush2.msra.mxu0 0.0
    %1541 = vmatprep.subr.mxu0 0.0
    %1542 = vmatpush2.msra.mxu0 0.0
    %1543 = vmatprep.subr.mxu0 0.0
    %1544 = vmatpush2.msra.mxu0 0.0
    %1545 = vmatprep.subr.mxu0 0.0
    %1546 = vmatpush2.msra.mxu0 0.0
    %1547 = vmatprep.subr.mxu0 0.0
    %1548 = vmatpush2.msra.mxu0 0.0
    %1549 = vmatprep.subr.mxu0 0.0
    %1550 = vmatpush2.msra.mxu0 0.0
    %1551 = vmatprep.mubr.f32.mxu0 0.0
    %1552 = vmatmul.mubr.f32.gmra.mxu0 %v1485
    %v1553 = vpop.f32.mrf.mxu0
    %v1554 = vadd.f32 0.0, %v1553
    %v1555 = vpop.f32.mrf.mxu0
    %1556 = vdwg.mxu0
    %v1557 = vadd.f32 %v1474, %v1554
    %s1558 = scalar_lea.vmem %s3, 144
    %v1559 = vld [vmem:[%s1558] sm:$0xff]
    %1560 = vrot.lane.b32.xlu0 %v145, 110
    %v1561 = vpop.permute.xlu0 %1560
    %1562 = vrot.lane.b32.xlu0 %v146, 110
    %v1563 = vpop.permute.xlu0 %1562
    %vm1564 = vcmask 900096
    %v1565 = vsel %vm1564, %v1561, %v1563
    %v1568 = vsel %vm68, %v1559, 0
    %1570 = vmatprep.subr.mxu0 0.0
    %1571 = vmatpush1.msra.mxu0 0.0
    %1572 = vmatprep.subr.mxu0 0.0
    %1573 = vmatpush1.msra.mxu0 0.0
    %1574 = vmatprep.subr.mxu0 0.0
    %1575 = vmatpush1.msra.mxu0 0.0
    %1576 = vmatprep.subr.mxu0 0.0
    %1577 = vmatpush1.msra.mxu0 0.0
    %1578 = vmatprep.subr.mxu0 0.0
    %1579 = vmatpush1.msra.mxu0 0.0
    %1580 = vmatprep.subr.mxu0 0.0
    %1581 = vmatpush1.msra.mxu0 0.0
    %1582 = vmatprep.subr.mxu0 0.0
    %1583 = vmatpush1.msra.mxu0 0.0
    %1584 = vmatprep.subr.mxu0 0.0
    %1585 = vmatpush1.msra.mxu0 0.0
    %1586 = vmatprep.subr.mxu0 0.0
    %1587 = vmatpush1.msra.mxu0 0.0
    %1588 = vmatprep.subr.mxu0 0.0
    %1589 = vmatpush1.msra.mxu0 0.0
    %1590 = vmatprep.subr.mxu0 0.0
    %1591 = vmatpush1.msra.mxu0 0.0
    %1592 = vmatprep.subr.mxu0 0.0
    %1593 = vmatpush1.msra.mxu0 0.0
    %1594 = vmatprep.subr.mxu0 0.0
    %1595 = vmatpush1.msra.mxu0 0.0
    %1596 = vmatprep.subr.mxu0 0.0
    %1597 = vmatpush1.msra.mxu0 0.0
    %1598 = vmatprep.subr.mxu0 0.0
    %1599 = vmatpush1.msra.mxu0 0.0
    %1600 = vmatprep.subr.mxu0 0.0
    %1601 = vmatpush1.msra.mxu0 %v1565
    %1602 = vmatprep.subr.mxu0 0.0
    %1603 = vmatpush2.msra.mxu0 0.0
    %1604 = vmatprep.subr.mxu0 0.0
    %1605 = vmatpush2.msra.mxu0 0.0
    %1606 = vmatprep.subr.mxu0 0.0
    %1607 = vmatpush2.msra.mxu0 0.0
    %1608 = vmatprep.subr.mxu0 0.0
    %1609 = vmatpush2.msra.mxu0 0.0
    %1610 = vmatprep.subr.mxu0 0.0
    %1611 = vmatpush2.msra.mxu0 0.0
    %1612 = vmatprep.subr.mxu0 0.0
    %1613 = vmatpush2.msra.mxu0 0.0
    %1614 = vmatprep.subr.mxu0 0.0
    %1615 = vmatpush2.msra.mxu0 0.0
    %1616 = vmatprep.subr.mxu0 0.0
    %1617 = vmatpush2.msra.mxu0 0.0
    %1618 = vmatprep.subr.mxu0 0.0
    %1619 = vmatpush2.msra.mxu0 0.0
    %1620 = vmatprep.subr.mxu0 0.0
    %1621 = vmatpush2.msra.mxu0 0.0
    %1622 = vmatprep.subr.mxu0 0.0
    %1623 = vmatpush2.msra.mxu0 0.0
    %1624 = vmatprep.subr.mxu0 0.0
    %1625 = vmatpush2.msra.mxu0 0.0
    %1626 = vmatprep.subr.mxu0 0.0
    %1627 = vmatpush2.msra.mxu0 0.0
    %1628 = vmatprep.subr.mxu0 0.0
    %1629 = vmatpush2.msra.mxu0 0.0
    %1630 = vmatprep.subr.mxu0 0.0
    %1631 = vmatpush2.msra.mxu0 0.0
    %1632 = vmatprep.subr.mxu0 0.0
    %1633 = vmatpush2.msra.mxu0 0.0
    %1634 = vmatprep.mubr.f32.mxu0 0.0
    %1635 = vmatmul.mubr.f32.gmra.mxu0 %v1568
    %v1636 = vpop.f32.mrf.mxu0
    %v1637 = vadd.f32 0.0, %v1636
    %v1638 = vpop.f32.mrf.mxu0
    %1639 = vdwg.mxu0
    %v1640 = vadd.f32 %v1557, %v1637
    %s1641 = scalar_lea.vmem %s3, 152
    %v1642 = vld [vmem:[%s1641] sm:$0xff]
    %1643 = vrot.lane.b32.xlu0 %v145, 109
    %v1644 = vpop.permute.xlu0 %1643
    %1645 = vrot.lane.b32.xlu0 %v146, 109
    %v1646 = vpop.permute.xlu0 %1645
    %vm1647 = vcmask 891904
    %v1648 = vsel %vm1647, %v1644, %v1646
    %v1651 = vsel %vm68, %v1642, 0
    %1653 = vmatprep.subr.mxu0 0.0
    %1654 = vmatpush1.msra.mxu0 0.0
    %1655 = vmatprep.subr.mxu0 0.0
    %1656 = vmatpush1.msra.mxu0 0.0
    %1657 = vmatprep.subr.mxu0 0.0
    %1658 = vmatpush1.msra.mxu0 0.0
    %1659 = vmatprep.subr.mxu0 0.0
    %1660 = vmatpush1.msra.mxu0 0.0
    %1661 = vmatprep.subr.mxu0 0.0
    %1662 = vmatpush1.msra.mxu0 0.0
    %1663 = vmatprep.subr.mxu0 0.0
    %1664 = vmatpush1.msra.mxu0 0.0
    %1665 = vmatprep.subr.mxu0 0.0
    %1666 = vmatpush1.msra.mxu0 0.0
    %1667 = vmatprep.subr.mxu0 0.0
    %1668 = vmatpush1.msra.mxu0 0.0
    %1669 = vmatprep.subr.mxu0 0.0
    %1670 = vmatpush1.msra.mxu0 0.0
    %1671 = vmatprep.subr.mxu0 0.0
    %1672 = vmatpush1.msra.mxu0 0.0
    %1673 = vmatprep.subr.mxu0 0.0
    %1674 = vmatpush1.msra.mxu0 0.0
    %1675 = vmatprep.subr.mxu0 0.0
    %1676 = vmatpush1.msra.mxu0 0.0
    %1677 = vmatprep.subr.mxu0 0.0
    %1678 = vmatpush1.msra.mxu0 0.0
    %1679 = vmatprep.subr.mxu0 0.0
    %1680 = vmatpush1.msra.mxu0 0.0
    %1681 = vmatprep.subr.mxu0 0.0
    %1682 = vmatpush1.msra.mxu0 0.0
    %1683 = vmatprep.subr.mxu0 0.0
    %1684 = vmatpush1.msra.mxu0 %v1648
    %1685 = vmatprep.subr.mxu0 0.0
    %1686 = vmatpush2.msra.mxu0 0.0
    %1687 = vmatprep.subr.mxu0 0.0
    %1688 = vmatpush2.msra.mxu0 0.0
    %1689 = vmatprep.subr.mxu0 0.0
    %1690 = vmatpush2.msra.mxu0 0.0
    %1691 = vmatprep.subr.mxu0 0.0
    %1692 = vmatpush2.msra.mxu0 0.0
    %1693 = vmatprep.subr.mxu0 0.0
    %1694 = vmatpush2.msra.mxu0 0.0
    %1695 = vmatprep.subr.mxu0 0.0
    %1696 = vmatpush2.msra.mxu0 0.0
    %1697 = vmatprep.subr.mxu0 0.0
    %1698 = vmatpush2.msra.mxu0 0.0
    %1699 = vmatprep.subr.mxu0 0.0
    %1700 = vmatpush2.msra.mxu0 0.0
    %1701 = vmatprep.subr.mxu0 0.0
    %1702 = vmatpush2.msra.mxu0 0.0
    %1703 = vmatprep.subr.mxu0 0.0
    %1704 = vmatpush2.msra.mxu0 0.0
    %1705 = vmatprep.subr.mxu0 0.0
    %1706 = vmatpush2.msra.mxu0 0.0
    %1707 = vmatprep.subr.mxu0 0.0
    %1708 = vmatpush2.msra.mxu0 0.0
    %1709 = vmatprep.subr.mxu0 0.0
    %1710 = vmatpush2.msra.mxu0 0.0
    %1711 = vmatprep.subr.mxu0 0.0
    %1712 = vmatpush2.msra.mxu0 0.0
    %1713 = vmatprep.subr.mxu0 0.0
    %1714 = vmatpush2.msra.mxu0 0.0
    %1715 = vmatprep.subr.mxu0 0.0
    %1716 = vmatpush2.msra.mxu0 0.0
    %1717 = vmatprep.mubr.f32.mxu0 0.0
    %1718 = vmatmul.mubr.f32.gmra.mxu0 %v1651
    %v1719 = vpop.f32.mrf.mxu0
    %v1720 = vadd.f32 0.0, %v1719
    %v1721 = vpop.f32.mrf.mxu0
    %1722 = vdwg.mxu0
    %v1723 = vadd.f32 %v1640, %v1720
    %s1724 = scalar_lea.vmem %s3, 160
    %v1725 = vld [vmem:[%s1724] sm:$0xff]
    %1726 = vrot.lane.b32.xlu0 %v145, 108
    %v1727 = vpop.permute.xlu0 %1726
    %1728 = vrot.lane.b32.xlu0 %v146, 108
    %v1729 = vpop.permute.xlu0 %1728
    %vm1730 = vcmask 883712
    %v1731 = vsel %vm1730, %v1727, %v1729
    %v1734 = vsel %vm68, %v1725, 0
    %1736 = vmatprep.subr.mxu0 0.0
    %1737 = vmatpush1.msra.mxu0 0.0
    %1738 = vmatprep.subr.mxu0 0.0
    %1739 = vmatpush1.msra.mxu0 0.0
    %1740 = vmatprep.subr.mxu0 0.0
    %1741 = vmatpush1.msra.mxu0 0.0
    %1742 = vmatprep.subr.mxu0 0.0
    %1743 = vmatpush1.msra.mxu0 0.0
    %1744 = vmatprep.subr.mxu0 0.0
    %1745 = vmatpush1.msra.mxu0 0.0
    %1746 = vmatprep.subr.mxu0 0.0
    %1747 = vmatpush1.msra.mxu0 0.0
    %1748 = vmatprep.subr.mxu0 0.0
    %1749 = vmatpush1.msra.mxu0 0.0
    %1750 = vmatprep.subr.mxu0 0.0
    %1751 = vmatpush1.msra.mxu0 0.0
    %1752 = vmatprep.subr.mxu0 0.0
    %1753 = vmatpush1.msra.mxu0 0.0
    %1754 = vmatprep.subr.mxu0 0.0
    %1755 = vmatpush1.msra.mxu0 0.0
    %1756 = vmatprep.subr.mxu0 0.0
    %1757 = vmatpush1.msra.mxu0 0.0
    %1758 = vmatprep.subr.mxu0 0.0
    %1759 = vmatpush1.msra.mxu0 0.0
    %1760 = vmatprep.subr.mxu0 0.0
    %1761 = vmatpush1.msra.mxu0 0.0
    %1762 = vmatprep.subr.mxu0 0.0
    %1763 = vmatpush1.msra.mxu0 0.0
    %1764 = vmatprep.subr.mxu0 0.0
    %1765 = vmatpush1.msra.mxu0 0.0
    %1766 = vmatprep.subr.mxu0 0.0
    %1767 = vmatpush1.msra.mxu0 %v1731
    %1768 = vmatprep.subr.mxu0 0.0
    %1769 = vmatpush2.msra.mxu0 0.0
    %1770 = vmatprep.subr.mxu0 0.0
    %1771 = vmatpush2.msra.mxu0 0.0
    %1772 = vmatprep.subr.mxu0 0.0
    %1773 = vmatpush2.msra.mxu0 0.0
    %1774 = vmatprep.subr.mxu0 0.0
    %1775 = vmatpush2.msra.mxu0 0.0
    %1776 = vmatprep.subr.mxu0 0.0
    %1777 = vmatpush2.msra.mxu0 0.0
    %1778 = vmatprep.subr.mxu0 0.0
    %1779 = vmatpush2.msra.mxu0 0.0
    %1780 = vmatprep.subr.mxu0 0.0
    %1781 = vmatpush2.msra.mxu0 0.0
    %1782 = vmatprep.subr.mxu0 0.0
    %1783 = vmatpush2.msra.mxu0 0.0
    %1784 = vmatprep.subr.mxu0 0.0
    %1785 = vmatpush2.msra.mxu0 0.0
    %1786 = vmatprep.subr.mxu0 0.0
    %1787 = vmatpush2.msra.mxu0 0.0
    %1788 = vmatprep.subr.mxu0 0.0
    %1789 = vmatpush2.msra.mxu0 0.0
    %1790 = vmatprep.subr.mxu0 0.0
    %1791 = vmatpush2.msra.mxu0 0.0
    %1792 = vmatprep.subr.mxu0 0.0
    %1793 = vmatpush2.msra.mxu0 0.0
    %1794 = vmatprep.subr.mxu0 0.0
    %1795 = vmatpush2.msra.mxu0 0.0
    %1796 = vmatprep.subr.mxu0 0.0
    %1797 = vmatpush2.msra.mxu0 0.0
    %1798 = vmatprep.subr.mxu0 0.0
    %1799 = vmatpush2.msra.mxu0 0.0
    %1800 = vmatprep.mubr.f32.mxu0 0.0
    %1801 = vmatmul.mubr.f32.gmra.mxu0 %v1734
    %v1802 = vpop.f32.mrf.mxu0
    %v1803 = vadd.f32 0.0, %v1802
    %v1804 = vpop.f32.mrf.mxu0
    %1805 = vdwg.mxu0
    %v1806 = vadd.f32 %v1723, %v1803
    %v1807 = vmax.f32 %v1806, 0.0
    %v1808 = vsel %vm41, 1, 0
    %vm1809 = vcmp.eq.s32.totalorder %v1808, 1
    %v1810 = vsel %vm1809, %v1807, 0.0
    %1811 = vst [vmem:[#allocation4] sm:$0xff] %v1810
    %1813 = vrot.lane.b32.xlu0 %v1810, 10
    %v1814 = vpop.permute.xlu0 %1813
    %1816 = vst.msk [vmem:[#allocation3] sm:$0xff] %vm63, %v1814
    %1817 = vst.msk [vmem:[#allocation3 + $0x8] sm:$0xff] %vm27, %v1814
    %v1818 = vld [vmem:[%s5] sm:$0xff]
    %v1819 = vld [vmem:[#allocation3] sm:$0xff]
    %v1821 = vsel %vm68, %v1818, 0
    %1823 = vmatprep.subr.mxu0 0.0
    %1824 = vmatpush1.msra.mxu0 0.0
    %1825 = vmatprep.subr.mxu0 0.0
    %1826 = vmatpush1.msra.mxu0 0.0
    %1827 = vmatprep.subr.mxu0 0.0
    %1828 = vmatpush1.msra.mxu0 0.0
    %1829 = vmatprep.subr.mxu0 0.0
    %1830 = vmatpush1.msra.mxu0 0.0
    %1831 = vmatprep.subr.mxu0 0.0
    %1832 = vmatpush1.msra.mxu0 0.0
    %1833 = vmatprep.subr.mxu0 0.0
    %1834 = vmatpush1.msra.mxu0 0.0
    %1835 = vmatprep.subr.mxu0 0.0
    %1836 = vmatpush1.msra.mxu0 0.0
    %1837 = vmatprep.subr.mxu0 0.0
    %1838 = vmatpush1.msra.mxu0 0.0
    %1839 = vmatprep.subr.mxu0 0.0
    %1840 = vmatpush1.msra.mxu0 0.0
    %1841 = vmatprep.subr.mxu0 0.0
    %1842 = vmatpush1.msra.mxu0 0.0
    %1843 = vmatprep.subr.mxu0 0.0
    %1844 = vmatpush1.msra.mxu0 0.0
    %1845 = vmatprep.subr.mxu0 0.0
    %1846 = vmatpush1.msra.mxu0 0.0
    %1847 = vmatprep.subr.mxu0 0.0
    %1848 = vmatpush1.msra.mxu0 0.0
    %1849 = vmatprep.subr.mxu0 0.0
    %1850 = vmatpush1.msra.mxu0 0.0
    %1851 = vmatprep.subr.mxu0 0.0
    %1852 = vmatpush1.msra.mxu0 0.0
    %1853 = vmatprep.subr.mxu0 0.0
    %1854 = vmatpush1.msra.mxu0 %v1819
    %1855 = vmatprep.subr.mxu0 0.0
    %1856 = vmatpush2.msra.mxu0 0.0
    %1857 = vmatprep.subr.mxu0 0.0
    %1858 = vmatpush2.msra.mxu0 0.0
    %1859 = vmatprep.subr.mxu0 0.0
    %1860 = vmatpush2.msra.mxu0 0.0
    %1861 = vmatprep.subr.mxu0 0.0
    %1862 = vmatpush2.msra.mxu0 0.0
    %1863 = vmatprep.subr.mxu0 0.0
    %1864 = vmatpush2.msra.mxu0 0.0
    %1865 = vmatprep.subr.mxu0 0.0
    %1866 = vmatpush2.msra.mxu0 0.0
    %1867 = vmatprep.subr.mxu0 0.0
    %1868 = vmatpush2.msra.mxu0 0.0
    %1869 = vmatprep.subr.mxu0 0.0
    %1870 = vmatpush2.msra.mxu0 0.0
    %1871 = vmatprep.subr.mxu0 0.0
    %1872 = vmatpush2.msra.mxu0 0.0
    %1873 = vmatprep.subr.mxu0 0.0
    %1874 = vmatpush2.msra.mxu0 0.0
    %1875 = vmatprep.subr.mxu0 0.0
    %1876 = vmatpush2.msra.mxu0 0.0
    %1877 = vmatprep.subr.mxu0 0.0
    %1878 = vmatpush2.msra.mxu0 0.0
    %1879 = vmatprep.subr.mxu0 0.0
    %1880 = vmatpush2.msra.mxu0 0.0
    %1881 = vmatprep.subr.mxu0 0.0
    %1882 = vmatpush2.msra.mxu0 0.0
    %1883 = vmatprep.subr.mxu0 0.0
    %1884 = vmatpush2.msra.mxu0 0.0
    %1885 = vmatprep.subr.mxu0 0.0
    %1886 = vmatpush2.msra.mxu0 0.0
    %1887 = vmatprep.mubr.f32.mxu0 0.0
    %1888 = vmatmul.mubr.f32.gmra.mxu0 %v1821
    %v1889 = vpop.f32.mrf.mxu0
    %v1890 = vadd.f32 0.0, %v1889
    %v1891 = vpop.f32.mrf.mxu0
    %1892 = vdwg.mxu0
    %v1893 = vadd.f32 %v52, %v1890
    %s1894 = scalar_lea.vmem %s5, 8
    %v1895 = vld [vmem:[%s1894] sm:$0xff]
    %v1896 = vld [vmem:[#allocation3] sm:$0xff]
    %v1897 = vld [vmem:[#allocation3 + $0x8] sm:$0xff]
    %1900 = vrot.lane.b32.xlu0 %v1896, 127
    %v1901 = vpop.permute.xlu0 %1900
    %1902 = vrot.lane.b32.xlu0 %v1897, 127
    %v1903 = vpop.permute.xlu0 %1902
    %v1904 = vsel %vm153, %v1901, %v1903
    %v1907 = vsel %vm68, %v1895, 0
    %1909 = vmatprep.subr.mxu0 0.0
    %1910 = vmatpush1.msra.mxu0 0.0
    %1911 = vmatprep.subr.mxu0 0.0
    %1912 = vmatpush1.msra.mxu0 0.0
    %1913 = vmatprep.subr.mxu0 0.0
    %1914 = vmatpush1.msra.mxu0 0.0
    %1915 = vmatprep.subr.mxu0 0.0
    %1916 = vmatpush1.msra.mxu0 0.0
    %1917 = vmatprep.subr.mxu0 0.0
    %1918 = vmatpush1.msra.mxu0 0.0
    %1919 = vmatprep.subr.mxu0 0.0
    %1920 = vmatpush1.msra.mxu0 0.0
    %1921 = vmatprep.subr.mxu0 0.0
    %1922 = vmatpush1.msra.mxu0 0.0
    %1923 = vmatprep.subr.mxu0 0.0
    %1924 = vmatpush1.msra.mxu0 0.0
    %1925 = vmatprep.subr.mxu0 0.0
    %1926 = vmatpush1.msra.mxu0 0.0
    %1927 = vmatprep.subr.mxu0 0.0
    %1928 = vmatpush1.msra.mxu0 0.0
    %1929 = vmatprep.subr.mxu0 0.0
    %1930 = vmatpush1.msra.mxu0 0.0
    %1931 = vmatprep.subr.mxu0 0.0
    %1932 = vmatpush1.msra.mxu0 0.0
    %1933 = vmatprep.subr.mxu0 0.0
    %1934 = vmatpush1.msra.mxu0 0.0
    %1935 = vmatprep.subr.mxu0 0.0
    %1936 = vmatpush1.msra.mxu0 0.0
    %1937 = vmatprep.subr.mxu0 0.0
    %1938 = vmatpush1.msra.mxu0 0.0
    %1939 = vmatprep.subr.mxu0 0.0
    %1940 = vmatpush1.msra.mxu0 %v1904
    %1941 = vmatprep.subr.mxu0 0.0
    %1942 = vmatpush2.msra.mxu0 0.0
    %1943 = vmatprep.subr.mxu0 0.0
    %1944 = vmatpush2.msra.mxu0 0.0
    %1945 = vmatprep.subr.mxu0 0.0
    %1946 = vmatpush2.msra.mxu0 0.0
    %1947 = vmatprep.subr.mxu0 0.0
    %1948 = vmatpush2.msra.mxu0 0.0
    %1949 = vmatprep.subr.mxu0 0.0
    %1950 = vmatpush2.msra.mxu0 0.0
    %1951 = vmatprep.subr.mxu0 0.0
    %1952 = vmatpush2.msra.mxu0 0.0
    %1953 = vmatprep.subr.mxu0 0.0
    %1954 = vmatpush2.msra.mxu0 0.0
    %1955 = vmatprep.subr.mxu0 0.0
    %1956 = vmatpush2.msra.mxu0 0.0
    %1957 = vmatprep.subr.mxu0 0.0
    %1958 = vmatpush2.msra.mxu0 0.0
    %1959 = vmatprep.subr.mxu0 0.0
    %1960 = vmatpush2.msra.mxu0 0.0
    %1961 = vmatprep.subr.mxu0 0.0
    %1962 = vmatpush2.msra.mxu0 0.0
    %1963 = vmatprep.subr.mxu0 0.0
    %1964 = vmatpush2.msra.mxu0 0.0
    %1965 = vmatprep.subr.mxu0 0.0
    %1966 = vmatpush2.msra.mxu0 0.0
    %1967 = vmatprep.subr.mxu0 0.0
    %1968 = vmatpush2.msra.mxu0 0.0
    %1969 = vmatprep.subr.mxu0 0.0
    %1970 = vmatpush2.msra.mxu0 0.0
    %1971 = vmatprep.subr.mxu0 0.0
    %1972 = vmatpush2.msra.mxu0 0.0
    %1973 = vmatprep.mubr.f32.mxu0 0.0
    %1974 = vmatmul.mubr.f32.gmra.mxu0 %v1907
    %v1975 = vpop.f32.mrf.mxu0
    %v1976 = vadd.f32 0.0, %v1975
    %v1977 = vpop.f32.mrf.mxu0
    %1978 = vdwg.mxu0
    %v1979 = vadd.f32 %v1893, %v1976
    %s1980 = scalar_lea.vmem %s5, 16
    %v1981 = vld [vmem:[%s1980] sm:$0xff]
    %1982 = vrot.lane.b32.xlu0 %v1896, 126
    %v1983 = vpop.permute.xlu0 %1982
    %1984 = vrot.lane.b32.xlu0 %v1897, 126
    %v1985 = vpop.permute.xlu0 %1984
    %v1986 = vsel %vm236, %v1983, %v1985
    %v1989 = vsel %vm68, %v1981, 0
    %1991 = vmatprep.subr.mxu0 0.0
    %1992 = vmatpush1.msra.mxu0 0.0
    %1993 = vmatprep.subr.mxu0 0.0
    %1994 = vmatpush1.msra.mxu0 0.0
    %1995 = vmatprep.subr.mxu0 0.0
    %1996 = vmatpush1.msra.mxu0 0.0
    %1997 = vmatprep.subr.mxu0 0.0
    %1998 = vmatpush1.msra.mxu0 0.0
    %1999 = vmatprep.subr.mxu0 0.0
    %2000 = vmatpush1.msra.mxu0 0.0
    %2001 = vmatprep.subr.mxu0 0.0
    %2002 = vmatpush1.msra.mxu0 0.0
    %2003 = vmatprep.subr.mxu0 0.0
    %2004 = vmatpush1.msra.mxu0 0.0
    %2005 = vmatprep.subr.mxu0 0.0
    %2006 = vmatpush1.msra.mxu0 0.0
    %2007 = vmatprep.subr.mxu0 0.0
    %2008 = vmatpush1.msra.mxu0 0.0
    %2009 = vmatprep.subr.mxu0 0.0
    %2010 = vmatpush1.msra.mxu0 0.0
    %2011 = vmatprep.subr.mxu0 0.0
    %2012 = vmatpush1.msra.mxu0 0.0
    %2013 = vmatprep.subr.mxu0 0.0
    %2014 = vmatpush1.msra.mxu0 0.0
    %2015 = vmatprep.subr.mxu0 0.0
    %2016 = vmatpush1.msra.mxu0 0.0
    %2017 = vmatprep.subr.mxu0 0.0
    %2018 = vmatpush1.msra.mxu0 0.0
    %2019 = vmatprep.subr.mxu0 0.0
    %2020 = vmatpush1.msra.mxu0 0.0
    %2021 = vmatprep.subr.mxu0 0.0
    %2022 = vmatpush1.msra.mxu0 %v1986
    %2023 = vmatprep.subr.mxu0 0.0
    %2024 = vmatpush2.msra.mxu0 0.0
    %2025 = vmatprep.subr.mxu0 0.0
    %2026 = vmatpush2.msra.mxu0 0.0
    %2027 = vmatprep.subr.mxu0 0.0
    %2028 = vmatpush2.msra.mxu0 0.0
    %2029 = vmatprep.subr.mxu0 0.0
    %2030 = vmatpush2.msra.mxu0 0.0
    %2031 = vmatprep.subr.mxu0 0.0
    %2032 = vmatpush2.msra.mxu0 0.0
    %2033 = vmatprep.subr.mxu0 0.0
    %2034 = vmatpush2.msra.mxu0 0.0
    %2035 = vmatprep.subr.mxu0 0.0
    %2036 = vmatpush2.msra.mxu0 0.0
    %2037 = vmatprep.subr.mxu0 0.0
    %2038 = vmatpush2.msra.mxu0 0.0
    %2039 = vmatprep.subr.mxu0 0.0
    %2040 = vmatpush2.msra.mxu0 0.0
    %2041 = vmatprep.subr.mxu0 0.0
    %2042 = vmatpush2.msra.mxu0 0.0
    %2043 = vmatprep.subr.mxu0 0.0
    %2044 = vmatpush2.msra.mxu0 0.0
    %2045 = vmatprep.subr.mxu0 0.0
    %2046 = vmatpush2.msra.mxu0 0.0
    %2047 = vmatprep.subr.mxu0 0.0
    %2048 = vmatpush2.msra.mxu0 0.0
    %2049 = vmatprep.subr.mxu0 0.0
    %2050 = vmatpush2.msra.mxu0 0.0
    %2051 = vmatprep.subr.mxu0 0.0
    %2052 = vmatpush2.msra.mxu0 0.0
    %2053 = vmatprep.subr.mxu0 0.0
    %2054 = vmatpush2.msra.mxu0 0.0
    %2055 = vmatprep.mubr.f32.mxu0 0.0
    %2056 = vmatmul.mubr.f32.gmra.mxu0 %v1989
    %v2057 = vpop.f32.mrf.mxu0
    %v2058 = vadd.f32 0.0, %v2057
    %v2059 = vpop.f32.mrf.mxu0
    %2060 = vdwg.mxu0
    %v2061 = vadd.f32 %v1979, %v2058
    %s2062 = scalar_lea.vmem %s5, 24
    %v2063 = vld [vmem:[%s2062] sm:$0xff]
    %2064 = vrot.lane.b32.xlu0 %v1896, 125
    %v2065 = vpop.permute.xlu0 %2064
    %2066 = vrot.lane.b32.xlu0 %v1897, 125
    %v2067 = vpop.permute.xlu0 %2066
    %v2068 = vsel %vm319, %v2065, %v2067
    %v2071 = vsel %vm68, %v2063, 0
    %2073 = vmatprep.subr.mxu0 0.0
    %2074 = vmatpush1.msra.mxu0 0.0
    %2075 = vmatprep.subr.mxu0 0.0
    %2076 = vmatpush1.msra.mxu0 0.0
    %2077 = vmatprep.subr.mxu0 0.0
    %2078 = vmatpush1.msra.mxu0 0.0
    %2079 = vmatprep.subr.mxu0 0.0
    %2080 = vmatpush1.msra.mxu0 0.0
    %2081 = vmatprep.subr.mxu0 0.0
    %2082 = vmatpush1.msra.mxu0 0.0
    %2083 = vmatprep.subr.mxu0 0.0
    %2084 = vmatpush1.msra.mxu0 0.0
    %2085 = vmatprep.subr.mxu0 0.0
    %2086 = vmatpush1.msra.mxu0 0.0
    %2087 = vmatprep.subr.mxu0 0.0
    %2088 = vmatpush1.msra.mxu0 0.0
    %2089 = vmatprep.subr.mxu0 0.0
    %2090 = vmatpush1.msra.mxu0 0.0
    %2091 = vmatprep.subr.mxu0 0.0
    %2092 = vmatpush1.msra.mxu0 0.0
    %2093 = vmatprep.subr.mxu0 0.0
    %2094 = vmatpush1.msra.mxu0 0.0
    %2095 = vmatprep.subr.mxu0 0.0
    %2096 = vmatpush1.msra.mxu0 0.0
    %2097 = vmatprep.subr.mxu0 0.0
    %2098 = vmatpush1.msra.mxu0 0.0
    %2099 = vmatprep.subr.mxu0 0.0
    %2100 = vmatpush1.msra.mxu0 0.0
    %2101 = vmatprep.subr.mxu0 0.0
    %2102 = vmatpush1.msra.mxu0 0.0
    %2103 = vmatprep.subr.mxu0 0.0
    %2104 = vmatpush1.msra.mxu0 %v2068
    %2105 = vmatprep.subr.mxu0 0.0
    %2106 = vmatpush2.msra.mxu0 0.0
    %2107 = vmatprep.subr.mxu0 0.0
    %2108 = vmatpush2.msra.mxu0 0.0
    %2109 = vmatprep.subr.mxu0 0.0
    %2110 = vmatpush2.msra.mxu0 0.0
    %2111 = vmatprep.subr.mxu0 0.0
    %2112 = vmatpush2.msra.mxu0 0.0
    %2113 = vmatprep.subr.mxu0 0.0
    %2114 = vmatpush2.msra.mxu0 0.0
    %2115 = vmatprep.subr.mxu0 0.0
    %2116 = vmatpush2.msra.mxu0 0.0
    %2117 = vmatprep.subr.mxu0 0.0
    %2118 = vmatpush2.msra.mxu0 0.0
    %2119 = vmatprep.subr.mxu0 0.0
    %2120 = vmatpush2.msra.mxu0 0.0
    %2121 = vmatprep.subr.mxu0 0.0
    %2122 = vmatpush2.msra.mxu0 0.0
    %2123 = vmatprep.subr.mxu0 0.0
    %2124 = vmatpush2.msra.mxu0 0.0
    %2125 = vmatprep.subr.mxu0 0.0
    %2126 = vmatpush2.msra.mxu0 0.0
    %2127 = vmatprep.subr.mxu0 0.0
    %2128 = vmatpush2.msra.mxu0 0.0
    %2129 = vmatprep.subr.mxu0 0.0
    %2130 = vmatpush2.msra.mxu0 0.0
    %2131 = vmatprep.subr.mxu0 0.0
    %2132 = vmatpush2.msra.mxu0 0.0
    %2133 = vmatprep.subr.mxu0 0.0
    %2134 = vmatpush2.msra.mxu0 0.0
    %2135 = vmatprep.subr.mxu0 0.0
    %2136 = vmatpush2.msra.mxu0 0.0
    %2137 = vmatprep.mubr.f32.mxu0 0.0
    %2138 = vmatmul.mubr.f32.gmra.mxu0 %v2071
    %v2139 = vpop.f32.mrf.mxu0
    %v2140 = vadd.f32 0.0, %v2139
    %v2141 = vpop.f32.mrf.mxu0
    %2142 = vdwg.mxu0
    %v2143 = vadd.f32 %v2061, %v2140
    %s2144 = scalar_lea.vmem %s5, 32
    %v2145 = vld [vmem:[%s2144] sm:$0xff]
    %2146 = vrot.lane.b32.xlu0 %v1896, 124
    %v2147 = vpop.permute.xlu0 %2146
    %2148 = vrot.lane.b32.xlu0 %v1897, 124
    %v2149 = vpop.permute.xlu0 %2148
    %v2150 = vsel %vm402, %v2147, %v2149
    %v2153 = vsel %vm68, %v2145, 0
    %2155 = vmatprep.subr.mxu0 0.0
    %2156 = vmatpush1.msra.mxu0 0.0
    %2157 = vmatprep.subr.mxu0 0.0
    %2158 = vmatpush1.msra.mxu0 0.0
    %2159 = vmatprep.subr.mxu0 0.0
    %2160 = vmatpush1.msra.mxu0 0.0
    %2161 = vmatprep.subr.mxu0 0.0
    %2162 = vmatpush1.msra.mxu0 0.0
    %2163 = vmatprep.subr.mxu0 0.0
    %2164 = vmatpush1.msra.mxu0 0.0
    %2165 = vmatprep.subr.mxu0 0.0
    %2166 = vmatpush1.msra.mxu0 0.0
    %2167 = vmatprep.subr.mxu0 0.0
    %2168 = vmatpush1.msra.mxu0 0.0
    %2169 = vmatprep.subr.mxu0 0.0
    %2170 = vmatpush1.msra.mxu0 0.0
    %2171 = vmatprep.subr.mxu0 0.0
    %2172 = vmatpush1.msra.mxu0 0.0
    %2173 = vmatprep.subr.mxu0 0.0
    %2174 = vmatpush1.msra.mxu0 0.0
    %2175 = vmatprep.subr.mxu0 0.0
    %2176 = vmatpush1.msra.mxu0 0.0
    %2177 = vmatprep.subr.mxu0 0.0
    %2178 = vmatpush1.msra.mxu0 0.0
    %2179 = vmatprep.subr.mxu0 0.0
    %2180 = vmatpush1.msra.mxu0 0.0
    %2181 = vmatprep.subr.mxu0 0.0
    %2182 = vmatpush1.msra.mxu0 0.0
    %2183 = vmatprep.subr.mxu0 0.0
    %2184 = vmatpush1.msra.mxu0 0.0
    %2185 = vmatprep.subr.mxu0 0.0
    %2186 = vmatpush1.msra.mxu0 %v2150
    %2187 = vmatprep.subr.mxu0 0.0
    %2188 = vmatpush2.msra.mxu0 0.0
    %2189 = vmatprep.subr.mxu0 0.0
    %2190 = vmatpush2.msra.mxu0 0.0
    %2191 = vmatprep.subr.mxu0 0.0
    %2192 = vmatpush2.msra.mxu0 0.0
    %2193 = vmatprep.subr.mxu0 0.0
    %2194 = vmatpush2.msra.mxu0 0.0
    %2195 = vmatprep.subr.mxu0 0.0
    %2196 = vmatpush2.msra.mxu0 0.0
    %2197 = vmatprep.subr.mxu0 0.0
    %2198 = vmatpush2.msra.mxu0 0.0
    %2199 = vmatprep.subr.mxu0 0.0
    %2200 = vmatpush2.msra.mxu0 0.0
    %2201 = vmatprep.subr.mxu0 0.0
    %2202 = vmatpush2.msra.mxu0 0.0
    %2203 = vmatprep.subr.mxu0 0.0
    %2204 = vmatpush2.msra.mxu0 0.0
    %2205 = vmatprep.subr.mxu0 0.0
    %2206 = vmatpush2.msra.mxu0 0.0
    %2207 = vmatprep.subr.mxu0 0.0
    %2208 = vmatpush2.msra.mxu0 0.0
    %2209 = vmatprep.subr.mxu0 0.0
    %2210 = vmatpush2.msra.mxu0 0.0
    %2211 = vmatprep.subr.mxu0 0.0
    %2212 = vmatpush2.msra.mxu0 0.0
    %2213 = vmatprep.subr.mxu0 0.0
    %2214 = vmatpush2.msra.mxu0 0.0
    %2215 = vmatprep.subr.mxu0 0.0
    %2216 = vmatpush2.msra.mxu0 0.0
    %2217 = vmatprep.subr.mxu0 0.0
    %2218 = vmatpush2.msra.mxu0 0.0
    %2219 = vmatprep.mubr.f32.mxu0 0.0
    %2220 = vmatmul.mubr.f32.gmra.mxu0 %v2153
    %v2221 = vpop.f32.mrf.mxu0
    %v2222 = vadd.f32 0.0, %v2221
    %v2223 = vpop.f32.mrf.mxu0
    %2224 = vdwg.mxu0
    %v2225 = vadd.f32 %v2143, %v2222
    %s2226 = scalar_lea.vmem %s5, 40
    %v2227 = vld [vmem:[%s2226] sm:$0xff]
    %2228 = vrot.lane.b32.xlu0 %v1896, 123
    %v2229 = vpop.permute.xlu0 %2228
    %2230 = vrot.lane.b32.xlu0 %v1897, 123
    %v2231 = vpop.permute.xlu0 %2230
    %v2232 = vsel %vm485, %v2229, %v2231
    %v2235 = vsel %vm68, %v2227, 0
    %2237 = vmatprep.subr.mxu0 0.0
    %2238 = vmatpush1.msra.mxu0 0.0
    %2239 = vmatprep.subr.mxu0 0.0
    %2240 = vmatpush1.msra.mxu0 0.0
    %2241 = vmatprep.subr.mxu0 0.0
    %2242 = vmatpush1.msra.mxu0 0.0
    %2243 = vmatprep.subr.mxu0 0.0
    %2244 = vmatpush1.msra.mxu0 0.0
    %2245 = vmatprep.subr.mxu0 0.0
    %2246 = vmatpush1.msra.mxu0 0.0
    %2247 = vmatprep.subr.mxu0 0.0
    %2248 = vmatpush1.msra.mxu0 0.0
    %2249 = vmatprep.subr.mxu0 0.0
    %2250 = vmatpush1.msra.mxu0 0.0
    %2251 = vmatprep.subr.mxu0 0.0
    %2252 = vmatpush1.msra.mxu0 0.0
    %2253 = vmatprep.subr.mxu0 0.0
    %2254 = vmatpush1.msra.mxu0 0.0
    %2255 = vmatprep.subr.mxu0 0.0
    %2256 = vmatpush1.msra.mxu0 0.0
    %2257 = vmatprep.subr.mxu0 0.0
    %2258 = vmatpush1.msra.mxu0 0.0
    %2259 = vmatprep.subr.mxu0 0.0
    %2260 = vmatpush1.msra.mxu0 0.0
    %2261 = vmatprep.subr.mxu0 0.0
    %2262 = vmatpush1.msra.mxu0 0.0
    %2263 = vmatprep.subr.mxu0 0.0
    %2264 = vmatpush1.msra.mxu0 0.0
    %2265 = vmatprep.subr.mxu0 0.0
    %2266 = vmatpush1.msra.mxu0 0.0
    %2267 = vmatprep.subr.mxu0 0.0
    %2268 = vmatpush1.msra.mxu0 %v2232
    %2269 = vmatprep.subr.mxu0 0.0
    %2270 = vmatpush2.msra.mxu0 0.0
    %2271 = vmatprep.subr.mxu0 0.0
    %2272 = vmatpush2.msra.mxu0 0.0
    %2273 = vmatprep.subr.mxu0 0.0
    %2274 = vmatpush2.msra.mxu0 0.0
    %2275 = vmatprep.subr.mxu0 0.0
    %2276 = vmatpush2.msra.mxu0 0.0
    %2277 = vmatprep.subr.mxu0 0.0
    %2278 = vmatpush2.msra.mxu0 0.0
    %2279 = vmatprep.subr.mxu0 0.0
    %2280 = vmatpush2.msra.mxu0 0.0
    %2281 = vmatprep.subr.mxu0 0.0
    %2282 = vmatpush2.msra.mxu0 0.0
    %2283 = vmatprep.subr.mxu0 0.0
    %2284 = vmatpush2.msra.mxu0 0.0
    %2285 = vmatprep.subr.mxu0 0.0
    %2286 = vmatpush2.msra.mxu0 0.0
    %2287 = vmatprep.subr.mxu0 0.0
    %2288 = vmatpush2.msra.mxu0 0.0
    %2289 = vmatprep.subr.mxu0 0.0
    %2290 = vmatpush2.msra.mxu0 0.0
    %2291 = vmatprep.subr.mxu0 0.0
    %2292 = vmatpush2.msra.mxu0 0.0
    %2293 = vmatprep.subr.mxu0 0.0
    %2294 = vmatpush2.msra.mxu0 0.0
    %2295 = vmatprep.subr.mxu0 0.0
    %2296 = vmatpush2.msra.mxu0 0.0
    %2297 = vmatprep.subr.mxu0 0.0
    %2298 = vmatpush2.msra.mxu0 0.0
    %2299 = vmatprep.subr.mxu0 0.0
    %2300 = vmatpush2.msra.mxu0 0.0
    %2301 = vmatprep.mubr.f32.mxu0 0.0
    %2302 = vmatmul.mubr.f32.gmra.mxu0 %v2235
    %v2303 = vpop.f32.mrf.mxu0
    %v2304 = vadd.f32 0.0, %v2303
    %v2305 = vpop.f32.mrf.mxu0
    %2306 = vdwg.mxu0
    %v2307 = vadd.f32 %v2225, %v2304
    %s2308 = scalar_lea.vmem %s5, 48
    %v2309 = vld [vmem:[%s2308] sm:$0xff]
    %2310 = vrot.lane.b32.xlu0 %v1896, 122
    %v2311 = vpop.permute.xlu0 %2310
    %2312 = vrot.lane.b32.xlu0 %v1897, 122
    %v2313 = vpop.permute.xlu0 %2312
    %v2314 = vsel %vm568, %v2311, %v2313
    %v2317 = vsel %vm68, %v2309, 0
    %2319 = vmatprep.subr.mxu0 0.0
    %2320 = vmatpush1.msra.mxu0 0.0
    %2321 = vmatprep.subr.mxu0 0.0
    %2322 = vmatpush1.msra.mxu0 0.0
    %2323 = vmatprep.subr.mxu0 0.0
    %2324 = vmatpush1.msra.mxu0 0.0
    %2325 = vmatprep.subr.mxu0 0.0
    %2326 = vmatpush1.msra.mxu0 0.0
    %2327 = vmatprep.subr.mxu0 0.0
    %2328 = vmatpush1.msra.mxu0 0.0
    %2329 = vmatprep.subr.mxu0 0.0
    %2330 = vmatpush1.msra.mxu0 0.0
    %2331 = vmatprep.subr.mxu0 0.0
    %2332 = vmatpush1.msra.mxu0 0.0
    %2333 = vmatprep.subr.mxu0 0.0
    %2334 = vmatpush1.msra.mxu0 0.0
    %2335 = vmatprep.subr.mxu0 0.0
    %2336 = vmatpush1.msra.mxu0 0.0
    %2337 = vmatprep.subr.mxu0 0.0
    %2338 = vmatpush1.msra.mxu0 0.0
    %2339 = vmatprep.subr.mxu0 0.0
    %2340 = vmatpush1.msra.mxu0 0.0
    %2341 = vmatprep.subr.mxu0 0.0
    %2342 = vmatpush1.msra.mxu0 0.0
    %2343 = vmatprep.subr.mxu0 0.0
    %2344 = vmatpush1.msra.mxu0 0.0
    %2345 = vmatprep.subr.mxu0 0.0
    %2346 = vmatpush1.msra.mxu0 0.0
    %2347 = vmatprep.subr.mxu0 0.0
    %2348 = vmatpush1.msra.mxu0 0.0
    %2349 = vmatprep.subr.mxu0 0.0
    %2350 = vmatpush1.msra.mxu0 %v2314
    %2351 = vmatprep.subr.mxu0 0.0
    %2352 = vmatpush2.msra.mxu0 0.0
    %2353 = vmatprep.subr.mxu0 0.0
    %2354 = vmatpush2.msra.mxu0 0.0
    %2355 = vmatprep.subr.mxu0 0.0
    %2356 = vmatpush2.msra.mxu0 0.0
    %2357 = vmatprep.subr.mxu0 0.0
    %2358 = vmatpush2.msra.mxu0 0.0
    %2359 = vmatprep.subr.mxu0 0.0
    %2360 = vmatpush2.msra.mxu0 0.0
    %2361 = vmatprep.subr.mxu0 0.0
    %2362 = vmatpush2.msra.mxu0 0.0
    %2363 = vmatprep.subr.mxu0 0.0
    %2364 = vmatpush2.msra.mxu0 0.0
    %2365 = vmatprep.subr.mxu0 0.0
    %2366 = vmatpush2.msra.mxu0 0.0
    %2367 = vmatprep.subr.mxu0 0.0
    %2368 = vmatpush2.msra.mxu0 0.0
    %2369 = vmatprep.subr.mxu0 0.0
    %2370 = vmatpush2.msra.mxu0 0.0
    %2371 = vmatprep.subr.mxu0 0.0
    %2372 = vmatpush2.msra.mxu0 0.0
    %2373 = vmatprep.subr.mxu0 0.0
    %2374 = vmatpush2.msra.mxu0 0.0
    %2375 = vmatprep.subr.mxu0 0.0
    %2376 = vmatpush2.msra.mxu0 0.0
    %2377 = vmatprep.subr.mxu0 0.0
    %2378 = vmatpush2.msra.mxu0 0.0
    %2379 = vmatprep.subr.mxu0 0.0
    %2380 = vmatpush2.msra.mxu0 0.0
    %2381 = vmatprep.subr.mxu0 0.0
    %2382 = vmatpush2.msra.mxu0 0.0
    %2383 = vmatprep.mubr.f32.mxu0 0.0
    %2384 = vmatmul.mubr.f32.gmra.mxu0 %v2317
    %v2385 = vpop.f32.mrf.mxu0
    %v2386 = vadd.f32 0.0, %v2385
    %v2387 = vpop.f32.mrf.mxu0
    %2388 = vdwg.mxu0
    %v2389 = vadd.f32 %v2307, %v2386
    %s2390 = scalar_lea.vmem %s5, 56
    %v2391 = vld [vmem:[%s2390] sm:$0xff]
    %2392 = vrot.lane.b32.xlu0 %v1896, 121
    %v2393 = vpop.permute.xlu0 %2392
    %2394 = vrot.lane.b32.xlu0 %v1897, 121
    %v2395 = vpop.permute.xlu0 %2394
    %v2396 = vsel %vm651, %v2393, %v2395
    %v2399 = vsel %vm68, %v2391, 0
    %2401 = vmatprep.subr.mxu0 0.0
    %2402 = vmatpush1.msra.mxu0 0.0
    %2403 = vmatprep.subr.mxu0 0.0
    %2404 = vmatpush1.msra.mxu0 0.0
    %2405 = vmatprep.subr.mxu0 0.0
    %2406 = vmatpush1.msra.mxu0 0.0
    %2407 = vmatprep.subr.mxu0 0.0
    %2408 = vmatpush1.msra.mxu0 0.0
    %2409 = vmatprep.subr.mxu0 0.0
    %2410 = vmatpush1.msra.mxu0 0.0
    %2411 = vmatprep.subr.mxu0 0.0
    %2412 = vmatpush1.msra.mxu0 0.0
    %2413 = vmatprep.subr.mxu0 0.0
    %2414 = vmatpush1.msra.mxu0 0.0
    %2415 = vmatprep.subr.mxu0 0.0
    %2416 = vmatpush1.msra.mxu0 0.0
    %2417 = vmatprep.subr.mxu0 0.0
    %2418 = vmatpush1.msra.mxu0 0.0
    %2419 = vmatprep.subr.mxu0 0.0
    %2420 = vmatpush1.msra.mxu0 0.0
    %2421 = vmatprep.subr.mxu0 0.0
    %2422 = vmatpush1.msra.mxu0 0.0
    %2423 = vmatprep.subr.mxu0 0.0
    %2424 = vmatpush1.msra.mxu0 0.0
    %2425 = vmatprep.subr.mxu0 0.0
    %2426 = vmatpush1.msra.mxu0 0.0
    %2427 = vmatprep.subr.mxu0 0.0
    %2428 = vmatpush1.msra.mxu0 0.0
    %2429 = vmatprep.subr.mxu0 0.0
    %2430 = vmatpush1.msra.mxu0 0.0
    %2431 = vmatprep.subr.mxu0 0.0
    %2432 = vmatpush1.msra.mxu0 %v2396
    %2433 = vmatprep.subr.mxu0 0.0
    %2434 = vmatpush2.msra.mxu0 0.0
    %2435 = vmatprep.subr.mxu0 0.0
    %2436 = vmatpush2.msra.mxu0 0.0
    %2437 = vmatprep.subr.mxu0 0.0
    %2438 = vmatpush2.msra.mxu0 0.0
    %2439 = vmatprep.subr.mxu0 0.0
    %2440 = vmatpush2.msra.mxu0 0.0
    %2441 = vmatprep.subr.mxu0 0.0
    %2442 = vmatpush2.msra.mxu0 0.0
    %2443 = vmatprep.subr.mxu0 0.0
    %2444 = vmatpush2.msra.mxu0 0.0
    %2445 = vmatprep.subr.mxu0 0.0
    %2446 = vmatpush2.msra.mxu0 0.0
    %2447 = vmatprep.subr.mxu0 0.0
    %2448 = vmatpush2.msra.mxu0 0.0
    %2449 = vmatprep.subr.mxu0 0.0
    %2450 = vmatpush2.msra.mxu0 0.0
    %2451 = vmatprep.subr.mxu0 0.0
    %2452 = vmatpush2.msra.mxu0 0.0
    %2453 = vmatprep.subr.mxu0 0.0
    %2454 = vmatpush2.msra.mxu0 0.0
    %2455 = vmatprep.subr.mxu0 0.0
    %2456 = vmatpush2.msra.mxu0 0.0
    %2457 = vmatprep.subr.mxu0 0.0
    %2458 = vmatpush2.msra.mxu0 0.0
    %2459 = vmatprep.subr.mxu0 0.0
    %2460 = vmatpush2.msra.mxu0 0.0
    %2461 = vmatprep.subr.mxu0 0.0
    %2462 = vmatpush2.msra.mxu0 0.0
    %2463 = vmatprep.subr.mxu0 0.0
    %2464 = vmatpush2.msra.mxu0 0.0
    %2465 = vmatprep.mubr.f32.mxu0 0.0
    %2466 = vmatmul.mubr.f32.gmra.mxu0 %v2399
    %v2467 = vpop.f32.mrf.mxu0
    %v2468 = vadd.f32 0.0, %v2467
    %v2469 = vpop.f32.mrf.mxu0
    %2470 = vdwg.mxu0
    %v2471 = vadd.f32 %v2389, %v2468
    %s2472 = scalar_lea.vmem %s5, 64
    %v2473 = vld [vmem:[%s2472] sm:$0xff]
    %2474 = vrot.lane.b32.xlu0 %v1896, 120
    %v2475 = vpop.permute.xlu0 %2474
    %2476 = vrot.lane.b32.xlu0 %v1897, 120
    %v2477 = vpop.permute.xlu0 %2476
    %v2478 = vsel %vm734, %v2475, %v2477
    %v2481 = vsel %vm68, %v2473, 0
    %2483 = vmatprep.subr.mxu0 0.0
    %2484 = vmatpush1.msra.mxu0 0.0
    %2485 = vmatprep.subr.mxu0 0.0
    %2486 = vmatpush1.msra.mxu0 0.0
    %2487 = vmatprep.subr.mxu0 0.0
    %2488 = vmatpush1.msra.mxu0 0.0
    %2489 = vmatprep.subr.mxu0 0.0
    %2490 = vmatpush1.msra.mxu0 0.0
    %2491 = vmatprep.subr.mxu0 0.0
    %2492 = vmatpush1.msra.mxu0 0.0
    %2493 = vmatprep.subr.mxu0 0.0
    %2494 = vmatpush1.msra.mxu0 0.0
    %2495 = vmatprep.subr.mxu0 0.0
    %2496 = vmatpush1.msra.mxu0 0.0
    %2497 = vmatprep.subr.mxu0 0.0
    %2498 = vmatpush1.msra.mxu0 0.0
    %2499 = vmatprep.subr.mxu0 0.0
    %2500 = vmatpush1.msra.mxu0 0.0
    %2501 = vmatprep.subr.mxu0 0.0
    %2502 = vmatpush1.msra.mxu0 0.0
    %2503 = vmatprep.subr.mxu0 0.0
    %2504 = vmatpush1.msra.mxu0 0.0
    %2505 = vmatprep.subr.mxu0 0.0
    %2506 = vmatpush1.msra.mxu0 0.0
    %2507 = vmatprep.subr.mxu0 0.0
    %2508 = vmatpush1.msra.mxu0 0.0
    %2509 = vmatprep.subr.mxu0 0.0
    %2510 = vmatpush1.msra.mxu0 0.0
    %2511 = vmatprep.subr.mxu0 0.0
    %2512 = vmatpush1.msra.mxu0 0.0
    %2513 = vmatprep.subr.mxu0 0.0
    %2514 = vmatpush1.msra.mxu0 %v2478
    %2515 = vmatprep.subr.mxu0 0.0
    %2516 = vmatpush2.msra.mxu0 0.0
    %2517 = vmatprep.subr.mxu0 0.0
    %2518 = vmatpush2.msra.mxu0 0.0
    %2519 = vmatprep.subr.mxu0 0.0
    %2520 = vmatpush2.msra.mxu0 0.0
    %2521 = vmatprep.subr.mxu0 0.0
    %2522 = vmatpush2.msra.mxu0 0.0
    %2523 = vmatprep.subr.mxu0 0.0
    %2524 = vmatpush2.msra.mxu0 0.0
    %2525 = vmatprep.subr.mxu0 0.0
    %2526 = vmatpush2.msra.mxu0 0.0
    %2527 = vmatprep.subr.mxu0 0.0
    %2528 = vmatpush2.msra.mxu0 0.0
    %2529 = vmatprep.subr.mxu0 0.0
    %2530 = vmatpush2.msra.mxu0 0.0
    %2531 = vmatprep.subr.mxu0 0.0
    %2532 = vmatpush2.msra.mxu0 0.0
    %2533 = vmatprep.subr.mxu0 0.0
    %2534 = vmatpush2.msra.mxu0 0.0
    %2535 = vmatprep.subr.mxu0 0.0
    %2536 = vmatpush2.msra.mxu0 0.0
    %2537 = vmatprep.subr.mxu0 0.0
    %2538 = vmatpush2.msra.mxu0 0.0
    %2539 = vmatprep.subr.mxu0 0.0
    %2540 = vmatpush2.msra.mxu0 0.0
    %2541 = vmatprep.subr.mxu0 0.0
    %2542 = vmatpush2.msra.mxu0 0.0
    %2543 = vmatprep.subr.mxu0 0.0
    %2544 = vmatpush2.msra.mxu0 0.0
    %2545 = vmatprep.subr.mxu0 0.0
    %2546 = vmatpush2.msra.mxu0 0.0
    %2547 = vmatprep.mubr.f32.mxu0 0.0
    %2548 = vmatmul.mubr.f32.gmra.mxu0 %v2481
    %v2549 = vpop.f32.mrf.mxu0
    %v2550 = vadd.f32 0.0, %v2549
    %v2551 = vpop.f32.mrf.mxu0
    %2552 = vdwg.mxu0
    %v2553 = vadd.f32 %v2471, %v2550
    %s2554 = scalar_lea.vmem %s5, 72
    %v2555 = vld [vmem:[%s2554] sm:$0xff]
    %2556 = vrot.lane.b32.xlu0 %v1896, 119
    %v2557 = vpop.permute.xlu0 %2556
    %2558 = vrot.lane.b32.xlu0 %v1897, 119
    %v2559 = vpop.permute.xlu0 %2558
    %v2560 = vsel %vm817, %v2557, %v2559
    %v2563 = vsel %vm68, %v2555, 0
    %2565 = vmatprep.subr.mxu0 0.0
    %2566 = vmatpush1.msra.mxu0 0.0
    %2567 = vmatprep.subr.mxu0 0.0
    %2568 = vmatpush1.msra.mxu0 0.0
    %2569 = vmatprep.subr.mxu0 0.0
    %2570 = vmatpush1.msra.mxu0 0.0
    %2571 = vmatprep.subr.mxu0 0.0
    %2572 = vmatpush1.msra.mxu0 0.0
    %2573 = vmatprep.subr.mxu0 0.0
    %2574 = vmatpush1.msra.mxu0 0.0
    %2575 = vmatprep.subr.mxu0 0.0
    %2576 = vmatpush1.msra.mxu0 0.0
    %2577 = vmatprep.subr.mxu0 0.0
    %2578 = vmatpush1.msra.mxu0 0.0
    %2579 = vmatprep.subr.mxu0 0.0
    %2580 = vmatpush1.msra.mxu0 0.0
    %2581 = vmatprep.subr.mxu0 0.0
    %2582 = vmatpush1.msra.mxu0 0.0
    %2583 = vmatprep.subr.mxu0 0.0
    %2584 = vmatpush1.msra.mxu0 0.0
    %2585 = vmatprep.subr.mxu0 0.0
    %2586 = vmatpush1.msra.mxu0 0.0
    %2587 = vmatprep.subr.mxu0 0.0
    %2588 = vmatpush1.msra.mxu0 0.0
    %2589 = vmatprep.subr.mxu0 0.0
    %2590 = vmatpush1.msra.mxu0 0.0
    %2591 = vmatprep.subr.mxu0 0.0
    %2592 = vmatpush1.msra.mxu0 0.0
    %2593 = vmatprep.subr.mxu0 0.0
    %2594 = vmatpush1.msra.mxu0 0.0
    %2595 = vmatprep.subr.mxu0 0.0
    %2596 = vmatpush1.msra.mxu0 %v2560
    %2597 = vmatprep.subr.mxu0 0.0
    %2598 = vmatpush2.msra.mxu0 0.0
    %2599 = vmatprep.subr.mxu0 0.0
    %2600 = vmatpush2.msra.mxu0 0.0
    %2601 = vmatprep.subr.mxu0 0.0
    %2602 = vmatpush2.msra.mxu0 0.0
    %2603 = vmatprep.subr.mxu0 0.0
    %2604 = vmatpush2.msra.mxu0 0.0
    %2605 = vmatprep.subr.mxu0 0.0
    %2606 = vmatpush2.msra.mxu0 0.0
    %2607 = vmatprep.subr.mxu0 0.0
    %2608 = vmatpush2.msra.mxu0 0.0
    %2609 = vmatprep.subr.mxu0 0.0
    %2610 = vmatpush2.msra.mxu0 0.0
    %2611 = vmatprep.subr.mxu0 0.0
    %2612 = vmatpush2.msra.mxu0 0.0
    %2613 = vmatprep.subr.mxu0 0.0
    %2614 = vmatpush2.msra.mxu0 0.0
    %2615 = vmatprep.subr.mxu0 0.0
    %2616 = vmatpush2.msra.mxu0 0.0
    %2617 = vmatprep.subr.mxu0 0.0
    %2618 = vmatpush2.msra.mxu0 0.0
    %2619 = vmatprep.subr.mxu0 0.0
    %2620 = vmatpush2.msra.mxu0 0.0
    %2621 = vmatprep.subr.mxu0 0.0
    %2622 = vmatpush2.msra.mxu0 0.0
    %2623 = vmatprep.subr.mxu0 0.0
    %2624 = vmatpush2.msra.mxu0 0.0
    %2625 = vmatprep.subr.mxu0 0.0
    %2626 = vmatpush2.msra.mxu0 0.0
    %2627 = vmatprep.subr.mxu0 0.0
    %2628 = vmatpush2.msra.mxu0 0.0
    %2629 = vmatprep.mubr.f32.mxu0 0.0
    %2630 = vmatmul.mubr.f32.gmra.mxu0 %v2563
    %v2631 = vpop.f32.mrf.mxu0
    %v2632 = vadd.f32 0.0, %v2631
    %v2633 = vpop.f32.mrf.mxu0
    %2634 = vdwg.mxu0
    %v2635 = vadd.f32 %v2553, %v2632
    %s2636 = scalar_lea.vmem %s5, 80
    %v2637 = vld [vmem:[%s2636] sm:$0xff]
    %2638 = vrot.lane.b32.xlu0 %v1896, 118
    %v2639 = vpop.permute.xlu0 %2638
    %2640 = vrot.lane.b32.xlu0 %v1897, 118
    %v2641 = vpop.permute.xlu0 %2640
    %v2642 = vsel %vm900, %v2639, %v2641
    %v2645 = vsel %vm68, %v2637, 0
    %2647 = vmatprep.subr.mxu0 0.0
    %2648 = vmatpush1.msra.mxu0 0.0
    %2649 = vmatprep.subr.mxu0 0.0
    %2650 = vmatpush1.msra.mxu0 0.0
    %2651 = vmatprep.subr.mxu0 0.0
    %2652 = vmatpush1.msra.mxu0 0.0
    %2653 = vmatprep.subr.mxu0 0.0
    %2654 = vmatpush1.msra.mxu0 0.0
    %2655 = vmatprep.subr.mxu0 0.0
    %2656 = vmatpush1.msra.mxu0 0.0
    %2657 = vmatprep.subr.mxu0 0.0
    %2658 = vmatpush1.msra.mxu0 0.0
    %2659 = vmatprep.subr.mxu0 0.0
    %2660 = vmatpush1.msra.mxu0 0.0
    %2661 = vmatprep.subr.mxu0 0.0
    %2662 = vmatpush1.msra.mxu0 0.0
    %2663 = vmatprep.subr.mxu0 0.0
    %2664 = vmatpush1.msra.mxu0 0.0
    %2665 = vmatprep.subr.mxu0 0.0
    %2666 = vmatpush1.msra.mxu0 0.0
    %2667 = vmatprep.subr.mxu0 0.0
    %2668 = vmatpush1.msra.mxu0 0.0
    %2669 = vmatprep.subr.mxu0 0.0
    %2670 = vmatpush1.msra.mxu0 0.0
    %2671 = vmatprep.subr.mxu0 0.0
    %2672 = vmatpush1.msra.mxu0 0.0
    %2673 = vmatprep.subr.mxu0 0.0
    %2674 = vmatpush1.msra.mxu0 0.0
    %2675 = vmatprep.subr.mxu0 0.0
    %2676 = vmatpush1.msra.mxu0 0.0
    %2677 = vmatprep.subr.mxu0 0.0
    %2678 = vmatpush1.msra.mxu0 %v2642
    %2679 = vmatprep.subr.mxu0 0.0
    %2680 = vmatpush2.msra.mxu0 0.0
    %2681 = vmatprep.subr.mxu0 0.0
    %2682 = vmatpush2.msra.mxu0 0.0
    %2683 = vmatprep.subr.mxu0 0.0
    %2684 = vmatpush2.msra.mxu0 0.0
    %2685 = vmatprep.subr.mxu0 0.0
    %2686 = vmatpush2.msra.mxu0 0.0
    %2687 = vmatprep.subr.mxu0 0.0
    %2688 = vmatpush2.msra.mxu0 0.0
    %2689 = vmatprep.subr.mxu0 0.0
    %2690 = vmatpush2.msra.mxu0 0.0
    %2691 = vmatprep.subr.mxu0 0.0
    %2692 = vmatpush2.msra.mxu0 0.0
    %2693 = vmatprep.subr.mxu0 0.0
    %2694 = vmatpush2.msra.mxu0 0.0
    %2695 = vmatprep.subr.mxu0 0.0
    %2696 = vmatpush2.msra.mxu0 0.0
    %2697 = vmatprep.subr.mxu0 0.0
    %2698 = vmatpush2.msra.mxu0 0.0
    %2699 = vmatprep.subr.mxu0 0.0
    %2700 = vmatpush2.msra.mxu0 0.0
    %2701 = vmatprep.subr.mxu0 0.0
    %2702 = vmatpush2.msra.mxu0 0.0
    %2703 = vmatprep.subr.mxu0 0.0
    %2704 = vmatpush2.msra.mxu0 0.0
    %2705 = vmatprep.subr.mxu0 0.0
    %2706 = vmatpush2.msra.mxu0 0.0
    %2707 = vmatprep.subr.mxu0 0.0
    %2708 = vmatpush2.msra.mxu0 0.0
    %2709 = vmatprep.subr.mxu0 0.0
    %2710 = vmatpush2.msra.mxu0 0.0
    %2711 = vmatprep.mubr.f32.mxu0 0.0
    %2712 = vmatmul.mubr.f32.gmra.mxu0 %v2645
    %v2713 = vpop.f32.mrf.mxu0
    %v2714 = vadd.f32 0.0, %v2713
    %v2715 = vpop.f32.mrf.mxu0
    %2716 = vdwg.mxu0
    %v2717 = vadd.f32 %v2635, %v2714
    %s2718 = scalar_lea.vmem %s5, 88
    %v2719 = vld [vmem:[%s2718] sm:$0xff]
    %2720 = vrot.lane.b32.xlu0 %v1896, 117
    %v2721 = vpop.permute.xlu0 %2720
    %2722 = vrot.lane.b32.xlu0 %v1897, 117
    %v2723 = vpop.permute.xlu0 %2722
    %v2724 = vsel %vm983, %v2721, %v2723
    %v2727 = vsel %vm68, %v2719, 0
    %2729 = vmatprep.subr.mxu0 0.0
    %2730 = vmatpush1.msra.mxu0 0.0
    %2731 = vmatprep.subr.mxu0 0.0
    %2732 = vmatpush1.msra.mxu0 0.0
    %2733 = vmatprep.subr.mxu0 0.0
    %2734 = vmatpush1.msra.mxu0 0.0
    %2735 = vmatprep.subr.mxu0 0.0
    %2736 = vmatpush1.msra.mxu0 0.0
    %2737 = vmatprep.subr.mxu0 0.0
    %2738 = vmatpush1.msra.mxu0 0.0
    %2739 = vmatprep.subr.mxu0 0.0
    %2740 = vmatpush1.msra.mxu0 0.0
    %2741 = vmatprep.subr.mxu0 0.0
    %2742 = vmatpush1.msra.mxu0 0.0
    %2743 = vmatprep.subr.mxu0 0.0
    %2744 = vmatpush1.msra.mxu0 0.0
    %2745 = vmatprep.subr.mxu0 0.0
    %2746 = vmatpush1.msra.mxu0 0.0
    %2747 = vmatprep.subr.mxu0 0.0
    %2748 = vmatpush1.msra.mxu0 0.0
    %2749 = vmatprep.subr.mxu0 0.0
    %2750 = vmatpush1.msra.mxu0 0.0
    %2751 = vmatprep.subr.mxu0 0.0
    %2752 = vmatpush1.msra.mxu0 0.0
    %2753 = vmatprep.subr.mxu0 0.0
    %2754 = vmatpush1.msra.mxu0 0.0
    %2755 = vmatprep.subr.mxu0 0.0
    %2756 = vmatpush1.msra.mxu0 0.0
    %2757 = vmatprep.subr.mxu0 0.0
    %2758 = vmatpush1.msra.mxu0 0.0
    %2759 = vmatprep.subr.mxu0 0.0
    %2760 = vmatpush1.msra.mxu0 %v2724
    %2761 = vmatprep.subr.mxu0 0.0
    %2762 = vmatpush2.msra.mxu0 0.0
    %2763 = vmatprep.subr.mxu0 0.0
    %2764 = vmatpush2.msra.mxu0 0.0
    %2765 = vmatprep.subr.mxu0 0.0
    %2766 = vmatpush2.msra.mxu0 0.0
    %2767 = vmatprep.subr.mxu0 0.0
    %2768 = vmatpush2.msra.mxu0 0.0
    %2769 = vmatprep.subr.mxu0 0.0
    %2770 = vmatpush2.msra.mxu0 0.0
    %2771 = vmatprep.subr.mxu0 0.0
    %2772 = vmatpush2.msra.mxu0 0.0
    %2773 = vmatprep.subr.mxu0 0.0
    %2774 = vmatpush2.msra.mxu0 0.0
    %2775 = vmatprep.subr.mxu0 0.0
    %2776 = vmatpush2.msra.mxu0 0.0
    %2777 = vmatprep.subr.mxu0 0.0
    %2778 = vmatpush2.msra.mxu0 0.0
    %2779 = vmatprep.subr.mxu0 0.0
    %2780 = vmatpush2.msra.mxu0 0.0
    %2781 = vmatprep.subr.mxu0 0.0
    %2782 = vmatpush2.msra.mxu0 0.0
    %2783 = vmatprep.subr.mxu0 0.0
    %2784 = vmatpush2.msra.mxu0 0.0
    %2785 = vmatprep.subr.mxu0 0.0
    %2786 = vmatpush2.msra.mxu0 0.0
    %2787 = vmatprep.subr.mxu0 0.0
    %2788 = vmatpush2.msra.mxu0 0.0
    %2789 = vmatprep.subr.mxu0 0.0
    %2790 = vmatpush2.msra.mxu0 0.0
    %2791 = vmatprep.subr.mxu0 0.0
    %2792 = vmatpush2.msra.mxu0 0.0
    %2793 = vmatprep.mubr.f32.mxu0 0.0
    %2794 = vmatmul.mubr.f32.gmra.mxu0 %v2727
    %v2795 = vpop.f32.mrf.mxu0
    %v2796 = vadd.f32 0.0, %v2795
    %v2797 = vpop.f32.mrf.mxu0
    %2798 = vdwg.mxu0
    %v2799 = vadd.f32 %v2717, %v2796
    %s2800 = scalar_lea.vmem %s5, 96
    %v2801 = vld [vmem:[%s2800] sm:$0xff]
    %2802 = vrot.lane.b32.xlu0 %v1896, 116
    %v2803 = vpop.permute.xlu0 %2802
    %2804 = vrot.lane.b32.xlu0 %v1897, 116
    %v2805 = vpop.permute.xlu0 %2804
    %v2806 = vsel %vm1066, %v2803, %v2805
    %v2809 = vsel %vm68, %v2801, 0
    %2811 = vmatprep.subr.mxu0 0.0
    %2812 = vmatpush1.msra.mxu0 0.0
    %2813 = vmatprep.subr.mxu0 0.0
    %2814 = vmatpush1.msra.mxu0 0.0
    %2815 = vmatprep.subr.mxu0 0.0
    %2816 = vmatpush1.msra.mxu0 0.0
    %2817 = vmatprep.subr.mxu0 0.0
    %2818 = vmatpush1.msra.mxu0 0.0
    %2819 = vmatprep.subr.mxu0 0.0
    %2820 = vmatpush1.msra.mxu0 0.0
    %2821 = vmatprep.subr.mxu0 0.0
    %2822 = vmatpush1.msra.mxu0 0.0
    %2823 = vmatprep.subr.mxu0 0.0
    %2824 = vmatpush1.msra.mxu0 0.0
    %2825 = vmatprep.subr.mxu0 0.0
    %2826 = vmatpush1.msra.mxu0 0.0
    %2827 = vmatprep.subr.mxu0 0.0
    %2828 = vmatpush1.msra.mxu0 0.0
    %2829 = vmatprep.subr.mxu0 0.0
    %2830 = vmatpush1.msra.mxu0 0.0
    %2831 = vmatprep.subr.mxu0 0.0
    %2832 = vmatpush1.msra.mxu0 0.0
    %2833 = vmatprep.subr.mxu0 0.0
    %2834 = vmatpush1.msra.mxu0 0.0
    %2835 = vmatprep.subr.mxu0 0.0
    %2836 = vmatpush1.msra.mxu0 0.0
    %2837 = vmatprep.subr.mxu0 0.0
    %2838 = vmatpush1.msra.mxu0 0.0
    %2839 = vmatprep.subr.mxu0 0.0
    %2840 = vmatpush1.msra.mxu0 0.0
    %2841 = vmatprep.subr.mxu0 0.0
    %2842 = vmatpush1.msra.mxu0 %v2806
    %2843 = vmatprep.subr.mxu0 0.0
    %2844 = vmatpush2.msra.mxu0 0.0
    %2845 = vmatprep.subr.mxu0 0.0
    %2846 = vmatpush2.msra.mxu0 0.0
    %2847 = vmatprep.subr.mxu0 0.0
    %2848 = vmatpush2.msra.mxu0 0.0
    %2849 = vmatprep.subr.mxu0 0.0
    %2850 = vmatpush2.msra.mxu0 0.0
    %2851 = vmatprep.subr.mxu0 0.0
    %2852 = vmatpush2.msra.mxu0 0.0
    %2853 = vmatprep.subr.mxu0 0.0
    %2854 = vmatpush2.msra.mxu0 0.0
    %2855 = vmatprep.subr.mxu0 0.0
    %2856 = vmatpush2.msra.mxu0 0.0
    %2857 = vmatprep.subr.mxu0 0.0
    %2858 = vmatpush2.msra.mxu0 0.0
    %2859 = vmatprep.subr.mxu0 0.0
    %2860 = vmatpush2.msra.mxu0 0.0
    %2861 = vmatprep.subr.mxu0 0.0
    %2862 = vmatpush2.msra.mxu0 0.0
    %2863 = vmatprep.subr.mxu0 0.0
    %2864 = vmatpush2.msra.mxu0 0.0
    %2865 = vmatprep.subr.mxu0 0.0
    %2866 = vmatpush2.msra.mxu0 0.0
    %2867 = vmatprep.subr.mxu0 0.0
    %2868 = vmatpush2.msra.mxu0 0.0
    %2869 = vmatprep.subr.mxu0 0.0
    %2870 = vmatpush2.msra.mxu0 0.0
    %2871 = vmatprep.subr.mxu0 0.0
    %2872 = vmatpush2.msra.mxu0 0.0
    %2873 = vmatprep.subr.mxu0 0.0
    %2874 = vmatpush2.msra.mxu0 0.0
    %2875 = vmatprep.mubr.f32.mxu0 0.0
    %2876 = vmatmul.mubr.f32.gmra.mxu0 %v2809
    %v2877 = vpop.f32.mrf.mxu0
    %v2878 = vadd.f32 0.0, %v2877
    %v2879 = vpop.f32.mrf.mxu0
    %2880 = vdwg.mxu0
    %v2881 = vadd.f32 %v2799, %v2878
    %s2882 = scalar_lea.vmem %s5, 104
    %v2883 = vld [vmem:[%s2882] sm:$0xff]
    %2884 = vrot.lane.b32.xlu0 %v1896, 115
    %v2885 = vpop.permute.xlu0 %2884
    %2886 = vrot.lane.b32.xlu0 %v1897, 115
    %v2887 = vpop.permute.xlu0 %2886
    %v2888 = vsel %vm1149, %v2885, %v2887
    %v2891 = vsel %vm68, %v2883, 0
    %2893 = vmatprep.subr.mxu0 0.0
    %2894 = vmatpush1.msra.mxu0 0.0
    %2895 = vmatprep.subr.mxu0 0.0
    %2896 = vmatpush1.msra.mxu0 0.0
    %2897 = vmatprep.subr.mxu0 0.0
    %2898 = vmatpush1.msra.mxu0 0.0
    %2899 = vmatprep.subr.mxu0 0.0
    %2900 = vmatpush1.msra.mxu0 0.0
    %2901 = vmatprep.subr.mxu0 0.0
    %2902 = vmatpush1.msra.mxu0 0.0
    %2903 = vmatprep.subr.mxu0 0.0
    %2904 = vmatpush1.msra.mxu0 0.0
    %2905 = vmatprep.subr.mxu0 0.0
    %2906 = vmatpush1.msra.mxu0 0.0
    %2907 = vmatprep.subr.mxu0 0.0
    %2908 = vmatpush1.msra.mxu0 0.0
    %2909 = vmatprep.subr.mxu0 0.0
    %2910 = vmatpush1.msra.mxu0 0.0
    %2911 = vmatprep.subr.mxu0 0.0
    %2912 = vmatpush1.msra.mxu0 0.0
    %2913 = vmatprep.subr.mxu0 0.0
    %2914 = vmatpush1.msra.mxu0 0.0
    %2915 = vmatprep.subr.mxu0 0.0
    %2916 = vmatpush1.msra.mxu0 0.0
    %2917 = vmatprep.subr.mxu0 0.0
    %2918 = vmatpush1.msra.mxu0 0.0
    %2919 = vmatprep.subr.mxu0 0.0
    %2920 = vmatpush1.msra.mxu0 0.0
    %2921 = vmatprep.subr.mxu0 0.0
    %2922 = vmatpush1.msra.mxu0 0.0
    %2923 = vmatprep.subr.mxu0 0.0
    %2924 = vmatpush1.msra.mxu0 %v2888
    %2925 = vmatprep.subr.mxu0 0.0
    %2926 = vmatpush2.msra.mxu0 0.0
    %2927 = vmatprep.subr.mxu0 0.0
    %2928 = vmatpush2.msra.mxu0 0.0
    %2929 = vmatprep.subr.mxu0 0.0
    %2930 = vmatpush2.msra.mxu0 0.0
    %2931 = vmatprep.subr.mxu0 0.0
    %2932 = vmatpush2.msra.mxu0 0.0
    %2933 = vmatprep.subr.mxu0 0.0
    %2934 = vmatpush2.msra.mxu0 0.0
    %2935 = vmatprep.subr.mxu0 0.0
    %2936 = vmatpush2.msra.mxu0 0.0
    %2937 = vmatprep.subr.mxu0 0.0
    %2938 = vmatpush2.msra.mxu0 0.0
    %2939 = vmatprep.subr.mxu0 0.0
    %2940 = vmatpush2.msra.mxu0 0.0
    %2941 = vmatprep.subr.mxu0 0.0
    %2942 = vmatpush2.msra.mxu0 0.0
    %2943 = vmatprep.subr.mxu0 0.0
    %2944 = vmatpush2.msra.mxu0 0.0
    %2945 = vmatprep.subr.mxu0 0.0
    %2946 = vmatpush2.msra.mxu0 0.0
    %2947 = vmatprep.subr.mxu0 0.0
    %2948 = vmatpush2.msra.mxu0 0.0
    %2949 = vmatprep.subr.mxu0 0.0
    %2950 = vmatpush2.msra.mxu0 0.0
    %2951 = vmatprep.subr.mxu0 0.0
    %2952 = vmatpush2.msra.mxu0 0.0
    %2953 = vmatprep.subr.mxu0 0.0
    %2954 = vmatpush2.msra.mxu0 0.0
    %2955 = vmatprep.subr.mxu0 0.0
    %2956 = vmatpush2.msra.mxu0 0.0
    %2957 = vmatprep.mubr.f32.mxu0 0.0
    %2958 = vmatmul.mubr.f32.gmra.mxu0 %v2891
    %v2959 = vpop.f32.mrf.mxu0
    %v2960 = vadd.f32 0.0, %v2959
    %v2961 = vpop.f32.mrf.mxu0
    %2962 = vdwg.mxu0
    %v2963 = vadd.f32 %v2881, %v2960
    %s2964 = scalar_lea.vmem %s5, 112
    %v2965 = vld [vmem:[%s2964] sm:$0xff]
    %2966 = vrot.lane.b32.xlu0 %v1896, 114
    %v2967 = vpop.permute.xlu0 %2966
    %2968 = vrot.lane.b32.xlu0 %v1897, 114
    %v2969 = vpop.permute.xlu0 %2968
    %v2970 = vsel %vm1232, %v2967, %v2969
    %v2973 = vsel %vm68, %v2965, 0
    %2975 = vmatprep.subr.mxu0 0.0
    %2976 = vmatpush1.msra.mxu0 0.0
    %2977 = vmatprep.subr.mxu0 0.0
    %2978 = vmatpush1.msra.mxu0 0.0
    %2979 = vmatprep.subr.mxu0 0.0
    %2980 = vmatpush1.msra.mxu0 0.0
    %2981 = vmatprep.subr.mxu0 0.0
    %2982 = vmatpush1.msra.mxu0 0.0
    %2983 = vmatprep.subr.mxu0 0.0
    %2984 = vmatpush1.msra.mxu0 0.0
    %2985 = vmatprep.subr.mxu0 0.0
    %2986 = vmatpush1.msra.mxu0 0.0
    %2987 = vmatprep.subr.mxu0 0.0
    %2988 = vmatpush1.msra.mxu0 0.0
    %2989 = vmatprep.subr.mxu0 0.0
    %2990 = vmatpush1.msra.mxu0 0.0
    %2991 = vmatprep.subr.mxu0 0.0
    %2992 = vmatpush1.msra.mxu0 0.0
    %2993 = vmatprep.subr.mxu0 0.0
    %2994 = vmatpush1.msra.mxu0 0.0
    %2995 = vmatprep.subr.mxu0 0.0
    %2996 = vmatpush1.msra.mxu0 0.0
    %2997 = vmatprep.subr.mxu0 0.0
    %2998 = vmatpush1.msra.mxu0 0.0
    %2999 = vmatprep.subr.mxu0 0.0
    %3000 = vmatpush1.msra.mxu0 0.0
    %3001 = vmatprep.subr.mxu0 0.0
    %3002 = vmatpush1.msra.mxu0 0.0
    %3003 = vmatprep.subr.mxu0 0.0
    %3004 = vmatpush1.msra.mxu0 0.0
    %3005 = vmatprep.subr.mxu0 0.0
    %3006 = vmatpush1.msra.mxu0 %v2970
    %3007 = vmatprep.subr.mxu0 0.0
    %3008 = vmatpush2.msra.mxu0 0.0
    %3009 = vmatprep.subr.mxu0 0.0
    %3010 = vmatpush2.msra.mxu0 0.0
    %3011 = vmatprep.subr.mxu0 0.0
    %3012 = vmatpush2.msra.mxu0 0.0
    %3013 = vmatprep.subr.mxu0 0.0
    %3014 = vmatpush2.msra.mxu0 0.0
    %3015 = vmatprep.subr.mxu0 0.0
    %3016 = vmatpush2.msra.mxu0 0.0
    %3017 = vmatprep.subr.mxu0 0.0
    %3018 = vmatpush2.msra.mxu0 0.0
    %3019 = vmatprep.subr.mxu0 0.0
    %3020 = vmatpush2.msra.mxu0 0.0
    %3021 = vmatprep.subr.mxu0 0.0
    %3022 = vmatpush2.msra.mxu0 0.0
    %3023 = vmatprep.subr.mxu0 0.0
    %3024 = vmatpush2.msra.mxu0 0.0
    %3025 = vmatprep.subr.mxu0 0.0
    %3026 = vmatpush2.msra.mxu0 0.0
    %3027 = vmatprep.subr.mxu0 0.0
    %3028 = vmatpush2.msra.mxu0 0.0
    %3029 = vmatprep.subr.mxu0 0.0
    %3030 = vmatpush2.msra.mxu0 0.0
    %3031 = vmatprep.subr.mxu0 0.0
    %3032 = vmatpush2.msra.mxu0 0.0
    %3033 = vmatprep.subr.mxu0 0.0
    %3034 = vmatpush2.msra.mxu0 0.0
    %3035 = vmatprep.subr.mxu0 0.0
    %3036 = vmatpush2.msra.mxu0 0.0
    %3037 = vmatprep.subr.mxu0 0.0
    %3038 = vmatpush2.msra.mxu0 0.0
    %3039 = vmatprep.mubr.f32.mxu0 0.0
    %3040 = vmatmul.mubr.f32.gmra.mxu0 %v2973
    %v3041 = vpop.f32.mrf.mxu0
    %v3042 = vadd.f32 0.0, %v3041
    %v3043 = vpop.f32.mrf.mxu0
    %3044 = vdwg.mxu0
    %v3045 = vadd.f32 %v2963, %v3042
    %s3046 = scalar_lea.vmem %s5, 120
    %v3047 = vld [vmem:[%s3046] sm:$0xff]
    %3048 = vrot.lane.b32.xlu0 %v1896, 113
    %v3049 = vpop.permute.xlu0 %3048
    %3050 = vrot.lane.b32.xlu0 %v1897, 113
    %v3051 = vpop.permute.xlu0 %3050
    %v3052 = vsel %vm1315, %v3049, %v3051
    %v3055 = vsel %vm68, %v3047, 0
    %3057 = vmatprep.subr.mxu0 0.0
    %3058 = vmatpush1.msra.mxu0 0.0
    %3059 = vmatprep.subr.mxu0 0.0
    %3060 = vmatpush1.msra.mxu0 0.0
    %3061 = vmatprep.subr.mxu0 0.0
    %3062 = vmatpush1.msra.mxu0 0.0
    %3063 = vmatprep.subr.mxu0 0.0
    %3064 = vmatpush1.msra.mxu0 0.0
    %3065 = vmatprep.subr.mxu0 0.0
    %3066 = vmatpush1.msra.mxu0 0.0
    %3067 = vmatprep.subr.mxu0 0.0
    %3068 = vmatpush1.msra.mxu0 0.0
    %3069 = vmatprep.subr.mxu0 0.0
    %3070 = vmatpush1.msra.mxu0 0.0
    %3071 = vmatprep.subr.mxu0 0.0
    %3072 = vmatpush1.msra.mxu0 0.0
    %3073 = vmatprep.subr.mxu0 0.0
    %3074 = vmatpush1.msra.mxu0 0.0
    %3075 = vmatprep.subr.mxu0 0.0
    %3076 = vmatpush1.msra.mxu0 0.0
    %3077 = vmatprep.subr.mxu0 0.0
    %3078 = vmatpush1.msra.mxu0 0.0
    %3079 = vmatprep.subr.mxu0 0.0
    %3080 = vmatpush1.msra.mxu0 0.0
    %3081 = vmatprep.subr.mxu0 0.0
    %3082 = vmatpush1.msra.mxu0 0.0
    %3083 = vmatprep.subr.mxu0 0.0
    %3084 = vmatpush1.msra.mxu0 0.0
    %3085 = vmatprep.subr.mxu0 0.0
    %3086 = vmatpush1.msra.mxu0 0.0
    %3087 = vmatprep.subr.mxu0 0.0
    %3088 = vmatpush1.msra.mxu0 %v3052
    %3089 = vmatprep.subr.mxu0 0.0
    %3090 = vmatpush2.msra.mxu0 0.0
    %3091 = vmatprep.subr.mxu0 0.0
    %3092 = vmatpush2.msra.mxu0 0.0
    %3093 = vmatprep.subr.mxu0 0.0
    %3094 = vmatpush2.msra.mxu0 0.0
    %3095 = vmatprep.subr.mxu0 0.0
    %3096 = vmatpush2.msra.mxu0 0.0
    %3097 = vmatprep.subr.mxu0 0.0
    %3098 = vmatpush2.msra.mxu0 0.0
    %3099 = vmatprep.subr.mxu0 0.0
    %3100 = vmatpush2.msra.mxu0 0.0
    %3101 = vmatprep.subr.mxu0 0.0
    %3102 = vmatpush2.msra.mxu0 0.0
    %3103 = vmatprep.subr.mxu0 0.0
    %3104 = vmatpush2.msra.mxu0 0.0
    %3105 = vmatprep.subr.mxu0 0.0
    %3106 = vmatpush2.msra.mxu0 0.0
    %3107 = vmatprep.subr.mxu0 0.0
    %3108 = vmatpush2.msra.mxu0 0.0
    %3109 = vmatprep.subr.mxu0 0.0
    %3110 = vmatpush2.msra.mxu0 0.0
    %3111 = vmatprep.subr.mxu0 0.0
    %3112 = vmatpush2.msra.mxu0 0.0
    %3113 = vmatprep.subr.mxu0 0.0
    %3114 = vmatpush2.msra.mxu0 0.0
    %3115 = vmatprep.subr.mxu0 0.0
    %3116 = vmatpush2.msra.mxu0 0.0
    %3117 = vmatprep.subr.mxu0 0.0
    %3118 = vmatpush2.msra.mxu0 0.0
    %3119 = vmatprep.subr.mxu0 0.0
    %3120 = vmatpush2.msra.mxu0 0.0
    %3121 = vmatprep.mubr.f32.mxu0 0.0
    %3122 = vmatmul.mubr.f32.gmra.mxu0 %v3055
    %v3123 = vpop.f32.mrf.mxu0
    %v3124 = vadd.f32 0.0, %v3123
    %v3125 = vpop.f32.mrf.mxu0
    %3126 = vdwg.mxu0
    %v3127 = vadd.f32 %v3045, %v3124
    %s3128 = scalar_lea.vmem %s5, 128
    %v3129 = vld [vmem:[%s3128] sm:$0xff]
    %3130 = vrot.lane.b32.xlu0 %v1896, 112
    %v3131 = vpop.permute.xlu0 %3130
    %3132 = vrot.lane.b32.xlu0 %v1897, 112
    %v3133 = vpop.permute.xlu0 %3132
    %v3134 = vsel %vm1398, %v3131, %v3133
    %v3137 = vsel %vm68, %v3129, 0
    %3139 = vmatprep.subr.mxu0 0.0
    %3140 = vmatpush1.msra.mxu0 0.0
    %3141 = vmatprep.subr.mxu0 0.0
    %3142 = vmatpush1.msra.mxu0 0.0
    %3143 = vmatprep.subr.mxu0 0.0
    %3144 = vmatpush1.msra.mxu0 0.0
    %3145 = vmatprep.subr.mxu0 0.0
    %3146 = vmatpush1.msra.mxu0 0.0
    %3147 = vmatprep.subr.mxu0 0.0
    %3148 = vmatpush1.msra.mxu0 0.0
    %3149 = vmatprep.subr.mxu0 0.0
    %3150 = vmatpush1.msra.mxu0 0.0
    %3151 = vmatprep.subr.mxu0 0.0
    %3152 = vmatpush1.msra.mxu0 0.0
    %3153 = vmatprep.subr.mxu0 0.0
    %3154 = vmatpush1.msra.mxu0 0.0
    %3155 = vmatprep.subr.mxu0 0.0
    %3156 = vmatpush1.msra.mxu0 0.0
    %3157 = vmatprep.subr.mxu0 0.0
    %3158 = vmatpush1.msra.mxu0 0.0
    %3159 = vmatprep.subr.mxu0 0.0
    %3160 = vmatpush1.msra.mxu0 0.0
    %3161 = vmatprep.subr.mxu0 0.0
    %3162 = vmatpush1.msra.mxu0 0.0
    %3163 = vmatprep.subr.mxu0 0.0
    %3164 = vmatpush1.msra.mxu0 0.0
    %3165 = vmatprep.subr.mxu0 0.0
    %3166 = vmatpush1.msra.mxu0 0.0
    %3167 = vmatprep.subr.mxu0 0.0
    %3168 = vmatpush1.msra.mxu0 0.0
    %3169 = vmatprep.subr.mxu0 0.0
    %3170 = vmatpush1.msra.mxu0 %v3134
    %3171 = vmatprep.subr.mxu0 0.0
    %3172 = vmatpush2.msra.mxu0 0.0
    %3173 = vmatprep.subr.mxu0 0.0
    %3174 = vmatpush2.msra.mxu0 0.0
    %3175 = vmatprep.subr.mxu0 0.0
    %3176 = vmatpush2.msra.mxu0 0.0
    %3177 = vmatprep.subr.mxu0 0.0
    %3178 = vmatpush2.msra.mxu0 0.0
    %3179 = vmatprep.subr.mxu0 0.0
    %3180 = vmatpush2.msra.mxu0 0.0
    %3181 = vmatprep.subr.mxu0 0.0
    %3182 = vmatpush2.msra.mxu0 0.0
    %3183 = vmatprep.subr.mxu0 0.0
    %3184 = vmatpush2.msra.mxu0 0.0
    %3185 = vmatprep.subr.mxu0 0.0
    %3186 = vmatpush2.msra.mxu0 0.0
    %3187 = vmatprep.subr.mxu0 0.0
    %3188 = vmatpush2.msra.mxu0 0.0
    %3189 = vmatprep.subr.mxu0 0.0
    %3190 = vmatpush2.msra.mxu0 0.0
    %3191 = vmatprep.subr.mxu0 0.0
    %3192 = vmatpush2.msra.mxu0 0.0
    %3193 = vmatprep.subr.mxu0 0.0
    %3194 = vmatpush2.msra.mxu0 0.0
    %3195 = vmatprep.subr.mxu0 0.0
    %3196 = vmatpush2.msra.mxu0 0.0
    %3197 = vmatprep.subr.mxu0 0.0
    %3198 = vmatpush2.msra.mxu0 0.0
    %3199 = vmatprep.subr.mxu0 0.0
    %3200 = vmatpush2.msra.mxu0 0.0
    %3201 = vmatprep.subr.mxu0 0.0
    %3202 = vmatpush2.msra.mxu0 0.0
    %3203 = vmatprep.mubr.f32.mxu0 0.0
    %3204 = vmatmul.mubr.f32.gmra.mxu0 %v3137
    %v3205 = vpop.f32.mrf.mxu0
    %v3206 = vadd.f32 0.0, %v3205
    %v3207 = vpop.f32.mrf.mxu0
    %3208 = vdwg.mxu0
    %v3209 = vadd.f32 %v3127, %v3206
    %s3210 = scalar_lea.vmem %s5, 136
    %v3211 = vld [vmem:[%s3210] sm:$0xff]
    %3212 = vrot.lane.b32.xlu0 %v1896, 111
    %v3213 = vpop.permute.xlu0 %3212
    %3214 = vrot.lane.b32.xlu0 %v1897, 111
    %v3215 = vpop.permute.xlu0 %3214
    %v3216 = vsel %vm1481, %v3213, %v3215
    %v3219 = vsel %vm68, %v3211, 0
    %3221 = vmatprep.subr.mxu0 0.0
    %3222 = vmatpush1.msra.mxu0 0.0
    %3223 = vmatprep.subr.mxu0 0.0
    %3224 = vmatpush1.msra.mxu0 0.0
    %3225 = vmatprep.subr.mxu0 0.0
    %3226 = vmatpush1.msra.mxu0 0.0
    %3227 = vmatprep.subr.mxu0 0.0
    %3228 = vmatpush1.msra.mxu0 0.0
    %3229 = vmatprep.subr.mxu0 0.0
    %3230 = vmatpush1.msra.mxu0 0.0
    %3231 = vmatprep.subr.mxu0 0.0
    %3232 = vmatpush1.msra.mxu0 0.0
    %3233 = vmatprep.subr.mxu0 0.0
    %3234 = vmatpush1.msra.mxu0 0.0
    %3235 = vmatprep.subr.mxu0 0.0
    %3236 = vmatpush1.msra.mxu0 0.0
    %3237 = vmatprep.subr.mxu0 0.0
    %3238 = vmatpush1.msra.mxu0 0.0
    %3239 = vmatprep.subr.mxu0 0.0
    %3240 = vmatpush1.msra.mxu0 0.0
    %3241 = vmatprep.subr.mxu0 0.0
    %3242 = vmatpush1.msra.mxu0 0.0
    %3243 = vmatprep.subr.mxu0 0.0
    %3244 = vmatpush1.msra.mxu0 0.0
    %3245 = vmatprep.subr.mxu0 0.0
    %3246 = vmatpush1.msra.mxu0 0.0
    %3247 = vmatprep.subr.mxu0 0.0
    %3248 = vmatpush1.msra.mxu0 0.0
    %3249 = vmatprep.subr.mxu0 0.0
    %3250 = vmatpush1.msra.mxu0 0.0
    %3251 = vmatprep.subr.mxu0 0.0
    %3252 = vmatpush1.msra.mxu0 %v3216
    %3253 = vmatprep.subr.mxu0 0.0
    %3254 = vmatpush2.msra.mxu0 0.0
    %3255 = vmatprep.subr.mxu0 0.0
    %3256 = vmatpush2.msra.mxu0 0.0
    %3257 = vmatprep.subr.mxu0 0.0
    %3258 = vmatpush2.msra.mxu0 0.0
    %3259 = vmatprep.subr.mxu0 0.0
    %3260 = vmatpush2.msra.mxu0 0.0
    %3261 = vmatprep.subr.mxu0 0.0
    %3262 = vmatpush2.msra.mxu0 0.0
    %3263 = vmatprep.subr.mxu0 0.0
    %3264 = vmatpush2.msra.mxu0 0.0
    %3265 = vmatprep.subr.mxu0 0.0
    %3266 = vmatpush2.msra.mxu0 0.0
    %3267 = vmatprep.subr.mxu0 0.0
    %3268 = vmatpush2.msra.mxu0 0.0
    %3269 = vmatprep.subr.mxu0 0.0
    %3270 = vmatpush2.msra.mxu0 0.0
    %3271 = vmatprep.subr.mxu0 0.0
    %3272 = vmatpush2.msra.mxu0 0.0
    %3273 = vmatprep.subr.mxu0 0.0
    %3274 = vmatpush2.msra.mxu0 0.0
    %3275 = vmatprep.subr.mxu0 0.0
    %3276 = vmatpush2.msra.mxu0 0.0
    %3277 = vmatprep.subr.mxu0 0.0
    %3278 = vmatpush2.msra.mxu0 0.0
    %3279 = vmatprep.subr.mxu0 0.0
    %3280 = vmatpush2.msra.mxu0 0.0
    %3281 = vmatprep.subr.mxu0 0.0
    %3282 = vmatpush2.msra.mxu0 0.0
    %3283 = vmatprep.subr.mxu0 0.0
    %3284 = vmatpush2.msra.mxu0 0.0
    %3285 = vmatprep.mubr.f32.mxu0 0.0
    %3286 = vmatmul.mubr.f32.gmra.mxu0 %v3219
    %v3287 = vpop.f32.mrf.mxu0
    %v3288 = vadd.f32 0.0, %v3287
    %v3289 = vpop.f32.mrf.mxu0
    %3290 = vdwg.mxu0
    %v3291 = vadd.f32 %v3209, %v3288
    %s3292 = scalar_lea.vmem %s5, 144
    %v3293 = vld [vmem:[%s3292] sm:$0xff]
    %3294 = vrot.lane.b32.xlu0 %v1896, 110
    %v3295 = vpop.permute.xlu0 %3294
    %3296 = vrot.lane.b32.xlu0 %v1897, 110
    %v3297 = vpop.permute.xlu0 %3296
    %v3298 = vsel %vm1564, %v3295, %v3297
    %v3301 = vsel %vm68, %v3293, 0
    %3303 = vmatprep.subr.mxu0 0.0
    %3304 = vmatpush1.msra.mxu0 0.0
    %3305 = vmatprep.subr.mxu0 0.0
    %3306 = vmatpush1.msra.mxu0 0.0
    %3307 = vmatprep.subr.mxu0 0.0
    %3308 = vmatpush1.msra.mxu0 0.0
    %3309 = vmatprep.subr.mxu0 0.0
    %3310 = vmatpush1.msra.mxu0 0.0
    %3311 = vmatprep.subr.mxu0 0.0
    %3312 = vmatpush1.msra.mxu0 0.0
    %3313 = vmatprep.subr.mxu0 0.0
    %3314 = vmatpush1.msra.mxu0 0.0
    %3315 = vmatprep.subr.mxu0 0.0
    %3316 = vmatpush1.msra.mxu0 0.0
    %3317 = vmatprep.subr.mxu0 0.0
    %3318 = vmatpush1.msra.mxu0 0.0
    %3319 = vmatprep.subr.mxu0 0.0
    %3320 = vmatpush1.msra.mxu0 0.0
    %3321 = vmatprep.subr.mxu0 0.0
    %3322 = vmatpush1.msra.mxu0 0.0
    %3323 = vmatprep.subr.mxu0 0.0
    %3324 = vmatpush1.msra.mxu0 0.0
    %3325 = vmatprep.subr.mxu0 0.0
    %3326 = vmatpush1.msra.mxu0 0.0
    %3327 = vmatprep.subr.mxu0 0.0
    %3328 = vmatpush1.msra.mxu0 0.0
    %3329 = vmatprep.subr.mxu0 0.0
    %3330 = vmatpush1.msra.mxu0 0.0
    %3331 = vmatprep.subr.mxu0 0.0
    %3332 = vmatpush1.msra.mxu0 0.0
    %3333 = vmatprep.subr.mxu0 0.0
    %3334 = vmatpush1.msra.mxu0 %v3298
    %3335 = vmatprep.subr.mxu0 0.0
    %3336 = vmatpush2.msra.mxu0 0.0
    %3337 = vmatprep.subr.mxu0 0.0
    %3338 = vmatpush2.msra.mxu0 0.0
    %3339 = vmatprep.subr.mxu0 0.0
    %3340 = vmatpush2.msra.mxu0 0.0
    %3341 = vmatprep.subr.mxu0 0.0
    %3342 = vmatpush2.msra.mxu0 0.0
    %3343 = vmatprep.subr.mxu0 0.0
    %3344 = vmatpush2.msra.mxu0 0.0
    %3345 = vmatprep.subr.mxu0 0.0
    %3346 = vmatpush2.msra.mxu0 0.0
    %3347 = vmatprep.subr.mxu0 0.0
    %3348 = vmatpush2.msra.mxu0 0.0
    %3349 = vmatprep.subr.mxu0 0.0
    %3350 = vmatpush2.msra.mxu0 0.0
    %3351 = vmatprep.subr.mxu0 0.0
    %3352 = vmatpush2.msra.mxu0 0.0
    %3353 = vmatprep.subr.mxu0 0.0
    %3354 = vmatpush2.msra.mxu0 0.0
    %3355 = vmatprep.subr.mxu0 0.0
    %3356 = vmatpush2.msra.mxu0 0.0
    %3357 = vmatprep.subr.mxu0 0.0
    %3358 = vmatpush2.msra.mxu0 0.0
    %3359 = vmatprep.subr.mxu0 0.0
    %3360 = vmatpush2.msra.mxu0 0.0
    %3361 = vmatprep.subr.mxu0 0.0
    %3362 = vmatpush2.msra.mxu0 0.0
    %3363 = vmatprep.subr.mxu0 0.0
    %3364 = vmatpush2.msra.mxu0 0.0
    %3365 = vmatprep.subr.mxu0 0.0
    %3366 = vmatpush2.msra.mxu0 0.0
    %3367 = vmatprep.mubr.f32.mxu0 0.0
    %3368 = vmatmul.mubr.f32.gmra.mxu0 %v3301
    %v3369 = vpop.f32.mrf.mxu0
    %v3370 = vadd.f32 0.0, %v3369
    %v3371 = vpop.f32.mrf.mxu0
    %3372 = vdwg.mxu0
    %v3373 = vadd.f32 %v3291, %v3370
    %s3374 = scalar_lea.vmem %s5, 152
    %v3375 = vld [vmem:[%s3374] sm:$0xff]
    %3376 = vrot.lane.b32.xlu0 %v1896, 109
    %v3377 = vpop.permute.xlu0 %3376
    %3378 = vrot.lane.b32.xlu0 %v1897, 109
    %v3379 = vpop.permute.xlu0 %3378
    %v3380 = vsel %vm1647, %v3377, %v3379
    %v3383 = vsel %vm68, %v3375, 0
    %3385 = vmatprep.subr.mxu0 0.0
    %3386 = vmatpush1.msra.mxu0 0.0
    %3387 = vmatprep.subr.mxu0 0.0
    %3388 = vmatpush1.msra.mxu0 0.0
    %3389 = vmatprep.subr.mxu0 0.0
    %3390 = vmatpush1.msra.mxu0 0.0
    %3391 = vmatprep.subr.mxu0 0.0
    %3392 = vmatpush1.msra.mxu0 0.0
    %3393 = vmatprep.subr.mxu0 0.0
    %3394 = vmatpush1.msra.mxu0 0.0
    %3395 = vmatprep.subr.mxu0 0.0
    %3396 = vmatpush1.msra.mxu0 0.0
    %3397 = vmatprep.subr.mxu0 0.0
    %3398 = vmatpush1.msra.mxu0 0.0
    %3399 = vmatprep.subr.mxu0 0.0
    %3400 = vmatpush1.msra.mxu0 0.0
    %3401 = vmatprep.subr.mxu0 0.0
    %3402 = vmatpush1.msra.mxu0 0.0
    %3403 = vmatprep.subr.mxu0 0.0
    %3404 = vmatpush1.msra.mxu0 0.0
    %3405 = vmatprep.subr.mxu0 0.0
    %3406 = vmatpush1.msra.mxu0 0.0
    %3407 = vmatprep.subr.mxu0 0.0
    %3408 = vmatpush1.msra.mxu0 0.0
    %3409 = vmatprep.subr.mxu0 0.0
    %3410 = vmatpush1.msra.mxu0 0.0
    %3411 = vmatprep.subr.mxu0 0.0
    %3412 = vmatpush1.msra.mxu0 0.0
    %3413 = vmatprep.subr.mxu0 0.0
    %3414 = vmatpush1.msra.mxu0 0.0
    %3415 = vmatprep.subr.mxu0 0.0
    %3416 = vmatpush1.msra.mxu0 %v3380
    %3417 = vmatprep.subr.mxu0 0.0
    %3418 = vmatpush2.msra.mxu0 0.0
    %3419 = vmatprep.subr.mxu0 0.0
    %3420 = vmatpush2.msra.mxu0 0.0
    %3421 = vmatprep.subr.mxu0 0.0
    %3422 = vmatpush2.msra.mxu0 0.0
    %3423 = vmatprep.subr.mxu0 0.0
    %3424 = vmatpush2.msra.mxu0 0.0
    %3425 = vmatprep.subr.mxu0 0.0
    %3426 = vmatpush2.msra.mxu0 0.0
    %3427 = vmatprep.subr.mxu0 0.0
    %3428 = vmatpush2.msra.mxu0 0.0
    %3429 = vmatprep.subr.mxu0 0.0
    %3430 = vmatpush2.msra.mxu0 0.0
    %3431 = vmatprep.subr.mxu0 0.0
    %3432 = vmatpush2.msra.mxu0 0.0
    %3433 = vmatprep.subr.mxu0 0.0
    %3434 = vmatpush2.msra.mxu0 0.0
    %3435 = vmatprep.subr.mxu0 0.0
    %3436 = vmatpush2.msra.mxu0 0.0
    %3437 = vmatprep.subr.mxu0 0.0
    %3438 = vmatpush2.msra.mxu0 0.0
    %3439 = vmatprep.subr.mxu0 0.0
    %3440 = vmatpush2.msra.mxu0 0.0
    %3441 = vmatprep.subr.mxu0 0.0
    %3442 = vmatpush2.msra.mxu0 0.0
    %3443 = vmatprep.subr.mxu0 0.0
    %3444 = vmatpush2.msra.mxu0 0.0
    %3445 = vmatprep.subr.mxu0 0.0
    %3446 = vmatpush2.msra.mxu0 0.0
    %3447 = vmatprep.subr.mxu0 0.0
    %3448 = vmatpush2.msra.mxu0 0.0
    %3449 = vmatprep.mubr.f32.mxu0 0.0
    %3450 = vmatmul.mubr.f32.gmra.mxu0 %v3383
    %v3451 = vpop.f32.mrf.mxu0
    %v3452 = vadd.f32 0.0, %v3451
    %v3453 = vpop.f32.mrf.mxu0
    %3454 = vdwg.mxu0
    %v3455 = vadd.f32 %v3373, %v3452
    %s3456 = scalar_lea.vmem %s5, 160
    %v3457 = vld [vmem:[%s3456] sm:$0xff]
    %3458 = vrot.lane.b32.xlu0 %v1896, 108
    %v3459 = vpop.permute.xlu0 %3458
    %3460 = vrot.lane.b32.xlu0 %v1897, 108
    %v3461 = vpop.permute.xlu0 %3460
    %v3462 = vsel %vm1730, %v3459, %v3461
    %v3465 = vsel %vm68, %v3457, 0
    %3467 = vmatprep.subr.mxu0 0.0
    %3468 = vmatpush1.msra.mxu0 0.0
    %3469 = vmatprep.subr.mxu0 0.0
    %3470 = vmatpush1.msra.mxu0 0.0
    %3471 = vmatprep.subr.mxu0 0.0
    %3472 = vmatpush1.msra.mxu0 0.0
    %3473 = vmatprep.subr.mxu0 0.0
    %3474 = vmatpush1.msra.mxu0 0.0
    %3475 = vmatprep.subr.mxu0 0.0
    %3476 = vmatpush1.msra.mxu0 0.0
    %3477 = vmatprep.subr.mxu0 0.0
    %3478 = vmatpush1.msra.mxu0 0.0
    %3479 = vmatprep.subr.mxu0 0.0
    %3480 = vmatpush1.msra.mxu0 0.0
    %3481 = vmatprep.subr.mxu0 0.0
    %3482 = vmatpush1.msra.mxu0 0.0
    %3483 = vmatprep.subr.mxu0 0.0
    %3484 = vmatpush1.msra.mxu0 0.0
    %3485 = vmatprep.subr.mxu0 0.0
    %3486 = vmatpush1.msra.mxu0 0.0
    %3487 = vmatprep.subr.mxu0 0.0
    %3488 = vmatpush1.msra.mxu0 0.0
    %3489 = vmatprep.subr.mxu0 0.0
    %3490 = vmatpush1.msra.mxu0 0.0
    %3491 = vmatprep.subr.mxu0 0.0
    %3492 = vmatpush1.msra.mxu0 0.0
    %3493 = vmatprep.subr.mxu0 0.0
    %3494 = vmatpush1.msra.mxu0 0.0
    %3495 = vmatprep.subr.mxu0 0.0
    %3496 = vmatpush1.msra.mxu0 0.0
    %3497 = vmatprep.subr.mxu0 0.0
    %3498 = vmatpush1.msra.mxu0 %v3462
    %3499 = vmatprep.subr.mxu0 0.0
    %3500 = vmatpush2.msra.mxu0 0.0
    %3501 = vmatprep.subr.mxu0 0.0
    %3502 = vmatpush2.msra.mxu0 0.0
    %3503 = vmatprep.subr.mxu0 0.0
    %3504 = vmatpush2.msra.mxu0 0.0
    %3505 = vmatprep.subr.mxu0 0.0
    %3506 = vmatpush2.msra.mxu0 0.0
    %3507 = vmatprep.subr.mxu0 0.0
    %3508 = vmatpush2.msra.mxu0 0.0
    %3509 = vmatprep.subr.mxu0 0.0
    %3510 = vmatpush2.msra.mxu0 0.0
    %3511 = vmatprep.subr.mxu0 0.0
    %3512 = vmatpush2.msra.mxu0 0.0
    %3513 = vmatprep.subr.mxu0 0.0
    %3514 = vmatpush2.msra.mxu0 0.0
    %3515 = vmatprep.subr.mxu0 0.0
    %3516 = vmatpush2.msra.mxu0 0.0
    %3517 = vmatprep.subr.mxu0 0.0
    %3518 = vmatpush2.msra.mxu0 0.0
    %3519 = vmatprep.subr.mxu0 0.0
    %3520 = vmatpush2.msra.mxu0 0.0
    %3521 = vmatprep.subr.mxu0 0.0
    %3522 = vmatpush2.msra.mxu0 0.0
    %3523 = vmatprep.subr.mxu0 0.0
    %3524 = vmatpush2.msra.mxu0 0.0
    %3525 = vmatprep.subr.mxu0 0.0
    %3526 = vmatpush2.msra.mxu0 0.0
    %3527 = vmatprep.subr.mxu0 0.0
    %3528 = vmatpush2.msra.mxu0 0.0
    %3529 = vmatprep.subr.mxu0 0.0
    %3530 = vmatpush2.msra.mxu0 0.0
    %3531 = vmatprep.mubr.f32.mxu0 0.0
    %3532 = vmatmul.mubr.f32.gmra.mxu0 %v3465
    %v3533 = vpop.f32.mrf.mxu0
    %v3534 = vadd.f32 0.0, %v3533
    %v3535 = vpop.f32.mrf.mxu0
    %3536 = vdwg.mxu0
    %v3537 = vadd.f32 %v3455, %v3534
    %v3538 = vmax.f32 %v3537, 0.0
    %v3539 = vld [vmem:[#allocation4] sm:$0xff]
    %v3540 = vadd.f32 %v3538, %v3539
    %3541 = vst [vmem:[#allocation5] sm:$0xff] %v3540
    %s3542 = scalar_lea.vmem %s0, 8
    %v3543 = vld [vmem:[%s3542] sm:$0xff]
    %s3544 = scalar_lea.vmem %s2, 8
    %v3545 = vld [vmem:[%s3544] sm:$0xff]
    %v3546 = vmax.f32 %v3543, %v3545
    %s3547 = scalar_lea.vmem %s1, 8
    %v3548 = vld [vmem:[%s3547] sm:$0xff]
    %v3549 = vmax.f32 %v3546, %v3548
    %3551 = vrot.lane.b32.xlu0 %v3549, 10
    %v3552 = vpop.permute.xlu0 %3551
    %3554 = vst.msk [vmem:[%s33] sm:$0xff] %vm63, %v3552
    %3555 = vst.msk [vmem:[%s33 + $0x8] sm:$0xff] %vm27, %v3552
    %v3556 = vld [vmem:[%s3] sm:$0xff]
    %v3557 = vld [vmem:[%s33] sm:$0xff]
    %v3559 = vsel %vm68, %v3556, 0
    %3561 = vmatprep.subr.mxu0 0.0
    %3562 = vmatpush1.msra.mxu0 0.0
    %3563 = vmatprep.subr.mxu0 0.0
    %3564 = vmatpush1.msra.mxu0 0.0
    %3565 = vmatprep.subr.mxu0 0.0
    %3566 = vmatpush1.msra.mxu0 0.0
    %3567 = vmatprep.subr.mxu0 0.0
    %3568 = vmatpush1.msra.mxu0 0.0
    %3569 = vmatprep.subr.mxu0 0.0
    %3570 = vmatpush1.msra.mxu0 0.0
    %3571 = vmatprep.subr.mxu0 0.0
    %3572 = vmatpush1.msra.mxu0 0.0
    %3573 = vmatprep.subr.mxu0 0.0
    %3574 = vmatpush1.msra.mxu0 0.0
    %3575 = vmatprep.subr.mxu0 0.0
    %3576 = vmatpush1.msra.mxu0 0.0
    %3577 = vmatprep.subr.mxu0 0.0
    %3578 = vmatpush1.msra.mxu0 0.0
    %3579 = vmatprep.subr.mxu0 0.0
    %3580 = vmatpush1.msra.mxu0 0.0
    %3581 = vmatprep.subr.mxu0 0.0
    %3582 = vmatpush1.msra.mxu0 0.0
    %3583 = vmatprep.subr.mxu0 0.0
    %3584 = vmatpush1.msra.mxu0 0.0
    %3585 = vmatprep.subr.mxu0 0.0
    %3586 = vmatpush1.msra.mxu0 0.0
    %3587 = vmatprep.subr.mxu0 0.0
    %3588 = vmatpush1.msra.mxu0 0.0
    %3589 = vmatprep.subr.mxu0 0.0
    %3590 = vmatpush1.msra.mxu0 0.0
    %3591 = vmatprep.subr.mxu0 0.0
    %3592 = vmatpush1.msra.mxu0 %v3557
    %3593 = vmatprep.subr.mxu0 0.0
    %3594 = vmatpush2.msra.mxu0 0.0
    %3595 = vmatprep.subr.mxu0 0.0
    %3596 = vmatpush2.msra.mxu0 0.0
    %3597 = vmatprep.subr.mxu0 0.0
    %3598 = vmatpush2.msra.mxu0 0.0
    %3599 = vmatprep.subr.mxu0 0.0
    %3600 = vmatpush2.msra.mxu0 0.0
    %3601 = vmatprep.subr.mxu0 0.0
    %3602 = vmatpush2.msra.mxu0 0.0
    %3603 = vmatprep.subr.mxu0 0.0
    %3604 = vmatpush2.msra.mxu0 0.0
    %3605 = vmatprep.subr.mxu0 0.0
    %3606 = vmatpush2.msra.mxu0 0.0
    %3607 = vmatprep.subr.mxu0 0.0
    %3608 = vmatpush2.msra.mxu0 0.0
    %3609 = vmatprep.subr.mxu0 0.0
    %3610 = vmatpush2.msra.mxu0 0.0
    %3611 = vmatprep.subr.mxu0 0.0
    %3612 = vmatpush2.msra.mxu0 0.0
    %3613 = vmatprep.subr.mxu0 0.0
    %3614 = vmatpush2.msra.mxu0 0.0
    %3615 = vmatprep.subr.mxu0 0.0
    %3616 = vmatpush2.msra.mxu0 0.0
    %3617 = vmatprep.subr.mxu0 0.0
    %3618 = vmatpush2.msra.mxu0 0.0
    %3619 = vmatprep.subr.mxu0 0.0
    %3620 = vmatpush2.msra.mxu0 0.0
    %3621 = vmatprep.subr.mxu0 0.0
    %3622 = vmatpush2.msra.mxu0 0.0
    %3623 = vmatprep.subr.mxu0 0.0
    %3624 = vmatpush2.msra.mxu0 0.0
    %3625 = vmatprep.mubr.f32.mxu0 0.0
    %3626 = vmatmul.mubr.f32.gmra.mxu0 %v3559
    %v3627 = vpop.f32.mrf.mxu0
    %v3628 = vadd.f32 0.0, %v3627
    %v3629 = vpop.f32.mrf.mxu0
    %3630 = vdwg.mxu0
    %v3631 = vadd.f32 %v46, %v3628
    %v3632 = vld [vmem:[%s143] sm:$0xff]
    %v3633 = vld [vmem:[%s33] sm:$0xff]
    %v3634 = vld [vmem:[%s33 + $0x8] sm:$0xff]
    %3637 = vrot.lane.b32.xlu0 %v3633, 127
    %v3638 = vpop.permute.xlu0 %3637
    %3639 = vrot.lane.b32.xlu0 %v3634, 127
    %v3640 = vpop.permute.xlu0 %3639
    %v3641 = vsel %vm153, %v3638, %v3640
    %v3644 = vsel %vm68, %v3632, 0
    %3646 = vmatprep.subr.mxu0 0.0
    %3647 = vmatpush1.msra.mxu0 0.0
    %3648 = vmatprep.subr.mxu0 0.0
    %3649 = vmatpush1.msra.mxu0 0.0
    %3650 = vmatprep.subr.mxu0 0.0
    %3651 = vmatpush1.msra.mxu0 0.0
    %3652 = vmatprep.subr.mxu0 0.0
    %3653 = vmatpush1.msra.mxu0 0.0
    %3654 = vmatprep.subr.mxu0 0.0
    %3655 = vmatpush1.msra.mxu0 0.0
    %3656 = vmatprep.subr.mxu0 0.0
    %3657 = vmatpush1.msra.mxu0 0.0
    %3658 = vmatprep.subr.mxu0 0.0
    %3659 = vmatpush1.msra.mxu0 0.0
    %3660 = vmatprep.subr.mxu0 0.0
    %3661 = vmatpush1.msra.mxu0 0.0
    %3662 = vmatprep.subr.mxu0 0.0
    %3663 = vmatpush1.msra.mxu0 0.0
    %3664 = vmatprep.subr.mxu0 0.0
    %3665 = vmatpush1.msra.mxu0 0.0
    %3666 = vmatprep.subr.mxu0 0.0
    %3667 = vmatpush1.msra.mxu0 0.0
    %3668 = vmatprep.subr.mxu0 0.0
    %3669 = vmatpush1.msra.mxu0 0.0
    %3670 = vmatprep.subr.mxu0 0.0
    %3671 = vmatpush1.msra.mxu0 0.0
    %3672 = vmatprep.subr.mxu0 0.0
    %3673 = vmatpush1.msra.mxu0 0.0
    %3674 = vmatprep.subr.mxu0 0.0
    %3675 = vmatpush1.msra.mxu0 0.0
    %3676 = vmatprep.subr.mxu0 0.0
    %3677 = vmatpush1.msra.mxu0 %v3641
    %3678 = vmatprep.subr.mxu0 0.0
    %3679 = vmatpush2.msra.mxu0 0.0
    %3680 = vmatprep.subr.mxu0 0.0
    %3681 = vmatpush2.msra.mxu0 0.0
    %3682 = vmatprep.subr.mxu0 0.0
    %3683 = vmatpush2.msra.mxu0 0.0
    %3684 = vmatprep.subr.mxu0 0.0
    %3685 = vmatpush2.msra.mxu0 0.0
    %3686 = vmatprep.subr.mxu0 0.0
    %3687 = vmatpush2.msra.mxu0 0.0
    %3688 = vmatprep.subr.mxu0 0.0
    %3689 = vmatpush2.msra.mxu0 0.0
    %3690 = vmatprep.subr.mxu0 0.0
    %3691 = vmatpush2.msra.mxu0 0.0
    %3692 = vmatprep.subr.mxu0 0.0
    %3693 = vmatpush2.msra.mxu0 0.0
    %3694 = vmatprep.subr.mxu0 0.0
    %3695 = vmatpush2.msra.mxu0 0.0
    %3696 = vmatprep.subr.mxu0 0.0
    %3697 = vmatpush2.msra.mxu0 0.0
    %3698 = vmatprep.subr.mxu0 0.0
    %3699 = vmatpush2.msra.mxu0 0.0
    %3700 = vmatprep.subr.mxu0 0.0
    %3701 = vmatpush2.msra.mxu0 0.0
    %3702 = vmatprep.subr.mxu0 0.0
    %3703 = vmatpush2.msra.mxu0 0.0
    %3704 = vmatprep.subr.mxu0 0.0
    %3705 = vmatpush2.msra.mxu0 0.0
    %3706 = vmatprep.subr.mxu0 0.0
    %3707 = vmatpush2.msra.mxu0 0.0
    %3708 = vmatprep.subr.mxu0 0.0
    %3709 = vmatpush2.msra.mxu0 0.0
    %3710 = vmatprep.mubr.f32.mxu0 0.0
    %3711 = vmatmul.mubr.f32.gmra.mxu0 %v3644
    %v3712 = vpop.f32.mrf.mxu0
    %v3713 = vadd.f32 0.0, %v3712
    %v3714 = vpop.f32.mrf.mxu0
    %3715 = vdwg.mxu0
    %v3716 = vadd.f32 %v3631, %v3713
    %v3717 = vld [vmem:[%s230] sm:$0xff]
    %3718 = vrot.lane.b32.xlu0 %v3633, 126
    %v3719 = vpop.permute.xlu0 %3718
    %3720 = vrot.lane.b32.xlu0 %v3634, 126
    %v3721 = vpop.permute.xlu0 %3720
    %v3722 = vsel %vm236, %v3719, %v3721
    %v3725 = vsel %vm68, %v3717, 0
    %3727 = vmatprep.subr.mxu0 0.0
    %3728 = vmatpush1.msra.mxu0 0.0
    %3729 = vmatprep.subr.mxu0 0.0
    %3730 = vmatpush1.msra.mxu0 0.0
    %3731 = vmatprep.subr.mxu0 0.0
    %3732 = vmatpush1.msra.mxu0 0.0
    %3733 = vmatprep.subr.mxu0 0.0
    %3734 = vmatpush1.msra.mxu0 0.0
    %3735 = vmatprep.subr.mxu0 0.0
    %3736 = vmatpush1.msra.mxu0 0.0
    %3737 = vmatprep.subr.mxu0 0.0
    %3738 = vmatpush1.msra.mxu0 0.0
    %3739 = vmatprep.subr.mxu0 0.0
    %3740 = vmatpush1.msra.mxu0 0.0
    %3741 = vmatprep.subr.mxu0 0.0
    %3742 = vmatpush1.msra.mxu0 0.0
    %3743 = vmatprep.subr.mxu0 0.0
    %3744 = vmatpush1.msra.mxu0 0.0
    %3745 = vmatprep.subr.mxu0 0.0
    %3746 = vmatpush1.msra.mxu0 0.0
    %3747 = vmatprep.subr.mxu0 0.0
    %3748 = vmatpush1.msra.mxu0 0.0
    %3749 = vmatprep.subr.mxu0 0.0
    %3750 = vmatpush1.msra.mxu0 0.0
    %3751 = vmatprep.subr.mxu0 0.0
    %3752 = vmatpush1.msra.mxu0 0.0
    %3753 = vmatprep.subr.mxu0 0.0
    %3754 = vmatpush1.msra.mxu0 0.0
    %3755 = vmatprep.subr.mxu0 0.0
    %3756 = vmatpush1.msra.mxu0 0.0
    %3757 = vmatprep.subr.mxu0 0.0
    %3758 = vmatpush1.msra.mxu0 %v3722
    %3759 = vmatprep.subr.mxu0 0.0
    %3760 = vmatpush2.msra.mxu0 0.0
    %3761 = vmatprep.subr.mxu0 0.0
    %3762 = vmatpush2.msra.mxu0 0.0
    %3763 = vmatprep.subr.mxu0 0.0
    %3764 = vmatpush2.msra.mxu0 0.0
    %3765 = vmatprep.subr.mxu0 0.0
    %3766 = vmatpush2.msra.mxu0 0.0
    %3767 = vmatprep.subr.mxu0 0.0
    %3768 = vmatpush2.msra.mxu0 0.0
    %3769 = vmatprep.subr.mxu0 0.0
    %3770 = vmatpush2.msra.mxu0 0.0
    %3771 = vmatprep.subr.mxu0 0.0
    %3772 = vmatpush2.msra.mxu0 0.0
    %3773 = vmatprep.subr.mxu0 0.0
    %3774 = vmatpush2.msra.mxu0 0.0
    %3775 = vmatprep.subr.mxu0 0.0
    %3776 = vmatpush2.msra.mxu0 0.0
    %3777 = vmatprep.subr.mxu0 0.0
    %3778 = vmatpush2.msra.mxu0 0.0
    %3779 = vmatprep.subr.mxu0 0.0
    %3780 = vmatpush2.msra.mxu0 0.0
    %3781 = vmatprep.subr.mxu0 0.0
    %3782 = vmatpush2.msra.mxu0 0.0
    %3783 = vmatprep.subr.mxu0 0.0
    %3784 = vmatpush2.msra.mxu0 0.0
    %3785 = vmatprep.subr.mxu0 0.0
    %3786 = vmatpush2.msra.mxu0 0.0
    %3787 = vmatprep.subr.mxu0 0.0
    %3788 = vmatpush2.msra.mxu0 0.0
    %3789 = vmatprep.subr.mxu0 0.0
    %3790 = vmatpush2.msra.mxu0 0.0
    %3791 = vmatprep.mubr.f32.mxu0 0.0
    %3792 = vmatmul.mubr.f32.gmra.mxu0 %v3725
    %v3793 = vpop.f32.mrf.mxu0
    %v3794 = vadd.f32 0.0, %v3793
    %v3795 = vpop.f32.mrf.mxu0
    %3796 = vdwg.mxu0
    %v3797 = vadd.f32 %v3716, %v3794
    %v3798 = vld [vmem:[%s313] sm:$0xff]
    %3799 = vrot.lane.b32.xlu0 %v3633, 125
    %v3800 = vpop.permute.xlu0 %3799
    %3801 = vrot.lane.b32.xlu0 %v3634, 125
    %v3802 = vpop.permute.xlu0 %3801
    %v3803 = vsel %vm319, %v3800, %v3802
    %v3806 = vsel %vm68, %v3798, 0
    %3808 = vmatprep.subr.mxu0 0.0
    %3809 = vmatpush1.msra.mxu0 0.0
    %3810 = vmatprep.subr.mxu0 0.0
    %3811 = vmatpush1.msra.mxu0 0.0
    %3812 = vmatprep.subr.mxu0 0.0
    %3813 = vmatpush1.msra.mxu0 0.0
    %3814 = vmatprep.subr.mxu0 0.0
    %3815 = vmatpush1.msra.mxu0 0.0
    %3816 = vmatprep.subr.mxu0 0.0
    %3817 = vmatpush1.msra.mxu0 0.0
    %3818 = vmatprep.subr.mxu0 0.0
    %3819 = vmatpush1.msra.mxu0 0.0
    %3820 = vmatprep.subr.mxu0 0.0
    %3821 = vmatpush1.msra.mxu0 0.0
    %3822 = vmatprep.subr.mxu0 0.0
    %3823 = vmatpush1.msra.mxu0 0.0
    %3824 = vmatprep.subr.mxu0 0.0
    %3825 = vmatpush1.msra.mxu0 0.0
    %3826 = vmatprep.subr.mxu0 0.0
    %3827 = vmatpush1.msra.mxu0 0.0
    %3828 = vmatprep.subr.mxu0 0.0
    %3829 = vmatpush1.msra.mxu0 0.0
    %3830 = vmatprep.subr.mxu0 0.0
    %3831 = vmatpush1.msra.mxu0 0.0
    %3832 = vmatprep.subr.mxu0 0.0
    %3833 = vmatpush1.msra.mxu0 0.0
    %3834 = vmatprep.subr.mxu0 0.0
    %3835 = vmatpush1.msra.mxu0 0.0
    %3836 = vmatprep.subr.mxu0 0.0
    %3837 = vmatpush1.msra.mxu0 0.0
    %3838 = vmatprep.subr.mxu0 0.0
    %3839 = vmatpush1.msra.mxu0 %v3803
    %3840 = vmatprep.subr.mxu0 0.0
    %3841 = vmatpush2.msra.mxu0 0.0
    %3842 = vmatprep.subr.mxu0 0.0
    %3843 = vmatpush2.msra.mxu0 0.0
    %3844 = vmatprep.subr.mxu0 0.0
    %3845 = vmatpush2.msra.mxu0 0.0
    %3846 = vmatprep.subr.mxu0 0.0
    %3847 = vmatpush2.msra.mxu0 0.0
    %3848 = vmatprep.subr.mxu0 0.0
    %3849 = vmatpush2.msra.mxu0 0.0
    %3850 = vmatprep.subr.mxu0 0.0
    %3851 = vmatpush2.msra.mxu0 0.0
    %3852 = vmatprep.subr.mxu0 0.0
    %3853 = vmatpush2.msra.mxu0 0.0
    %3854 = vmatprep.subr.mxu0 0.0
    %3855 = vmatpush2.msra.mxu0 0.0
    %3856 = vmatprep.subr.mxu0 0.0
    %3857 = vmatpush2.msra.mxu0 0.0
    %3858 = vmatprep.subr.mxu0 0.0
    %3859 = vmatpush2.msra.mxu0 0.0
    %3860 = vmatprep.subr.mxu0 0.0
    %3861 = vmatpush2.msra.mxu0 0.0
    %3862 = vmatprep.subr.mxu0 0.0
    %3863 = vmatpush2.msra.mxu0 0.0
    %3864 = vmatprep.subr.mxu0 0.0
    %3865 = vmatpush2.msra.mxu0 0.0
    %3866 = vmatprep.subr.mxu0 0.0
    %3867 = vmatpush2.msra.mxu0 0.0
    %3868 = vmatprep.subr.mxu0 0.0
    %3869 = vmatpush2.msra.mxu0 0.0
    %3870 = vmatprep.subr.mxu0 0.0
    %3871 = vmatpush2.msra.mxu0 0.0
    %3872 = vmatprep.mubr.f32.mxu0 0.0
    %3873 = vmatmul.mubr.f32.gmra.mxu0 %v3806
    %v3874 = vpop.f32.mrf.mxu0
    %v3875 = vadd.f32 0.0, %v3874
    %v3876 = vpop.f32.mrf.mxu0
    %3877 = vdwg.mxu0
    %v3878 = vadd.f32 %v3797, %v3875
    %v3879 = vld [vmem:[%s396] sm:$0xff]
    %3880 = vrot.lane.b32.xlu0 %v3633, 124
    %v3881 = vpop.permute.xlu0 %3880
    %3882 = vrot.lane.b32.xlu0 %v3634, 124
    %v3883 = vpop.permute.xlu0 %3882
    %v3884 = vsel %vm402, %v3881, %v3883
    %v3887 = vsel %vm68, %v3879, 0
    %3889 = vmatprep.subr.mxu0 0.0
    %3890 = vmatpush1.msra.mxu0 0.0
    %3891 = vmatprep.subr.mxu0 0.0
    %3892 = vmatpush1.msra.mxu0 0.0
    %3893 = vmatprep.subr.mxu0 0.0
    %3894 = vmatpush1.msra.mxu0 0.0
    %3895 = vmatprep.subr.mxu0 0.0
    %3896 = vmatpush1.msra.mxu0 0.0
    %3897 = vmatprep.subr.mxu0 0.0
    %3898 = vmatpush1.msra.mxu0 0.0
    %3899 = vmatprep.subr.mxu0 0.0
    %3900 = vmatpush1.msra.mxu0 0.0
    %3901 = vmatprep.subr.mxu0 0.0
    %3902 = vmatpush1.msra.mxu0 0.0
    %3903 = vmatprep.subr.mxu0 0.0
    %3904 = vmatpush1.msra.mxu0 0.0
    %3905 = vmatprep.subr.mxu0 0.0
    %3906 = vmatpush1.msra.mxu0 0.0
    %3907 = vmatprep.subr.mxu0 0.0
    %3908 = vmatpush1.msra.mxu0 0.0
    %3909 = vmatprep.subr.mxu0 0.0
    %3910 = vmatpush1.msra.mxu0 0.0
    %3911 = vmatprep.subr.mxu0 0.0
    %3912 = vmatpush1.msra.mxu0 0.0
    %3913 = vmatprep.subr.mxu0 0.0
    %3914 = vmatpush1.msra.mxu0 0.0
    %3915 = vmatprep.subr.mxu0 0.0
    %3916 = vmatpush1.msra.mxu0 0.0
    %3917 = vmatprep.subr.mxu0 0.0
    %3918 = vmatpush1.msra.mxu0 0.0
    %3919 = vmatprep.subr.mxu0 0.0
    %3920 = vmatpush1.msra.mxu0 %v3884
    %3921 = vmatprep.subr.mxu0 0.0
    %3922 = vmatpush2.msra.mxu0 0.0
    %3923 = vmatprep.subr.mxu0 0.0
    %3924 = vmatpush2.msra.mxu0 0.0
    %3925 = vmatprep.subr.mxu0 0.0
    %3926 = vmatpush2.msra.mxu0 0.0
    %3927 = vmatprep.subr.mxu0 0.0
    %3928 = vmatpush2.msra.mxu0 0.0
    %3929 = vmatprep.subr.mxu0 0.0
    %3930 = vmatpush2.msra.mxu0 0.0
    %3931 = vmatprep.subr.mxu0 0.0
    %3932 = vmatpush2.msra.mxu0 0.0
    %3933 = vmatprep.subr.mxu0 0.0
    %3934 = vmatpush2.msra.mxu0 0.0
    %3935 = vmatprep.subr.mxu0 0.0
    %3936 = vmatpush2.msra.mxu0 0.0
    %3937 = vmatprep.subr.mxu0 0.0
    %3938 = vmatpush2.msra.mxu0 0.0
    %3939 = vmatprep.subr.mxu0 0.0
    %3940 = vmatpush2.msra.mxu0 0.0
    %3941 = vmatprep.subr.mxu0 0.0
    %3942 = vmatpush2.msra.mxu0 0.0
    %3943 = vmatprep.subr.mxu0 0.0
    %3944 = vmatpush2.msra.mxu0 0.0
    %3945 = vmatprep.subr.mxu0 0.0
    %3946 = vmatpush2.msra.mxu0 0.0
    %3947 = vmatprep.subr.mxu0 0.0
    %3948 = vmatpush2.msra.mxu0 0.0
    %3949 = vmatprep.subr.mxu0 0.0
    %3950 = vmatpush2.msra.mxu0 0.0
    %3951 = vmatprep.subr.mxu0 0.0
    %3952 = vmatpush2.msra.mxu0 0.0
    %3953 = vmatprep.mubr.f32.mxu0 0.0
    %3954 = vmatmul.mubr.f32.gmra.mxu0 %v3887
    %v3955 = vpop.f32.mrf.mxu0
    %v3956 = vadd.f32 0.0, %v3955
    %v3957 = vpop.f32.mrf.mxu0
    %3958 = vdwg.mxu0
    %v3959 = vadd.f32 %v3878, %v3956
    %v3960 = vld [vmem:[%s479] sm:$0xff]
    %3961 = vrot.lane.b32.xlu0 %v3633, 123
    %v3962 = vpop.permute.xlu0 %3961
    %3963 = vrot.lane.b32.xlu0 %v3634, 123
    %v3964 = vpop.permute.xlu0 %3963
    %v3965 = vsel %vm485, %v3962, %v3964
    %v3968 = vsel %vm68, %v3960, 0
    %3970 = vmatprep.subr.mxu0 0.0
    %3971 = vmatpush1.msra.mxu0 0.0
    %3972 = vmatprep.subr.mxu0 0.0
    %3973 = vmatpush1.msra.mxu0 0.0
    %3974 = vmatprep.subr.mxu0 0.0
    %3975 = vmatpush1.msra.mxu0 0.0
    %3976 = vmatprep.subr.mxu0 0.0
    %3977 = vmatpush1.msra.mxu0 0.0
    %3978 = vmatprep.subr.mxu0 0.0
    %3979 = vmatpush1.msra.mxu0 0.0
    %3980 = vmatprep.subr.mxu0 0.0
    %3981 = vmatpush1.msra.mxu0 0.0
    %3982 = vmatprep.subr.mxu0 0.0
    %3983 = vmatpush1.msra.mxu0 0.0
    %3984 = vmatprep.subr.mxu0 0.0
    %3985 = vmatpush1.msra.mxu0 0.0
    %3986 = vmatprep.subr.mxu0 0.0
    %3987 = vmatpush1.msra.mxu0 0.0
    %3988 = vmatprep.subr.mxu0 0.0
    %3989 = vmatpush1.msra.mxu0 0.0
    %3990 = vmatprep.subr.mxu0 0.0
    %3991 = vmatpush1.msra.mxu0 0.0
    %3992 = vmatprep.subr.mxu0 0.0
    %3993 = vmatpush1.msra.mxu0 0.0
    %3994 = vmatprep.subr.mxu0 0.0
    %3995 = vmatpush1.msra.mxu0 0.0
    %3996 = vmatprep.subr.mxu0 0.0
    %3997 = vmatpush1.msra.mxu0 0.0
    %3998 = vmatprep.subr.mxu0 0.0
    %3999 = vmatpush1.msra.mxu0 0.0
    %4000 = vmatprep.subr.mxu0 0.0
    %4001 = vmatpush1.msra.mxu0 %v3965
    %4002 = vmatprep.subr.mxu0 0.0
    %4003 = vmatpush2.msra.mxu0 0.0
    %4004 = vmatprep.subr.mxu0 0.0
    %4005 = vmatpush2.msra.mxu0 0.0
    %4006 = vmatprep.subr.mxu0 0.0
    %4007 = vmatpush2.msra.mxu0 0.0
    %4008 = vmatprep.subr.mxu0 0.0
    %4009 = vmatpush2.msra.mxu0 0.0
    %4010 = vmatprep.subr.mxu0 0.0
    %4011 = vmatpush2.msra.mxu0 0.0
    %4012 = vmatprep.subr.mxu0 0.0
    %4013 = vmatpush2.msra.mxu0 0.0
    %4014 = vmatprep.subr.mxu0 0.0
    %4015 = vmatpush2.msra.mxu0 0.0
    %4016 = vmatprep.subr.mxu0 0.0
    %4017 = vmatpush2.msra.mxu0 0.0
    %4018 = vmatprep.subr.mxu0 0.0
    %4019 = vmatpush2.msra.mxu0 0.0
    %4020 = vmatprep.subr.mxu0 0.0
    %4021 = vmatpush2.msra.mxu0 0.0
    %4022 = vmatprep.subr.mxu0 0.0
    %4023 = vmatpush2.msra.mxu0 0.0
    %4024 = vmatprep.subr.mxu0 0.0
    %4025 = vmatpush2.msra.mxu0 0.0
    %4026 = vmatprep.subr.mxu0 0.0
    %4027 = vmatpush2.msra.mxu0 0.0
    %4028 = vmatprep.subr.mxu0 0.0
    %4029 = vmatpush2.msra.mxu0 0.0
    %4030 = vmatprep.subr.mxu0 0.0
    %4031 = vmatpush2.msra.mxu0 0.0
    %4032 = vmatprep.subr.mxu0 0.0
    %4033 = vmatpush2.msra.mxu0 0.0
    %4034 = vmatprep.mubr.f32.mxu0 0.0
    %4035 = vmatmul.mubr.f32.gmra.mxu0 %v3968
    %v4036 = vpop.f32.mrf.mxu0
    %v4037 = vadd.f32 0.0, %v4036
    %v4038 = vpop.f32.mrf.mxu0
    %4039 = vdwg.mxu0
    %v4040 = vadd.f32 %v3959, %v4037
    %v4041 = vld [vmem:[%s562] sm:$0xff]
    %4042 = vrot.lane.b32.xlu0 %v3633, 122
    %v4043 = vpop.permute.xlu0 %4042
    %4044 = vrot.lane.b32.xlu0 %v3634, 122
    %v4045 = vpop.permute.xlu0 %4044
    %v4046 = vsel %vm568, %v4043, %v4045
    %v4049 = vsel %vm68, %v4041, 0
    %4051 = vmatprep.subr.mxu0 0.0
    %4052 = vmatpush1.msra.mxu0 0.0
    %4053 = vmatprep.subr.mxu0 0.0
    %4054 = vmatpush1.msra.mxu0 0.0
    %4055 = vmatprep.subr.mxu0 0.0
    %4056 = vmatpush1.msra.mxu0 0.0
    %4057 = vmatprep.subr.mxu0 0.0
    %4058 = vmatpush1.msra.mxu0 0.0
    %4059 = vmatprep.subr.mxu0 0.0
    %4060 = vmatpush1.msra.mxu0 0.0
    %4061 = vmatprep.subr.mxu0 0.0
    %4062 = vmatpush1.msra.mxu0 0.0
    %4063 = vmatprep.subr.mxu0 0.0
    %4064 = vmatpush1.msra.mxu0 0.0
    %4065 = vmatprep.subr.mxu0 0.0
    %4066 = vmatpush1.msra.mxu0 0.0
    %4067 = vmatprep.subr.mxu0 0.0
    %4068 = vmatpush1.msra.mxu0 0.0
    %4069 = vmatprep.subr.mxu0 0.0
    %4070 = vmatpush1.msra.mxu0 0.0
    %4071 = vmatprep.subr.mxu0 0.0
    %4072 = vmatpush1.msra.mxu0 0.0
    %4073 = vmatprep.subr.mxu0 0.0
    %4074 = vmatpush1.msra.mxu0 0.0
    %4075 = vmatprep.subr.mxu0 0.0
    %4076 = vmatpush1.msra.mxu0 0.0
    %4077 = vmatprep.subr.mxu0 0.0
    %4078 = vmatpush1.msra.mxu0 0.0
    %4079 = vmatprep.subr.mxu0 0.0
    %4080 = vmatpush1.msra.mxu0 0.0
    %4081 = vmatprep.subr.mxu0 0.0
    %4082 = vmatpush1.msra.mxu0 %v4046
    %4083 = vmatprep.subr.mxu0 0.0
    %4084 = vmatpush2.msra.mxu0 0.0
    %4085 = vmatprep.subr.mxu0 0.0
    %4086 = vmatpush2.msra.mxu0 0.0
    %4087 = vmatprep.subr.mxu0 0.0
    %4088 = vmatpush2.msra.mxu0 0.0
    %4089 = vmatprep.subr.mxu0 0.0
    %4090 = vmatpush2.msra.mxu0 0.0
    %4091 = vmatprep.subr.mxu0 0.0
    %4092 = vmatpush2.msra.mxu0 0.0
    %4093 = vmatprep.subr.mxu0 0.0
    %4094 = vmatpush2.msra.mxu0 0.0
    %4095 = vmatprep.subr.mxu0 0.0
    %4096 = vmatpush2.msra.mxu0 0.0
    %4097 = vmatprep.subr.mxu0 0.0
    %4098 = vmatpush2.msra.mxu0 0.0
    %4099 = vmatprep.subr.mxu0 0.0
    %4100 = vmatpush2.msra.mxu0 0.0
    %4101 = vmatprep.subr.mxu0 0.0
    %4102 = vmatpush2.msra.mxu0 0.0
    %4103 = vmatprep.subr.mxu0 0.0
    %4104 = vmatpush2.msra.mxu0 0.0
    %4105 = vmatprep.subr.mxu0 0.0
    %4106 = vmatpush2.msra.mxu0 0.0
    %4107 = vmatprep.subr.mxu0 0.0
    %4108 = vmatpush2.msra.mxu0 0.0
    %4109 = vmatprep.subr.mxu0 0.0
    %4110 = vmatpush2.msra.mxu0 0.0
    %4111 = vmatprep.subr.mxu0 0.0
    %4112 = vmatpush2.msra.mxu0 0.0
    %4113 = vmatprep.subr.mxu0 0.0
    %4114 = vmatpush2.msra.mxu0 0.0
    %4115 = vmatprep.mubr.f32.mxu0 0.0
    %4116 = vmatmul.mubr.f32.gmra.mxu0 %v4049
    %v4117 = vpop.f32.mrf.mxu0
    %v4118 = vadd.f32 0.0, %v4117
    %v4119 = vpop.f32.mrf.mxu0
    %4120 = vdwg.mxu0
    %v4121 = vadd.f32 %v4040, %v4118
    %v4122 = vld [vmem:[%s645] sm:$0xff]
    %4123 = vrot.lane.b32.xlu0 %v3633, 121
    %v4124 = vpop.permute.xlu0 %4123
    %4125 = vrot.lane.b32.xlu0 %v3634, 121
    %v4126 = vpop.permute.xlu0 %4125
    %v4127 = vsel %vm651, %v4124, %v4126
    %v4130 = vsel %vm68, %v4122, 0
    %4132 = vmatprep.subr.mxu0 0.0
    %4133 = vmatpush1.msra.mxu0 0.0
    %4134 = vmatprep.subr.mxu0 0.0
    %4135 = vmatpush1.msra.mxu0 0.0
    %4136 = vmatprep.subr.mxu0 0.0
    %4137 = vmatpush1.msra.mxu0 0.0
    %4138 = vmatprep.subr.mxu0 0.0
    %4139 = vmatpush1.msra.mxu0 0.0
    %4140 = vmatprep.subr.mxu0 0.0
    %4141 = vmatpush1.msra.mxu0 0.0
    %4142 = vmatprep.subr.mxu0 0.0
    %4143 = vmatpush1.msra.mxu0 0.0
    %4144 = vmatprep.subr.mxu0 0.0
    %4145 = vmatpush1.msra.mxu0 0.0
    %4146 = vmatprep.subr.mxu0 0.0
    %4147 = vmatpush1.msra.mxu0 0.0
    %4148 = vmatprep.subr.mxu0 0.0
    %4149 = vmatpush1.msra.mxu0 0.0
    %4150 = vmatprep.subr.mxu0 0.0
    %4151 = vmatpush1.msra.mxu0 0.0
    %4152 = vmatprep.subr.mxu0 0.0
    %4153 = vmatpush1.msra.mxu0 0.0
    %4154 = vmatprep.subr.mxu0 0.0
    %4155 = vmatpush1.msra.mxu0 0.0
    %4156 = vmatprep.subr.mxu0 0.0
    %4157 = vmatpush1.msra.mxu0 0.0
    %4158 = vmatprep.subr.mxu0 0.0
    %4159 = vmatpush1.msra.mxu0 0.0
    %4160 = vmatprep.subr.mxu0 0.0
    %4161 = vmatpush1.msra.mxu0 0.0
    %4162 = vmatprep.subr.mxu0 0.0
    %4163 = vmatpush1.msra.mxu0 %v4127
    %4164 = vmatprep.subr.mxu0 0.0
    %4165 = vmatpush2.msra.mxu0 0.0
    %4166 = vmatprep.subr.mxu0 0.0
    %4167 = vmatpush2.msra.mxu0 0.0
    %4168 = vmatprep.subr.mxu0 0.0
    %4169 = vmatpush2.msra.mxu0 0.0
    %4170 = vmatprep.subr.mxu0 0.0
    %4171 = vmatpush2.msra.mxu0 0.0
    %4172 = vmatprep.subr.mxu0 0.0
    %4173 = vmatpush2.msra.mxu0 0.0
    %4174 = vmatprep.subr.mxu0 0.0
    %4175 = vmatpush2.msra.mxu0 0.0
    %4176 = vmatprep.subr.mxu0 0.0
    %4177 = vmatpush2.msra.mxu0 0.0
    %4178 = vmatprep.subr.mxu0 0.0
    %4179 = vmatpush2.msra.mxu0 0.0
    %4180 = vmatprep.subr.mxu0 0.0
    %4181 = vmatpush2.msra.mxu0 0.0
    %4182 = vmatprep.subr.mxu0 0.0
    %4183 = vmatpush2.msra.mxu0 0.0
    %4184 = vmatprep.subr.mxu0 0.0
    %4185 = vmatpush2.msra.mxu0 0.0
    %4186 = vmatprep.subr.mxu0 0.0
    %4187 = vmatpush2.msra.mxu0 0.0
    %4188 = vmatprep.subr.mxu0 0.0
    %4189 = vmatpush2.msra.mxu0 0.0
    %4190 = vmatprep.subr.mxu0 0.0
    %4191 = vmatpush2.msra.mxu0 0.0
    %4192 = vmatprep.subr.mxu0 0.0
    %4193 = vmatpush2.msra.mxu0 0.0
    %4194 = vmatprep.subr.mxu0 0.0
    %4195 = vmatpush2.msra.mxu0 0.0
    %4196 = vmatprep.mubr.f32.mxu0 0.0
    %4197 = vmatmul.mubr.f32.gmra.mxu0 %v4130
    %v4198 = vpop.f32.mrf.mxu0
    %v4199 = vadd.f32 0.0, %v4198
    %v4200 = vpop.f32.mrf.mxu0
    %4201 = vdwg.mxu0
    %v4202 = vadd.f32 %v4121, %v4199
    %v4203 = vld [vmem:[%s728] sm:$0xff]
    %4204 = vrot.lane.b32.xlu0 %v3633, 120
    %v4205 = vpop.permute.xlu0 %4204
    %4206 = vrot.lane.b32.xlu0 %v3634, 120
    %v4207 = vpop.permute.xlu0 %4206
    %v4208 = vsel %vm734, %v4205, %v4207
    %v4211 = vsel %vm68, %v4203, 0
    %4213 = vmatprep.subr.mxu0 0.0
    %4214 = vmatpush1.msra.mxu0 0.0
    %4215 = vmatprep.subr.mxu0 0.0
    %4216 = vmatpush1.msra.mxu0 0.0
    %4217 = vmatprep.subr.mxu0 0.0
    %4218 = vmatpush1.msra.mxu0 0.0
    %4219 = vmatprep.subr.mxu0 0.0
    %4220 = vmatpush1.msra.mxu0 0.0
    %4221 = vmatprep.subr.mxu0 0.0
    %4222 = vmatpush1.msra.mxu0 0.0
    %4223 = vmatprep.subr.mxu0 0.0
    %4224 = vmatpush1.msra.mxu0 0.0
    %4225 = vmatprep.subr.mxu0 0.0
    %4226 = vmatpush1.msra.mxu0 0.0
    %4227 = vmatprep.subr.mxu0 0.0
    %4228 = vmatpush1.msra.mxu0 0.0
    %4229 = vmatprep.subr.mxu0 0.0
    %4230 = vmatpush1.msra.mxu0 0.0
    %4231 = vmatprep.subr.mxu0 0.0
    %4232 = vmatpush1.msra.mxu0 0.0
    %4233 = vmatprep.subr.mxu0 0.0
    %4234 = vmatpush1.msra.mxu0 0.0
    %4235 = vmatprep.subr.mxu0 0.0
    %4236 = vmatpush1.msra.mxu0 0.0
    %4237 = vmatprep.subr.mxu0 0.0
    %4238 = vmatpush1.msra.mxu0 0.0
    %4239 = vmatprep.subr.mxu0 0.0
    %4240 = vmatpush1.msra.mxu0 0.0
    %4241 = vmatprep.subr.mxu0 0.0
    %4242 = vmatpush1.msra.mxu0 0.0
    %4243 = vmatprep.subr.mxu0 0.0
    %4244 = vmatpush1.msra.mxu0 %v4208
    %4245 = vmatprep.subr.mxu0 0.0
    %4246 = vmatpush2.msra.mxu0 0.0
    %4247 = vmatprep.subr.mxu0 0.0
    %4248 = vmatpush2.msra.mxu0 0.0
    %4249 = vmatprep.subr.mxu0 0.0
    %4250 = vmatpush2.msra.mxu0 0.0
    %4251 = vmatprep.subr.mxu0 0.0
    %4252 = vmatpush2.msra.mxu0 0.0
    %4253 = vmatprep.subr.mxu0 0.0
    %4254 = vmatpush2.msra.mxu0 0.0
    %4255 = vmatprep.subr.mxu0 0.0
    %4256 = vmatpush2.msra.mxu0 0.0
    %4257 = vmatprep.subr.mxu0 0.0
    %4258 = vmatpush2.msra.mxu0 0.0
    %4259 = vmatprep.subr.mxu0 0.0
    %4260 = vmatpush2.msra.mxu0 0.0
    %4261 = vmatprep.subr.mxu0 0.0
    %4262 = vmatpush2.msra.mxu0 0.0
    %4263 = vmatprep.subr.mxu0 0.0
    %4264 = vmatpush2.msra.mxu0 0.0
    %4265 = vmatprep.subr.mxu0 0.0
    %4266 = vmatpush2.msra.mxu0 0.0
    %4267 = vmatprep.subr.mxu0 0.0
    %4268 = vmatpush2.msra.mxu0 0.0
    %4269 = vmatprep.subr.mxu0 0.0
    %4270 = vmatpush2.msra.mxu0 0.0
    %4271 = vmatprep.subr.mxu0 0.0
    %4272 = vmatpush2.msra.mxu0 0.0
    %4273 = vmatprep.subr.mxu0 0.0
    %4274 = vmatpush2.msra.mxu0 0.0
    %4275 = vmatprep.subr.mxu0 0.0
    %4276 = vmatpush2.msra.mxu0 0.0
    %4277 = vmatprep.mubr.f32.mxu0 0.0
    %4278 = vmatmul.mubr.f32.gmra.mxu0 %v4211
    %v4279 = vpop.f32.mrf.mxu0
    %v4280 = vadd.f32 0.0, %v4279
    %v4281 = vpop.f32.mrf.mxu0
    %4282 = vdwg.mxu0
    %v4283 = vadd.f32 %v4202, %v4280
    %v4284 = vld [vmem:[%s811] sm:$0xff]
    %4285 = vrot.lane.b32.xlu0 %v3633, 119
    %v4286 = vpop.permute.xlu0 %4285
    %4287 = vrot.lane.b32.xlu0 %v3634, 119
    %v4288 = vpop.permute.xlu0 %4287
    %v4289 = vsel %vm817, %v4286, %v4288
    %v4292 = vsel %vm68, %v4284, 0
    %4294 = vmatprep.subr.mxu0 0.0
    %4295 = vmatpush1.msra.mxu0 0.0
    %4296 = vmatprep.subr.mxu0 0.0
    %4297 = vmatpush1.msra.mxu0 0.0
    %4298 = vmatprep.subr.mxu0 0.0
    %4299 = vmatpush1.msra.mxu0 0.0
    %4300 = vmatprep.subr.mxu0 0.0
    %4301 = vmatpush1.msra.mxu0 0.0
    %4302 = vmatprep.subr.mxu0 0.0
    %4303 = vmatpush1.msra.mxu0 0.0
    %4304 = vmatprep.subr.mxu0 0.0
    %4305 = vmatpush1.msra.mxu0 0.0
    %4306 = vmatprep.subr.mxu0 0.0
    %4307 = vmatpush1.msra.mxu0 0.0
    %4308 = vmatprep.subr.mxu0 0.0
    %4309 = vmatpush1.msra.mxu0 0.0
    %4310 = vmatprep.subr.mxu0 0.0
    %4311 = vmatpush1.msra.mxu0 0.0
    %4312 = vmatprep.subr.mxu0 0.0
    %4313 = vmatpush1.msra.mxu0 0.0
    %4314 = vmatprep.subr.mxu0 0.0
    %4315 = vmatpush1.msra.mxu0 0.0
    %4316 = vmatprep.subr.mxu0 0.0
    %4317 = vmatpush1.msra.mxu0 0.0
    %4318 = vmatprep.subr.mxu0 0.0
    %4319 = vmatpush1.msra.mxu0 0.0
    %4320 = vmatprep.subr.mxu0 0.0
    %4321 = vmatpush1.msra.mxu0 0.0
    %4322 = vmatprep.subr.mxu0 0.0
    %4323 = vmatpush1.msra.mxu0 0.0
    %4324 = vmatprep.subr.mxu0 0.0
    %4325 = vmatpush1.msra.mxu0 %v4289
    %4326 = vmatprep.subr.mxu0 0.0
    %4327 = vmatpush2.msra.mxu0 0.0
    %4328 = vmatprep.subr.mxu0 0.0
    %4329 = vmatpush2.msra.mxu0 0.0
    %4330 = vmatprep.subr.mxu0 0.0
    %4331 = vmatpush2.msra.mxu0 0.0
    %4332 = vmatprep.subr.mxu0 0.0
    %4333 = vmatpush2.msra.mxu0 0.0
    %4334 = vmatprep.subr.mxu0 0.0
    %4335 = vmatpush2.msra.mxu0 0.0
    %4336 = vmatprep.subr.mxu0 0.0
    %4337 = vmatpush2.msra.mxu0 0.0
    %4338 = vmatprep.subr.mxu0 0.0
    %4339 = vmatpush2.msra.mxu0 0.0
    %4340 = vmatprep.subr.mxu0 0.0
    %4341 = vmatpush2.msra.mxu0 0.0
    %4342 = vmatprep.subr.mxu0 0.0
    %4343 = vmatpush2.msra.mxu0 0.0
    %4344 = vmatprep.subr.mxu0 0.0
    %4345 = vmatpush2.msra.mxu0 0.0
    %4346 = vmatprep.subr.mxu0 0.0
    %4347 = vmatpush2.msra.mxu0 0.0
    %4348 = vmatprep.subr.mxu0 0.0
    %4349 = vmatpush2.msra.mxu0 0.0
    %4350 = vmatprep.subr.mxu0 0.0
    %4351 = vmatpush2.msra.mxu0 0.0
    %4352 = vmatprep.subr.mxu0 0.0
    %4353 = vmatpush2.msra.mxu0 0.0
    %4354 = vmatprep.subr.mxu0 0.0
    %4355 = vmatpush2.msra.mxu0 0.0
    %4356 = vmatprep.subr.mxu0 0.0
    %4357 = vmatpush2.msra.mxu0 0.0
    %4358 = vmatprep.mubr.f32.mxu0 0.0
    %4359 = vmatmul.mubr.f32.gmra.mxu0 %v4292
    %v4360 = vpop.f32.mrf.mxu0
    %v4361 = vadd.f32 0.0, %v4360
    %v4362 = vpop.f32.mrf.mxu0
    %4363 = vdwg.mxu0
    %v4364 = vadd.f32 %v4283, %v4361
    %v4365 = vld [vmem:[%s894] sm:$0xff]
    %4366 = vrot.lane.b32.xlu0 %v3633, 118
    %v4367 = vpop.permute.xlu0 %4366
    %4368 = vrot.lane.b32.xlu0 %v3634, 118
    %v4369 = vpop.permute.xlu0 %4368
    %v4370 = vsel %vm900, %v4367, %v4369
    %v4373 = vsel %vm68, %v4365, 0
    %4375 = vmatprep.subr.mxu0 0.0
    %4376 = vmatpush1.msra.mxu0 0.0
    %4377 = vmatprep.subr.mxu0 0.0
    %4378 = vmatpush1.msra.mxu0 0.0
    %4379 = vmatprep.subr.mxu0 0.0
    %4380 = vmatpush1.msra.mxu0 0.0
    %4381 = vmatprep.subr.mxu0 0.0
    %4382 = vmatpush1.msra.mxu0 0.0
    %4383 = vmatprep.subr.mxu0 0.0
    %4384 = vmatpush1.msra.mxu0 0.0
    %4385 = vmatprep.subr.mxu0 0.0
    %4386 = vmatpush1.msra.mxu0 0.0
    %4387 = vmatprep.subr.mxu0 0.0
    %4388 = vmatpush1.msra.mxu0 0.0
    %4389 = vmatprep.subr.mxu0 0.0
    %4390 = vmatpush1.msra.mxu0 0.0
    %4391 = vmatprep.subr.mxu0 0.0
    %4392 = vmatpush1.msra.mxu0 0.0
    %4393 = vmatprep.subr.mxu0 0.0
    %4394 = vmatpush1.msra.mxu0 0.0
    %4395 = vmatprep.subr.mxu0 0.0
    %4396 = vmatpush1.msra.mxu0 0.0
    %4397 = vmatprep.subr.mxu0 0.0
    %4398 = vmatpush1.msra.mxu0 0.0
    %4399 = vmatprep.subr.mxu0 0.0
    %4400 = vmatpush1.msra.mxu0 0.0
    %4401 = vmatprep.subr.mxu0 0.0
    %4402 = vmatpush1.msra.mxu0 0.0
    %4403 = vmatprep.subr.mxu0 0.0
    %4404 = vmatpush1.msra.mxu0 0.0
    %4405 = vmatprep.subr.mxu0 0.0
    %4406 = vmatpush1.msra.mxu0 %v4370
    %4407 = vmatprep.subr.mxu0 0.0
    %4408 = vmatpush2.msra.mxu0 0.0
    %4409 = vmatprep.subr.mxu0 0.0
    %4410 = vmatpush2.msra.mxu0 0.0
    %4411 = vmatprep.subr.mxu0 0.0
    %4412 = vmatpush2.msra.mxu0 0.0
    %4413 = vmatprep.subr.mxu0 0.0
    %4414 = vmatpush2.msra.mxu0 0.0
    %4415 = vmatprep.subr.mxu0 0.0
    %4416 = vmatpush2.msra.mxu0 0.0
    %4417 = vmatprep.subr.mxu0 0.0
    %4418 = vmatpush2.msra.mxu0 0.0
    %4419 = vmatprep.subr.mxu0 0.0
    %4420 = vmatpush2.msra.mxu0 0.0
    %4421 = vmatprep.subr.mxu0 0.0
    %4422 = vmatpush2.msra.mxu0 0.0
    %4423 = vmatprep.subr.mxu0 0.0
    %4424 = vmatpush2.msra.mxu0 0.0
    %4425 = vmatprep.subr.mxu0 0.0
    %4426 = vmatpush2.msra.mxu0 0.0
    %4427 = vmatprep.subr.mxu0 0.0
    %4428 = vmatpush2.msra.mxu0 0.0
    %4429 = vmatprep.subr.mxu0 0.0
    %4430 = vmatpush2.msra.mxu0 0.0
    %4431 = vmatprep.subr.mxu0 0.0
    %4432 = vmatpush2.msra.mxu0 0.0
    %4433 = vmatprep.subr.mxu0 0.0
    %4434 = vmatpush2.msra.mxu0 0.0
    %4435 = vmatprep.subr.mxu0 0.0
    %4436 = vmatpush2.msra.mxu0 0.0
    %4437 = vmatprep.subr.mxu0 0.0
    %4438 = vmatpush2.msra.mxu0 0.0
    %4439 = vmatprep.mubr.f32.mxu0 0.0
    %4440 = vmatmul.mubr.f32.gmra.mxu0 %v4373
    %v4441 = vpop.f32.mrf.mxu0
    %v4442 = vadd.f32 0.0, %v4441
    %v4443 = vpop.f32.mrf.mxu0
    %4444 = vdwg.mxu0
    %v4445 = vadd.f32 %v4364, %v4442
    %v4446 = vld [vmem:[%s977] sm:$0xff]
    %4447 = vrot.lane.b32.xlu0 %v3633, 117
    %v4448 = vpop.permute.xlu0 %4447
    %4449 = vrot.lane.b32.xlu0 %v3634, 117
    %v4450 = vpop.permute.xlu0 %4449
    %v4451 = vsel %vm983, %v4448, %v4450
    %v4454 = vsel %vm68, %v4446, 0
    %4456 = vmatprep.subr.mxu0 0.0
    %4457 = vmatpush1.msra.mxu0 0.0
    %4458 = vmatprep.subr.mxu0 0.0
    %4459 = vmatpush1.msra.mxu0 0.0
    %4460 = vmatprep.subr.mxu0 0.0
    %4461 = vmatpush1.msra.mxu0 0.0
    %4462 = vmatprep.subr.mxu0 0.0
    %4463 = vmatpush1.msra.mxu0 0.0
    %4464 = vmatprep.subr.mxu0 0.0
    %4465 = vmatpush1.msra.mxu0 0.0
    %4466 = vmatprep.subr.mxu0 0.0
    %4467 = vmatpush1.msra.mxu0 0.0
    %4468 = vmatprep.subr.mxu0 0.0
    %4469 = vmatpush1.msra.mxu0 0.0
    %4470 = vmatprep.subr.mxu0 0.0
    %4471 = vmatpush1.msra.mxu0 0.0
    %4472 = vmatprep.subr.mxu0 0.0
    %4473 = vmatpush1.msra.mxu0 0.0
    %4474 = vmatprep.subr.mxu0 0.0
    %4475 = vmatpush1.msra.mxu0 0.0
    %4476 = vmatprep.subr.mxu0 0.0
    %4477 = vmatpush1.msra.mxu0 0.0
    %4478 = vmatprep.subr.mxu0 0.0
    %4479 = vmatpush1.msra.mxu0 0.0
    %4480 = vmatprep.subr.mxu0 0.0
    %4481 = vmatpush1.msra.mxu0 0.0
    %4482 = vmatprep.subr.mxu0 0.0
    %4483 = vmatpush1.msra.mxu0 0.0
    %4484 = vmatprep.subr.mxu0 0.0
    %4485 = vmatpush1.msra.mxu0 0.0
    %4486 = vmatprep.subr.mxu0 0.0
    %4487 = vmatpush1.msra.mxu0 %v4451
    %4488 = vmatprep.subr.mxu0 0.0
    %4489 = vmatpush2.msra.mxu0 0.0
    %4490 = vmatprep.subr.mxu0 0.0
    %4491 = vmatpush2.msra.mxu0 0.0
    %4492 = vmatprep.subr.mxu0 0.0
    %4493 = vmatpush2.msra.mxu0 0.0
    %4494 = vmatprep.subr.mxu0 0.0
    %4495 = vmatpush2.msra.mxu0 0.0
    %4496 = vmatprep.subr.mxu0 0.0
    %4497 = vmatpush2.msra.mxu0 0.0
    %4498 = vmatprep.subr.mxu0 0.0
    %4499 = vmatpush2.msra.mxu0 0.0
    %4500 = vmatprep.subr.mxu0 0.0
    %4501 = vmatpush2.msra.mxu0 0.0
    %4502 = vmatprep.subr.mxu0 0.0
    %4503 = vmatpush2.msra.mxu0 0.0
    %4504 = vmatprep.subr.mxu0 0.0
    %4505 = vmatpush2.msra.mxu0 0.0
    %4506 = vmatprep.subr.mxu0 0.0
    %4507 = vmatpush2.msra.mxu0 0.0
    %4508 = vmatprep.subr.mxu0 0.0
    %4509 = vmatpush2.msra.mxu0 0.0
    %4510 = vmatprep.subr.mxu0 0.0
    %4511 = vmatpush2.msra.mxu0 0.0
    %4512 = vmatprep.subr.mxu0 0.0
    %4513 = vmatpush2.msra.mxu0 0.0
    %4514 = vmatprep.subr.mxu0 0.0
    %4515 = vmatpush2.msra.mxu0 0.0
    %4516 = vmatprep.subr.mxu0 0.0
    %4517 = vmatpush2.msra.mxu0 0.0
    %4518 = vmatprep.subr.mxu0 0.0
    %4519 = vmatpush2.msra.mxu0 0.0
    %4520 = vmatprep.mubr.f32.mxu0 0.0
    %4521 = vmatmul.mubr.f32.gmra.mxu0 %v4454
    %v4522 = vpop.f32.mrf.mxu0
    %v4523 = vadd.f32 0.0, %v4522
    %v4524 = vpop.f32.mrf.mxu0
    %4525 = vdwg.mxu0
    %v4526 = vadd.f32 %v4445, %v4523
    %v4527 = vld [vmem:[%s1060] sm:$0xff]
    %4528 = vrot.lane.b32.xlu0 %v3633, 116
    %v4529 = vpop.permute.xlu0 %4528
    %4530 = vrot.lane.b32.xlu0 %v3634, 116
    %v4531 = vpop.permute.xlu0 %4530
    %v4532 = vsel %vm1066, %v4529, %v4531
    %v4535 = vsel %vm68, %v4527, 0
    %4537 = vmatprep.subr.mxu0 0.0
    %4538 = vmatpush1.msra.mxu0 0.0
    %4539 = vmatprep.subr.mxu0 0.0
    %4540 = vmatpush1.msra.mxu0 0.0
    %4541 = vmatprep.subr.mxu0 0.0
    %4542 = vmatpush1.msra.mxu0 0.0
    %4543 = vmatprep.subr.mxu0 0.0
    %4544 = vmatpush1.msra.mxu0 0.0
    %4545 = vmatprep.subr.mxu0 0.0
    %4546 = vmatpush1.msra.mxu0 0.0
    %4547 = vmatprep.subr.mxu0 0.0
    %4548 = vmatpush1.msra.mxu0 0.0
    %4549 = vmatprep.subr.mxu0 0.0
    %4550 = vmatpush1.msra.mxu0 0.0
    %4551 = vmatprep.subr.mxu0 0.0
    %4552 = vmatpush1.msra.mxu0 0.0
    %4553 = vmatprep.subr.mxu0 0.0
    %4554 = vmatpush1.msra.mxu0 0.0
    %4555 = vmatprep.subr.mxu0 0.0
    %4556 = vmatpush1.msra.mxu0 0.0
    %4557 = vmatprep.subr.mxu0 0.0
    %4558 = vmatpush1.msra.mxu0 0.0
    %4559 = vmatprep.subr.mxu0 0.0
    %4560 = vmatpush1.msra.mxu0 0.0
    %4561 = vmatprep.subr.mxu0 0.0
    %4562 = vmatpush1.msra.mxu0 0.0
    %4563 = vmatprep.subr.mxu0 0.0
    %4564 = vmatpush1.msra.mxu0 0.0
    %4565 = vmatprep.subr.mxu0 0.0
    %4566 = vmatpush1.msra.mxu0 0.0
    %4567 = vmatprep.subr.mxu0 0.0
    %4568 = vmatpush1.msra.mxu0 %v4532
    %4569 = vmatprep.subr.mxu0 0.0
    %4570 = vmatpush2.msra.mxu0 0.0
    %4571 = vmatprep.subr.mxu0 0.0
    %4572 = vmatpush2.msra.mxu0 0.0
    %4573 = vmatprep.subr.mxu0 0.0
    %4574 = vmatpush2.msra.mxu0 0.0
    %4575 = vmatprep.subr.mxu0 0.0
    %4576 = vmatpush2.msra.mxu0 0.0
    %4577 = vmatprep.subr.mxu0 0.0
    %4578 = vmatpush2.msra.mxu0 0.0
    %4579 = vmatprep.subr.mxu0 0.0
    %4580 = vmatpush2.msra.mxu0 0.0
    %4581 = vmatprep.subr.mxu0 0.0
    %4582 = vmatpush2.msra.mxu0 0.0
    %4583 = vmatprep.subr.mxu0 0.0
    %4584 = vmatpush2.msra.mxu0 0.0
    %4585 = vmatprep.subr.mxu0 0.0
    %4586 = vmatpush2.msra.mxu0 0.0
    %4587 = vmatprep.subr.mxu0 0.0
    %4588 = vmatpush2.msra.mxu0 0.0
    %4589 = vmatprep.subr.mxu0 0.0
    %4590 = vmatpush2.msra.mxu0 0.0
    %4591 = vmatprep.subr.mxu0 0.0
    %4592 = vmatpush2.msra.mxu0 0.0
    %4593 = vmatprep.subr.mxu0 0.0
    %4594 = vmatpush2.msra.mxu0 0.0
    %4595 = vmatprep.subr.mxu0 0.0
    %4596 = vmatpush2.msra.mxu0 0.0
    %4597 = vmatprep.subr.mxu0 0.0
    %4598 = vmatpush2.msra.mxu0 0.0
    %4599 = vmatprep.subr.mxu0 0.0
    %4600 = vmatpush2.msra.mxu0 0.0
    %4601 = vmatprep.mubr.f32.mxu0 0.0
    %4602 = vmatmul.mubr.f32.gmra.mxu0 %v4535
    %v4603 = vpop.f32.mrf.mxu0
    %v4604 = vadd.f32 0.0, %v4603
    %v4605 = vpop.f32.mrf.mxu0
    %4606 = vdwg.mxu0
    %v4607 = vadd.f32 %v4526, %v4604
    %v4608 = vld [vmem:[%s1143] sm:$0xff]
    %4609 = vrot.lane.b32.xlu0 %v3633, 115
    %v4610 = vpop.permute.xlu0 %4609
    %4611 = vrot.lane.b32.xlu0 %v3634, 115
    %v4612 = vpop.permute.xlu0 %4611
    %v4613 = vsel %vm1149, %v4610, %v4612
    %v4616 = vsel %vm68, %v4608, 0
    %4618 = vmatprep.subr.mxu0 0.0
    %4619 = vmatpush1.msra.mxu0 0.0
    %4620 = vmatprep.subr.mxu0 0.0
    %4621 = vmatpush1.msra.mxu0 0.0
    %4622 = vmatprep.subr.mxu0 0.0
    %4623 = vmatpush1.msra.mxu0 0.0
    %4624 = vmatprep.subr.mxu0 0.0
    %4625 = vmatpush1.msra.mxu0 0.0
    %4626 = vmatprep.subr.mxu0 0.0
    %4627 = vmatpush1.msra.mxu0 0.0
    %4628 = vmatprep.subr.mxu0 0.0
    %4629 = vmatpush1.msra.mxu0 0.0
    %4630 = vmatprep.subr.mxu0 0.0
    %4631 = vmatpush1.msra.mxu0 0.0
    %4632 = vmatprep.subr.mxu0 0.0
    %4633 = vmatpush1.msra.mxu0 0.0
    %4634 = vmatprep.subr.mxu0 0.0
    %4635 = vmatpush1.msra.mxu0 0.0
    %4636 = vmatprep.subr.mxu0 0.0
    %4637 = vmatpush1.msra.mxu0 0.0
    %4638 = vmatprep.subr.mxu0 0.0
    %4639 = vmatpush1.msra.mxu0 0.0
    %4640 = vmatprep.subr.mxu0 0.0
    %4641 = vmatpush1.msra.mxu0 0.0
    %4642 = vmatprep.subr.mxu0 0.0
    %4643 = vmatpush1.msra.mxu0 0.0
    %4644 = vmatprep.subr.mxu0 0.0
    %4645 = vmatpush1.msra.mxu0 0.0
    %4646 = vmatprep.subr.mxu0 0.0
    %4647 = vmatpush1.msra.mxu0 0.0
    %4648 = vmatprep.subr.mxu0 0.0
    %4649 = vmatpush1.msra.mxu0 %v4613
    %4650 = vmatprep.subr.mxu0 0.0
    %4651 = vmatpush2.msra.mxu0 0.0
    %4652 = vmatprep.subr.mxu0 0.0
    %4653 = vmatpush2.msra.mxu0 0.0
    %4654 = vmatprep.subr.mxu0 0.0
    %4655 = vmatpush2.msra.mxu0 0.0
    %4656 = vmatprep.subr.mxu0 0.0
    %4657 = vmatpush2.msra.mxu0 0.0
    %4658 = vmatprep.subr.mxu0 0.0
    %4659 = vmatpush2.msra.mxu0 0.0
    %4660 = vmatprep.subr.mxu0 0.0
    %4661 = vmatpush2.msra.mxu0 0.0
    %4662 = vmatprep.subr.mxu0 0.0
    %4663 = vmatpush2.msra.mxu0 0.0
    %4664 = vmatprep.subr.mxu0 0.0
    %4665 = vmatpush2.msra.mxu0 0.0
    %4666 = vmatprep.subr.mxu0 0.0
    %4667 = vmatpush2.msra.mxu0 0.0
    %4668 = vmatprep.subr.mxu0 0.0
    %4669 = vmatpush2.msra.mxu0 0.0
    %4670 = vmatprep.subr.mxu0 0.0
    %4671 = vmatpush2.msra.mxu0 0.0
    %4672 = vmatprep.subr.mxu0 0.0
    %4673 = vmatpush2.msra.mxu0 0.0
    %4674 = vmatprep.subr.mxu0 0.0
    %4675 = vmatpush2.msra.mxu0 0.0
    %4676 = vmatprep.subr.mxu0 0.0
    %4677 = vmatpush2.msra.mxu0 0.0
    %4678 = vmatprep.subr.mxu0 0.0
    %4679 = vmatpush2.msra.mxu0 0.0
    %4680 = vmatprep.subr.mxu0 0.0
    %4681 = vmatpush2.msra.mxu0 0.0
    %4682 = vmatprep.mubr.f32.mxu0 0.0
    %4683 = vmatmul.mubr.f32.gmra.mxu0 %v4616
    %v4684 = vpop.f32.mrf.mxu0
    %v4685 = vadd.f32 0.0, %v4684
    %v4686 = vpop.f32.mrf.mxu0
    %4687 = vdwg.mxu0
    %v4688 = vadd.f32 %v4607, %v4685
    %v4689 = vld [vmem:[%s1226] sm:$0xff]
    %4690 = vrot.lane.b32.xlu0 %v3633, 114
    %v4691 = vpop.permute.xlu0 %4690
    %4692 = vrot.lane.b32.xlu0 %v3634, 114
    %v4693 = vpop.permute.xlu0 %4692
    %v4694 = vsel %vm1232, %v4691, %v4693
    %v4697 = vsel %vm68, %v4689, 0
    %4699 = vmatprep.subr.mxu0 0.0
    %4700 = vmatpush1.msra.mxu0 0.0
    %4701 = vmatprep.subr.mxu0 0.0
    %4702 = vmatpush1.msra.mxu0 0.0
    %4703 = vmatprep.subr.mxu0 0.0
    %4704 = vmatpush1.msra.mxu0 0.0
    %4705 = vmatprep.subr.mxu0 0.0
    %4706 = vmatpush1.msra.mxu0 0.0
    %4707 = vmatprep.subr.mxu0 0.0
    %4708 = vmatpush1.msra.mxu0 0.0
    %4709 = vmatprep.subr.mxu0 0.0
    %4710 = vmatpush1.msra.mxu0 0.0
    %4711 = vmatprep.subr.mxu0 0.0
    %4712 = vmatpush1.msra.mxu0 0.0
    %4713 = vmatprep.subr.mxu0 0.0
    %4714 = vmatpush1.msra.mxu0 0.0
    %4715 = vmatprep.subr.mxu0 0.0
    %4716 = vmatpush1.msra.mxu0 0.0
    %4717 = vmatprep.subr.mxu0 0.0
    %4718 = vmatpush1.msra.mxu0 0.0
    %4719 = vmatprep.subr.mxu0 0.0
    %4720 = vmatpush1.msra.mxu0 0.0
    %4721 = vmatprep.subr.mxu0 0.0
    %4722 = vmatpush1.msra.mxu0 0.0
    %4723 = vmatprep.subr.mxu0 0.0
    %4724 = vmatpush1.msra.mxu0 0.0
    %4725 = vmatprep.subr.mxu0 0.0
    %4726 = vmatpush1.msra.mxu0 0.0
    %4727 = vmatprep.subr.mxu0 0.0
    %4728 = vmatpush1.msra.mxu0 0.0
    %4729 = vmatprep.subr.mxu0 0.0
    %4730 = vmatpush1.msra.mxu0 %v4694
    %4731 = vmatprep.subr.mxu0 0.0
    %4732 = vmatpush2.msra.mxu0 0.0
    %4733 = vmatprep.subr.mxu0 0.0
    %4734 = vmatpush2.msra.mxu0 0.0
    %4735 = vmatprep.subr.mxu0 0.0
    %4736 = vmatpush2.msra.mxu0 0.0
    %4737 = vmatprep.subr.mxu0 0.0
    %4738 = vmatpush2.msra.mxu0 0.0
    %4739 = vmatprep.subr.mxu0 0.0
    %4740 = vmatpush2.msra.mxu0 0.0
    %4741 = vmatprep.subr.mxu0 0.0
    %4742 = vmatpush2.msra.mxu0 0.0
    %4743 = vmatprep.subr.mxu0 0.0
    %4744 = vmatpush2.msra.mxu0 0.0
    %4745 = vmatprep.subr.mxu0 0.0
    %4746 = vmatpush2.msra.mxu0 0.0
    %4747 = vmatprep.subr.mxu0 0.0
    %4748 = vmatpush2.msra.mxu0 0.0
    %4749 = vmatprep.subr.mxu0 0.0
    %4750 = vmatpush2.msra.mxu0 0.0
    %4751 = vmatprep.subr.mxu0 0.0
    %4752 = vmatpush2.msra.mxu0 0.0
    %4753 = vmatprep.subr.mxu0 0.0
    %4754 = vmatpush2.msra.mxu0 0.0
    %4755 = vmatprep.subr.mxu0 0.0
    %4756 = vmatpush2.msra.mxu0 0.0
    %4757 = vmatprep.subr.mxu0 0.0
    %4758 = vmatpush2.msra.mxu0 0.0
    %4759 = vmatprep.subr.mxu0 0.0
    %4760 = vmatpush2.msra.mxu0 0.0
    %4761 = vmatprep.subr.mxu0 0.0
    %4762 = vmatpush2.msra.mxu0 0.0
    %4763 = vmatprep.mubr.f32.mxu0 0.0
    %4764 = vmatmul.mubr.f32.gmra.mxu0 %v4697
    %v4765 = vpop.f32.mrf.mxu0
    %v4766 = vadd.f32 0.0, %v4765
    %v4767 = vpop.f32.mrf.mxu0
    %4768 = vdwg.mxu0
    %v4769 = vadd.f32 %v4688, %v4766
    %v4770 = vld [vmem:[%s1309] sm:$0xff]
    %4771 = vrot.lane.b32.xlu0 %v3633, 113
    %v4772 = vpop.permute.xlu0 %4771
    %4773 = vrot.lane.b32.xlu0 %v3634, 113
    %v4774 = vpop.permute.xlu0 %4773
    %v4775 = vsel %vm1315, %v4772, %v4774
    %v4778 = vsel %vm68, %v4770, 0
    %4780 = vmatprep.subr.mxu0 0.0
    %4781 = vmatpush1.msra.mxu0 0.0
    %4782 = vmatprep.subr.mxu0 0.0
    %4783 = vmatpush1.msra.mxu0 0.0
    %4784 = vmatprep.subr.mxu0 0.0
    %4785 = vmatpush1.msra.mxu0 0.0
    %4786 = vmatprep.subr.mxu0 0.0
    %4787 = vmatpush1.msra.mxu0 0.0
    %4788 = vmatprep.subr.mxu0 0.0
    %4789 = vmatpush1.msra.mxu0 0.0
    %4790 = vmatprep.subr.mxu0 0.0
    %4791 = vmatpush1.msra.mxu0 0.0
    %4792 = vmatprep.subr.mxu0 0.0
    %4793 = vmatpush1.msra.mxu0 0.0
    %4794 = vmatprep.subr.mxu0 0.0
    %4795 = vmatpush1.msra.mxu0 0.0
    %4796 = vmatprep.subr.mxu0 0.0
    %4797 = vmatpush1.msra.mxu0 0.0
    %4798 = vmatprep.subr.mxu0 0.0
    %4799 = vmatpush1.msra.mxu0 0.0
    %4800 = vmatprep.subr.mxu0 0.0
    %4801 = vmatpush1.msra.mxu0 0.0
    %4802 = vmatprep.subr.mxu0 0.0
    %4803 = vmatpush1.msra.mxu0 0.0
    %4804 = vmatprep.subr.mxu0 0.0
    %4805 = vmatpush1.msra.mxu0 0.0
    %4806 = vmatprep.subr.mxu0 0.0
    %4807 = vmatpush1.msra.mxu0 0.0
    %4808 = vmatprep.subr.mxu0 0.0
    %4809 = vmatpush1.msra.mxu0 0.0
    %4810 = vmatprep.subr.mxu0 0.0
    %4811 = vmatpush1.msra.mxu0 %v4775
    %4812 = vmatprep.subr.mxu0 0.0
    %4813 = vmatpush2.msra.mxu0 0.0
    %4814 = vmatprep.subr.mxu0 0.0
    %4815 = vmatpush2.msra.mxu0 0.0
    %4816 = vmatprep.subr.mxu0 0.0
    %4817 = vmatpush2.msra.mxu0 0.0
    %4818 = vmatprep.subr.mxu0 0.0
    %4819 = vmatpush2.msra.mxu0 0.0
    %4820 = vmatprep.subr.mxu0 0.0
    %4821 = vmatpush2.msra.mxu0 0.0
    %4822 = vmatprep.subr.mxu0 0.0
    %4823 = vmatpush2.msra.mxu0 0.0
    %4824 = vmatprep.subr.mxu0 0.0
    %4825 = vmatpush2.msra.mxu0 0.0
    %4826 = vmatprep.subr.mxu0 0.0
    %4827 = vmatpush2.msra.mxu0 0.0
    %4828 = vmatprep.subr.mxu0 0.0
    %4829 = vmatpush2.msra.mxu0 0.0
    %4830 = vmatprep.subr.mxu0 0.0
    %4831 = vmatpush2.msra.mxu0 0.0
    %4832 = vmatprep.subr.mxu0 0.0
    %4833 = vmatpush2.msra.mxu0 0.0
    %4834 = vmatprep.subr.mxu0 0.0
    %4835 = vmatpush2.msra.mxu0 0.0
    %4836 = vmatprep.subr.mxu0 0.0
    %4837 = vmatpush2.msra.mxu0 0.0
    %4838 = vmatprep.subr.mxu0 0.0
    %4839 = vmatpush2.msra.mxu0 0.0
    %4840 = vmatprep.subr.mxu0 0.0
    %4841 = vmatpush2.msra.mxu0 0.0
    %4842 = vmatprep.subr.mxu0 0.0
    %4843 = vmatpush2.msra.mxu0 0.0
    %4844 = vmatprep.mubr.f32.mxu0 0.0
    %4845 = vmatmul.mubr.f32.gmra.mxu0 %v4778
    %v4846 = vpop.f32.mrf.mxu0
    %v4847 = vadd.f32 0.0, %v4846
    %v4848 = vpop.f32.mrf.mxu0
    %4849 = vdwg.mxu0
    %v4850 = vadd.f32 %v4769, %v4847
    %v4851 = vld [vmem:[%s1392] sm:$0xff]
    %4852 = vrot.lane.b32.xlu0 %v3633, 112
    %v4853 = vpop.permute.xlu0 %4852
    %4854 = vrot.lane.b32.xlu0 %v3634, 112
    %v4855 = vpop.permute.xlu0 %4854
    %v4856 = vsel %vm1398, %v4853, %v4855
    %v4859 = vsel %vm68, %v4851, 0
    %4861 = vmatprep.subr.mxu0 0.0
    %4862 = vmatpush1.msra.mxu0 0.0
    %4863 = vmatprep.subr.mxu0 0.0
    %4864 = vmatpush1.msra.mxu0 0.0
    %4865 = vmatprep.subr.mxu0 0.0
    %4866 = vmatpush1.msra.mxu0 0.0
    %4867 = vmatprep.subr.mxu0 0.0
    %4868 = vmatpush1.msra.mxu0 0.0
    %4869 = vmatprep.subr.mxu0 0.0
    %4870 = vmatpush1.msra.mxu0 0.0
    %4871 = vmatprep.subr.mxu0 0.0
    %4872 = vmatpush1.msra.mxu0 0.0
    %4873 = vmatprep.subr.mxu0 0.0
    %4874 = vmatpush1.msra.mxu0 0.0
    %4875 = vmatprep.subr.mxu0 0.0
    %4876 = vmatpush1.msra.mxu0 0.0
    %4877 = vmatprep.subr.mxu0 0.0
    %4878 = vmatpush1.msra.mxu0 0.0
    %4879 = vmatprep.subr.mxu0 0.0
    %4880 = vmatpush1.msra.mxu0 0.0
    %4881 = vmatprep.subr.mxu0 0.0
    %4882 = vmatpush1.msra.mxu0 0.0
    %4883 = vmatprep.subr.mxu0 0.0
    %4884 = vmatpush1.msra.mxu0 0.0
    %4885 = vmatprep.subr.mxu0 0.0
    %4886 = vmatpush1.msra.mxu0 0.0
    %4887 = vmatprep.subr.mxu0 0.0
    %4888 = vmatpush1.msra.mxu0 0.0
    %4889 = vmatprep.subr.mxu0 0.0
    %4890 = vmatpush1.msra.mxu0 0.0
    %4891 = vmatprep.subr.mxu0 0.0
    %4892 = vmatpush1.msra.mxu0 %v4856
    %4893 = vmatprep.subr.mxu0 0.0
    %4894 = vmatpush2.msra.mxu0 0.0
    %4895 = vmatprep.subr.mxu0 0.0
    %4896 = vmatpush2.msra.mxu0 0.0
    %4897 = vmatprep.subr.mxu0 0.0
    %4898 = vmatpush2.msra.mxu0 0.0
    %4899 = vmatprep.subr.mxu0 0.0
    %4900 = vmatpush2.msra.mxu0 0.0
    %4901 = vmatprep.subr.mxu0 0.0
    %4902 = vmatpush2.msra.mxu0 0.0
    %4903 = vmatprep.subr.mxu0 0.0
    %4904 = vmatpush2.msra.mxu0 0.0
    %4905 = vmatprep.subr.mxu0 0.0
    %4906 = vmatpush2.msra.mxu0 0.0
    %4907 = vmatprep.subr.mxu0 0.0
    %4908 = vmatpush2.msra.mxu0 0.0
    %4909 = vmatprep.subr.mxu0 0.0
    %4910 = vmatpush2.msra.mxu0 0.0
    %4911 = vmatprep.subr.mxu0 0.0
    %4912 = vmatpush2.msra.mxu0 0.0
    %4913 = vmatprep.subr.mxu0 0.0
    %4914 = vmatpush2.msra.mxu0 0.0
    %4915 = vmatprep.subr.mxu0 0.0
    %4916 = vmatpush2.msra.mxu0 0.0
    %4917 = vmatprep.subr.mxu0 0.0
    %4918 = vmatpush2.msra.mxu0 0.0
    %4919 = vmatprep.subr.mxu0 0.0
    %4920 = vmatpush2.msra.mxu0 0.0
    %4921 = vmatprep.subr.mxu0 0.0
    %4922 = vmatpush2.msra.mxu0 0.0
    %4923 = vmatprep.subr.mxu0 0.0
    %4924 = vmatpush2.msra.mxu0 0.0
    %4925 = vmatprep.mubr.f32.mxu0 0.0
    %4926 = vmatmul.mubr.f32.gmra.mxu0 %v4859
    %v4927 = vpop.f32.mrf.mxu0
    %v4928 = vadd.f32 0.0, %v4927
    %v4929 = vpop.f32.mrf.mxu0
    %4930 = vdwg.mxu0
    %v4931 = vadd.f32 %v4850, %v4928
    %v4932 = vld [vmem:[%s1475] sm:$0xff]
    %4933 = vrot.lane.b32.xlu0 %v3633, 111
    %v4934 = vpop.permute.xlu0 %4933
    %4935 = vrot.lane.b32.xlu0 %v3634, 111
    %v4936 = vpop.permute.xlu0 %4935
    %v4937 = vsel %vm1481, %v4934, %v4936
    %v4940 = vsel %vm68, %v4932, 0
    %4942 = vmatprep.subr.mxu0 0.0
    %4943 = vmatpush1.msra.mxu0 0.0
    %4944 = vmatprep.subr.mxu0 0.0
    %4945 = vmatpush1.msra.mxu0 0.0
    %4946 = vmatprep.subr.mxu0 0.0
    %4947 = vmatpush1.msra.mxu0 0.0
    %4948 = vmatprep.subr.mxu0 0.0
    %4949 = vmatpush1.msra.mxu0 0.0
    %4950 = vmatprep.subr.mxu0 0.0
    %4951 = vmatpush1.msra.mxu0 0.0
    %4952 = vmatprep.subr.mxu0 0.0
    %4953 = vmatpush1.msra.mxu0 0.0
    %4954 = vmatprep.subr.mxu0 0.0
    %4955 = vmatpush1.msra.mxu0 0.0
    %4956 = vmatprep.subr.mxu0 0.0
    %4957 = vmatpush1.msra.mxu0 0.0
    %4958 = vmatprep.subr.mxu0 0.0
    %4959 = vmatpush1.msra.mxu0 0.0
    %4960 = vmatprep.subr.mxu0 0.0
    %4961 = vmatpush1.msra.mxu0 0.0
    %4962 = vmatprep.subr.mxu0 0.0
    %4963 = vmatpush1.msra.mxu0 0.0
    %4964 = vmatprep.subr.mxu0 0.0
    %4965 = vmatpush1.msra.mxu0 0.0
    %4966 = vmatprep.subr.mxu0 0.0
    %4967 = vmatpush1.msra.mxu0 0.0
    %4968 = vmatprep.subr.mxu0 0.0
    %4969 = vmatpush1.msra.mxu0 0.0
    %4970 = vmatprep.subr.mxu0 0.0
    %4971 = vmatpush1.msra.mxu0 0.0
    %4972 = vmatprep.subr.mxu0 0.0
    %4973 = vmatpush1.msra.mxu0 %v4937
    %4974 = vmatprep.subr.mxu0 0.0
    %4975 = vmatpush2.msra.mxu0 0.0
    %4976 = vmatprep.subr.mxu0 0.0
    %4977 = vmatpush2.msra.mxu0 0.0
    %4978 = vmatprep.subr.mxu0 0.0
    %4979 = vmatpush2.msra.mxu0 0.0
    %4980 = vmatprep.subr.mxu0 0.0
    %4981 = vmatpush2.msra.mxu0 0.0
    %4982 = vmatprep.subr.mxu0 0.0
    %4983 = vmatpush2.msra.mxu0 0.0
    %4984 = vmatprep.subr.mxu0 0.0
    %4985 = vmatpush2.msra.mxu0 0.0
    %4986 = vmatprep.subr.mxu0 0.0
    %4987 = vmatpush2.msra.mxu0 0.0
    %4988 = vmatprep.subr.mxu0 0.0
    %4989 = vmatpush2.msra.mxu0 0.0
    %4990 = vmatprep.subr.mxu0 0.0
    %4991 = vmatpush2.msra.mxu0 0.0
    %4992 = vmatprep.subr.mxu0 0.0
    %4993 = vmatpush2.msra.mxu0 0.0
    %4994 = vmatprep.subr.mxu0 0.0
    %4995 = vmatpush2.msra.mxu0 0.0
    %4996 = vmatprep.subr.mxu0 0.0
    %4997 = vmatpush2.msra.mxu0 0.0
    %4998 = vmatprep.subr.mxu0 0.0
    %4999 = vmatpush2.msra.mxu0 0.0
    %5000 = vmatprep.subr.mxu0 0.0
    %5001 = vmatpush2.msra.mxu0 0.0
    %5002 = vmatprep.subr.mxu0 0.0
    %5003 = vmatpush2.msra.mxu0 0.0
    %5004 = vmatprep.subr.mxu0 0.0
    %5005 = vmatpush2.msra.mxu0 0.0
    %5006 = vmatprep.mubr.f32.mxu0 0.0
    %5007 = vmatmul.mubr.f32.gmra.mxu0 %v4940
    %v5008 = vpop.f32.mrf.mxu0
    %v5009 = vadd.f32 0.0, %v5008
    %v5010 = vpop.f32.mrf.mxu0
    %5011 = vdwg.mxu0
    %v5012 = vadd.f32 %v4931, %v5009
    %v5013 = vld [vmem:[%s1558] sm:$0xff]
    %5014 = vrot.lane.b32.xlu0 %v3633, 110
    %v5015 = vpop.permute.xlu0 %5014
    %5016 = vrot.lane.b32.xlu0 %v3634, 110
    %v5017 = vpop.permute.xlu0 %5016
    %v5018 = vsel %vm1564, %v5015, %v5017
    %v5021 = vsel %vm68, %v5013, 0
    %5023 = vmatprep.subr.mxu0 0.0
    %5024 = vmatpush1.msra.mxu0 0.0
    %5025 = vmatprep.subr.mxu0 0.0
    %5026 = vmatpush1.msra.mxu0 0.0
    %5027 = vmatprep.subr.mxu0 0.0
    %5028 = vmatpush1.msra.mxu0 0.0
    %5029 = vmatprep.subr.mxu0 0.0
    %5030 = vmatpush1.msra.mxu0 0.0
    %5031 = vmatprep.subr.mxu0 0.0
    %5032 = vmatpush1.msra.mxu0 0.0
    %5033 = vmatprep.subr.mxu0 0.0
    %5034 = vmatpush1.msra.mxu0 0.0
    %5035 = vmatprep.subr.mxu0 0.0
    %5036 = vmatpush1.msra.mxu0 0.0
    %5037 = vmatprep.subr.mxu0 0.0
    %5038 = vmatpush1.msra.mxu0 0.0
    %5039 = vmatprep.subr.mxu0 0.0
    %5040 = vmatpush1.msra.mxu0 0.0
    %5041 = vmatprep.subr.mxu0 0.0
    %5042 = vmatpush1.msra.mxu0 0.0
    %5043 = vmatprep.subr.mxu0 0.0
    %5044 = vmatpush1.msra.mxu0 0.0
    %5045 = vmatprep.subr.mxu0 0.0
    %5046 = vmatpush1.msra.mxu0 0.0
    %5047 = vmatprep.subr.mxu0 0.0
    %5048 = vmatpush1.msra.mxu0 0.0
    %5049 = vmatprep.subr.mxu0 0.0
    %5050 = vmatpush1.msra.mxu0 0.0
    %5051 = vmatprep.subr.mxu0 0.0
    %5052 = vmatpush1.msra.mxu0 0.0
    %5053 = vmatprep.subr.mxu0 0.0
    %5054 = vmatpush1.msra.mxu0 %v5018
    %5055 = vmatprep.subr.mxu0 0.0
    %5056 = vmatpush2.msra.mxu0 0.0
    %5057 = vmatprep.subr.mxu0 0.0
    %5058 = vmatpush2.msra.mxu0 0.0
    %5059 = vmatprep.subr.mxu0 0.0
    %5060 = vmatpush2.msra.mxu0 0.0
    %5061 = vmatprep.subr.mxu0 0.0
    %5062 = vmatpush2.msra.mxu0 0.0
    %5063 = vmatprep.subr.mxu0 0.0
    %5064 = vmatpush2.msra.mxu0 0.0
    %5065 = vmatprep.subr.mxu0 0.0
    %5066 = vmatpush2.msra.mxu0 0.0
    %5067 = vmatprep.subr.mxu0 0.0
    %5068 = vmatpush2.msra.mxu0 0.0
    %5069 = vmatprep.subr.mxu0 0.0
    %5070 = vmatpush2.msra.mxu0 0.0
    %5071 = vmatprep.subr.mxu0 0.0
    %5072 = vmatpush2.msra.mxu0 0.0
    %5073 = vmatprep.subr.mxu0 0.0
    %5074 = vmatpush2.msra.mxu0 0.0
    %5075 = vmatprep.subr.mxu0 0.0
    %5076 = vmatpush2.msra.mxu0 0.0
    %5077 = vmatprep.subr.mxu0 0.0
    %5078 = vmatpush2.msra.mxu0 0.0
    %5079 = vmatprep.subr.mxu0 0.0
    %5080 = vmatpush2.msra.mxu0 0.0
    %5081 = vmatprep.subr.mxu0 0.0
    %5082 = vmatpush2.msra.mxu0 0.0
    %5083 = vmatprep.subr.mxu0 0.0
    %5084 = vmatpush2.msra.mxu0 0.0
    %5085 = vmatprep.subr.mxu0 0.0
    %5086 = vmatpush2.msra.mxu0 0.0
    %5087 = vmatprep.mubr.f32.mxu0 0.0
    %5088 = vmatmul.mubr.f32.gmra.mxu0 %v5021
    %v5089 = vpop.f32.mrf.mxu0
    %v5090 = vadd.f32 0.0, %v5089
    %v5091 = vpop.f32.mrf.mxu0
    %5092 = vdwg.mxu0
    %v5093 = vadd.f32 %v5012, %v5090
    %v5094 = vld [vmem:[%s1641] sm:$0xff]
    %5095 = vrot.lane.b32.xlu0 %v3633, 109
    %v5096 = vpop.permute.xlu0 %5095
    %5097 = vrot.lane.b32.xlu0 %v3634, 109
    %v5098 = vpop.permute.xlu0 %5097
    %v5099 = vsel %vm1647, %v5096, %v5098
    %v5102 = vsel %vm68, %v5094, 0
    %5104 = vmatprep.subr.mxu0 0.0
    %5105 = vmatpush1.msra.mxu0 0.0
    %5106 = vmatprep.subr.mxu0 0.0
    %5107 = vmatpush1.msra.mxu0 0.0
    %5108 = vmatprep.subr.mxu0 0.0
    %5109 = vmatpush1.msra.mxu0 0.0
    %5110 = vmatprep.subr.mxu0 0.0
    %5111 = vmatpush1.msra.mxu0 0.0
    %5112 = vmatprep.subr.mxu0 0.0
    %5113 = vmatpush1.msra.mxu0 0.0
    %5114 = vmatprep.subr.mxu0 0.0
    %5115 = vmatpush1.msra.mxu0 0.0
    %5116 = vmatprep.subr.mxu0 0.0
    %5117 = vmatpush1.msra.mxu0 0.0
    %5118 = vmatprep.subr.mxu0 0.0
    %5119 = vmatpush1.msra.mxu0 0.0
    %5120 = vmatprep.subr.mxu0 0.0
    %5121 = vmatpush1.msra.mxu0 0.0
    %5122 = vmatprep.subr.mxu0 0.0
    %5123 = vmatpush1.msra.mxu0 0.0
    %5124 = vmatprep.subr.mxu0 0.0
    %5125 = vmatpush1.msra.mxu0 0.0
    %5126 = vmatprep.subr.mxu0 0.0
    %5127 = vmatpush1.msra.mxu0 0.0
    %5128 = vmatprep.subr.mxu0 0.0
    %5129 = vmatpush1.msra.mxu0 0.0
    %5130 = vmatprep.subr.mxu0 0.0
    %5131 = vmatpush1.msra.mxu0 0.0
    %5132 = vmatprep.subr.mxu0 0.0
    %5133 = vmatpush1.msra.mxu0 0.0
    %5134 = vmatprep.subr.mxu0 0.0
    %5135 = vmatpush1.msra.mxu0 %v5099
    %5136 = vmatprep.subr.mxu0 0.0
    %5137 = vmatpush2.msra.mxu0 0.0
    %5138 = vmatprep.subr.mxu0 0.0
    %5139 = vmatpush2.msra.mxu0 0.0
    %5140 = vmatprep.subr.mxu0 0.0
    %5141 = vmatpush2.msra.mxu0 0.0
    %5142 = vmatprep.subr.mxu0 0.0
    %5143 = vmatpush2.msra.mxu0 0.0
    %5144 = vmatprep.subr.mxu0 0.0
    %5145 = vmatpush2.msra.mxu0 0.0
    %5146 = vmatprep.subr.mxu0 0.0
    %5147 = vmatpush2.msra.mxu0 0.0
    %5148 = vmatprep.subr.mxu0 0.0
    %5149 = vmatpush2.msra.mxu0 0.0
    %5150 = vmatprep.subr.mxu0 0.0
    %5151 = vmatpush2.msra.mxu0 0.0
    %5152 = vmatprep.subr.mxu0 0.0
    %5153 = vmatpush2.msra.mxu0 0.0
    %5154 = vmatprep.subr.mxu0 0.0
    %5155 = vmatpush2.msra.mxu0 0.0
    %5156 = vmatprep.subr.mxu0 0.0
    %5157 = vmatpush2.msra.mxu0 0.0
    %5158 = vmatprep.subr.mxu0 0.0
    %5159 = vmatpush2.msra.mxu0 0.0
    %5160 = vmatprep.subr.mxu0 0.0
    %5161 = vmatpush2.msra.mxu0 0.0
    %5162 = vmatprep.subr.mxu0 0.0
    %5163 = vmatpush2.msra.mxu0 0.0
    %5164 = vmatprep.subr.mxu0 0.0
    %5165 = vmatpush2.msra.mxu0 0.0
    %5166 = vmatprep.subr.mxu0 0.0
    %5167 = vmatpush2.msra.mxu0 0.0
    %5168 = vmatprep.mubr.f32.mxu0 0.0
    %5169 = vmatmul.mubr.f32.gmra.mxu0 %v5102
    %v5170 = vpop.f32.mrf.mxu0
    %v5171 = vadd.f32 0.0, %v5170
    %v5172 = vpop.f32.mrf.mxu0
    %5173 = vdwg.mxu0
    %v5174 = vadd.f32 %v5093, %v5171
    %v5175 = vld [vmem:[%s1724] sm:$0xff]
    %5176 = vrot.lane.b32.xlu0 %v3633, 108
    %v5177 = vpop.permute.xlu0 %5176
    %5178 = vrot.lane.b32.xlu0 %v3634, 108
    %v5179 = vpop.permute.xlu0 %5178
    %v5180 = vsel %vm1730, %v5177, %v5179
    %v5183 = vsel %vm68, %v5175, 0
    %5185 = vmatprep.subr.mxu0 0.0
    %5186 = vmatpush1.msra.mxu0 0.0
    %5187 = vmatprep.subr.mxu0 0.0
    %5188 = vmatpush1.msra.mxu0 0.0
    %5189 = vmatprep.subr.mxu0 0.0
    %5190 = vmatpush1.msra.mxu0 0.0
    %5191 = vmatprep.subr.mxu0 0.0
    %5192 = vmatpush1.msra.mxu0 0.0
    %5193 = vmatprep.subr.mxu0 0.0
    %5194 = vmatpush1.msra.mxu0 0.0
    %5195 = vmatprep.subr.mxu0 0.0
    %5196 = vmatpush1.msra.mxu0 0.0
    %5197 = vmatprep.subr.mxu0 0.0
    %5198 = vmatpush1.msra.mxu0 0.0
    %5199 = vmatprep.subr.mxu0 0.0
    %5200 = vmatpush1.msra.mxu0 0.0
    %5201 = vmatprep.subr.mxu0 0.0
    %5202 = vmatpush1.msra.mxu0 0.0
    %5203 = vmatprep.subr.mxu0 0.0
    %5204 = vmatpush1.msra.mxu0 0.0
    %5205 = vmatprep.subr.mxu0 0.0
    %5206 = vmatpush1.msra.mxu0 0.0
    %5207 = vmatprep.subr.mxu0 0.0
    %5208 = vmatpush1.msra.mxu0 0.0
    %5209 = vmatprep.subr.mxu0 0.0
    %5210 = vmatpush1.msra.mxu0 0.0
    %5211 = vmatprep.subr.mxu0 0.0
    %5212 = vmatpush1.msra.mxu0 0.0
    %5213 = vmatprep.subr.mxu0 0.0
    %5214 = vmatpush1.msra.mxu0 0.0
    %5215 = vmatprep.subr.mxu0 0.0
    %5216 = vmatpush1.msra.mxu0 %v5180
    %5217 = vmatprep.subr.mxu0 0.0
    %5218 = vmatpush2.msra.mxu0 0.0
    %5219 = vmatprep.subr.mxu0 0.0
    %5220 = vmatpush2.msra.mxu0 0.0
    %5221 = vmatprep.subr.mxu0 0.0
    %5222 = vmatpush2.msra.mxu0 0.0
    %5223 = vmatprep.subr.mxu0 0.0
    %5224 = vmatpush2.msra.mxu0 0.0
    %5225 = vmatprep.subr.mxu0 0.0
    %5226 = vmatpush2.msra.mxu0 0.0
    %5227 = vmatprep.subr.mxu0 0.0
    %5228 = vmatpush2.msra.mxu0 0.0
    %5229 = vmatprep.subr.mxu0 0.0
    %5230 = vmatpush2.msra.mxu0 0.0
    %5231 = vmatprep.subr.mxu0 0.0
    %5232 = vmatpush2.msra.mxu0 0.0
    %5233 = vmatprep.subr.mxu0 0.0
    %5234 = vmatpush2.msra.mxu0 0.0
    %5235 = vmatprep.subr.mxu0 0.0
    %5236 = vmatpush2.msra.mxu0 0.0
    %5237 = vmatprep.subr.mxu0 0.0
    %5238 = vmatpush2.msra.mxu0 0.0
    %5239 = vmatprep.subr.mxu0 0.0
    %5240 = vmatpush2.msra.mxu0 0.0
    %5241 = vmatprep.subr.mxu0 0.0
    %5242 = vmatpush2.msra.mxu0 0.0
    %5243 = vmatprep.subr.mxu0 0.0
    %5244 = vmatpush2.msra.mxu0 0.0
    %5245 = vmatprep.subr.mxu0 0.0
    %5246 = vmatpush2.msra.mxu0 0.0
    %5247 = vmatprep.subr.mxu0 0.0
    %5248 = vmatpush2.msra.mxu0 0.0
    %5249 = vmatprep.mubr.f32.mxu0 0.0
    %5250 = vmatmul.mubr.f32.gmra.mxu0 %v5183
    %v5251 = vpop.f32.mrf.mxu0
    %v5252 = vadd.f32 0.0, %v5251
    %v5253 = vpop.f32.mrf.mxu0
    %5254 = vdwg.mxu0
    %v5255 = vadd.f32 %v5174, %v5252
    %v5256 = vmax.f32 %v5255, 0.0
    %v5257 = vsel %vm1809, %v5256, 0.0
    %5258 = vst [vmem:[#allocation4] sm:$0xff] %v5257
    %5260 = vrot.lane.b32.xlu0 %v5257, 10
    %v5261 = vpop.permute.xlu0 %5260
    %5263 = vst.msk [vmem:[%s36] sm:$0xff] %vm63, %v5261
    %5264 = vst.msk [vmem:[%s36 + $0x8] sm:$0xff] %vm27, %v5261
    %v5265 = vld [vmem:[%s5] sm:$0xff]
    %v5266 = vld [vmem:[%s36] sm:$0xff]
    %v5268 = vsel %vm68, %v5265, 0
    %5270 = vmatprep.subr.mxu0 0.0
    %5271 = vmatpush1.msra.mxu0 0.0
    %5272 = vmatprep.subr.mxu0 0.0
    %5273 = vmatpush1.msra.mxu0 0.0
    %5274 = vmatprep.subr.mxu0 0.0
    %5275 = vmatpush1.msra.mxu0 0.0
    %5276 = vmatprep.subr.mxu0 0.0
    %5277 = vmatpush1.msra.mxu0 0.0
    %5278 = vmatprep.subr.mxu0 0.0
    %5279 = vmatpush1.msra.mxu0 0.0
    %5280 = vmatprep.subr.mxu0 0.0
    %5281 = vmatpush1.msra.mxu0 0.0
    %5282 = vmatprep.subr.mxu0 0.0
    %5283 = vmatpush1.msra.mxu0 0.0
    %5284 = vmatprep.subr.mxu0 0.0
    %5285 = vmatpush1.msra.mxu0 0.0
    %5286 = vmatprep.subr.mxu0 0.0
    %5287 = vmatpush1.msra.mxu0 0.0
    %5288 = vmatprep.subr.mxu0 0.0
    %5289 = vmatpush1.msra.mxu0 0.0
    %5290 = vmatprep.subr.mxu0 0.0
    %5291 = vmatpush1.msra.mxu0 0.0
    %5292 = vmatprep.subr.mxu0 0.0
    %5293 = vmatpush1.msra.mxu0 0.0
    %5294 = vmatprep.subr.mxu0 0.0
    %5295 = vmatpush1.msra.mxu0 0.0
    %5296 = vmatprep.subr.mxu0 0.0
    %5297 = vmatpush1.msra.mxu0 0.0
    %5298 = vmatprep.subr.mxu0 0.0
    %5299 = vmatpush1.msra.mxu0 0.0
    %5300 = vmatprep.subr.mxu0 0.0
    %5301 = vmatpush1.msra.mxu0 %v5266
    %5302 = vmatprep.subr.mxu0 0.0
    %5303 = vmatpush2.msra.mxu0 0.0
    %5304 = vmatprep.subr.mxu0 0.0
    %5305 = vmatpush2.msra.mxu0 0.0
    %5306 = vmatprep.subr.mxu0 0.0
    %5307 = vmatpush2.msra.mxu0 0.0
    %5308 = vmatprep.subr.mxu0 0.0
    %5309 = vmatpush2.msra.mxu0 0.0
    %5310 = vmatprep.subr.mxu0 0.0
    %5311 = vmatpush2.msra.mxu0 0.0
    %5312 = vmatprep.subr.mxu0 0.0
    %5313 = vmatpush2.msra.mxu0 0.0
    %5314 = vmatprep.subr.mxu0 0.0
    %5315 = vmatpush2.msra.mxu0 0.0
    %5316 = vmatprep.subr.mxu0 0.0
    %5317 = vmatpush2.msra.mxu0 0.0
    %5318 = vmatprep.subr.mxu0 0.0
    %5319 = vmatpush2.msra.mxu0 0.0
    %5320 = vmatprep.subr.mxu0 0.0
    %5321 = vmatpush2.msra.mxu0 0.0
    %5322 = vmatprep.subr.mxu0 0.0
    %5323 = vmatpush2.msra.mxu0 0.0
    %5324 = vmatprep.subr.mxu0 0.0
    %5325 = vmatpush2.msra.mxu0 0.0
    %5326 = vmatprep.subr.mxu0 0.0
    %5327 = vmatpush2.msra.mxu0 0.0
    %5328 = vmatprep.subr.mxu0 0.0
    %5329 = vmatpush2.msra.mxu0 0.0
    %5330 = vmatprep.subr.mxu0 0.0
    %5331 = vmatpush2.msra.mxu0 0.0
    %5332 = vmatprep.subr.mxu0 0.0
    %5333 = vmatpush2.msra.mxu0 0.0
    %5334 = vmatprep.mubr.f32.mxu0 0.0
    %5335 = vmatmul.mubr.f32.gmra.mxu0 %v5268
    %v5336 = vpop.f32.mrf.mxu0
    %v5337 = vadd.f32 0.0, %v5336
    %v5338 = vpop.f32.mrf.mxu0
    %5339 = vdwg.mxu0
    %v5340 = vadd.f32 %v52, %v5337
    %v5341 = vld [vmem:[%s1894] sm:$0xff]
    %v5342 = vld [vmem:[%s36] sm:$0xff]
    %v5343 = vld [vmem:[%s36 + $0x8] sm:$0xff]
    %5346 = vrot.lane.b32.xlu0 %v5342, 127
    %v5347 = vpop.permute.xlu0 %5346
    %5348 = vrot.lane.b32.xlu0 %v5343, 127
    %v5349 = vpop.permute.xlu0 %5348
    %v5350 = vsel %vm153, %v5347, %v5349
    %v5353 = vsel %vm68, %v5341, 0
    %5355 = vmatprep.subr.mxu0 0.0
    %5356 = vmatpush1.msra.mxu0 0.0
    %5357 = vmatprep.subr.mxu0 0.0
    %5358 = vmatpush1.msra.mxu0 0.0
    %5359 = vmatprep.subr.mxu0 0.0
    %5360 = vmatpush1.msra.mxu0 0.0
    %5361 = vmatprep.subr.mxu0 0.0
    %5362 = vmatpush1.msra.mxu0 0.0
    %5363 = vmatprep.subr.mxu0 0.0
    %5364 = vmatpush1.msra.mxu0 0.0
    %5365 = vmatprep.subr.mxu0 0.0
    %5366 = vmatpush1.msra.mxu0 0.0
    %5367 = vmatprep.subr.mxu0 0.0
    %5368 = vmatpush1.msra.mxu0 0.0
    %5369 = vmatprep.subr.mxu0 0.0
    %5370 = vmatpush1.msra.mxu0 0.0
    %5371 = vmatprep.subr.mxu0 0.0
    %5372 = vmatpush1.msra.mxu0 0.0
    %5373 = vmatprep.subr.mxu0 0.0
    %5374 = vmatpush1.msra.mxu0 0.0
    %5375 = vmatprep.subr.mxu0 0.0
    %5376 = vmatpush1.msra.mxu0 0.0
    %5377 = vmatprep.subr.mxu0 0.0
    %5378 = vmatpush1.msra.mxu0 0.0
    %5379 = vmatprep.subr.mxu0 0.0
    %5380 = vmatpush1.msra.mxu0 0.0
    %5381 = vmatprep.subr.mxu0 0.0
    %5382 = vmatpush1.msra.mxu0 0.0
    %5383 = vmatprep.subr.mxu0 0.0
    %5384 = vmatpush1.msra.mxu0 0.0
    %5385 = vmatprep.subr.mxu0 0.0
    %5386 = vmatpush1.msra.mxu0 %v5350
    %5387 = vmatprep.subr.mxu0 0.0
    %5388 = vmatpush2.msra.mxu0 0.0
    %5389 = vmatprep.subr.mxu0 0.0
    %5390 = vmatpush2.msra.mxu0 0.0
    %5391 = vmatprep.subr.mxu0 0.0
    %5392 = vmatpush2.msra.mxu0 0.0
    %5393 = vmatprep.subr.mxu0 0.0
    %5394 = vmatpush2.msra.mxu0 0.0
    %5395 = vmatprep.subr.mxu0 0.0
    %5396 = vmatpush2.msra.mxu0 0.0
    %5397 = vmatprep.subr.mxu0 0.0
    %5398 = vmatpush2.msra.mxu0 0.0
    %5399 = vmatprep.subr.mxu0 0.0
    %5400 = vmatpush2.msra.mxu0 0.0
    %5401 = vmatprep.subr.mxu0 0.0
    %5402 = vmatpush2.msra.mxu0 0.0
    %5403 = vmatprep.subr.mxu0 0.0
    %5404 = vmatpush2.msra.mxu0 0.0
    %5405 = vmatprep.subr.mxu0 0.0
    %5406 = vmatpush2.msra.mxu0 0.0
    %5407 = vmatprep.subr.mxu0 0.0
    %5408 = vmatpush2.msra.mxu0 0.0
    %5409 = vmatprep.subr.mxu0 0.0
    %5410 = vmatpush2.msra.mxu0 0.0
    %5411 = vmatprep.subr.mxu0 0.0
    %5412 = vmatpush2.msra.mxu0 0.0
    %5413 = vmatprep.subr.mxu0 0.0
    %5414 = vmatpush2.msra.mxu0 0.0
    %5415 = vmatprep.subr.mxu0 0.0
    %5416 = vmatpush2.msra.mxu0 0.0
    %5417 = vmatprep.subr.mxu0 0.0
    %5418 = vmatpush2.msra.mxu0 0.0
    %5419 = vmatprep.mubr.f32.mxu0 0.0
    %5420 = vmatmul.mubr.f32.gmra.mxu0 %v5353
    %v5421 = vpop.f32.mrf.mxu0
    %v5422 = vadd.f32 0.0, %v5421
    %v5423 = vpop.f32.mrf.mxu0
    %5424 = vdwg.mxu0
    %v5425 = vadd.f32 %v5340, %v5422
    %v5426 = vld [vmem:[%s1980] sm:$0xff]
    %5427 = vrot.lane.b32.xlu0 %v5342, 126
    %v5428 = vpop.permute.xlu0 %5427
    %5429 = vrot.lane.b32.xlu0 %v5343, 126
    %v5430 = vpop.permute.xlu0 %5429
    %v5431 = vsel %vm236, %v5428, %v5430
    %v5434 = vsel %vm68, %v5426, 0
    %5436 = vmatprep.subr.mxu0 0.0
    %5437 = vmatpush1.msra.mxu0 0.0
    %5438 = vmatprep.subr.mxu0 0.0
    %5439 = vmatpush1.msra.mxu0 0.0
    %5440 = vmatprep.subr.mxu0 0.0
    %5441 = vmatpush1.msra.mxu0 0.0
    %5442 = vmatprep.subr.mxu0 0.0
    %5443 = vmatpush1.msra.mxu0 0.0
    %5444 = vmatprep.subr.mxu0 0.0
    %5445 = vmatpush1.msra.mxu0 0.0
    %5446 = vmatprep.subr.mxu0 0.0
    %5447 = vmatpush1.msra.mxu0 0.0
    %5448 = vmatprep.subr.mxu0 0.0
    %5449 = vmatpush1.msra.mxu0 0.0
    %5450 = vmatprep.subr.mxu0 0.0
    %5451 = vmatpush1.msra.mxu0 0.0
    %5452 = vmatprep.subr.mxu0 0.0
    %5453 = vmatpush1.msra.mxu0 0.0
    %5454 = vmatprep.subr.mxu0 0.0
    %5455 = vmatpush1.msra.mxu0 0.0
    %5456 = vmatprep.subr.mxu0 0.0
    %5457 = vmatpush1.msra.mxu0 0.0
    %5458 = vmatprep.subr.mxu0 0.0
    %5459 = vmatpush1.msra.mxu0 0.0
    %5460 = vmatprep.subr.mxu0 0.0
    %5461 = vmatpush1.msra.mxu0 0.0
    %5462 = vmatprep.subr.mxu0 0.0
    %5463 = vmatpush1.msra.mxu0 0.0
    %5464 = vmatprep.subr.mxu0 0.0
    %5465 = vmatpush1.msra.mxu0 0.0
    %5466 = vmatprep.subr.mxu0 0.0
    %5467 = vmatpush1.msra.mxu0 %v5431
    %5468 = vmatprep.subr.mxu0 0.0
    %5469 = vmatpush2.msra.mxu0 0.0
    %5470 = vmatprep.subr.mxu0 0.0
    %5471 = vmatpush2.msra.mxu0 0.0
    %5472 = vmatprep.subr.mxu0 0.0
    %5473 = vmatpush2.msra.mxu0 0.0
    %5474 = vmatprep.subr.mxu0 0.0
    %5475 = vmatpush2.msra.mxu0 0.0
    %5476 = vmatprep.subr.mxu0 0.0
    %5477 = vmatpush2.msra.mxu0 0.0
    %5478 = vmatprep.subr.mxu0 0.0
    %5479 = vmatpush2.msra.mxu0 0.0
    %5480 = vmatprep.subr.mxu0 0.0
    %5481 = vmatpush2.msra.mxu0 0.0
    %5482 = vmatprep.subr.mxu0 0.0
    %5483 = vmatpush2.msra.mxu0 0.0
    %5484 = vmatprep.subr.mxu0 0.0
    %5485 = vmatpush2.msra.mxu0 0.0
    %5486 = vmatprep.subr.mxu0 0.0
    %5487 = vmatpush2.msra.mxu0 0.0
    %5488 = vmatprep.subr.mxu0 0.0
    %5489 = vmatpush2.msra.mxu0 0.0
    %5490 = vmatprep.subr.mxu0 0.0
    %5491 = vmatpush2.msra.mxu0 0.0
    %5492 = vmatprep.subr.mxu0 0.0
    %5493 = vmatpush2.msra.mxu0 0.0
    %5494 = vmatprep.subr.mxu0 0.0
    %5495 = vmatpush2.msra.mxu0 0.0
    %5496 = vmatprep.subr.mxu0 0.0
    %5497 = vmatpush2.msra.mxu0 0.0
    %5498 = vmatprep.subr.mxu0 0.0
    %5499 = vmatpush2.msra.mxu0 0.0
    %5500 = vmatprep.mubr.f32.mxu0 0.0
    %5501 = vmatmul.mubr.f32.gmra.mxu0 %v5434
    %v5502 = vpop.f32.mrf.mxu0
    %v5503 = vadd.f32 0.0, %v5502
    %v5504 = vpop.f32.mrf.mxu0
    %5505 = vdwg.mxu0
    %v5506 = vadd.f32 %v5425, %v5503
    %v5507 = vld [vmem:[%s2062] sm:$0xff]
    %5508 = vrot.lane.b32.xlu0 %v5342, 125
    %v5509 = vpop.permute.xlu0 %5508
    %5510 = vrot.lane.b32.xlu0 %v5343, 125
    %v5511 = vpop.permute.xlu0 %5510
    %v5512 = vsel %vm319, %v5509, %v5511
    %v5515 = vsel %vm68, %v5507, 0
    %5517 = vmatprep.subr.mxu0 0.0
    %5518 = vmatpush1.msra.mxu0 0.0
    %5519 = vmatprep.subr.mxu0 0.0
    %5520 = vmatpush1.msra.mxu0 0.0
    %5521 = vmatprep.subr.mxu0 0.0
    %5522 = vmatpush1.msra.mxu0 0.0
    %5523 = vmatprep.subr.mxu0 0.0
    %5524 = vmatpush1.msra.mxu0 0.0
    %5525 = vmatprep.subr.mxu0 0.0
    %5526 = vmatpush1.msra.mxu0 0.0
    %5527 = vmatprep.subr.mxu0 0.0
    %5528 = vmatpush1.msra.mxu0 0.0
    %5529 = vmatprep.subr.mxu0 0.0
    %5530 = vmatpush1.msra.mxu0 0.0
    %5531 = vmatprep.subr.mxu0 0.0
    %5532 = vmatpush1.msra.mxu0 0.0
    %5533 = vmatprep.subr.mxu0 0.0
    %5534 = vmatpush1.msra.mxu0 0.0
    %5535 = vmatprep.subr.mxu0 0.0
    %5536 = vmatpush1.msra.mxu0 0.0
    %5537 = vmatprep.subr.mxu0 0.0
    %5538 = vmatpush1.msra.mxu0 0.0
    %5539 = vmatprep.subr.mxu0 0.0
    %5540 = vmatpush1.msra.mxu0 0.0
    %5541 = vmatprep.subr.mxu0 0.0
    %5542 = vmatpush1.msra.mxu0 0.0
    %5543 = vmatprep.subr.mxu0 0.0
    %5544 = vmatpush1.msra.mxu0 0.0
    %5545 = vmatprep.subr.mxu0 0.0
    %5546 = vmatpush1.msra.mxu0 0.0
    %5547 = vmatprep.subr.mxu0 0.0
    %5548 = vmatpush1.msra.mxu0 %v5512
    %5549 = vmatprep.subr.mxu0 0.0
    %5550 = vmatpush2.msra.mxu0 0.0
    %5551 = vmatprep.subr.mxu0 0.0
    %5552 = vmatpush2.msra.mxu0 0.0
    %5553 = vmatprep.subr.mxu0 0.0
    %5554 = vmatpush2.msra.mxu0 0.0
    %5555 = vmatprep.subr.mxu0 0.0
    %5556 = vmatpush2.msra.mxu0 0.0
    %5557 = vmatprep.subr.mxu0 0.0
    %5558 = vmatpush2.msra.mxu0 0.0
    %5559 = vmatprep.subr.mxu0 0.0
    %5560 = vmatpush2.msra.mxu0 0.0
    %5561 = vmatprep.subr.mxu0 0.0
    %5562 = vmatpush2.msra.mxu0 0.0
    %5563 = vmatprep.subr.mxu0 0.0
    %5564 = vmatpush2.msra.mxu0 0.0
    %5565 = vmatprep.subr.mxu0 0.0
    %5566 = vmatpush2.msra.mxu0 0.0
    %5567 = vmatprep.subr.mxu0 0.0
    %5568 = vmatpush2.msra.mxu0 0.0
    %5569 = vmatprep.subr.mxu0 0.0
    %5570 = vmatpush2.msra.mxu0 0.0
    %5571 = vmatprep.subr.mxu0 0.0
    %5572 = vmatpush2.msra.mxu0 0.0
    %5573 = vmatprep.subr.mxu0 0.0
    %5574 = vmatpush2.msra.mxu0 0.0
    %5575 = vmatprep.subr.mxu0 0.0
    %5576 = vmatpush2.msra.mxu0 0.0
    %5577 = vmatprep.subr.mxu0 0.0
    %5578 = vmatpush2.msra.mxu0 0.0
    %5579 = vmatprep.subr.mxu0 0.0
    %5580 = vmatpush2.msra.mxu0 0.0
    %5581 = vmatprep.mubr.f32.mxu0 0.0
    %5582 = vmatmul.mubr.f32.gmra.mxu0 %v5515
    %v5583 = vpop.f32.mrf.mxu0
    %v5584 = vadd.f32 0.0, %v5583
    %v5585 = vpop.f32.mrf.mxu0
    %5586 = vdwg.mxu0
    %v5587 = vadd.f32 %v5506, %v5584
    %v5588 = vld [vmem:[%s2144] sm:$0xff]
    %5589 = vrot.lane.b32.xlu0 %v5342, 124
    %v5590 = vpop.permute.xlu0 %5589
    %5591 = vrot.lane.b32.xlu0 %v5343, 124
    %v5592 = vpop.permute.xlu0 %5591
    %v5593 = vsel %vm402, %v5590, %v5592
    %v5596 = vsel %vm68, %v5588, 0
    %5598 = vmatprep.subr.mxu0 0.0
    %5599 = vmatpush1.msra.mxu0 0.0
    %5600 = vmatprep.subr.mxu0 0.0
    %5601 = vmatpush1.msra.mxu0 0.0
    %5602 = vmatprep.subr.mxu0 0.0
    %5603 = vmatpush1.msra.mxu0 0.0
    %5604 = vmatprep.subr.mxu0 0.0
    %5605 = vmatpush1.msra.mxu0 0.0
    %5606 = vmatprep.subr.mxu0 0.0
    %5607 = vmatpush1.msra.mxu0 0.0
    %5608 = vmatprep.subr.mxu0 0.0
    %5609 = vmatpush1.msra.mxu0 0.0
    %5610 = vmatprep.subr.mxu0 0.0
    %5611 = vmatpush1.msra.mxu0 0.0
    %5612 = vmatprep.subr.mxu0 0.0
    %5613 = vmatpush1.msra.mxu0 0.0
    %5614 = vmatprep.subr.mxu0 0.0
    %5615 = vmatpush1.msra.mxu0 0.0
    %5616 = vmatprep.subr.mxu0 0.0
    %5617 = vmatpush1.msra.mxu0 0.0
    %5618 = vmatprep.subr.mxu0 0.0
    %5619 = vmatpush1.msra.mxu0 0.0
    %5620 = vmatprep.subr.mxu0 0.0
    %5621 = vmatpush1.msra.mxu0 0.0
    %5622 = vmatprep.subr.mxu0 0.0
    %5623 = vmatpush1.msra.mxu0 0.0
    %5624 = vmatprep.subr.mxu0 0.0
    %5625 = vmatpush1.msra.mxu0 0.0
    %5626 = vmatprep.subr.mxu0 0.0
    %5627 = vmatpush1.msra.mxu0 0.0
    %5628 = vmatprep.subr.mxu0 0.0
    %5629 = vmatpush1.msra.mxu0 %v5593
    %5630 = vmatprep.subr.mxu0 0.0
    %5631 = vmatpush2.msra.mxu0 0.0
    %5632 = vmatprep.subr.mxu0 0.0
    %5633 = vmatpush2.msra.mxu0 0.0
    %5634 = vmatprep.subr.mxu0 0.0
    %5635 = vmatpush2.msra.mxu0 0.0
    %5636 = vmatprep.subr.mxu0 0.0
    %5637 = vmatpush2.msra.mxu0 0.0
    %5638 = vmatprep.subr.mxu0 0.0
    %5639 = vmatpush2.msra.mxu0 0.0
    %5640 = vmatprep.subr.mxu0 0.0
    %5641 = vmatpush2.msra.mxu0 0.0
    %5642 = vmatprep.subr.mxu0 0.0
    %5643 = vmatpush2.msra.mxu0 0.0
    %5644 = vmatprep.subr.mxu0 0.0
    %5645 = vmatpush2.msra.mxu0 0.0
    %5646 = vmatprep.subr.mxu0 0.0
    %5647 = vmatpush2.msra.mxu0 0.0
    %5648 = vmatprep.subr.mxu0 0.0
    %5649 = vmatpush2.msra.mxu0 0.0
    %5650 = vmatprep.subr.mxu0 0.0
    %5651 = vmatpush2.msra.mxu0 0.0
    %5652 = vmatprep.subr.mxu0 0.0
    %5653 = vmatpush2.msra.mxu0 0.0
    %5654 = vmatprep.subr.mxu0 0.0
    %5655 = vmatpush2.msra.mxu0 0.0
    %5656 = vmatprep.subr.mxu0 0.0
    %5657 = vmatpush2.msra.mxu0 0.0
    %5658 = vmatprep.subr.mxu0 0.0
    %5659 = vmatpush2.msra.mxu0 0.0
    %5660 = vmatprep.subr.mxu0 0.0
    %5661 = vmatpush2.msra.mxu0 0.0
    %5662 = vmatprep.mubr.f32.mxu0 0.0
    %5663 = vmatmul.mubr.f32.gmra.mxu0 %v5596
    %v5664 = vpop.f32.mrf.mxu0
    %v5665 = vadd.f32 0.0, %v5664
    %v5666 = vpop.f32.mrf.mxu0
    %5667 = vdwg.mxu0
    %v5668 = vadd.f32 %v5587, %v5665
    %v5669 = vld [vmem:[%s2226] sm:$0xff]
    %5670 = vrot.lane.b32.xlu0 %v5342, 123
    %v5671 = vpop.permute.xlu0 %5670
    %5672 = vrot.lane.b32.xlu0 %v5343, 123
    %v5673 = vpop.permute.xlu0 %5672
    %v5674 = vsel %vm485, %v5671, %v5673
    %v5677 = vsel %vm68, %v5669, 0
    %5679 = vmatprep.subr.mxu0 0.0
    %5680 = vmatpush1.msra.mxu0 0.0
    %5681 = vmatprep.subr.mxu0 0.0
    %5682 = vmatpush1.msra.mxu0 0.0
    %5683 = vmatprep.subr.mxu0 0.0
    %5684 = vmatpush1.msra.mxu0 0.0
    %5685 = vmatprep.subr.mxu0 0.0
    %5686 = vmatpush1.msra.mxu0 0.0
    %5687 = vmatprep.subr.mxu0 0.0
    %5688 = vmatpush1.msra.mxu0 0.0
    %5689 = vmatprep.subr.mxu0 0.0
    %5690 = vmatpush1.msra.mxu0 0.0
    %5691 = vmatprep.subr.mxu0 0.0
    %5692 = vmatpush1.msra.mxu0 0.0
    %5693 = vmatprep.subr.mxu0 0.0
    %5694 = vmatpush1.msra.mxu0 0.0
    %5695 = vmatprep.subr.mxu0 0.0
    %5696 = vmatpush1.msra.mxu0 0.0
    %5697 = vmatprep.subr.mxu0 0.0
    %5698 = vmatpush1.msra.mxu0 0.0
    %5699 = vmatprep.subr.mxu0 0.0
    %5700 = vmatpush1.msra.mxu0 0.0
    %5701 = vmatprep.subr.mxu0 0.0
    %5702 = vmatpush1.msra.mxu0 0.0
    %5703 = vmatprep.subr.mxu0 0.0
    %5704 = vmatpush1.msra.mxu0 0.0
    %5705 = vmatprep.subr.mxu0 0.0
    %5706 = vmatpush1.msra.mxu0 0.0
    %5707 = vmatprep.subr.mxu0 0.0
    %5708 = vmatpush1.msra.mxu0 0.0
    %5709 = vmatprep.subr.mxu0 0.0
    %5710 = vmatpush1.msra.mxu0 %v5674
    %5711 = vmatprep.subr.mxu0 0.0
    %5712 = vmatpush2.msra.mxu0 0.0
    %5713 = vmatprep.subr.mxu0 0.0
    %5714 = vmatpush2.msra.mxu0 0.0
    %5715 = vmatprep.subr.mxu0 0.0
    %5716 = vmatpush2.msra.mxu0 0.0
    %5717 = vmatprep.subr.mxu0 0.0
    %5718 = vmatpush2.msra.mxu0 0.0
    %5719 = vmatprep.subr.mxu0 0.0
    %5720 = vmatpush2.msra.mxu0 0.0
    %5721 = vmatprep.subr.mxu0 0.0
    %5722 = vmatpush2.msra.mxu0 0.0
    %5723 = vmatprep.subr.mxu0 0.0
    %5724 = vmatpush2.msra.mxu0 0.0
    %5725 = vmatprep.subr.mxu0 0.0
    %5726 = vmatpush2.msra.mxu0 0.0
    %5727 = vmatprep.subr.mxu0 0.0
    %5728 = vmatpush2.msra.mxu0 0.0
    %5729 = vmatprep.subr.mxu0 0.0
    %5730 = vmatpush2.msra.mxu0 0.0
    %5731 = vmatprep.subr.mxu0 0.0
    %5732 = vmatpush2.msra.mxu0 0.0
    %5733 = vmatprep.subr.mxu0 0.0
    %5734 = vmatpush2.msra.mxu0 0.0
    %5735 = vmatprep.subr.mxu0 0.0
    %5736 = vmatpush2.msra.mxu0 0.0
    %5737 = vmatprep.subr.mxu0 0.0
    %5738 = vmatpush2.msra.mxu0 0.0
    %5739 = vmatprep.subr.mxu0 0.0
    %5740 = vmatpush2.msra.mxu0 0.0
    %5741 = vmatprep.subr.mxu0 0.0
    %5742 = vmatpush2.msra.mxu0 0.0
    %5743 = vmatprep.mubr.f32.mxu0 0.0
    %5744 = vmatmul.mubr.f32.gmra.mxu0 %v5677
    %v5745 = vpop.f32.mrf.mxu0
    %v5746 = vadd.f32 0.0, %v5745
    %v5747 = vpop.f32.mrf.mxu0
    %5748 = vdwg.mxu0
    %v5749 = vadd.f32 %v5668, %v5746
    %v5750 = vld [vmem:[%s2308] sm:$0xff]
    %5751 = vrot.lane.b32.xlu0 %v5342, 122
    %v5752 = vpop.permute.xlu0 %5751
    %5753 = vrot.lane.b32.xlu0 %v5343, 122
    %v5754 = vpop.permute.xlu0 %5753
    %v5755 = vsel %vm568, %v5752, %v5754
    %v5758 = vsel %vm68, %v5750, 0
    %5760 = vmatprep.subr.mxu0 0.0
    %5761 = vmatpush1.msra.mxu0 0.0
    %5762 = vmatprep.subr.mxu0 0.0
    %5763 = vmatpush1.msra.mxu0 0.0
    %5764 = vmatprep.subr.mxu0 0.0
    %5765 = vmatpush1.msra.mxu0 0.0
    %5766 = vmatprep.subr.mxu0 0.0
    %5767 = vmatpush1.msra.mxu0 0.0
    %5768 = vmatprep.subr.mxu0 0.0
    %5769 = vmatpush1.msra.mxu0 0.0
    %5770 = vmatprep.subr.mxu0 0.0
    %5771 = vmatpush1.msra.mxu0 0.0
    %5772 = vmatprep.subr.mxu0 0.0
    %5773 = vmatpush1.msra.mxu0 0.0
    %5774 = vmatprep.subr.mxu0 0.0
    %5775 = vmatpush1.msra.mxu0 0.0
    %5776 = vmatprep.subr.mxu0 0.0
    %5777 = vmatpush1.msra.mxu0 0.0
    %5778 = vmatprep.subr.mxu0 0.0
    %5779 = vmatpush1.msra.mxu0 0.0
    %5780 = vmatprep.subr.mxu0 0.0
    %5781 = vmatpush1.msra.mxu0 0.0
    %5782 = vmatprep.subr.mxu0 0.0
    %5783 = vmatpush1.msra.mxu0 0.0
    %5784 = vmatprep.subr.mxu0 0.0
    %5785 = vmatpush1.msra.mxu0 0.0
    %5786 = vmatprep.subr.mxu0 0.0
    %5787 = vmatpush1.msra.mxu0 0.0
    %5788 = vmatprep.subr.mxu0 0.0
    %5789 = vmatpush1.msra.mxu0 0.0
    %5790 = vmatprep.subr.mxu0 0.0
    %5791 = vmatpush1.msra.mxu0 %v5755
    %5792 = vmatprep.subr.mxu0 0.0
    %5793 = vmatpush2.msra.mxu0 0.0
    %5794 = vmatprep.subr.mxu0 0.0
    %5795 = vmatpush2.msra.mxu0 0.0
    %5796 = vmatprep.subr.mxu0 0.0
    %5797 = vmatpush2.msra.mxu0 0.0
    %5798 = vmatprep.subr.mxu0 0.0
    %5799 = vmatpush2.msra.mxu0 0.0
    %5800 = vmatprep.subr.mxu0 0.0
    %5801 = vmatpush2.msra.mxu0 0.0
    %5802 = vmatprep.subr.mxu0 0.0
    %5803 = vmatpush2.msra.mxu0 0.0
    %5804 = vmatprep.subr.mxu0 0.0
    %5805 = vmatpush2.msra.mxu0 0.0
    %5806 = vmatprep.subr.mxu0 0.0
    %5807 = vmatpush2.msra.mxu0 0.0
    %5808 = vmatprep.subr.mxu0 0.0
    %5809 = vmatpush2.msra.mxu0 0.0
    %5810 = vmatprep.subr.mxu0 0.0
    %5811 = vmatpush2.msra.mxu0 0.0
    %5812 = vmatprep.subr.mxu0 0.0
    %5813 = vmatpush2.msra.mxu0 0.0
    %5814 = vmatprep.subr.mxu0 0.0
    %5815 = vmatpush2.msra.mxu0 0.0
    %5816 = vmatprep.subr.mxu0 0.0
    %5817 = vmatpush2.msra.mxu0 0.0
    %5818 = vmatprep.subr.mxu0 0.0
    %5819 = vmatpush2.msra.mxu0 0.0
    %5820 = vmatprep.subr.mxu0 0.0
    %5821 = vmatpush2.msra.mxu0 0.0
    %5822 = vmatprep.subr.mxu0 0.0
    %5823 = vmatpush2.msra.mxu0 0.0
    %5824 = vmatprep.mubr.f32.mxu0 0.0
    %5825 = vmatmul.mubr.f32.gmra.mxu0 %v5758
    %v5826 = vpop.f32.mrf.mxu0
    %v5827 = vadd.f32 0.0, %v5826
    %v5828 = vpop.f32.mrf.mxu0
    %5829 = vdwg.mxu0
    %v5830 = vadd.f32 %v5749, %v5827
    %v5831 = vld [vmem:[%s2390] sm:$0xff]
    %5832 = vrot.lane.b32.xlu0 %v5342, 121
    %v5833 = vpop.permute.xlu0 %5832
    %5834 = vrot.lane.b32.xlu0 %v5343, 121
    %v5835 = vpop.permute.xlu0 %5834
    %v5836 = vsel %vm651, %v5833, %v5835
    %v5839 = vsel %vm68, %v5831, 0
    %5841 = vmatprep.subr.mxu0 0.0
    %5842 = vmatpush1.msra.mxu0 0.0
    %5843 = vmatprep.subr.mxu0 0.0
    %5844 = vmatpush1.msra.mxu0 0.0
    %5845 = vmatprep.subr.mxu0 0.0
    %5846 = vmatpush1.msra.mxu0 0.0
    %5847 = vmatprep.subr.mxu0 0.0
    %5848 = vmatpush1.msra.mxu0 0.0
    %5849 = vmatprep.subr.mxu0 0.0
    %5850 = vmatpush1.msra.mxu0 0.0
    %5851 = vmatprep.subr.mxu0 0.0
    %5852 = vmatpush1.msra.mxu0 0.0
    %5853 = vmatprep.subr.mxu0 0.0
    %5854 = vmatpush1.msra.mxu0 0.0
    %5855 = vmatprep.subr.mxu0 0.0
    %5856 = vmatpush1.msra.mxu0 0.0
    %5857 = vmatprep.subr.mxu0 0.0
    %5858 = vmatpush1.msra.mxu0 0.0
    %5859 = vmatprep.subr.mxu0 0.0
    %5860 = vmatpush1.msra.mxu0 0.0
    %5861 = vmatprep.subr.mxu0 0.0
    %5862 = vmatpush1.msra.mxu0 0.0
    %5863 = vmatprep.subr.mxu0 0.0
    %5864 = vmatpush1.msra.mxu0 0.0
    %5865 = vmatprep.subr.mxu0 0.0
    %5866 = vmatpush1.msra.mxu0 0.0
    %5867 = vmatprep.subr.mxu0 0.0
    %5868 = vmatpush1.msra.mxu0 0.0
    %5869 = vmatprep.subr.mxu0 0.0
    %5870 = vmatpush1.msra.mxu0 0.0
    %5871 = vmatprep.subr.mxu0 0.0
    %5872 = vmatpush1.msra.mxu0 %v5836
    %5873 = vmatprep.subr.mxu0 0.0
    %5874 = vmatpush2.msra.mxu0 0.0
    %5875 = vmatprep.subr.mxu0 0.0
    %5876 = vmatpush2.msra.mxu0 0.0
    %5877 = vmatprep.subr.mxu0 0.0
    %5878 = vmatpush2.msra.mxu0 0.0
    %5879 = vmatprep.subr.mxu0 0.0
    %5880 = vmatpush2.msra.mxu0 0.0
    %5881 = vmatprep.subr.mxu0 0.0
    %5882 = vmatpush2.msra.mxu0 0.0
    %5883 = vmatprep.subr.mxu0 0.0
    %5884 = vmatpush2.msra.mxu0 0.0
    %5885 = vmatprep.subr.mxu0 0.0
    %5886 = vmatpush2.msra.mxu0 0.0
    %5887 = vmatprep.subr.mxu0 0.0
    %5888 = vmatpush2.msra.mxu0 0.0
    %5889 = vmatprep.subr.mxu0 0.0
    %5890 = vmatpush2.msra.mxu0 0.0
    %5891 = vmatprep.subr.mxu0 0.0
    %5892 = vmatpush2.msra.mxu0 0.0
    %5893 = vmatprep.subr.mxu0 0.0
    %5894 = vmatpush2.msra.mxu0 0.0
    %5895 = vmatprep.subr.mxu0 0.0
    %5896 = vmatpush2.msra.mxu0 0.0
    %5897 = vmatprep.subr.mxu0 0.0
    %5898 = vmatpush2.msra.mxu0 0.0
    %5899 = vmatprep.subr.mxu0 0.0
    %5900 = vmatpush2.msra.mxu0 0.0
    %5901 = vmatprep.subr.mxu0 0.0
    %5902 = vmatpush2.msra.mxu0 0.0
    %5903 = vmatprep.subr.mxu0 0.0
    %5904 = vmatpush2.msra.mxu0 0.0
    %5905 = vmatprep.mubr.f32.mxu0 0.0
    %5906 = vmatmul.mubr.f32.gmra.mxu0 %v5839
    %v5907 = vpop.f32.mrf.mxu0
    %v5908 = vadd.f32 0.0, %v5907
    %v5909 = vpop.f32.mrf.mxu0
    %5910 = vdwg.mxu0
    %v5911 = vadd.f32 %v5830, %v5908
    %v5912 = vld [vmem:[%s2472] sm:$0xff]
    %5913 = vrot.lane.b32.xlu0 %v5342, 120
    %v5914 = vpop.permute.xlu0 %5913
    %5915 = vrot.lane.b32.xlu0 %v5343, 120
    %v5916 = vpop.permute.xlu0 %5915
    %v5917 = vsel %vm734, %v5914, %v5916
    %v5920 = vsel %vm68, %v5912, 0
    %5922 = vmatprep.subr.mxu0 0.0
    %5923 = vmatpush1.msra.mxu0 0.0
    %5924 = vmatprep.subr.mxu0 0.0
    %5925 = vmatpush1.msra.mxu0 0.0
    %5926 = vmatprep.subr.mxu0 0.0
    %5927 = vmatpush1.msra.mxu0 0.0
    %5928 = vmatprep.subr.mxu0 0.0
    %5929 = vmatpush1.msra.mxu0 0.0
    %5930 = vmatprep.subr.mxu0 0.0
    %5931 = vmatpush1.msra.mxu0 0.0
    %5932 = vmatprep.subr.mxu0 0.0
    %5933 = vmatpush1.msra.mxu0 0.0
    %5934 = vmatprep.subr.mxu0 0.0
    %5935 = vmatpush1.msra.mxu0 0.0
    %5936 = vmatprep.subr.mxu0 0.0
    %5937 = vmatpush1.msra.mxu0 0.0
    %5938 = vmatprep.subr.mxu0 0.0
    %5939 = vmatpush1.msra.mxu0 0.0
    %5940 = vmatprep.subr.mxu0 0.0
    %5941 = vmatpush1.msra.mxu0 0.0
    %5942 = vmatprep.subr.mxu0 0.0
    %5943 = vmatpush1.msra.mxu0 0.0
    %5944 = vmatprep.subr.mxu0 0.0
    %5945 = vmatpush1.msra.mxu0 0.0
    %5946 = vmatprep.subr.mxu0 0.0
    %5947 = vmatpush1.msra.mxu0 0.0
    %5948 = vmatprep.subr.mxu0 0.0
    %5949 = vmatpush1.msra.mxu0 0.0
    %5950 = vmatprep.subr.mxu0 0.0
    %5951 = vmatpush1.msra.mxu0 0.0
    %5952 = vmatprep.subr.mxu0 0.0
    %5953 = vmatpush1.msra.mxu0 %v5917
    %5954 = vmatprep.subr.mxu0 0.0
    %5955 = vmatpush2.msra.mxu0 0.0
    %5956 = vmatprep.subr.mxu0 0.0
    %5957 = vmatpush2.msra.mxu0 0.0
    %5958 = vmatprep.subr.mxu0 0.0
    %5959 = vmatpush2.msra.mxu0 0.0
    %5960 = vmatprep.subr.mxu0 0.0
    %5961 = vmatpush2.msra.mxu0 0.0
    %5962 = vmatprep.subr.mxu0 0.0
    %5963 = vmatpush2.msra.mxu0 0.0
    %5964 = vmatprep.subr.mxu0 0.0
    %5965 = vmatpush2.msra.mxu0 0.0
    %5966 = vmatprep.subr.mxu0 0.0
    %5967 = vmatpush2.msra.mxu0 0.0
    %5968 = vmatprep.subr.mxu0 0.0
    %5969 = vmatpush2.msra.mxu0 0.0
    %5970 = vmatprep.subr.mxu0 0.0
    %5971 = vmatpush2.msra.mxu0 0.0
    %5972 = vmatprep.subr.mxu0 0.0
    %5973 = vmatpush2.msra.mxu0 0.0
    %5974 = vmatprep.subr.mxu0 0.0
    %5975 = vmatpush2.msra.mxu0 0.0
    %5976 = vmatprep.subr.mxu0 0.0
    %5977 = vmatpush2.msra.mxu0 0.0
    %5978 = vmatprep.subr.mxu0 0.0
    %5979 = vmatpush2.msra.mxu0 0.0
    %5980 = vmatprep.subr.mxu0 0.0
    %5981 = vmatpush2.msra.mxu0 0.0
    %5982 = vmatprep.subr.mxu0 0.0
    %5983 = vmatpush2.msra.mxu0 0.0
    %5984 = vmatprep.subr.mxu0 0.0
    %5985 = vmatpush2.msra.mxu0 0.0
    %5986 = vmatprep.mubr.f32.mxu0 0.0
    %5987 = vmatmul.mubr.f32.gmra.mxu0 %v5920
    %v5988 = vpop.f32.mrf.mxu0
    %v5989 = vadd.f32 0.0, %v5988
    %v5990 = vpop.f32.mrf.mxu0
    %5991 = vdwg.mxu0
    %v5992 = vadd.f32 %v5911, %v5989
    %v5993 = vld [vmem:[%s2554] sm:$0xff]
    %5994 = vrot.lane.b32.xlu0 %v5342, 119
    %v5995 = vpop.permute.xlu0 %5994
    %5996 = vrot.lane.b32.xlu0 %v5343, 119
    %v5997 = vpop.permute.xlu0 %5996
    %v5998 = vsel %vm817, %v5995, %v5997
    %v6001 = vsel %vm68, %v5993, 0
    %6003 = vmatprep.subr.mxu0 0.0
    %6004 = vmatpush1.msra.mxu0 0.0
    %6005 = vmatprep.subr.mxu0 0.0
    %6006 = vmatpush1.msra.mxu0 0.0
    %6007 = vmatprep.subr.mxu0 0.0
    %6008 = vmatpush1.msra.mxu0 0.0
    %6009 = vmatprep.subr.mxu0 0.0
    %6010 = vmatpush1.msra.mxu0 0.0
    %6011 = vmatprep.subr.mxu0 0.0
    %6012 = vmatpush1.msra.mxu0 0.0
    %6013 = vmatprep.subr.mxu0 0.0
    %6014 = vmatpush1.msra.mxu0 0.0
    %6015 = vmatprep.subr.mxu0 0.0
    %6016 = vmatpush1.msra.mxu0 0.0
    %6017 = vmatprep.subr.mxu0 0.0
    %6018 = vmatpush1.msra.mxu0 0.0
    %6019 = vmatprep.subr.mxu0 0.0
    %6020 = vmatpush1.msra.mxu0 0.0
    %6021 = vmatprep.subr.mxu0 0.0
    %6022 = vmatpush1.msra.mxu0 0.0
    %6023 = vmatprep.subr.mxu0 0.0
    %6024 = vmatpush1.msra.mxu0 0.0
    %6025 = vmatprep.subr.mxu0 0.0
    %6026 = vmatpush1.msra.mxu0 0.0
    %6027 = vmatprep.subr.mxu0 0.0
    %6028 = vmatpush1.msra.mxu0 0.0
    %6029 = vmatprep.subr.mxu0 0.0
    %6030 = vmatpush1.msra.mxu0 0.0
    %6031 = vmatprep.subr.mxu0 0.0
    %6032 = vmatpush1.msra.mxu0 0.0
    %6033 = vmatprep.subr.mxu0 0.0
    %6034 = vmatpush1.msra.mxu0 %v5998
    %6035 = vmatprep.subr.mxu0 0.0
    %6036 = vmatpush2.msra.mxu0 0.0
    %6037 = vmatprep.subr.mxu0 0.0
    %6038 = vmatpush2.msra.mxu0 0.0
    %6039 = vmatprep.subr.mxu0 0.0
    %6040 = vmatpush2.msra.mxu0 0.0
    %6041 = vmatprep.subr.mxu0 0.0
    %6042 = vmatpush2.msra.mxu0 0.0
    %6043 = vmatprep.subr.mxu0 0.0
    %6044 = vmatpush2.msra.mxu0 0.0
    %6045 = vmatprep.subr.mxu0 0.0
    %6046 = vmatpush2.msra.mxu0 0.0
    %6047 = vmatprep.subr.mxu0 0.0
    %6048 = vmatpush2.msra.mxu0 0.0
    %6049 = vmatprep.subr.mxu0 0.0
    %6050 = vmatpush2.msra.mxu0 0.0
    %6051 = vmatprep.subr.mxu0 0.0
    %6052 = vmatpush2.msra.mxu0 0.0
    %6053 = vmatprep.subr.mxu0 0.0
    %6054 = vmatpush2.msra.mxu0 0.0
    %6055 = vmatprep.subr.mxu0 0.0
    %6056 = vmatpush2.msra.mxu0 0.0
    %6057 = vmatprep.subr.mxu0 0.0
    %6058 = vmatpush2.msra.mxu0 0.0
    %6059 = vmatprep.subr.mxu0 0.0
    %6060 = vmatpush2.msra.mxu0 0.0
    %6061 = vmatprep.subr.mxu0 0.0
    %6062 = vmatpush2.msra.mxu0 0.0
    %6063 = vmatprep.subr.mxu0 0.0
    %6064 = vmatpush2.msra.mxu0 0.0
    %6065 = vmatprep.subr.mxu0 0.0
    %6066 = vmatpush2.msra.mxu0 0.0
    %6067 = vmatprep.mubr.f32.mxu0 0.0
    %6068 = vmatmul.mubr.f32.gmra.mxu0 %v6001
    %v6069 = vpop.f32.mrf.mxu0
    %v6070 = vadd.f32 0.0, %v6069
    %v6071 = vpop.f32.mrf.mxu0
    %6072 = vdwg.mxu0
    %v6073 = vadd.f32 %v5992, %v6070
    %v6074 = vld [vmem:[%s2636] sm:$0xff]
    %6075 = vrot.lane.b32.xlu0 %v5342, 118
    %v6076 = vpop.permute.xlu0 %6075
    %6077 = vrot.lane.b32.xlu0 %v5343, 118
    %v6078 = vpop.permute.xlu0 %6077
    %v6079 = vsel %vm900, %v6076, %v6078
    %v6082 = vsel %vm68, %v6074, 0
    %6084 = vmatprep.subr.mxu0 0.0
    %6085 = vmatpush1.msra.mxu0 0.0
    %6086 = vmatprep.subr.mxu0 0.0
    %6087 = vmatpush1.msra.mxu0 0.0
    %6088 = vmatprep.subr.mxu0 0.0
    %6089 = vmatpush1.msra.mxu0 0.0
    %6090 = vmatprep.subr.mxu0 0.0
    %6091 = vmatpush1.msra.mxu0 0.0
    %6092 = vmatprep.subr.mxu0 0.0
    %6093 = vmatpush1.msra.mxu0 0.0
    %6094 = vmatprep.subr.mxu0 0.0
    %6095 = vmatpush1.msra.mxu0 0.0
    %6096 = vmatprep.subr.mxu0 0.0
    %6097 = vmatpush1.msra.mxu0 0.0
    %6098 = vmatprep.subr.mxu0 0.0
    %6099 = vmatpush1.msra.mxu0 0.0
    %6100 = vmatprep.subr.mxu0 0.0
    %6101 = vmatpush1.msra.mxu0 0.0
    %6102 = vmatprep.subr.mxu0 0.0
    %6103 = vmatpush1.msra.mxu0 0.0
    %6104 = vmatprep.subr.mxu0 0.0
    %6105 = vmatpush1.msra.mxu0 0.0
    %6106 = vmatprep.subr.mxu0 0.0
    %6107 = vmatpush1.msra.mxu0 0.0
    %6108 = vmatprep.subr.mxu0 0.0
    %6109 = vmatpush1.msra.mxu0 0.0
    %6110 = vmatprep.subr.mxu0 0.0
    %6111 = vmatpush1.msra.mxu0 0.0
    %6112 = vmatprep.subr.mxu0 0.0
    %6113 = vmatpush1.msra.mxu0 0.0
    %6114 = vmatprep.subr.mxu0 0.0
    %6115 = vmatpush1.msra.mxu0 %v6079
    %6116 = vmatprep.subr.mxu0 0.0
    %6117 = vmatpush2.msra.mxu0 0.0
    %6118 = vmatprep.subr.mxu0 0.0
    %6119 = vmatpush2.msra.mxu0 0.0
    %6120 = vmatprep.subr.mxu0 0.0
    %6121 = vmatpush2.msra.mxu0 0.0
    %6122 = vmatprep.subr.mxu0 0.0
    %6123 = vmatpush2.msra.mxu0 0.0
    %6124 = vmatprep.subr.mxu0 0.0
    %6125 = vmatpush2.msra.mxu0 0.0
    %6126 = vmatprep.subr.mxu0 0.0
    %6127 = vmatpush2.msra.mxu0 0.0
    %6128 = vmatprep.subr.mxu0 0.0
    %6129 = vmatpush2.msra.mxu0 0.0
    %6130 = vmatprep.subr.mxu0 0.0
    %6131 = vmatpush2.msra.mxu0 0.0
    %6132 = vmatprep.subr.mxu0 0.0
    %6133 = vmatpush2.msra.mxu0 0.0
    %6134 = vmatprep.subr.mxu0 0.0
    %6135 = vmatpush2.msra.mxu0 0.0
    %6136 = vmatprep.subr.mxu0 0.0
    %6137 = vmatpush2.msra.mxu0 0.0
    %6138 = vmatprep.subr.mxu0 0.0
    %6139 = vmatpush2.msra.mxu0 0.0
    %6140 = vmatprep.subr.mxu0 0.0
    %6141 = vmatpush2.msra.mxu0 0.0
    %6142 = vmatprep.subr.mxu0 0.0
    %6143 = vmatpush2.msra.mxu0 0.0
    %6144 = vmatprep.subr.mxu0 0.0
    %6145 = vmatpush2.msra.mxu0 0.0
    %6146 = vmatprep.subr.mxu0 0.0
    %6147 = vmatpush2.msra.mxu0 0.0
    %6148 = vmatprep.mubr.f32.mxu0 0.0
    %6149 = vmatmul.mubr.f32.gmra.mxu0 %v6082
    %v6150 = vpop.f32.mrf.mxu0
    %v6151 = vadd.f32 0.0, %v6150
    %v6152 = vpop.f32.mrf.mxu0
    %6153 = vdwg.mxu0
    %v6154 = vadd.f32 %v6073, %v6151
    %v6155 = vld [vmem:[%s2718] sm:$0xff]
    %6156 = vrot.lane.b32.xlu0 %v5342, 117
    %v6157 = vpop.permute.xlu0 %6156
    %6158 = vrot.lane.b32.xlu0 %v5343, 117
    %v6159 = vpop.permute.xlu0 %6158
    %v6160 = vsel %vm983, %v6157, %v6159
    %v6163 = vsel %vm68, %v6155, 0
    %6165 = vmatprep.subr.mxu0 0.0
    %6166 = vmatpush1.msra.mxu0 0.0
    %6167 = vmatprep.subr.mxu0 0.0
    %6168 = vmatpush1.msra.mxu0 0.0
    %6169 = vmatprep.subr.mxu0 0.0
    %6170 = vmatpush1.msra.mxu0 0.0
    %6171 = vmatprep.subr.mxu0 0.0
    %6172 = vmatpush1.msra.mxu0 0.0
    %6173 = vmatprep.subr.mxu0 0.0
    %6174 = vmatpush1.msra.mxu0 0.0
    %6175 = vmatprep.subr.mxu0 0.0
    %6176 = vmatpush1.msra.mxu0 0.0
    %6177 = vmatprep.subr.mxu0 0.0
    %6178 = vmatpush1.msra.mxu0 0.0
    %6179 = vmatprep.subr.mxu0 0.0
    %6180 = vmatpush1.msra.mxu0 0.0
    %6181 = vmatprep.subr.mxu0 0.0
    %6182 = vmatpush1.msra.mxu0 0.0
    %6183 = vmatprep.subr.mxu0 0.0
    %6184 = vmatpush1.msra.mxu0 0.0
    %6185 = vmatprep.subr.mxu0 0.0
    %6186 = vmatpush1.msra.mxu0 0.0
    %6187 = vmatprep.subr.mxu0 0.0
    %6188 = vmatpush1.msra.mxu0 0.0
    %6189 = vmatprep.subr.mxu0 0.0
    %6190 = vmatpush1.msra.mxu0 0.0
    %6191 = vmatprep.subr.mxu0 0.0
    %6192 = vmatpush1.msra.mxu0 0.0
    %6193 = vmatprep.subr.mxu0 0.0
    %6194 = vmatpush1.msra.mxu0 0.0
    %6195 = vmatprep.subr.mxu0 0.0
    %6196 = vmatpush1.msra.mxu0 %v6160
    %6197 = vmatprep.subr.mxu0 0.0
    %6198 = vmatpush2.msra.mxu0 0.0
    %6199 = vmatprep.subr.mxu0 0.0
    %6200 = vmatpush2.msra.mxu0 0.0
    %6201 = vmatprep.subr.mxu0 0.0
    %6202 = vmatpush2.msra.mxu0 0.0
    %6203 = vmatprep.subr.mxu0 0.0
    %6204 = vmatpush2.msra.mxu0 0.0
    %6205 = vmatprep.subr.mxu0 0.0
    %6206 = vmatpush2.msra.mxu0 0.0
    %6207 = vmatprep.subr.mxu0 0.0
    %6208 = vmatpush2.msra.mxu0 0.0
    %6209 = vmatprep.subr.mxu0 0.0
    %6210 = vmatpush2.msra.mxu0 0.0
    %6211 = vmatprep.subr.mxu0 0.0
    %6212 = vmatpush2.msra.mxu0 0.0
    %6213 = vmatprep.subr.mxu0 0.0
    %6214 = vmatpush2.msra.mxu0 0.0
    %6215 = vmatprep.subr.mxu0 0.0
    %6216 = vmatpush2.msra.mxu0 0.0
    %6217 = vmatprep.subr.mxu0 0.0
    %6218 = vmatpush2.msra.mxu0 0.0
    %6219 = vmatprep.subr.mxu0 0.0
    %6220 = vmatpush2.msra.mxu0 0.0
    %6221 = vmatprep.subr.mxu0 0.0
    %6222 = vmatpush2.msra.mxu0 0.0
    %6223 = vmatprep.subr.mxu0 0.0
    %6224 = vmatpush2.msra.mxu0 0.0
    %6225 = vmatprep.subr.mxu0 0.0
    %6226 = vmatpush2.msra.mxu0 0.0
    %6227 = vmatprep.subr.mxu0 0.0
    %6228 = vmatpush2.msra.mxu0 0.0
    %6229 = vmatprep.mubr.f32.mxu0 0.0
    %6230 = vmatmul.mubr.f32.gmra.mxu0 %v6163
    %v6231 = vpop.f32.mrf.mxu0
    %v6232 = vadd.f32 0.0, %v6231
    %v6233 = vpop.f32.mrf.mxu0
    %6234 = vdwg.mxu0
    %v6235 = vadd.f32 %v6154, %v6232
    %v6236 = vld [vmem:[%s2800] sm:$0xff]
    %6237 = vrot.lane.b32.xlu0 %v5342, 116
    %v6238 = vpop.permute.xlu0 %6237
    %6239 = vrot.lane.b32.xlu0 %v5343, 116
    %v6240 = vpop.permute.xlu0 %6239
    %v6241 = vsel %vm1066, %v6238, %v6240
    %v6244 = vsel %vm68, %v6236, 0
    %6246 = vmatprep.subr.mxu0 0.0
    %6247 = vmatpush1.msra.mxu0 0.0
    %6248 = vmatprep.subr.mxu0 0.0
    %6249 = vmatpush1.msra.mxu0 0.0
    %6250 = vmatprep.subr.mxu0 0.0
    %6251 = vmatpush1.msra.mxu0 0.0
    %6252 = vmatprep.subr.mxu0 0.0
    %6253 = vmatpush1.msra.mxu0 0.0
    %6254 = vmatprep.subr.mxu0 0.0
    %6255 = vmatpush1.msra.mxu0 0.0
    %6256 = vmatprep.subr.mxu0 0.0
    %6257 = vmatpush1.msra.mxu0 0.0
    %6258 = vmatprep.subr.mxu0 0.0
    %6259 = vmatpush1.msra.mxu0 0.0
    %6260 = vmatprep.subr.mxu0 0.0
    %6261 = vmatpush1.msra.mxu0 0.0
    %6262 = vmatprep.subr.mxu0 0.0
    %6263 = vmatpush1.msra.mxu0 0.0
    %6264 = vmatprep.subr.mxu0 0.0
    %6265 = vmatpush1.msra.mxu0 0.0
    %6266 = vmatprep.subr.mxu0 0.0
    %6267 = vmatpush1.msra.mxu0 0.0
    %6268 = vmatprep.subr.mxu0 0.0
    %6269 = vmatpush1.msra.mxu0 0.0
    %6270 = vmatprep.subr.mxu0 0.0
    %6271 = vmatpush1.msra.mxu0 0.0
    %6272 = vmatprep.subr.mxu0 0.0
    %6273 = vmatpush1.msra.mxu0 0.0
    %6274 = vmatprep.subr.mxu0 0.0
    %6275 = vmatpush1.msra.mxu0 0.0
    %6276 = vmatprep.subr.mxu0 0.0
    %6277 = vmatpush1.msra.mxu0 %v6241
    %6278 = vmatprep.subr.mxu0 0.0
    %6279 = vmatpush2.msra.mxu0 0.0
    %6280 = vmatprep.subr.mxu0 0.0
    %6281 = vmatpush2.msra.mxu0 0.0
    %6282 = vmatprep.subr.mxu0 0.0
    %6283 = vmatpush2.msra.mxu0 0.0
    %6284 = vmatprep.subr.mxu0 0.0
    %6285 = vmatpush2.msra.mxu0 0.0
    %6286 = vmatprep.subr.mxu0 0.0
    %6287 = vmatpush2.msra.mxu0 0.0
    %6288 = vmatprep.subr.mxu0 0.0
    %6289 = vmatpush2.msra.mxu0 0.0
    %6290 = vmatprep.subr.mxu0 0.0
    %6291 = vmatpush2.msra.mxu0 0.0
    %6292 = vmatprep.subr.mxu0 0.0
    %6293 = vmatpush2.msra.mxu0 0.0
    %6294 = vmatprep.subr.mxu0 0.0
    %6295 = vmatpush2.msra.mxu0 0.0
    %6296 = vmatprep.subr.mxu0 0.0
    %6297 = vmatpush2.msra.mxu0 0.0
    %6298 = vmatprep.subr.mxu0 0.0
    %6299 = vmatpush2.msra.mxu0 0.0
    %6300 = vmatprep.subr.mxu0 0.0
    %6301 = vmatpush2.msra.mxu0 0.0
    %6302 = vmatprep.subr.mxu0 0.0
    %6303 = vmatpush2.msra.mxu0 0.0
    %6304 = vmatprep.subr.mxu0 0.0
    %6305 = vmatpush2.msra.mxu0 0.0
    %6306 = vmatprep.subr.mxu0 0.0
    %6307 = vmatpush2.msra.mxu0 0.0
    %6308 = vmatprep.subr.mxu0 0.0
    %6309 = vmatpush2.msra.mxu0 0.0
    %6310 = vmatprep.mubr.f32.mxu0 0.0
    %6311 = vmatmul.mubr.f32.gmra.mxu0 %v6244
    %v6312 = vpop.f32.mrf.mxu0
    %v6313 = vadd.f32 0.0, %v6312
    %v6314 = vpop.f32.mrf.mxu0
    %6315 = vdwg.mxu0
    %v6316 = vadd.f32 %v6235, %v6313
    %v6317 = vld [vmem:[%s2882] sm:$0xff]
    %6318 = vrot.lane.b32.xlu0 %v5342, 115
    %v6319 = vpop.permute.xlu0 %6318
    %6320 = vrot.lane.b32.xlu0 %v5343, 115
    %v6321 = vpop.permute.xlu0 %6320
    %v6322 = vsel %vm1149, %v6319, %v6321
    %v6325 = vsel %vm68, %v6317, 0
    %6327 = vmatprep.subr.mxu0 0.0
    %6328 = vmatpush1.msra.mxu0 0.0
    %6329 = vmatprep.subr.mxu0 0.0
    %6330 = vmatpush1.msra.mxu0 0.0
    %6331 = vmatprep.subr.mxu0 0.0
    %6332 = vmatpush1.msra.mxu0 0.0
    %6333 = vmatprep.subr.mxu0 0.0
    %6334 = vmatpush1.msra.mxu0 0.0
    %6335 = vmatprep.subr.mxu0 0.0
    %6336 = vmatpush1.msra.mxu0 0.0
    %6337 = vmatprep.subr.mxu0 0.0
    %6338 = vmatpush1.msra.mxu0 0.0
    %6339 = vmatprep.subr.mxu0 0.0
    %6340 = vmatpush1.msra.mxu0 0.0
    %6341 = vmatprep.subr.mxu0 0.0
    %6342 = vmatpush1.msra.mxu0 0.0
    %6343 = vmatprep.subr.mxu0 0.0
    %6344 = vmatpush1.msra.mxu0 0.0
    %6345 = vmatprep.subr.mxu0 0.0
    %6346 = vmatpush1.msra.mxu0 0.0
    %6347 = vmatprep.subr.mxu0 0.0
    %6348 = vmatpush1.msra.mxu0 0.0
    %6349 = vmatprep.subr.mxu0 0.0
    %6350 = vmatpush1.msra.mxu0 0.0
    %6351 = vmatprep.subr.mxu0 0.0
    %6352 = vmatpush1.msra.mxu0 0.0
    %6353 = vmatprep.subr.mxu0 0.0
    %6354 = vmatpush1.msra.mxu0 0.0
    %6355 = vmatprep.subr.mxu0 0.0
    %6356 = vmatpush1.msra.mxu0 0.0
    %6357 = vmatprep.subr.mxu0 0.0
    %6358 = vmatpush1.msra.mxu0 %v6322
    %6359 = vmatprep.subr.mxu0 0.0
    %6360 = vmatpush2.msra.mxu0 0.0
    %6361 = vmatprep.subr.mxu0 0.0
    %6362 = vmatpush2.msra.mxu0 0.0
    %6363 = vmatprep.subr.mxu0 0.0
    %6364 = vmatpush2.msra.mxu0 0.0
    %6365 = vmatprep.subr.mxu0 0.0
    %6366 = vmatpush2.msra.mxu0 0.0
    %6367 = vmatprep.subr.mxu0 0.0
    %6368 = vmatpush2.msra.mxu0 0.0
    %6369 = vmatprep.subr.mxu0 0.0
    %6370 = vmatpush2.msra.mxu0 0.0
    %6371 = vmatprep.subr.mxu0 0.0
    %6372 = vmatpush2.msra.mxu0 0.0
    %6373 = vmatprep.subr.mxu0 0.0
    %6374 = vmatpush2.msra.mxu0 0.0
    %6375 = vmatprep.subr.mxu0 0.0
    %6376 = vmatpush2.msra.mxu0 0.0
    %6377 = vmatprep.subr.mxu0 0.0
    %6378 = vmatpush2.msra.mxu0 0.0
    %6379 = vmatprep.subr.mxu0 0.0
    %6380 = vmatpush2.msra.mxu0 0.0
    %6381 = vmatprep.subr.mxu0 0.0
    %6382 = vmatpush2.msra.mxu0 0.0
    %6383 = vmatprep.subr.mxu0 0.0
    %6384 = vmatpush2.msra.mxu0 0.0
    %6385 = vmatprep.subr.mxu0 0.0
    %6386 = vmatpush2.msra.mxu0 0.0
    %6387 = vmatprep.subr.mxu0 0.0
    %6388 = vmatpush2.msra.mxu0 0.0
    %6389 = vmatprep.subr.mxu0 0.0
    %6390 = vmatpush2.msra.mxu0 0.0
    %6391 = vmatprep.mubr.f32.mxu0 0.0
    %6392 = vmatmul.mubr.f32.gmra.mxu0 %v6325
    %v6393 = vpop.f32.mrf.mxu0
    %v6394 = vadd.f32 0.0, %v6393
    %v6395 = vpop.f32.mrf.mxu0
    %6396 = vdwg.mxu0
    %v6397 = vadd.f32 %v6316, %v6394
    %v6398 = vld [vmem:[%s2964] sm:$0xff]
    %6399 = vrot.lane.b32.xlu0 %v5342, 114
    %v6400 = vpop.permute.xlu0 %6399
    %6401 = vrot.lane.b32.xlu0 %v5343, 114
    %v6402 = vpop.permute.xlu0 %6401
    %v6403 = vsel %vm1232, %v6400, %v6402
    %v6406 = vsel %vm68, %v6398, 0
    %6408 = vmatprep.subr.mxu0 0.0
    %6409 = vmatpush1.msra.mxu0 0.0
    %6410 = vmatprep.subr.mxu0 0.0
    %6411 = vmatpush1.msra.mxu0 0.0
    %6412 = vmatprep.subr.mxu0 0.0
    %6413 = vmatpush1.msra.mxu0 0.0
    %6414 = vmatprep.subr.mxu0 0.0
    %6415 = vmatpush1.msra.mxu0 0.0
    %6416 = vmatprep.subr.mxu0 0.0
    %6417 = vmatpush1.msra.mxu0 0.0
    %6418 = vmatprep.subr.mxu0 0.0
    %6419 = vmatpush1.msra.mxu0 0.0
    %6420 = vmatprep.subr.mxu0 0.0
    %6421 = vmatpush1.msra.mxu0 0.0
    %6422 = vmatprep.subr.mxu0 0.0
    %6423 = vmatpush1.msra.mxu0 0.0
    %6424 = vmatprep.subr.mxu0 0.0
    %6425 = vmatpush1.msra.mxu0 0.0
    %6426 = vmatprep.subr.mxu0 0.0
    %6427 = vmatpush1.msra.mxu0 0.0
    %6428 = vmatprep.subr.mxu0 0.0
    %6429 = vmatpush1.msra.mxu0 0.0
    %6430 = vmatprep.subr.mxu0 0.0
    %6431 = vmatpush1.msra.mxu0 0.0
    %6432 = vmatprep.subr.mxu0 0.0
    %6433 = vmatpush1.msra.mxu0 0.0
    %6434 = vmatprep.subr.mxu0 0.0
    %6435 = vmatpush1.msra.mxu0 0.0
    %6436 = vmatprep.subr.mxu0 0.0
    %6437 = vmatpush1.msra.mxu0 0.0
    %6438 = vmatprep.subr.mxu0 0.0
    %6439 = vmatpush1.msra.mxu0 %v6403
    %6440 = vmatprep.subr.mxu0 0.0
    %6441 = vmatpush2.msra.mxu0 0.0
    %6442 = vmatprep.subr.mxu0 0.0
    %6443 = vmatpush2.msra.mxu0 0.0
    %6444 = vmatprep.subr.mxu0 0.0
    %6445 = vmatpush2.msra.mxu0 0.0
    %6446 = vmatprep.subr.mxu0 0.0
    %6447 = vmatpush2.msra.mxu0 0.0
    %6448 = vmatprep.subr.mxu0 0.0
    %6449 = vmatpush2.msra.mxu0 0.0
    %6450 = vmatprep.subr.mxu0 0.0
    %6451 = vmatpush2.msra.mxu0 0.0
    %6452 = vmatprep.subr.mxu0 0.0
    %6453 = vmatpush2.msra.mxu0 0.0
    %6454 = vmatprep.subr.mxu0 0.0
    %6455 = vmatpush2.msra.mxu0 0.0
    %6456 = vmatprep.subr.mxu0 0.0
    %6457 = vmatpush2.msra.mxu0 0.0
    %6458 = vmatprep.subr.mxu0 0.0
    %6459 = vmatpush2.msra.mxu0 0.0
    %6460 = vmatprep.subr.mxu0 0.0
    %6461 = vmatpush2.msra.mxu0 0.0
    %6462 = vmatprep.subr.mxu0 0.0
    %6463 = vmatpush2.msra.mxu0 0.0
    %6464 = vmatprep.subr.mxu0 0.0
    %6465 = vmatpush2.msra.mxu0 0.0
    %6466 = vmatprep.subr.mxu0 0.0
    %6467 = vmatpush2.msra.mxu0 0.0
    %6468 = vmatprep.subr.mxu0 0.0
    %6469 = vmatpush2.msra.mxu0 0.0
    %6470 = vmatprep.subr.mxu0 0.0
    %6471 = vmatpush2.msra.mxu0 0.0
    %6472 = vmatprep.mubr.f32.mxu0 0.0
    %6473 = vmatmul.mubr.f32.gmra.mxu0 %v6406
    %v6474 = vpop.f32.mrf.mxu0
    %v6475 = vadd.f32 0.0, %v6474
    %v6476 = vpop.f32.mrf.mxu0
    %6477 = vdwg.mxu0
    %v6478 = vadd.f32 %v6397, %v6475
    %v6479 = vld [vmem:[%s3046] sm:$0xff]
    %6480 = vrot.lane.b32.xlu0 %v5342, 113
    %v6481 = vpop.permute.xlu0 %6480
    %6482 = vrot.lane.b32.xlu0 %v5343, 113
    %v6483 = vpop.permute.xlu0 %6482
    %v6484 = vsel %vm1315, %v6481, %v6483
    %v6487 = vsel %vm68, %v6479, 0
    %6489 = vmatprep.subr.mxu0 0.0
    %6490 = vmatpush1.msra.mxu0 0.0
    %6491 = vmatprep.subr.mxu0 0.0
    %6492 = vmatpush1.msra.mxu0 0.0
    %6493 = vmatprep.subr.mxu0 0.0
    %6494 = vmatpush1.msra.mxu0 0.0
    %6495 = vmatprep.subr.mxu0 0.0
    %6496 = vmatpush1.msra.mxu0 0.0
    %6497 = vmatprep.subr.mxu0 0.0
    %6498 = vmatpush1.msra.mxu0 0.0
    %6499 = vmatprep.subr.mxu0 0.0
    %6500 = vmatpush1.msra.mxu0 0.0
    %6501 = vmatprep.subr.mxu0 0.0
    %6502 = vmatpush1.msra.mxu0 0.0
    %6503 = vmatprep.subr.mxu0 0.0
    %6504 = vmatpush1.msra.mxu0 0.0
    %6505 = vmatprep.subr.mxu0 0.0
    %6506 = vmatpush1.msra.mxu0 0.0
    %6507 = vmatprep.subr.mxu0 0.0
    %6508 = vmatpush1.msra.mxu0 0.0
    %6509 = vmatprep.subr.mxu0 0.0
    %6510 = vmatpush1.msra.mxu0 0.0
    %6511 = vmatprep.subr.mxu0 0.0
    %6512 = vmatpush1.msra.mxu0 0.0
    %6513 = vmatprep.subr.mxu0 0.0
    %6514 = vmatpush1.msra.mxu0 0.0
    %6515 = vmatprep.subr.mxu0 0.0
    %6516 = vmatpush1.msra.mxu0 0.0
    %6517 = vmatprep.subr.mxu0 0.0
    %6518 = vmatpush1.msra.mxu0 0.0
    %6519 = vmatprep.subr.mxu0 0.0
    %6520 = vmatpush1.msra.mxu0 %v6484
    %6521 = vmatprep.subr.mxu0 0.0
    %6522 = vmatpush2.msra.mxu0 0.0
    %6523 = vmatprep.subr.mxu0 0.0
    %6524 = vmatpush2.msra.mxu0 0.0
    %6525 = vmatprep.subr.mxu0 0.0
    %6526 = vmatpush2.msra.mxu0 0.0
    %6527 = vmatprep.subr.mxu0 0.0
    %6528 = vmatpush2.msra.mxu0 0.0
    %6529 = vmatprep.subr.mxu0 0.0
    %6530 = vmatpush2.msra.mxu0 0.0
    %6531 = vmatprep.subr.mxu0 0.0
    %6532 = vmatpush2.msra.mxu0 0.0
    %6533 = vmatprep.subr.mxu0 0.0
    %6534 = vmatpush2.msra.mxu0 0.0
    %6535 = vmatprep.subr.mxu0 0.0
    %6536 = vmatpush2.msra.mxu0 0.0
    %6537 = vmatprep.subr.mxu0 0.0
    %6538 = vmatpush2.msra.mxu0 0.0
    %6539 = vmatprep.subr.mxu0 0.0
    %6540 = vmatpush2.msra.mxu0 0.0
    %6541 = vmatprep.subr.mxu0 0.0
    %6542 = vmatpush2.msra.mxu0 0.0
    %6543 = vmatprep.subr.mxu0 0.0
    %6544 = vmatpush2.msra.mxu0 0.0
    %6545 = vmatprep.subr.mxu0 0.0
    %6546 = vmatpush2.msra.mxu0 0.0
    %6547 = vmatprep.subr.mxu0 0.0
    %6548 = vmatpush2.msra.mxu0 0.0
    %6549 = vmatprep.subr.mxu0 0.0
    %6550 = vmatpush2.msra.mxu0 0.0
    %6551 = vmatprep.subr.mxu0 0.0
    %6552 = vmatpush2.msra.mxu0 0.0
    %6553 = vmatprep.mubr.f32.mxu0 0.0
    %6554 = vmatmul.mubr.f32.gmra.mxu0 %v6487
    %v6555 = vpop.f32.mrf.mxu0
    %v6556 = vadd.f32 0.0, %v6555
    %v6557 = vpop.f32.mrf.mxu0
    %6558 = vdwg.mxu0
    %v6559 = vadd.f32 %v6478, %v6556
    %v6560 = vld [vmem:[%s3128] sm:$0xff]
    %6561 = vrot.lane.b32.xlu0 %v5342, 112
    %v6562 = vpop.permute.xlu0 %6561
    %6563 = vrot.lane.b32.xlu0 %v5343, 112
    %v6564 = vpop.permute.xlu0 %6563
    %v6565 = vsel %vm1398, %v6562, %v6564
    %v6568 = vsel %vm68, %v6560, 0
    %6570 = vmatprep.subr.mxu0 0.0
    %6571 = vmatpush1.msra.mxu0 0.0
    %6572 = vmatprep.subr.mxu0 0.0
    %6573 = vmatpush1.msra.mxu0 0.0
    %6574 = vmatprep.subr.mxu0 0.0
    %6575 = vmatpush1.msra.mxu0 0.0
    %6576 = vmatprep.subr.mxu0 0.0
    %6577 = vmatpush1.msra.mxu0 0.0
    %6578 = vmatprep.subr.mxu0 0.0
    %6579 = vmatpush1.msra.mxu0 0.0
    %6580 = vmatprep.subr.mxu0 0.0
    %6581 = vmatpush1.msra.mxu0 0.0
    %6582 = vmatprep.subr.mxu0 0.0
    %6583 = vmatpush1.msra.mxu0 0.0
    %6584 = vmatprep.subr.mxu0 0.0
    %6585 = vmatpush1.msra.mxu0 0.0
    %6586 = vmatprep.subr.mxu0 0.0
    %6587 = vmatpush1.msra.mxu0 0.0
    %6588 = vmatprep.subr.mxu0 0.0
    %6589 = vmatpush1.msra.mxu0 0.0
    %6590 = vmatprep.subr.mxu0 0.0
    %6591 = vmatpush1.msra.mxu0 0.0
    %6592 = vmatprep.subr.mxu0 0.0
    %6593 = vmatpush1.msra.mxu0 0.0
    %6594 = vmatprep.subr.mxu0 0.0
    %6595 = vmatpush1.msra.mxu0 0.0
    %6596 = vmatprep.subr.mxu0 0.0
    %6597 = vmatpush1.msra.mxu0 0.0
    %6598 = vmatprep.subr.mxu0 0.0
    %6599 = vmatpush1.msra.mxu0 0.0
    %6600 = vmatprep.subr.mxu0 0.0
    %6601 = vmatpush1.msra.mxu0 %v6565
    %6602 = vmatprep.subr.mxu0 0.0
    %6603 = vmatpush2.msra.mxu0 0.0
    %6604 = vmatprep.subr.mxu0 0.0
    %6605 = vmatpush2.msra.mxu0 0.0
    %6606 = vmatprep.subr.mxu0 0.0
    %6607 = vmatpush2.msra.mxu0 0.0
    %6608 = vmatprep.subr.mxu0 0.0
    %6609 = vmatpush2.msra.mxu0 0.0
    %6610 = vmatprep.subr.mxu0 0.0
    %6611 = vmatpush2.msra.mxu0 0.0
    %6612 = vmatprep.subr.mxu0 0.0
    %6613 = vmatpush2.msra.mxu0 0.0
    %6614 = vmatprep.subr.mxu0 0.0
    %6615 = vmatpush2.msra.mxu0 0.0
    %6616 = vmatprep.subr.mxu0 0.0
    %6617 = vmatpush2.msra.mxu0 0.0
    %6618 = vmatprep.subr.mxu0 0.0
    %6619 = vmatpush2.msra.mxu0 0.0
    %6620 = vmatprep.subr.mxu0 0.0
    %6621 = vmatpush2.msra.mxu0 0.0
    %6622 = vmatprep.subr.mxu0 0.0
    %6623 = vmatpush2.msra.mxu0 0.0
    %6624 = vmatprep.subr.mxu0 0.0
    %6625 = vmatpush2.msra.mxu0 0.0
    %6626 = vmatprep.subr.mxu0 0.0
    %6627 = vmatpush2.msra.mxu0 0.0
    %6628 = vmatprep.subr.mxu0 0.0
    %6629 = vmatpush2.msra.mxu0 0.0
    %6630 = vmatprep.subr.mxu0 0.0
    %6631 = vmatpush2.msra.mxu0 0.0
    %6632 = vmatprep.subr.mxu0 0.0
    %6633 = vmatpush2.msra.mxu0 0.0
    %6634 = vmatprep.mubr.f32.mxu0 0.0
    %6635 = vmatmul.mubr.f32.gmra.mxu0 %v6568
    %v6636 = vpop.f32.mrf.mxu0
    %v6637 = vadd.f32 0.0, %v6636
    %v6638 = vpop.f32.mrf.mxu0
    %6639 = vdwg.mxu0
    %v6640 = vadd.f32 %v6559, %v6637
    %v6641 = vld [vmem:[%s3210] sm:$0xff]
    %6642 = vrot.lane.b32.xlu0 %v5342, 111
    %v6643 = vpop.permute.xlu0 %6642
    %6644 = vrot.lane.b32.xlu0 %v5343, 111
    %v6645 = vpop.permute.xlu0 %6644
    %v6646 = vsel %vm1481, %v6643, %v6645
    %v6649 = vsel %vm68, %v6641, 0
    %6651 = vmatprep.subr.mxu0 0.0
    %6652 = vmatpush1.msra.mxu0 0.0
    %6653 = vmatprep.subr.mxu0 0.0
    %6654 = vmatpush1.msra.mxu0 0.0
    %6655 = vmatprep.subr.mxu0 0.0
    %6656 = vmatpush1.msra.mxu0 0.0
    %6657 = vmatprep.subr.mxu0 0.0
    %6658 = vmatpush1.msra.mxu0 0.0
    %6659 = vmatprep.subr.mxu0 0.0
    %6660 = vmatpush1.msra.mxu0 0.0
    %6661 = vmatprep.subr.mxu0 0.0
    %6662 = vmatpush1.msra.mxu0 0.0
    %6663 = vmatprep.subr.mxu0 0.0
    %6664 = vmatpush1.msra.mxu0 0.0
    %6665 = vmatprep.subr.mxu0 0.0
    %6666 = vmatpush1.msra.mxu0 0.0
    %6667 = vmatprep.subr.mxu0 0.0
    %6668 = vmatpush1.msra.mxu0 0.0
    %6669 = vmatprep.subr.mxu0 0.0
    %6670 = vmatpush1.msra.mxu0 0.0
    %6671 = vmatprep.subr.mxu0 0.0
    %6672 = vmatpush1.msra.mxu0 0.0
    %6673 = vmatprep.subr.mxu0 0.0
    %6674 = vmatpush1.msra.mxu0 0.0
    %6675 = vmatprep.subr.mxu0 0.0
    %6676 = vmatpush1.msra.mxu0 0.0
    %6677 = vmatprep.subr.mxu0 0.0
    %6678 = vmatpush1.msra.mxu0 0.0
    %6679 = vmatprep.subr.mxu0 0.0
    %6680 = vmatpush1.msra.mxu0 0.0
    %6681 = vmatprep.subr.mxu0 0.0
    %6682 = vmatpush1.msra.mxu0 %v6646
    %6683 = vmatprep.subr.mxu0 0.0
    %6684 = vmatpush2.msra.mxu0 0.0
    %6685 = vmatprep.subr.mxu0 0.0
    %6686 = vmatpush2.msra.mxu0 0.0
    %6687 = vmatprep.subr.mxu0 0.0
    %6688 = vmatpush2.msra.mxu0 0.0
    %6689 = vmatprep.subr.mxu0 0.0
    %6690 = vmatpush2.msra.mxu0 0.0
    %6691 = vmatprep.subr.mxu0 0.0
    %6692 = vmatpush2.msra.mxu0 0.0
    %6693 = vmatprep.subr.mxu0 0.0
    %6694 = vmatpush2.msra.mxu0 0.0
    %6695 = vmatprep.subr.mxu0 0.0
    %6696 = vmatpush2.msra.mxu0 0.0
    %6697 = vmatprep.subr.mxu0 0.0
    %6698 = vmatpush2.msra.mxu0 0.0
    %6699 = vmatprep.subr.mxu0 0.0
    %6700 = vmatpush2.msra.mxu0 0.0
    %6701 = vmatprep.subr.mxu0 0.0
    %6702 = vmatpush2.msra.mxu0 0.0
    %6703 = vmatprep.subr.mxu0 0.0
    %6704 = vmatpush2.msra.mxu0 0.0
    %6705 = vmatprep.subr.mxu0 0.0
    %6706 = vmatpush2.msra.mxu0 0.0
    %6707 = vmatprep.subr.mxu0 0.0
    %6708 = vmatpush2.msra.mxu0 0.0
    %6709 = vmatprep.subr.mxu0 0.0
    %6710 = vmatpush2.msra.mxu0 0.0
    %6711 = vmatprep.subr.mxu0 0.0
    %6712 = vmatpush2.msra.mxu0 0.0
    %6713 = vmatprep.subr.mxu0 0.0
    %6714 = vmatpush2.msra.mxu0 0.0
    %6715 = vmatprep.mubr.f32.mxu0 0.0
    %6716 = vmatmul.mubr.f32.gmra.mxu0 %v6649
    %v6717 = vpop.f32.mrf.mxu0
    %v6718 = vadd.f32 0.0, %v6717
    %v6719 = vpop.f32.mrf.mxu0
    %6720 = vdwg.mxu0
    %v6721 = vadd.f32 %v6640, %v6718
    %v6722 = vld [vmem:[%s3292] sm:$0xff]
    %6723 = vrot.lane.b32.xlu0 %v5342, 110
    %v6724 = vpop.permute.xlu0 %6723
    %6725 = vrot.lane.b32.xlu0 %v5343, 110
    %v6726 = vpop.permute.xlu0 %6725
    %v6727 = vsel %vm1564, %v6724, %v6726
    %v6730 = vsel %vm68, %v6722, 0
    %6732 = vmatprep.subr.mxu0 0.0
    %6733 = vmatpush1.msra.mxu0 0.0
    %6734 = vmatprep.subr.mxu0 0.0
    %6735 = vmatpush1.msra.mxu0 0.0
    %6736 = vmatprep.subr.mxu0 0.0
    %6737 = vmatpush1.msra.mxu0 0.0
    %6738 = vmatprep.subr.mxu0 0.0
    %6739 = vmatpush1.msra.mxu0 0.0
    %6740 = vmatprep.subr.mxu0 0.0
    %6741 = vmatpush1.msra.mxu0 0.0
    %6742 = vmatprep.subr.mxu0 0.0
    %6743 = vmatpush1.msra.mxu0 0.0
    %6744 = vmatprep.subr.mxu0 0.0
    %6745 = vmatpush1.msra.mxu0 0.0
    %6746 = vmatprep.subr.mxu0 0.0
    %6747 = vmatpush1.msra.mxu0 0.0
    %6748 = vmatprep.subr.mxu0 0.0
    %6749 = vmatpush1.msra.mxu0 0.0
    %6750 = vmatprep.subr.mxu0 0.0
    %6751 = vmatpush1.msra.mxu0 0.0
    %6752 = vmatprep.subr.mxu0 0.0
    %6753 = vmatpush1.msra.mxu0 0.0
    %6754 = vmatprep.subr.mxu0 0.0
    %6755 = vmatpush1.msra.mxu0 0.0
    %6756 = vmatprep.subr.mxu0 0.0
    %6757 = vmatpush1.msra.mxu0 0.0
    %6758 = vmatprep.subr.mxu0 0.0
    %6759 = vmatpush1.msra.mxu0 0.0
    %6760 = vmatprep.subr.mxu0 0.0
    %6761 = vmatpush1.msra.mxu0 0.0
    %6762 = vmatprep.subr.mxu0 0.0
    %6763 = vmatpush1.msra.mxu0 %v6727
    %6764 = vmatprep.subr.mxu0 0.0
    %6765 = vmatpush2.msra.mxu0 0.0
    %6766 = vmatprep.subr.mxu0 0.0
    %6767 = vmatpush2.msra.mxu0 0.0
    %6768 = vmatprep.subr.mxu0 0.0
    %6769 = vmatpush2.msra.mxu0 0.0
    %6770 = vmatprep.subr.mxu0 0.0
    %6771 = vmatpush2.msra.mxu0 0.0
    %6772 = vmatprep.subr.mxu0 0.0
    %6773 = vmatpush2.msra.mxu0 0.0
    %6774 = vmatprep.subr.mxu0 0.0
    %6775 = vmatpush2.msra.mxu0 0.0
    %6776 = vmatprep.subr.mxu0 0.0
    %6777 = vmatpush2.msra.mxu0 0.0
    %6778 = vmatprep.subr.mxu0 0.0
    %6779 = vmatpush2.msra.mxu0 0.0
    %6780 = vmatprep.subr.mxu0 0.0
    %6781 = vmatpush2.msra.mxu0 0.0
    %6782 = vmatprep.subr.mxu0 0.0
    %6783 = vmatpush2.msra.mxu0 0.0
    %6784 = vmatprep.subr.mxu0 0.0
    %6785 = vmatpush2.msra.mxu0 0.0
    %6786 = vmatprep.subr.mxu0 0.0
    %6787 = vmatpush2.msra.mxu0 0.0
    %6788 = vmatprep.subr.mxu0 0.0
    %6789 = vmatpush2.msra.mxu0 0.0
    %6790 = vmatprep.subr.mxu0 0.0
    %6791 = vmatpush2.msra.mxu0 0.0
    %6792 = vmatprep.subr.mxu0 0.0
    %6793 = vmatpush2.msra.mxu0 0.0
    %6794 = vmatprep.subr.mxu0 0.0
    %6795 = vmatpush2.msra.mxu0 0.0
    %6796 = vmatprep.mubr.f32.mxu0 0.0
    %6797 = vmatmul.mubr.f32.gmra.mxu0 %v6730
    %v6798 = vpop.f32.mrf.mxu0
    %v6799 = vadd.f32 0.0, %v6798
    %v6800 = vpop.f32.mrf.mxu0
    %6801 = vdwg.mxu0
    %v6802 = vadd.f32 %v6721, %v6799
    %v6803 = vld [vmem:[%s3374] sm:$0xff]
    %6804 = vrot.lane.b32.xlu0 %v5342, 109
    %v6805 = vpop.permute.xlu0 %6804
    %6806 = vrot.lane.b32.xlu0 %v5343, 109
    %v6807 = vpop.permute.xlu0 %6806
    %v6808 = vsel %vm1647, %v6805, %v6807
    %v6811 = vsel %vm68, %v6803, 0
    %6813 = vmatprep.subr.mxu0 0.0
    %6814 = vmatpush1.msra.mxu0 0.0
    %6815 = vmatprep.subr.mxu0 0.0
    %6816 = vmatpush1.msra.mxu0 0.0
    %6817 = vmatprep.subr.mxu0 0.0
    %6818 = vmatpush1.msra.mxu0 0.0
    %6819 = vmatprep.subr.mxu0 0.0
    %6820 = vmatpush1.msra.mxu0 0.0
    %6821 = vmatprep.subr.mxu0 0.0
    %6822 = vmatpush1.msra.mxu0 0.0
    %6823 = vmatprep.subr.mxu0 0.0
    %6824 = vmatpush1.msra.mxu0 0.0
    %6825 = vmatprep.subr.mxu0 0.0
    %6826 = vmatpush1.msra.mxu0 0.0
    %6827 = vmatprep.subr.mxu0 0.0
    %6828 = vmatpush1.msra.mxu0 0.0
    %6829 = vmatprep.subr.mxu0 0.0
    %6830 = vmatpush1.msra.mxu0 0.0
    %6831 = vmatprep.subr.mxu0 0.0
    %6832 = vmatpush1.msra.mxu0 0.0
    %6833 = vmatprep.subr.mxu0 0.0
    %6834 = vmatpush1.msra.mxu0 0.0
    %6835 = vmatprep.subr.mxu0 0.0
    %6836 = vmatpush1.msra.mxu0 0.0
    %6837 = vmatprep.subr.mxu0 0.0
    %6838 = vmatpush1.msra.mxu0 0.0
    %6839 = vmatprep.subr.mxu0 0.0
    %6840 = vmatpush1.msra.mxu0 0.0
    %6841 = vmatprep.subr.mxu0 0.0
    %6842 = vmatpush1.msra.mxu0 0.0
    %6843 = vmatprep.subr.mxu0 0.0
    %6844 = vmatpush1.msra.mxu0 %v6808
    %6845 = vmatprep.subr.mxu0 0.0
    %6846 = vmatpush2.msra.mxu0 0.0
    %6847 = vmatprep.subr.mxu0 0.0
    %6848 = vmatpush2.msra.mxu0 0.0
    %6849 = vmatprep.subr.mxu0 0.0
    %6850 = vmatpush2.msra.mxu0 0.0
    %6851 = vmatprep.subr.mxu0 0.0
    %6852 = vmatpush2.msra.mxu0 0.0
    %6853 = vmatprep.subr.mxu0 0.0
    %6854 = vmatpush2.msra.mxu0 0.0
    %6855 = vmatprep.subr.mxu0 0.0
    %6856 = vmatpush2.msra.mxu0 0.0
    %6857 = vmatprep.subr.mxu0 0.0
    %6858 = vmatpush2.msra.mxu0 0.0
    %6859 = vmatprep.subr.mxu0 0.0
    %6860 = vmatpush2.msra.mxu0 0.0
    %6861 = vmatprep.subr.mxu0 0.0
    %6862 = vmatpush2.msra.mxu0 0.0
    %6863 = vmatprep.subr.mxu0 0.0
    %6864 = vmatpush2.msra.mxu0 0.0
    %6865 = vmatprep.subr.mxu0 0.0
    %6866 = vmatpush2.msra.mxu0 0.0
    %6867 = vmatprep.subr.mxu0 0.0
    %6868 = vmatpush2.msra.mxu0 0.0
    %6869 = vmatprep.subr.mxu0 0.0
    %6870 = vmatpush2.msra.mxu0 0.0
    %6871 = vmatprep.subr.mxu0 0.0
    %6872 = vmatpush2.msra.mxu0 0.0
    %6873 = vmatprep.subr.mxu0 0.0
    %6874 = vmatpush2.msra.mxu0 0.0
    %6875 = vmatprep.subr.mxu0 0.0
    %6876 = vmatpush2.msra.mxu0 0.0
    %6877 = vmatprep.mubr.f32.mxu0 0.0
    %6878 = vmatmul.mubr.f32.gmra.mxu0 %v6811
    %v6879 = vpop.f32.mrf.mxu0
    %v6880 = vadd.f32 0.0, %v6879
    %v6881 = vpop.f32.mrf.mxu0
    %6882 = vdwg.mxu0
    %v6883 = vadd.f32 %v6802, %v6880
    %v6884 = vld [vmem:[%s3456] sm:$0xff]
    %6885 = vrot.lane.b32.xlu0 %v5342, 108
    %v6886 = vpop.permute.xlu0 %6885
    %6887 = vrot.lane.b32.xlu0 %v5343, 108
    %v6888 = vpop.permute.xlu0 %6887
    %v6889 = vsel %vm1730, %v6886, %v6888
    %v6892 = vsel %vm68, %v6884, 0
    %6894 = vmatprep.subr.mxu0 0.0
    %6895 = vmatpush1.msra.mxu0 0.0
    %6896 = vmatprep.subr.mxu0 0.0
    %6897 = vmatpush1.msra.mxu0 0.0
    %6898 = vmatprep.subr.mxu0 0.0
    %6899 = vmatpush1.msra.mxu0 0.0
    %6900 = vmatprep.subr.mxu0 0.0
    %6901 = vmatpush1.msra.mxu0 0.0
    %6902 = vmatprep.subr.mxu0 0.0
    %6903 = vmatpush1.msra.mxu0 0.0
    %6904 = vmatprep.subr.mxu0 0.0
    %6905 = vmatpush1.msra.mxu0 0.0
    %6906 = vmatprep.subr.mxu0 0.0
    %6907 = vmatpush1.msra.mxu0 0.0
    %6908 = vmatprep.subr.mxu0 0.0
    %6909 = vmatpush1.msra.mxu0 0.0
    %6910 = vmatprep.subr.mxu0 0.0
    %6911 = vmatpush1.msra.mxu0 0.0
    %6912 = vmatprep.subr.mxu0 0.0
    %6913 = vmatpush1.msra.mxu0 0.0
    %6914 = vmatprep.subr.mxu0 0.0
    %6915 = vmatpush1.msra.mxu0 0.0
    %6916 = vmatprep.subr.mxu0 0.0
    %6917 = vmatpush1.msra.mxu0 0.0
    %6918 = vmatprep.subr.mxu0 0.0
    %6919 = vmatpush1.msra.mxu0 0.0
    %6920 = vmatprep.subr.mxu0 0.0
    %6921 = vmatpush1.msra.mxu0 0.0
    %6922 = vmatprep.subr.mxu0 0.0
    %6923 = vmatpush1.msra.mxu0 0.0
    %6924 = vmatprep.subr.mxu0 0.0
    %6925 = vmatpush1.msra.mxu0 %v6889
    %6926 = vmatprep.subr.mxu0 0.0
    %6927 = vmatpush2.msra.mxu0 0.0
    %6928 = vmatprep.subr.mxu0 0.0
    %6929 = vmatpush2.msra.mxu0 0.0
    %6930 = vmatprep.subr.mxu0 0.0
    %6931 = vmatpush2.msra.mxu0 0.0
    %6932 = vmatprep.subr.mxu0 0.0
    %6933 = vmatpush2.msra.mxu0 0.0
    %6934 = vmatprep.subr.mxu0 0.0
    %6935 = vmatpush2.msra.mxu0 0.0
    %6936 = vmatprep.subr.mxu0 0.0
    %6937 = vmatpush2.msra.mxu0 0.0
    %6938 = vmatprep.subr.mxu0 0.0
    %6939 = vmatpush2.msra.mxu0 0.0
    %6940 = vmatprep.subr.mxu0 0.0
    %6941 = vmatpush2.msra.mxu0 0.0
    %6942 = vmatprep.subr.mxu0 0.0
    %6943 = vmatpush2.msra.mxu0 0.0
    %6944 = vmatprep.subr.mxu0 0.0
    %6945 = vmatpush2.msra.mxu0 0.0
    %6946 = vmatprep.subr.mxu0 0.0
    %6947 = vmatpush2.msra.mxu0 0.0
    %6948 = vmatprep.subr.mxu0 0.0
    %6949 = vmatpush2.msra.mxu0 0.0
    %6950 = vmatprep.subr.mxu0 0.0
    %6951 = vmatpush2.msra.mxu0 0.0
    %6952 = vmatprep.subr.mxu0 0.0
    %6953 = vmatpush2.msra.mxu0 0.0
    %6954 = vmatprep.subr.mxu0 0.0
    %6955 = vmatpush2.msra.mxu0 0.0
    %6956 = vmatprep.subr.mxu0 0.0
    %6957 = vmatpush2.msra.mxu0 0.0
    %6958 = vmatprep.mubr.f32.mxu0 0.0
    %6959 = vmatmul.mubr.f32.gmra.mxu0 %v6892
    %v6960 = vpop.f32.mrf.mxu0
    %v6961 = vadd.f32 0.0, %v6960
    %v6962 = vpop.f32.mrf.mxu0
    %6963 = vdwg.mxu0
    %v6964 = vadd.f32 %v6883, %v6961
    %v6965 = vmax.f32 %v6964, 0.0
    %v6966 = vld [vmem:[#allocation4] sm:$0xff]
    %v6967 = vadd.f32 %v6965, %v6966
    %s6968 = scalar_lea.vmem [#allocation5], 8
    %6969 = vst [vmem:[%s6968] sm:$0xff] %v6967
    // Predicated region
    $region30: #{tpu_custom_call.1} parent=1 // pred_check
      _
    $region31: #{tpu_custom_call.1} parent=1 // pred_check_branch
      %6971 = sbr.rel (0) target = $region33
    $region32: #{tpu_custom_call.1} parent=1 // pred_region
      %s6973 = ssub.s32 256, 256
      %6974 = vsyncadd [#allocation6], %s6973
      %s6975 = sshll.u32 [#allocation5], 4
      %s6976 = int_to_ptr.vmem [resolvable:$true] %s6975
      %6981 = dma.vmem_to_hbm [thread:$0]  %s6976, 256, %s7, [#allocation6], 128, 128, 8
    $region33: #{tpu_custom_call.1} parent=1 // pred_fallthru
      _
    // Predicated region
    $region34: #{tpu_custom_call.1} parent=1 // pred_check
      _
    $region35: #{tpu_custom_call.1} parent=1 // pred_check_branch
      %6983 = sbr.rel (0) target = $region37
    $region36: #{tpu_custom_call.1} parent=1 // pred_region
      %6984 = dma.done [#allocation6], 256
    $region37: #{tpu_custom_call.1} parent=1 // pred_fallthru
      _
    %6985 = vsyncpa [#allocation6], 1

</llo_original>
